<compile_context>
chip_gen: v6e
topology: v6e:2x2x1
jax: 0.10.0
libtpu: 0.0.40
codegen_flags: <defaults>
</compile_context>

<pallas_src>
import jax
import jax.numpy as jnp
from jax.experimental import pallas as pl
from jax.experimental.pallas import tpu as pltpu

# (kernel_size, stride) per CNNBlock, fixed by the module definition.
_SCHEDULE = ((8, 4), (8, 4), (4, 2), (4, 2))


# --------------------------- one-time param prep ---------------------------

def prepare_params(params):
    """Host-side, one-time:
      * Conv1d weight (C_out, C_in, K) -> (K, C_in, C_out) tap slices.
      * Eval BatchNorm1d of block i folded FORWARD into block i+1's conv:
          conv_w(scale*y + shift) = conv_{w*scale}(y) + sum_{k,ci} w[k,ci,co]*shift[ci]
        Only the final block keeps its BN (scale, shift) for in-kernel use.
    """
    eps = 1e-5
    prepped = {
        # nn.Linear weights stored pre-transposed: (in_features, out_features)
        "cw1": jnp.asarray(params["cond_w1"], jnp.float32),
        "cb1": jnp.asarray(params["cond_b1"], jnp.float32).reshape(1, -1),
        "cw2": jnp.asarray(params["cond_w2"], jnp.float32),
        "cb2": jnp.asarray(params["cond_b2"], jnp.float32).reshape(1, -1),
        "blocks": [],
    }
    prev_scale = None
    prev_shift = None
    n_blocks = len(params["blocks"])
    for idx, blk in enumerate(params["blocks"]):
        w = jnp.transpose(jnp.asarray(blk["w"], jnp.float32), (2, 1, 0))  # (K, C_in, C_out)
        b = jnp.asarray(blk["b"], jnp.float32)
        if prev_scale is not None:
            # Shift term uses the ORIGINAL (unscaled) weights.
            b = b + jnp.einsum("kio,i->o", w, prev_shift)
            w = w * prev_scale[None, :, None]
        scale = blk["gamma"] / jnp.sqrt(blk["var"] + eps)
        shift = blk["beta"] - blk["mean"] * scale
        entry = {"w": w, "b": b.reshape(1, -1)}
        if idx == n_blocks - 1:          # last BN cannot be folded forward
            entry["scale"] = scale.reshape(1, -1)
            entry["shift"] = shift.reshape(1, -1)
        prepped["blocks"].append(entry)
        prev_scale, prev_shift = scale, shift
    return prepped


# ------------------------------ fused forward ------------------------------

def cnn_classifier_forward(inp, mask, cond, prepped, *, b_tile=None):
    B, T, in_dim = inp.shape
    d = prepped["blocks"][0]["w"].shape[-1]          # d_decoder

    # Sequence-length schedule through the conv stack: L_out = (L - K)//S + 1.
    Ls = [T]
    for ksz, stride in _SCHEDULE:
        Ls.append((Ls[-1] - ksz) // stride + 1)
    L_final = Ls[-1]

    # Batch tiling: one grid step covers b_tile batch elements.
    if b_tile is None:
        b_tile = B if B <= 4 else 4
    assert B % b_tile == 0, "pad B to a multiple of b_tile"
    grid = (B // b_tile,)

    # Per-batch valid lengths from the (suffix/padding) mask -> SMEM via scalar
    # prefetch; `keep` is rebuilt in-kernel from an iota compare.
    lengths = jnp.sum(jnp.logical_not(mask), axis=-1).astype(jnp.int32)

    def kernel(len_ref, inp_ref, cond_ref,
               cw1_ref, cb1_ref, cw2_ref, cb2_ref,
               w0_ref, b0_ref, w1_ref, b1_ref, w2_ref, b2_ref, w3_ref, b3_ref,
               sc_ref, sh_ref, out_ref, s0, s1, s2, s3):
        g = pl.program_id(0)
        conv_w = (w0_ref, w1_ref, w2_ref, w3_ref)
        conv_b = (b0_ref, b1_ref, b2_ref, b3_ref)
        scratch = (s0, s1, s2, s3)
        # Hoisted out of the per-element loop (JAX does not CSE broadcasts).
        pos = jax.lax.broadcasted_iota(jnp.int32, (T, in_dim), 0)

        for bi in range(b_tile):
            # ---- Stage 0: cond_layer (Linear->LeakyReLU->Linear) + mask + add
            keep = (pos < len_ref[g * b_tile + bi]).astype(jnp.float32)
            c = jnp.dot(cond_ref[bi], cw1_ref[...],
                        preferred_element_type=jnp.float32) + cb1_ref[...]
            c = jnp.where(c >= 0.0, c, 0.01 * c)        # LeakyReLU (slope 0.01)
            c = jnp.dot(c, cw2_ref[...],
                        preferred_element_type=jnp.float32) + cb2_ref[...]
            # masked_fill_(inp) + masked_fill_(cond) + add == (inp + c) * keep
            s0[...] = (inp_ref[bi] + c) * keep

            # ---- Stages 1..4: Conv1d (strided taps, K accumulating dots)
            #      + bias + ReLU; BN of stages 1..3 is pre-folded into the
            #      next stage's weights, final BN applied on the last stage.
            for i, (ksz, stride) in enumerate(_SCHEDULE):
                l_out = Ls[i + 1]
                x_ref = scratch[i]
                wk_ref = conv_w[i]                       # (K, C_in, C_out)
                y = conv_b[i][...]                       # (1, C_out) broadcast
                for k in range(ksz):
                    tap = x_ref[pl.ds(k, l_out, stride=stride), :]  # (L_out, C_in)
                    y = y + jnp.dot(tap, wk_ref[k],
                                    preferred_element_type=jnp.float32)
                y = jnp.maximum(y, 0.0)                  # ReLU
                if i + 1 < len(_SCHEDULE):
                    scratch[i + 1][...] = y              # BN folded into next conv
                else:
                    out_ref[bi] = y * sc_ref[...] + sh_ref[...]   # final eval BN

    weight_args = [prepped["cw1"], prepped["cb1"], prepped["cw2"], prepped["cb2"]]
    for blk in prepped["blocks"]:
        weight_args += [blk["w"], blk["b"]]
    weight_args += [prepped["blocks"][-1]["scale"], prepped["blocks"][-1]["shift"]]

    def batched(shape):     # b_tile batch elements per grid step
        return pl.BlockSpec((b_tile,) + tuple(shape[1:]), lambda g, lens: (g, 0, 0))

    def replicated(arr):    # weights: same full block every grid step
        nd = arr.ndim

        def imap(g, lens):
            return (0,) * nd

        return pl.BlockSpec(tuple(arr.shape), imap)

    in_specs = ([batched(inp.shape), batched(cond.shape)]
                + [replicated(w) for w in weight_args])

    out = pl.pallas_call(
        kernel,
        out_shape=jax.ShapeDtypeStruct((B, L_final, d), jnp.float32),
        grid_spec=pltpu.PrefetchScalarGridSpec(
            num_scalar_prefetch=1,           # lengths -> SMEM
            grid=grid,
            in_specs=in_specs,
            out_specs=pl.BlockSpec((b_tile, L_final, d), lambda g, lens: (g, 0, 0)),
            scratch_shapes=[pltpu.VMEM((T, in_dim), jnp.float32)]
                         + [pltpu.VMEM((Ls[i + 1], d), jnp.float32)
                            for i in range(len(_SCHEDULE) - 1)],
        ),
        compiler_params=pltpu.CompilerParams(
            dimension_semantics=("parallel",)),   # shards batch tiles over TCs when grid > 1
    )(lengths, inp.astype(jnp.float32), cond.astype(jnp.float32), *weight_args)

    # Match PyTorch nn.Conv1d output layout (B, d_decoder, L_final).
    # In-kernel (L,d)->(d,L) transpose is marginal at d=16, L=2; kept host-side.
    return jnp.transpose(out, (0, 2, 1))


# ----------------------- deterministic parameters -----------------------

def init_params(key, in_dim, d_decoder, cond_dim):
    conv_cfg = [(in_dim, d_decoder), (d_decoder, d_decoder),
                (d_decoder, d_decoder), (d_decoder, d_decoder)]
    kernels = [8, 8, 4, 4]
    keys = iter(jax.random.split(key, 64))

    def nrm(shape, scale=0.1):
        return scale * jax.random.normal(next(keys), shape, jnp.float32)

    params = {
        "cond_w1": nrm((cond_dim, in_dim)),
        "cond_b1": nrm((in_dim,)),
        "cond_w2": nrm((in_dim, in_dim)),
        "cond_b2": nrm((in_dim,)),
        "blocks": [],
    }
    for (ci, co), ksz in zip(conv_cfg, kernels):
        params["blocks"].append({
            "w": nrm((co, ci, ksz)),                 # PyTorch Conv1d weight layout
            "b": nrm((co,)),
            "gamma": 1.0 + nrm((co,)),
            "beta": nrm((co,)),
            "mean": nrm((co,)),
            "var": 1.0 + jnp.abs(nrm((co,))),
        })
    return params


# ------------------------- pure-JAX reference ---------------------------

def reference_forward(inp, mask, cond, params):
    hp = jax.lax.Precision.HIGHEST
    keep = jnp.logical_not(mask).astype(jnp.float32)[:, None, :]      # (B,1,T)
    x = jnp.transpose(inp, (0, 2, 1)) * keep                          # (B,C,T)
    c = jnp.dot(cond, params["cond_w1"], precision=hp) + params["cond_b1"]
    c = jnp.where(c >= 0.0, c, 0.01 * c)
    c = jnp.dot(c, params["cond_w2"], precision=hp) + params["cond_b2"]
    c = jnp.transpose(c, (0, 2, 1)) * keep
    x = x + c
    eps = 1e-5
    for blk, (ksz, stride) in zip(params["blocks"], _SCHEDULE):
        y = jax.lax.conv_general_dilated(
            x, blk["w"], (stride,), "VALID",
            dimension_numbers=("NCH", "OIH", "NCH"), precision=hp)
        y = y + blk["b"][None, :, None]
        y = jnp.maximum(y, 0.0)
        scale = blk["gamma"] / jnp.sqrt(blk["var"] + eps)
        shift = blk["beta"] - blk["mean"] * scale
        x = y * scale[None, :, None] + shift[None, :, None]
    return x


# --------------------------------- main ----------------------------------

if __name__ == "__main__":
    B, T = 2, 256
    in_dim, d_decoder, cond_dim = 8, 16, 8

    key = jax.random.PRNGKey(0)
    k_inp, k_cond, k_par = jax.random.split(key, 3)
    inp = jax.random.normal(k_inp, (B, T, in_dim), jnp.float32)
    cond = jax.random.normal(k_cond, (B, T, cond_dim), jnp.float32)
    lengths = jnp.array([200, 256])
    mask = jnp.arange(T)[None, :] >= lengths[:, None]                 # (B,T) bool

    params = init_params(k_par, in_dim, d_decoder, cond_dim)
    prepped = prepare_params(params)          # one-time host-side prep (hoisted)

    forward = jax.jit(cnn_classifier_forward)
    out = jax.block_until_ready(forward(inp, mask, cond, prepped))

    # L: 256 -> 63 -> 14 -> 6 -> 2
    assert out.shape == (B, d_decoder, 2), out.shape

    ref = reference_forward(inp, mask, cond, params)
    err = float(jnp.max(jnp.abs(out - ref)))
    assert jnp.allclose(out, ref, rtol=2e-4, atol=2e-4), err

    print("KERNEL_OK")
</pallas_src>

<mosaic_0001>
module attributes {stable_mosaic.version = 11 : i64} {
  func.func @kernel(%arg0: i32, %arg1: memref<2xi32, #tpu.memory_space<smem>>, %arg2: memref<2x256x8xf32, #tpu.memory_space<vmem>>, %arg3: memref<2x256x8xf32, #tpu.memory_space<vmem>>, %arg4: memref<8x8xf32, #tpu.memory_space<vmem>>, %arg5: memref<1x8xf32, #tpu.memory_space<vmem>>, %arg6: memref<8x8xf32, #tpu.memory_space<vmem>>, %arg7: memref<1x8xf32, #tpu.memory_space<vmem>>, %arg8: memref<8x8x16xf32, #tpu.memory_space<vmem>>, %arg9: memref<1x16xf32, #tpu.memory_space<vmem>>, %arg10: memref<8x16x16xf32, #tpu.memory_space<vmem>>, %arg11: memref<1x16xf32, #tpu.memory_space<vmem>>, %arg12: memref<4x16x16xf32, #tpu.memory_space<vmem>>, %arg13: memref<1x16xf32, #tpu.memory_space<vmem>>, %arg14: memref<4x16x16xf32, #tpu.memory_space<vmem>>, %arg15: memref<1x16xf32, #tpu.memory_space<vmem>>, %arg16: memref<1x16xf32, #tpu.memory_space<vmem>>, %arg17: memref<1x16xf32, #tpu.memory_space<vmem>>, %arg18: memref<2x2x16xf32, #tpu.memory_space<vmem>>, %arg19: memref<256x8xf32, #tpu.memory_space<vmem>>, %arg20: memref<63x16xf32, #tpu.memory_space<vmem>>, %arg21: memref<14x16xf32, #tpu.memory_space<vmem>>, %arg22: memref<6x16xf32, #tpu.memory_space<vmem>>) attributes {dimension_semantics = [#tpu.dimension_semantics<parallel>], iteration_bounds = array<i64: 1>, scalar_prefetch = 1 : i64, scratch_operands = 4 : i64, tpu.core_type = #tpu.core_type<tc>, window_params = [{transform_indices = @transform_0, window_bounds = array<i64: 2, 256, 8>}, {transform_indices = @transform_1, window_bounds = array<i64: 2, 256, 8>}, {pipeline_mode = #tpu.pipeline_mode<synchronous>, transform_indices = @transform_2, window_bounds = array<i64: 8, 8>}, {pipeline_mode = #tpu.pipeline_mode<synchronous>, transform_indices = @transform_3, window_bounds = array<i64: 1, 8>}, {pipeline_mode = #tpu.pipeline_mode<synchronous>, transform_indices = @transform_4, window_bounds = array<i64: 8, 8>}, {pipeline_mode = #tpu.pipeline_mode<synchronous>, transform_indices = @transform_5, window_bounds = array<i64: 1, 8>}, {pipeline_mode = #tpu.pipeline_mode<synchronous>, transform_indices = @transform_6, window_bounds = array<i64: 8, 8, 16>}, {pipeline_mode = #tpu.pipeline_mode<synchronous>, transform_indices = @transform_7, window_bounds = array<i64: 1, 16>}, {pipeline_mode = #tpu.pipeline_mode<synchronous>, transform_indices = @transform_8, window_bounds = array<i64: 8, 16, 16>}, {pipeline_mode = #tpu.pipeline_mode<synchronous>, transform_indices = @transform_9, window_bounds = array<i64: 1, 16>}, {pipeline_mode = #tpu.pipeline_mode<synchronous>, transform_indices = @transform_10, window_bounds = array<i64: 4, 16, 16>}, {pipeline_mode = #tpu.pipeline_mode<synchronous>, transform_indices = @transform_11, window_bounds = array<i64: 1, 16>}, {pipeline_mode = #tpu.pipeline_mode<synchronous>, transform_indices = @transform_12, window_bounds = array<i64: 4, 16, 16>}, {pipeline_mode = #tpu.pipeline_mode<synchronous>, transform_indices = @transform_13, window_bounds = array<i64: 1, 16>}, {pipeline_mode = #tpu.pipeline_mode<synchronous>, transform_indices = @transform_14, window_bounds = array<i64: 1, 16>}, {pipeline_mode = #tpu.pipeline_mode<synchronous>, transform_indices = @transform_15, window_bounds = array<i64: 1, 16>}, {transform_indices = @transform_16, window_bounds = array<i64: 2, 2, 16>}]} {
    %0 = tpu.iota {dimensions = array<i32: 0>} : vector<256x8xi32>
    %c2_i32 = arith.constant 2 : i32
    %1 = arith.muli %arg0, %c2_i32 : i32
    %c0_i32 = arith.constant 0 : i32
    %2 = arith.addi %1, %c0_i32 : i32
    %3 = arith.index_cast %2 : i32 to index
    %4 = memref.load %arg1[%3] : memref<2xi32, #tpu.memory_space<smem>>
    %5 = vector.broadcast %4 : i32 to vector<256x8xi32>
    %6 = arith.cmpi slt, %0, %5 : vector<256x8xi32>
    %7 = arith.extui %6 : vector<256x8xi1> to vector<256x8xi32>
    %8 = arith.sitofp %7 : vector<256x8xi32> to vector<256x8xf32>
    %c0 = arith.constant 0 : index
    %c0_0 = arith.constant 0 : index
    %c0_1 = arith.constant 0 : index
    %9 = vector.load %arg3[%c0, %c0_0, %c0_1] : memref<2x256x8xf32, #tpu.memory_space<vmem>>, vector<1x256x8xf32>
    %10 = vector.shape_cast %9 : vector<1x256x8xf32> to vector<256x8xf32>
    %c0_2 = arith.constant 0 : index
    %c0_3 = arith.constant 0 : index
    %11 = vector.load %arg4[%c0_2, %c0_3] : memref<8x8xf32, #tpu.memory_space<vmem>>, vector<8x8xf32>
    %cst = arith.constant dense<0.000000e+00> : vector<256x8xf32>
    %12 = tpu.matmul %10, %11, %cst {dimension_numbers = #tpu.dot_dimension_numbers<[1], [0], [0], [1], [0, 0, 1, 1], [], []>} : vector<256x8xf32>, vector<8x8xf32>, vector<256x8xf32> -> vector<256x8xf32>
    %c0_4 = arith.constant 0 : index
    %c0_5 = arith.constant 0 : index
    %13 = vector.load %arg5[%c0_4, %c0_5] : memref<1x8xf32, #tpu.memory_space<vmem>>, vector<1x8xf32>
    %14 = vector.broadcast %13 : vector<1x8xf32> to vector<256x8xf32>
    %15 = arith.addf %12, %14 : vector<256x8xf32>
    %cst_6 = arith.constant 0.000000e+00 : f32
    %16 = vector.broadcast %cst_6 : f32 to vector<256x8xf32>
    %17 = arith.cmpf oge, %15, %16 : vector<256x8xf32>
    %cst_7 = arith.constant 0.00999999977 : f32
    %18 = vector.broadcast %cst_7 : f32 to vector<256x8xf32>
    %19 = arith.mulf %18, %15 : vector<256x8xf32>
    %20 = arith.select %17, %15, %19 : vector<256x8xi1>, vector<256x8xf32>
    %c0_8 = arith.constant 0 : index
    %c0_9 = arith.constant 0 : index
    %21 = vector.load %arg6[%c0_8, %c0_9] : memref<8x8xf32, #tpu.memory_space<vmem>>, vector<8x8xf32>
    %cst_10 = arith.constant dense<0.000000e+00> : vector<256x8xf32>
    %22 = tpu.matmul %20, %21, %cst_10 {dimension_numbers = #tpu.dot_dimension_numbers<[1], [0], [0], [1], [0, 0, 1, 1], [], []>} : vector<256x8xf32>, vector<8x8xf32>, vector<256x8xf32> -> vector<256x8xf32>
    %c0_11 = arith.constant 0 : index
    %c0_12 = arith.constant 0 : index
    %23 = vector.load %arg7[%c0_11, %c0_12] : memref<1x8xf32, #tpu.memory_space<vmem>>, vector<1x8xf32>
    %24 = vector.broadcast %23 : vector<1x8xf32> to vector<256x8xf32>
    %25 = arith.addf %22, %24 : vector<256x8xf32>
    %c0_13 = arith.constant 0 : index
    %c0_14 = arith.constant 0 : index
    %c0_15 = arith.constant 0 : index
    %26 = vector.load %arg2[%c0_13, %c0_14, %c0_15] : memref<2x256x8xf32, #tpu.memory_space<vmem>>, vector<1x256x8xf32>
    %27 = vector.shape_cast %26 : vector<1x256x8xf32> to vector<256x8xf32>
    %28 = arith.addf %27, %25 : vector<256x8xf32>
    %29 = arith.mulf %28, %8 : vector<256x8xf32>
    %c0_16 = arith.constant 0 : index
    %c0_17 = arith.constant 0 : index
    %30 = vector.load %arg19[%c0_16, %c0_17] : memref<256x8xf32, #tpu.memory_space<vmem>>, vector<256x8xf32>
    tpu.vector_store %arg19[%c0_16, %c0_17], %29 {strides = array<i32>} : memref<256x8xf32, #tpu.memory_space<vmem>>, vector<256x8xf32>,
    %c0_18 = arith.constant 0 : index
    %c0_19 = arith.constant 0 : index
    %31 = vector.load %arg9[%c0_18, %c0_19] : memref<1x16xf32, #tpu.memory_space<vmem>>, vector<1x16xf32>
    %c0_20 = arith.constant 0 : index
    %c0_21 = arith.constant 0 : index
    %32 = tpu.strided_load %arg19[%c0_20, %c0_21] {strides = array<i32: 4, 1>} : memref<256x8xf32, #tpu.memory_space<vmem>>, vector<63x8xf32>
    %c0_22 = arith.constant 0 : index
    %c0_23 = arith.constant 0 : index
    %c0_24 = arith.constant 0 : index
    %33 = vector.load %arg8[%c0_22, %c0_23, %c0_24] : memref<8x8x16xf32, #tpu.memory_space<vmem>>, vector<1x8x16xf32>
    %34 = vector.shape_cast %33 : vector<1x8x16xf32> to vector<8x16xf32>
    %cst_25 = arith.constant dense<0.000000e+00> : vector<63x16xf32>
    %35 = tpu.matmul %32, %34, %cst_25 {dimension_numbers = #tpu.dot_dimension_numbers<[1], [0], [0], [1], [0, 0, 1, 1], [], []>} : vector<63x8xf32>, vector<8x16xf32>, vector<63x16xf32> -> vector<63x16xf32>
    %36 = vector.broadcast %31 : vector<1x16xf32> to vector<63x16xf32>
    %37 = arith.addf %36, %35 : vector<63x16xf32>
    %c1 = arith.constant 1 : index
    %c0_26 = arith.constant 0 : index
    %38 = tpu.strided_load %arg19[%c1, %c0_26] {strides = array<i32: 4, 1>} : memref<256x8xf32, #tpu.memory_space<vmem>>, vector<63x8xf32>
    %c1_27 = arith.constant 1 : index
    %c0_28 = arith.constant 0 : index
    %c0_29 = arith.constant 0 : index
    %39 = vector.load %arg8[%c1_27, %c0_28, %c0_29] : memref<8x8x16xf32, #tpu.memory_space<vmem>>, vector<1x8x16xf32>
    %40 = vector.shape_cast %39 : vector<1x8x16xf32> to vector<8x16xf32>
    %cst_30 = arith.constant dense<0.000000e+00> : vector<63x16xf32>
    %41 = tpu.matmul %38, %40, %cst_30 {dimension_numbers = #tpu.dot_dimension_numbers<[1], [0], [0], [1], [0, 0, 1, 1], [], []>} : vector<63x8xf32>, vector<8x16xf32>, vector<63x16xf32> -> vector<63x16xf32>
    %42 = arith.addf %37, %41 : vector<63x16xf32>
    %c2 = arith.constant 2 : index
    %c0_31 = arith.constant 0 : index
    %43 = tpu.strided_load %arg19[%c2, %c0_31] {strides = array<i32: 4, 1>} : memref<256x8xf32, #tpu.memory_space<vmem>>, vector<63x8xf32>
    %c2_32 = arith.constant 2 : index
    %c0_33 = arith.constant 0 : index
    %c0_34 = arith.constant 0 : index
    %44 = vector.load %arg8[%c2_32, %c0_33, %c0_34] : memref<8x8x16xf32, #tpu.memory_space<vmem>>, vector<1x8x16xf32>
    %45 = vector.shape_cast %44 : vector<1x8x16xf32> to vector<8x16xf32>
    %cst_35 = arith.constant dense<0.000000e+00> : vector<63x16xf32>
    %46 = tpu.matmul %43, %45, %cst_35 {dimension_numbers = #tpu.dot_dimension_numbers<[1], [0], [0], [1], [0, 0, 1, 1], [], []>} : vector<63x8xf32>, vector<8x16xf32>, vector<63x16xf32> -> vector<63x16xf32>
    %47 = arith.addf %42, %46 : vector<63x16xf32>
    %c3 = arith.constant 3 : index
    %c0_36 = arith.constant 0 : index
    %48 = tpu.strided_load %arg19[%c3, %c0_36] {strides = array<i32: 4, 1>} : memref<256x8xf32, #tpu.memory_space<vmem>>, vector<63x8xf32>
    %c3_37 = arith.constant 3 : index
    %c0_38 = arith.constant 0 : index
    %c0_39 = arith.constant 0 : index
    %49 = vector.load %arg8[%c3_37, %c0_38, %c0_39] : memref<8x8x16xf32, #tpu.memory_space<vmem>>, vector<1x8x16xf32>
    %50 = vector.shape_cast %49 : vector<1x8x16xf32> to vector<8x16xf32>
    %cst_40 = arith.constant dense<0.000000e+00> : vector<63x16xf32>
    %51 = tpu.matmul %48, %50, %cst_40 {dimension_numbers = #tpu.dot_dimension_numbers<[1], [0], [0], [1], [0, 0, 1, 1], [], []>} : vector<63x8xf32>, vector<8x16xf32>, vector<63x16xf32> -> vector<63x16xf32>
    %52 = arith.addf %47, %51 : vector<63x16xf32>
    %c4 = arith.constant 4 : index
    %c0_41 = arith.constant 0 : index
    %53 = tpu.strided_load %arg19[%c4, %c0_41] {strides = array<i32: 4, 1>} : memref<256x8xf32, #tpu.memory_space<vmem>>, vector<63x8xf32>
    %c4_42 = arith.constant 4 : index
    %c0_43 = arith.constant 0 : index
    %c0_44 = arith.constant 0 : index
    %54 = vector.load %arg8[%c4_42, %c0_43, %c0_44] : memref<8x8x16xf32, #tpu.memory_space<vmem>>, vector<1x8x16xf32>
    %55 = vector.shape_cast %54 : vector<1x8x16xf32> to vector<8x16xf32>
    %cst_45 = arith.constant dense<0.000000e+00> : vector<63x16xf32>
    %56 = tpu.matmul %53, %55, %cst_45 {dimension_numbers = #tpu.dot_dimension_numbers<[1], [0], [0], [1], [0, 0, 1, 1], [], []>} : vector<63x8xf32>, vector<8x16xf32>, vector<63x16xf32> -> vector<63x16xf32>
    %57 = arith.addf %52, %56 : vector<63x16xf32>
    %c5 = arith.constant 5 : index
    %c0_46 = arith.constant 0 : index
    %58 = tpu.strided_load %arg19[%c5, %c0_46] {strides = array<i32: 4, 1>} : memref<256x8xf32, #tpu.memory_space<vmem>>, vector<63x8xf32>
    %c5_47 = arith.constant 5 : index
    %c0_48 = arith.constant 0 : index
    %c0_49 = arith.constant 0 : index
    %59 = vector.load %arg8[%c5_47, %c0_48, %c0_49] : memref<8x8x16xf32, #tpu.memory_space<vmem>>, vector<1x8x16xf32>
    %60 = vector.shape_cast %59 : vector<1x8x16xf32> to vector<8x16xf32>
    %cst_50 = arith.constant dense<0.000000e+00> : vector<63x16xf32>
    %61 = tpu.matmul %58, %60, %cst_50 {dimension_numbers = #tpu.dot_dimension_numbers<[1], [0], [0], [1], [0, 0, 1, 1], [], []>} : vector<63x8xf32>, vector<8x16xf32>, vector<63x16xf32> -> vector<63x16xf32>
    %62 = arith.addf %57, %61 : vector<63x16xf32>
    %c6 = arith.constant 6 : index
    %c0_51 = arith.constant 0 : index
    %63 = tpu.strided_load %arg19[%c6, %c0_51] {strides = array<i32: 4, 1>} : memref<256x8xf32, #tpu.memory_space<vmem>>, vector<63x8xf32>
    %c6_52 = arith.constant 6 : index
    %c0_53 = arith.constant 0 : index
    %c0_54 = arith.constant 0 : index
    %64 = vector.load %arg8[%c6_52, %c0_53, %c0_54] : memref<8x8x16xf32, #tpu.memory_space<vmem>>, vector<1x8x16xf32>
    %65 = vector.shape_cast %64 : vector<1x8x16xf32> to vector<8x16xf32>
    %cst_55 = arith.constant dense<0.000000e+00> : vector<63x16xf32>
    %66 = tpu.matmul %63, %65, %cst_55 {dimension_numbers = #tpu.dot_dimension_numbers<[1], [0], [0], [1], [0, 0, 1, 1], [], []>} : vector<63x8xf32>, vector<8x16xf32>, vector<63x16xf32> -> vector<63x16xf32>
    %67 = arith.addf %62, %66 : vector<63x16xf32>
    %c7 = arith.constant 7 : index
    %c0_56 = arith.constant 0 : index
    %68 = tpu.strided_load %arg19[%c7, %c0_56] {strides = array<i32: 4, 1>} : memref<256x8xf32, #tpu.memory_space<vmem>>, vector<63x8xf32>
    %c7_57 = arith.constant 7 : index
    %c0_58 = arith.constant 0 : index
    %c0_59 = arith.constant 0 : index
    %69 = vector.load %arg8[%c7_57, %c0_58, %c0_59] : memref<8x8x16xf32, #tpu.memory_space<vmem>>, vector<1x8x16xf32>
    %70 = vector.shape_cast %69 : vector<1x8x16xf32> to vector<8x16xf32>
    %cst_60 = arith.constant dense<0.000000e+00> : vector<63x16xf32>
    %71 = tpu.matmul %68, %70, %cst_60 {dimension_numbers = #tpu.dot_dimension_numbers<[1], [0], [0], [1], [0, 0, 1, 1], [], []>} : vector<63x8xf32>, vector<8x16xf32>, vector<63x16xf32> -> vector<63x16xf32>
    %72 = arith.addf %67, %71 : vector<63x16xf32>
    %cst_61 = arith.constant 0.000000e+00 : f32
    %73 = vector.broadcast %cst_61 : f32 to vector<63x16xf32>
    %74 = arith.maximumf %72, %73 : vector<63x16xf32>
    %c0_62 = arith.constant 0 : index
    %c0_63 = arith.constant 0 : index
    %75 = vector.load %arg20[%c0_62, %c0_63] : memref<63x16xf32, #tpu.memory_space<vmem>>, vector<63x16xf32>
    tpu.vector_store %arg20[%c0_62, %c0_63], %74 {strides = array<i32>} : memref<63x16xf32, #tpu.memory_space<vmem>>, vector<63x16xf32>,
    %c0_64 = arith.constant 0 : index
    %c0_65 = arith.constant 0 : index
    %76 = vector.load %arg11[%c0_64, %c0_65] : memref<1x16xf32, #tpu.memory_space<vmem>>, vector<1x16xf32>
    %c0_66 = arith.constant 0 : index
    %c0_67 = arith.constant 0 : index
    %77 = tpu.strided_load %arg20[%c0_66, %c0_67] {strides = array<i32: 4, 1>} : memref<63x16xf32, #tpu.memory_space<vmem>>, vector<14x16xf32>
    %c0_68 = arith.constant 0 : index
    %c0_69 = arith.constant 0 : index
    %c0_70 = arith.constant 0 : index
    %78 = vector.load %arg10[%c0_68, %c0_69, %c0_70] : memref<8x16x16xf32, #tpu.memory_space<vmem>>, vector<1x16x16xf32>
    %79 = vector.shape_cast %78 : vector<1x16x16xf32> to vector<16x16xf32>
    %cst_71 = arith.constant dense<0.000000e+00> : vector<14x16xf32>
    %80 = tpu.matmul %77, %79, %cst_71 {dimension_numbers = #tpu.dot_dimension_numbers<[1], [0], [0], [1], [0, 0, 1, 1], [], []>} : vector<14x16xf32>, vector<16x16xf32>, vector<14x16xf32> -> vector<14x16xf32>
    %81 = vector.broadcast %76 : vector<1x16xf32> to vector<14x16xf32>
    %82 = arith.addf %81, %80 : vector<14x16xf32>
    %c1_72 = arith.constant 1 : index
    %c0_73 = arith.constant 0 : index
    %83 = tpu.strided_load %arg20[%c1_72, %c0_73] {strides = array<i32: 4, 1>} : memref<63x16xf32, #tpu.memory_space<vmem>>, vector<14x16xf32>
    %c1_74 = arith.constant 1 : index
    %c0_75 = arith.constant 0 : index
    %c0_76 = arith.constant 0 : index
    %84 = vector.load %arg10[%c1_74, %c0_75, %c0_76] : memref<8x16x16xf32, #tpu.memory_space<vmem>>, vector<1x16x16xf32>
    %85 = vector.shape_cast %84 : vector<1x16x16xf32> to vector<16x16xf32>
    %cst_77 = arith.constant dense<0.000000e+00> : vector<14x16xf32>
    %86 = tpu.matmul %83, %85, %cst_77 {dimension_numbers = #tpu.dot_dimension_numbers<[1], [0], [0], [1], [0, 0, 1, 1], [], []>} : vector<14x16xf32>, vector<16x16xf32>, vector<14x16xf32> -> vector<14x16xf32>
    %87 = arith.addf %82, %86 : vector<14x16xf32>
    %c2_78 = arith.constant 2 : index
    %c0_79 = arith.constant 0 : index
    %88 = tpu.strided_load %arg20[%c2_78, %c0_79] {strides = array<i32: 4, 1>} : memref<63x16xf32, #tpu.memory_space<vmem>>, vector<14x16xf32>
    %c2_80 = arith.constant 2 : index
    %c0_81 = arith.constant 0 : index
    %c0_82 = arith.constant 0 : index
    %89 = vector.load %arg10[%c2_80, %c0_81, %c0_82] : memref<8x16x16xf32, #tpu.memory_space<vmem>>, vector<1x16x16xf32>
    %90 = vector.shape_cast %89 : vector<1x16x16xf32> to vector<16x16xf32>
    %cst_83 = arith.constant dense<0.000000e+00> : vector<14x16xf32>
    %91 = tpu.matmul %88, %90, %cst_83 {dimension_numbers = #tpu.dot_dimension_numbers<[1], [0], [0], [1], [0, 0, 1, 1], [], []>} : vector<14x16xf32>, vector<16x16xf32>, vector<14x16xf32> -> vector<14x16xf32>
    %92 = arith.addf %87, %91 : vector<14x16xf32>
    %c3_84 = arith.constant 3 : index
    %c0_85 = arith.constant 0 : index
    %93 = tpu.strided_load %arg20[%c3_84, %c0_85] {strides = array<i32: 4, 1>} : memref<63x16xf32, #tpu.memory_space<vmem>>, vector<14x16xf32>
    %c3_86 = arith.constant 3 : index
    %c0_87 = arith.constant 0 : index
    %c0_88 = arith.constant 0 : index
    %94 = vector.load %arg10[%c3_86, %c0_87, %c0_88] : memref<8x16x16xf32, #tpu.memory_space<vmem>>, vector<1x16x16xf32>
    %95 = vector.shape_cast %94 : vector<1x16x16xf32> to vector<16x16xf32>
    %cst_89 = arith.constant dense<0.000000e+00> : vector<14x16xf32>
    %96 = tpu.matmul %93, %95, %cst_89 {dimension_numbers = #tpu.dot_dimension_numbers<[1], [0], [0], [1], [0, 0, 1, 1], [], []>} : vector<14x16xf32>, vector<16x16xf32>, vector<14x16xf32> -> vector<14x16xf32>
    %97 = arith.addf %92, %96 : vector<14x16xf32>
    %c4_90 = arith.constant 4 : index
    %c0_91 = arith.constant 0 : index
    %98 = tpu.strided_load %arg20[%c4_90, %c0_91] {strides = array<i32: 4, 1>} : memref<63x16xf32, #tpu.memory_space<vmem>>, vector<14x16xf32>
    %c4_92 = arith.constant 4 : index
    %c0_93 = arith.constant 0 : index
    %c0_94 = arith.constant 0 : index
    %99 = vector.load %arg10[%c4_92, %c0_93, %c0_94] : memref<8x16x16xf32, #tpu.memory_space<vmem>>, vector<1x16x16xf32>
    %100 = vector.shape_cast %99 : vector<1x16x16xf32> to vector<16x16xf32>
    %cst_95 = arith.constant dense<0.000000e+00> : vector<14x16xf32>
    %101 = tpu.matmul %98, %100, %cst_95 {dimension_numbers = #tpu.dot_dimension_numbers<[1], [0], [0], [1], [0, 0, 1, 1], [], []>} : vector<14x16xf32>, vector<16x16xf32>, vector<14x16xf32> -> vector<14x16xf32>
    %102 = arith.addf %97, %101 : vector<14x16xf32>
    %c5_96 = arith.constant 5 : index
    %c0_97 = arith.constant 0 : index
    %103 = tpu.strided_load %arg20[%c5_96, %c0_97] {strides = array<i32: 4, 1>} : memref<63x16xf32, #tpu.memory_space<vmem>>, vector<14x16xf32>
    %c5_98 = arith.constant 5 : index
    %c0_99 = arith.constant 0 : index
    %c0_100 = arith.constant 0 : index
    %104 = vector.load %arg10[%c5_98, %c0_99, %c0_100] : memref<8x16x16xf32, #tpu.memory_space<vmem>>, vector<1x16x16xf32>
    %105 = vector.shape_cast %104 : vector<1x16x16xf32> to vector<16x16xf32>
    %cst_101 = arith.constant dense<0.000000e+00> : vector<14x16xf32>
    %106 = tpu.matmul %103, %105, %cst_101 {dimension_numbers = #tpu.dot_dimension_numbers<[1], [0], [0], [1], [0, 0, 1, 1], [], []>} : vector<14x16xf32>, vector<16x16xf32>, vector<14x16xf32> -> vector<14x16xf32>
    %107 = arith.addf %102, %106 : vector<14x16xf32>
    %c6_102 = arith.constant 6 : index
    %c0_103 = arith.constant 0 : index
    %108 = tpu.strided_load %arg20[%c6_102, %c0_103] {strides = array<i32: 4, 1>} : memref<63x16xf32, #tpu.memory_space<vmem>>, vector<14x16xf32>
    %c6_104 = arith.constant 6 : index
    %c0_105 = arith.constant 0 : index
    %c0_106 = arith.constant 0 : index
    %109 = vector.load %arg10[%c6_104, %c0_105, %c0_106] : memref<8x16x16xf32, #tpu.memory_space<vmem>>, vector<1x16x16xf32>
    %110 = vector.shape_cast %109 : vector<1x16x16xf32> to vector<16x16xf32>
    %cst_107 = arith.constant dense<0.000000e+00> : vector<14x16xf32>
    %111 = tpu.matmul %108, %110, %cst_107 {dimension_numbers = #tpu.dot_dimension_numbers<[1], [0], [0], [1], [0, 0, 1, 1], [], []>} : vector<14x16xf32>, vector<16x16xf32>, vector<14x16xf32> -> vector<14x16xf32>
    %112 = arith.addf %107, %111 : vector<14x16xf32>
    %c7_108 = arith.constant 7 : index
    %c0_109 = arith.constant 0 : index
    %113 = tpu.strided_load %arg20[%c7_108, %c0_109] {strides = array<i32: 4, 1>} : memref<63x16xf32, #tpu.memory_space<vmem>>, vector<14x16xf32>
    %c7_110 = arith.constant 7 : index
    %c0_111 = arith.constant 0 : index
    %c0_112 = arith.constant 0 : index
    %114 = vector.load %arg10[%c7_110, %c0_111, %c0_112] : memref<8x16x16xf32, #tpu.memory_space<vmem>>, vector<1x16x16xf32>
    %115 = vector.shape_cast %114 : vector<1x16x16xf32> to vector<16x16xf32>
    %cst_113 = arith.constant dense<0.000000e+00> : vector<14x16xf32>
    %116 = tpu.matmul %113, %115, %cst_113 {dimension_numbers = #tpu.dot_dimension_numbers<[1], [0], [0], [1], [0, 0, 1, 1], [], []>} : vector<14x16xf32>, vector<16x16xf32>, vector<14x16xf32> -> vector<14x16xf32>
    %117 = arith.addf %112, %116 : vector<14x16xf32>
    %cst_114 = arith.constant 0.000000e+00 : f32
    %118 = vector.broadcast %cst_114 : f32 to vector<14x16xf32>
    %119 = arith.maximumf %117, %118 : vector<14x16xf32>
    %c0_115 = arith.constant 0 : index
    %c0_116 = arith.constant 0 : index
    %120 = vector.load %arg21[%c0_115, %c0_116] : memref<14x16xf32, #tpu.memory_space<vmem>>, vector<14x16xf32>
    tpu.vector_store %arg21[%c0_115, %c0_116], %119 {strides = array<i32>} : memref<14x16xf32, #tpu.memory_space<vmem>>, vector<14x16xf32>,
    %c0_117 = arith.constant 0 : index
    %c0_118 = arith.constant 0 : index
    %121 = vector.load %arg13[%c0_117, %c0_118] : memref<1x16xf32, #tpu.memory_space<vmem>>, vector<1x16xf32>
    %c0_119 = arith.constant 0 : index
    %c0_120 = arith.constant 0 : index
    %122 = tpu.strided_load %arg21[%c0_119, %c0_120] {strides = array<i32: 2, 1>} : memref<14x16xf32, #tpu.memory_space<vmem>>, vector<6x16xf32>
    %c0_121 = arith.constant 0 : index
    %c0_122 = arith.constant 0 : index
    %c0_123 = arith.constant 0 : index
    %123 = vector.load %arg12[%c0_121, %c0_122, %c0_123] : memref<4x16x16xf32, #tpu.memory_space<vmem>>, vector<1x16x16xf32>
    %124 = vector.shape_cast %123 : vector<1x16x16xf32> to vector<16x16xf32>
    %cst_124 = arith.constant dense<0.000000e+00> : vector<6x16xf32>
    %125 = tpu.matmul %122, %124, %cst_124 {dimension_numbers = #tpu.dot_dimension_numbers<[1], [0], [0], [1], [0, 0, 1, 1], [], []>} : vector<6x16xf32>, vector<16x16xf32>, vector<6x16xf32> -> vector<6x16xf32>
    %126 = vector.broadcast %121 : vector<1x16xf32> to vector<6x16xf32>
    %127 = arith.addf %126, %125 : vector<6x16xf32>
    %c1_125 = arith.constant 1 : index
    %c0_126 = arith.constant 0 : index
    %128 = tpu.strided_load %arg21[%c1_125, %c0_126] {strides = array<i32: 2, 1>} : memref<14x16xf32, #tpu.memory_space<vmem>>, vector<6x16xf32>
    %c1_127 = arith.constant 1 : index
    %c0_128 = arith.constant 0 : index
    %c0_129 = arith.constant 0 : index
    %129 = vector.load %arg12[%c1_127, %c0_128, %c0_129] : memref<4x16x16xf32, #tpu.memory_space<vmem>>, vector<1x16x16xf32>
    %130 = vector.shape_cast %129 : vector<1x16x16xf32> to vector<16x16xf32>
    %cst_130 = arith.constant dense<0.000000e+00> : vector<6x16xf32>
    %131 = tpu.matmul %128, %130, %cst_130 {dimension_numbers = #tpu.dot_dimension_numbers<[1], [0], [0], [1], [0, 0, 1, 1], [], []>} : vector<6x16xf32>, vector<16x16xf32>, vector<6x16xf32> -> vector<6x16xf32>
    %132 = arith.addf %127, %131 : vector<6x16xf32>
    %c2_131 = arith.constant 2 : index
    %c0_132 = arith.constant 0 : index
    %133 = tpu.strided_load %arg21[%c2_131, %c0_132] {strides = array<i32: 2, 1>} : memref<14x16xf32, #tpu.memory_space<vmem>>, vector<6x16xf32>
    %c2_133 = arith.constant 2 : index
    %c0_134 = arith.constant 0 : index
    %c0_135 = arith.constant 0 : index
    %134 = vector.load %arg12[%c2_133, %c0_134, %c0_135] : memref<4x16x16xf32, #tpu.memory_space<vmem>>, vector<1x16x16xf32>
    %135 = vector.shape_cast %134 : vector<1x16x16xf32> to vector<16x16xf32>
    %cst_136 = arith.constant dense<0.000000e+00> : vector<6x16xf32>
    %136 = tpu.matmul %133, %135, %cst_136 {dimension_numbers = #tpu.dot_dimension_numbers<[1], [0], [0], [1], [0, 0, 1, 1], [], []>} : vector<6x16xf32>, vector<16x16xf32>, vector<6x16xf32> -> vector<6x16xf32>
    %137 = arith.addf %132, %136 : vector<6x16xf32>
    %c3_137 = arith.constant 3 : index
    %c0_138 = arith.constant 0 : index
    %138 = tpu.strided_load %arg21[%c3_137, %c0_138] {strides = array<i32: 2, 1>} : memref<14x16xf32, #tpu.memory_space<vmem>>, vector<6x16xf32>
    %c3_139 = arith.constant 3 : index
    %c0_140 = arith.constant 0 : index
    %c0_141 = arith.constant 0 : index
    %139 = vector.load %arg12[%c3_139, %c0_140, %c0_141] : memref<4x16x16xf32, #tpu.memory_space<vmem>>, vector<1x16x16xf32>
    %140 = vector.shape_cast %139 : vector<1x16x16xf32> to vector<16x16xf32>
    %cst_142 = arith.constant dense<0.000000e+00> : vector<6x16xf32>
    %141 = tpu.matmul %138, %140, %cst_142 {dimension_numbers = #tpu.dot_dimension_numbers<[1], [0], [0], [1], [0, 0, 1, 1], [], []>} : vector<6x16xf32>, vector<16x16xf32>, vector<6x16xf32> -> vector<6x16xf32>
    %142 = arith.addf %137, %141 : vector<6x16xf32>
    %cst_143 = arith.constant 0.000000e+00 : f32
    %143 = vector.broadcast %cst_143 : f32 to vector<6x16xf32>
    %144 = arith.maximumf %142, %143 : vector<6x16xf32>
    %c0_144 = arith.constant 0 : index
    %c0_145 = arith.constant 0 : index
    %145 = vector.load %arg22[%c0_144, %c0_145] : memref<6x16xf32, #tpu.memory_space<vmem>>, vector<6x16xf32>
    tpu.vector_store %arg22[%c0_144, %c0_145], %144 {strides = array<i32>} : memref<6x16xf32, #tpu.memory_space<vmem>>, vector<6x16xf32>,
    %c0_146 = arith.constant 0 : index
    %c0_147 = arith.constant 0 : index
    %146 = vector.load %arg15[%c0_146, %c0_147] : memref<1x16xf32, #tpu.memory_space<vmem>>, vector<1x16xf32>
    %c0_148 = arith.constant 0 : index
    %c0_149 = arith.constant 0 : index
    %147 = tpu.strided_load %arg22[%c0_148, %c0_149] {strides = array<i32: 2, 1>} : memref<6x16xf32, #tpu.memory_space<vmem>>, vector<2x16xf32>
    %c0_150 = arith.constant 0 : index
    %c0_151 = arith.constant 0 : index
    %c0_152 = arith.constant 0 : index
    %148 = vector.load %arg14[%c0_150, %c0_151, %c0_152] : memref<4x16x16xf32, #tpu.memory_space<vmem>>, vector<1x16x16xf32>
    %149 = vector.shape_cast %148 : vector<1x16x16xf32> to vector<16x16xf32>
    %cst_153 = arith.constant dense<0.000000e+00> : vector<2x16xf32>
    %150 = tpu.matmul %147, %149, %cst_153 {dimension_numbers = #tpu.dot_dimension_numbers<[1], [0], [0], [1], [0, 0, 1, 1], [], []>} : vector<2x16xf32>, vector<16x16xf32>, vector<2x16xf32> -> vector<2x16xf32>
    %151 = vector.broadcast %146 : vector<1x16xf32> to vector<2x16xf32>
    %152 = arith.addf %151, %150 : vector<2x16xf32>
    %c1_154 = arith.constant 1 : index
    %c0_155 = arith.constant 0 : index
    %153 = tpu.strided_load %arg22[%c1_154, %c0_155] {strides = array<i32: 2, 1>} : memref<6x16xf32, #tpu.memory_space<vmem>>, vector<2x16xf32>
    %c1_156 = arith.constant 1 : index
    %c0_157 = arith.constant 0 : index
    %c0_158 = arith.constant 0 : index
    %154 = vector.load %arg14[%c1_156, %c0_157, %c0_158] : memref<4x16x16xf32, #tpu.memory_space<vmem>>, vector<1x16x16xf32>
    %155 = vector.shape_cast %154 : vector<1x16x16xf32> to vector<16x16xf32>
    %cst_159 = arith.constant dense<0.000000e+00> : vector<2x16xf32>
    %156 = tpu.matmul %153, %155, %cst_159 {dimension_numbers = #tpu.dot_dimension_numbers<[1], [0], [0], [1], [0, 0, 1, 1], [], []>} : vector<2x16xf32>, vector<16x16xf32>, vector<2x16xf32> -> vector<2x16xf32>
    %157 = arith.addf %152, %156 : vector<2x16xf32>
    %c2_160 = arith.constant 2 : index
    %c0_161 = arith.constant 0 : index
    %158 = tpu.strided_load %arg22[%c2_160, %c0_161] {strides = array<i32: 2, 1>} : memref<6x16xf32, #tpu.memory_space<vmem>>, vector<2x16xf32>
    %c2_162 = arith.constant 2 : index
    %c0_163 = arith.constant 0 : index
    %c0_164 = arith.constant 0 : index
    %159 = vector.load %arg14[%c2_162, %c0_163, %c0_164] : memref<4x16x16xf32, #tpu.memory_space<vmem>>, vector<1x16x16xf32>
    %160 = vector.shape_cast %159 : vector<1x16x16xf32> to vector<16x16xf32>
    %cst_165 = arith.constant dense<0.000000e+00> : vector<2x16xf32>
    %161 = tpu.matmul %158, %160, %cst_165 {dimension_numbers = #tpu.dot_dimension_numbers<[1], [0], [0], [1], [0, 0, 1, 1], [], []>} : vector<2x16xf32>, vector<16x16xf32>, vector<2x16xf32> -> vector<2x16xf32>
    %162 = arith.addf %157, %161 : vector<2x16xf32>
    %c3_166 = arith.constant 3 : index
    %c0_167 = arith.constant 0 : index
    %163 = tpu.strided_load %arg22[%c3_166, %c0_167] {strides = array<i32: 2, 1>} : memref<6x16xf32, #tpu.memory_space<vmem>>, vector<2x16xf32>
    %c3_168 = arith.constant 3 : index
    %c0_169 = arith.constant 0 : index
    %c0_170 = arith.constant 0 : index
    %164 = vector.load %arg14[%c3_168, %c0_169, %c0_170] : memref<4x16x16xf32, #tpu.memory_space<vmem>>, vector<1x16x16xf32>
    %165 = vector.shape_cast %164 : vector<1x16x16xf32> to vector<16x16xf32>
    %cst_171 = arith.constant dense<0.000000e+00> : vector<2x16xf32>
    %166 = tpu.matmul %163, %165, %cst_171 {dimension_numbers = #tpu.dot_dimension_numbers<[1], [0], [0], [1], [0, 0, 1, 1], [], []>} : vector<2x16xf32>, vector<16x16xf32>, vector<2x16xf32> -> vector<2x16xf32>
    %167 = arith.addf %162, %166 : vector<2x16xf32>
    %cst_172 = arith.constant 0.000000e+00 : f32
    %168 = vector.broadcast %cst_172 : f32 to vector<2x16xf32>
    %169 = arith.maximumf %167, %168 : vector<2x16xf32>
    %c0_173 = arith.constant 0 : index
    %c0_174 = arith.constant 0 : index
    %170 = vector.load %arg16[%c0_173, %c0_174] : memref<1x16xf32, #tpu.memory_space<vmem>>, vector<1x16xf32>
    %171 = vector.broadcast %170 : vector<1x16xf32> to vector<2x16xf32>
    %172 = arith.mulf %169, %171 : vector<2x16xf32>
    %c0_175 = arith.constant 0 : index
    %c0_176 = arith.constant 0 : index
    %173 = vector.load %arg17[%c0_175, %c0_176] : memref<1x16xf32, #tpu.memory_space<vmem>>, vector<1x16xf32>
    %174 = vector.broadcast %173 : vector<1x16xf32> to vector<2x16xf32>
    %175 = arith.addf %172, %174 : vector<2x16xf32>
    %c0_177 = arith.constant 0 : index
    %c0_178 = arith.constant 0 : index
    %c0_179 = arith.constant 0 : index
    %176 = vector.load %arg18[%c0_177, %c0_178, %c0_179] : memref<2x2x16xf32, #tpu.memory_space<vmem>>, vector<1x2x16xf32>
    %177 = vector.shape_cast %176 : vector<1x2x16xf32> to vector<2x16xf32>
    %178 = vector.shape_cast %175 : vector<2x16xf32> to vector<1x2x16xf32>
    tpu.vector_store %arg18[%c0_177, %c0_178, %c0_179], %178 {strides = array<i32>} : memref<2x2x16xf32, #tpu.memory_space<vmem>>, vector<1x2x16xf32>,
    %c2_i32_180 = arith.constant 2 : i32
    %179 = arith.muli %arg0, %c2_i32_180 : i32
    %c1_i32 = arith.constant 1 : i32
    %180 = arith.addi %179, %c1_i32 : i32
    %181 = arith.index_cast %180 : i32 to index
    %182 = memref.load %arg1[%181] : memref<2xi32, #tpu.memory_space<smem>>
    %183 = vector.broadcast %182 : i32 to vector<256x8xi32>
    %184 = arith.cmpi slt, %0, %183 : vector<256x8xi32>
    %185 = arith.extui %184 : vector<256x8xi1> to vector<256x8xi32>
    %186 = arith.sitofp %185 : vector<256x8xi32> to vector<256x8xf32>
    %c1_181 = arith.constant 1 : index
    %c0_182 = arith.constant 0 : index
    %c0_183 = arith.constant 0 : index
    %187 = vector.load %arg3[%c1_181, %c0_182, %c0_183] : memref<2x256x8xf32, #tpu.memory_space<vmem>>, vector<1x256x8xf32>
    %188 = vector.shape_cast %187 : vector<1x256x8xf32> to vector<256x8xf32>
    %c0_184 = arith.constant 0 : index
    %c0_185 = arith.constant 0 : index
    %189 = vector.load %arg4[%c0_184, %c0_185] : memref<8x8xf32, #tpu.memory_space<vmem>>, vector<8x8xf32>
    %cst_186 = arith.constant dense<0.000000e+00> : vector<256x8xf32>
    %190 = tpu.matmul %188, %189, %cst_186 {dimension_numbers = #tpu.dot_dimension_numbers<[1], [0], [0], [1], [0, 0, 1, 1], [], []>} : vector<256x8xf32>, vector<8x8xf32>, vector<256x8xf32> -> vector<256x8xf32>
    %c0_187 = arith.constant 0 : index
    %c0_188 = arith.constant 0 : index
    %191 = vector.load %arg5[%c0_187, %c0_188] : memref<1x8xf32, #tpu.memory_space<vmem>>, vector<1x8xf32>
    %192 = vector.broadcast %191 : vector<1x8xf32> to vector<256x8xf32>
    %193 = arith.addf %190, %192 : vector<256x8xf32>
    %cst_189 = arith.constant 0.000000e+00 : f32
    %194 = vector.broadcast %cst_189 : f32 to vector<256x8xf32>
    %195 = arith.cmpf oge, %193, %194 : vector<256x8xf32>
    %cst_190 = arith.constant 0.00999999977 : f32
    %196 = vector.broadcast %cst_190 : f32 to vector<256x8xf32>
    %197 = arith.mulf %196, %193 : vector<256x8xf32>
    %198 = arith.select %195, %193, %197 : vector<256x8xi1>, vector<256x8xf32>
    %c0_191 = arith.constant 0 : index
    %c0_192 = arith.constant 0 : index
    %199 = vector.load %arg6[%c0_191, %c0_192] : memref<8x8xf32, #tpu.memory_space<vmem>>, vector<8x8xf32>
    %cst_193 = arith.constant dense<0.000000e+00> : vector<256x8xf32>
    %200 = tpu.matmul %198, %199, %cst_193 {dimension_numbers = #tpu.dot_dimension_numbers<[1], [0], [0], [1], [0, 0, 1, 1], [], []>} : vector<256x8xf32>, vector<8x8xf32>, vector<256x8xf32> -> vector<256x8xf32>
    %c0_194 = arith.constant 0 : index
    %c0_195 = arith.constant 0 : index
    %201 = vector.load %arg7[%c0_194, %c0_195] : memref<1x8xf32, #tpu.memory_space<vmem>>, vector<1x8xf32>
    %202 = vector.broadcast %201 : vector<1x8xf32> to vector<256x8xf32>
    %203 = arith.addf %200, %202 : vector<256x8xf32>
    %c1_196 = arith.constant 1 : index
    %c0_197 = arith.constant 0 : index
    %c0_198 = arith.constant 0 : index
    %204 = vector.load %arg2[%c1_196, %c0_197, %c0_198] : memref<2x256x8xf32, #tpu.memory_space<vmem>>, vector<1x256x8xf32>
    %205 = vector.shape_cast %204 : vector<1x256x8xf32> to vector<256x8xf32>
    %206 = arith.addf %205, %203 : vector<256x8xf32>
    %207 = arith.mulf %206, %186 : vector<256x8xf32>
    %c0_199 = arith.constant 0 : index
    %c0_200 = arith.constant 0 : index
    %208 = vector.load %arg19[%c0_199, %c0_200] : memref<256x8xf32, #tpu.memory_space<vmem>>, vector<256x8xf32>
    tpu.vector_store %arg19[%c0_199, %c0_200], %207 {strides = array<i32>} : memref<256x8xf32, #tpu.memory_space<vmem>>, vector<256x8xf32>,
    %c0_201 = arith.constant 0 : index
    %c0_202 = arith.constant 0 : index
    %209 = vector.load %arg9[%c0_201, %c0_202] : memref<1x16xf32, #tpu.memory_space<vmem>>, vector<1x16xf32>
    %c0_203 = arith.constant 0 : index
    %c0_204 = arith.constant 0 : index
    %210 = tpu.strided_load %arg19[%c0_203, %c0_204] {strides = array<i32: 4, 1>} : memref<256x8xf32, #tpu.memory_space<vmem>>, vector<63x8xf32>
    %c0_205 = arith.constant 0 : index
    %c0_206 = arith.constant 0 : index
    %c0_207 = arith.constant 0 : index
    %211 = vector.load %arg8[%c0_205, %c0_206, %c0_207] : memref<8x8x16xf32, #tpu.memory_space<vmem>>, vector<1x8x16xf32>
    %212 = vector.shape_cast %211 : vector<1x8x16xf32> to vector<8x16xf32>
    %cst_208 = arith.constant dense<0.000000e+00> : vector<63x16xf32>
    %213 = tpu.matmul %210, %212, %cst_208 {dimension_numbers = #tpu.dot_dimension_numbers<[1], [0], [0], [1], [0, 0, 1, 1], [], []>} : vector<63x8xf32>, vector<8x16xf32>, vector<63x16xf32> -> vector<63x16xf32>
    %214 = vector.broadcast %209 : vector<1x16xf32> to vector<63x16xf32>
    %215 = arith.addf %214, %213 : vector<63x16xf32>
    %c1_209 = arith.constant 1 : index
    %c0_210 = arith.constant 0 : index
    %216 = tpu.strided_load %arg19[%c1_209, %c0_210] {strides = array<i32: 4, 1>} : memref<256x8xf32, #tpu.memory_space<vmem>>, vector<63x8xf32>
    %c1_211 = arith.constant 1 : index
    %c0_212 = arith.constant 0 : index
    %c0_213 = arith.constant 0 : index
    %217 = vector.load %arg8[%c1_211, %c0_212, %c0_213] : memref<8x8x16xf32, #tpu.memory_space<vmem>>, vector<1x8x16xf32>
    %218 = vector.shape_cast %217 : vector<1x8x16xf32> to vector<8x16xf32>
    %cst_214 = arith.constant dense<0.000000e+00> : vector<63x16xf32>
    %219 = tpu.matmul %216, %218, %cst_214 {dimension_numbers = #tpu.dot_dimension_numbers<[1], [0], [0], [1], [0, 0, 1, 1], [], []>} : vector<63x8xf32>, vector<8x16xf32>, vector<63x16xf32> -> vector<63x16xf32>
    %220 = arith.addf %215, %219 : vector<63x16xf32>
    %c2_215 = arith.constant 2 : index
    %c0_216 = arith.constant 0 : index
    %221 = tpu.strided_load %arg19[%c2_215, %c0_216] {strides = array<i32: 4, 1>} : memref<256x8xf32, #tpu.memory_space<vmem>>, vector<63x8xf32>
    %c2_217 = arith.constant 2 : index
    %c0_218 = arith.constant 0 : index
    %c0_219 = arith.constant 0 : index
    %222 = vector.load %arg8[%c2_217, %c0_218, %c0_219] : memref<8x8x16xf32, #tpu.memory_space<vmem>>, vector<1x8x16xf32>
    %223 = vector.shape_cast %222 : vector<1x8x16xf32> to vector<8x16xf32>
    %cst_220 = arith.constant dense<0.000000e+00> : vector<63x16xf32>
    %224 = tpu.matmul %221, %223, %cst_220 {dimension_numbers = #tpu.dot_dimension_numbers<[1], [0], [0], [1], [0, 0, 1, 1], [], []>} : vector<63x8xf32>, vector<8x16xf32>, vector<63x16xf32> -> vector<63x16xf32>
    %225 = arith.addf %220, %224 : vector<63x16xf32>
    %c3_221 = arith.constant 3 : index
    %c0_222 = arith.constant 0 : index
    %226 = tpu.strided_load %arg19[%c3_221, %c0_222] {strides = array<i32: 4, 1>} : memref<256x8xf32, #tpu.memory_space<vmem>>, vector<63x8xf32>
    %c3_223 = arith.constant 3 : index
    %c0_224 = arith.constant 0 : index
    %c0_225 = arith.constant 0 : index
    %227 = vector.load %arg8[%c3_223, %c0_224, %c0_225] : memref<8x8x16xf32, #tpu.memory_space<vmem>>, vector<1x8x16xf32>
    %228 = vector.shape_cast %227 : vector<1x8x16xf32> to vector<8x16xf32>
    %cst_226 = arith.constant dense<0.000000e+00> : vector<63x16xf32>
    %229 = tpu.matmul %226, %228, %cst_226 {dimension_numbers = #tpu.dot_dimension_numbers<[1], [0], [0], [1], [0, 0, 1, 1], [], []>} : vector<63x8xf32>, vector<8x16xf32>, vector<63x16xf32> -> vector<63x16xf32>
    %230 = arith.addf %225, %229 : vector<63x16xf32>
    %c4_227 = arith.constant 4 : index
    %c0_228 = arith.constant 0 : index
    %231 = tpu.strided_load %arg19[%c4_227, %c0_228] {strides = array<i32: 4, 1>} : memref<256x8xf32, #tpu.memory_space<vmem>>, vector<63x8xf32>
    %c4_229 = arith.constant 4 : index
    %c0_230 = arith.constant 0 : index
    %c0_231 = arith.constant 0 : index
    %232 = vector.load %arg8[%c4_229, %c0_230, %c0_231] : memref<8x8x16xf32, #tpu.memory_space<vmem>>, vector<1x8x16xf32>
    %233 = vector.shape_cast %232 : vector<1x8x16xf32> to vector<8x16xf32>
    %cst_232 = arith.constant dense<0.000000e+00> : vector<63x16xf32>
    %234 = tpu.matmul %231, %233, %cst_232 {dimension_numbers = #tpu.dot_dimension_numbers<[1], [0], [0], [1], [0, 0, 1, 1], [], []>} : vector<63x8xf32>, vector<8x16xf32>, vector<63x16xf32> -> vector<63x16xf32>
    %235 = arith.addf %230, %234 : vector<63x16xf32>
    %c5_233 = arith.constant 5 : index
    %c0_234 = arith.constant 0 : index
    %236 = tpu.strided_load %arg19[%c5_233, %c0_234] {strides = array<i32: 4, 1>} : memref<256x8xf32, #tpu.memory_space<vmem>>, vector<63x8xf32>
    %c5_235 = arith.constant 5 : index
    %c0_236 = arith.constant 0 : index
    %c0_237 = arith.constant 0 : index
    %237 = vector.load %arg8[%c5_235, %c0_236, %c0_237] : memref<8x8x16xf32, #tpu.memory_space<vmem>>, vector<1x8x16xf32>
    %238 = vector.shape_cast %237 : vector<1x8x16xf32> to vector<8x16xf32>
    %cst_238 = arith.constant dense<0.000000e+00> : vector<63x16xf32>
    %239 = tpu.matmul %236, %238, %cst_238 {dimension_numbers = #tpu.dot_dimension_numbers<[1], [0], [0], [1], [0, 0, 1, 1], [], []>} : vector<63x8xf32>, vector<8x16xf32>, vector<63x16xf32> -> vector<63x16xf32>
    %240 = arith.addf %235, %239 : vector<63x16xf32>
    %c6_239 = arith.constant 6 : index
    %c0_240 = arith.constant 0 : index
    %241 = tpu.strided_load %arg19[%c6_239, %c0_240] {strides = array<i32: 4, 1>} : memref<256x8xf32, #tpu.memory_space<vmem>>, vector<63x8xf32>
    %c6_241 = arith.constant 6 : index
    %c0_242 = arith.constant 0 : index
    %c0_243 = arith.constant 0 : index
    %242 = vector.load %arg8[%c6_241, %c0_242, %c0_243] : memref<8x8x16xf32, #tpu.memory_space<vmem>>, vector<1x8x16xf32>
    %243 = vector.shape_cast %242 : vector<1x8x16xf32> to vector<8x16xf32>
    %cst_244 = arith.constant dense<0.000000e+00> : vector<63x16xf32>
    %244 = tpu.matmul %241, %243, %cst_244 {dimension_numbers = #tpu.dot_dimension_numbers<[1], [0], [0], [1], [0, 0, 1, 1], [], []>} : vector<63x8xf32>, vector<8x16xf32>, vector<63x16xf32> -> vector<63x16xf32>
    %245 = arith.addf %240, %244 : vector<63x16xf32>
    %c7_245 = arith.constant 7 : index
    %c0_246 = arith.constant 0 : index
    %246 = tpu.strided_load %arg19[%c7_245, %c0_246] {strides = array<i32: 4, 1>} : memref<256x8xf32, #tpu.memory_space<vmem>>, vector<63x8xf32>
    %c7_247 = arith.constant 7 : index
    %c0_248 = arith.constant 0 : index
    %c0_249 = arith.constant 0 : index
    %247 = vector.load %arg8[%c7_247, %c0_248, %c0_249] : memref<8x8x16xf32, #tpu.memory_space<vmem>>, vector<1x8x16xf32>
    %248 = vector.shape_cast %247 : vector<1x8x16xf32> to vector<8x16xf32>
    %cst_250 = arith.constant dense<0.000000e+00> : vector<63x16xf32>
    %249 = tpu.matmul %246, %248, %cst_250 {dimension_numbers = #tpu.dot_dimension_numbers<[1], [0], [0], [1], [0, 0, 1, 1], [], []>} : vector<63x8xf32>, vector<8x16xf32>, vector<63x16xf32> -> vector<63x16xf32>
    %250 = arith.addf %245, %249 : vector<63x16xf32>
    %cst_251 = arith.constant 0.000000e+00 : f32
    %251 = vector.broadcast %cst_251 : f32 to vector<63x16xf32>
    %252 = arith.maximumf %250, %251 : vector<63x16xf32>
    %c0_252 = arith.constant 0 : index
    %c0_253 = arith.constant 0 : index
    %253 = vector.load %arg20[%c0_252, %c0_253] : memref<63x16xf32, #tpu.memory_space<vmem>>, vector<63x16xf32>
    tpu.vector_store %arg20[%c0_252, %c0_253], %252 {strides = array<i32>} : memref<63x16xf32, #tpu.memory_space<vmem>>, vector<63x16xf32>,
    %c0_254 = arith.constant 0 : index
    %c0_255 = arith.constant 0 : index
    %254 = vector.load %arg11[%c0_254, %c0_255] : memref<1x16xf32, #tpu.memory_space<vmem>>, vector<1x16xf32>
    %c0_256 = arith.constant 0 : index
    %c0_257 = arith.constant 0 : index
    %255 = tpu.strided_load %arg20[%c0_256, %c0_257] {strides = array<i32: 4, 1>} : memref<63x16xf32, #tpu.memory_space<vmem>>, vector<14x16xf32>
    %c0_258 = arith.constant 0 : index
    %c0_259 = arith.constant 0 : index
    %c0_260 = arith.constant 0 : index
    %256 = vector.load %arg10[%c0_258, %c0_259, %c0_260] : memref<8x16x16xf32, #tpu.memory_space<vmem>>, vector<1x16x16xf32>
    %257 = vector.shape_cast %256 : vector<1x16x16xf32> to vector<16x16xf32>
    %cst_261 = arith.constant dense<0.000000e+00> : vector<14x16xf32>
    %258 = tpu.matmul %255, %257, %cst_261 {dimension_numbers = #tpu.dot_dimension_numbers<[1], [0], [0], [1], [0, 0, 1, 1], [], []>} : vector<14x16xf32>, vector<16x16xf32>, vector<14x16xf32> -> vector<14x16xf32>
    %259 = vector.broadcast %254 : vector<1x16xf32> to vector<14x16xf32>
    %260 = arith.addf %259, %258 : vector<14x16xf32>
    %c1_262 = arith.constant 1 : index
    %c0_263 = arith.constant 0 : index
    %261 = tpu.strided_load %arg20[%c1_262, %c0_263] {strides = array<i32: 4, 1>} : memref<63x16xf32, #tpu.memory_space<vmem>>, vector<14x16xf32>
    %c1_264 = arith.constant 1 : index
    %c0_265 = arith.constant 0 : index
    %c0_266 = arith.constant 0 : index
    %262 = vector.load %arg10[%c1_264, %c0_265, %c0_266] : memref<8x16x16xf32, #tpu.memory_space<vmem>>, vector<1x16x16xf32>
    %263 = vector.shape_cast %262 : vector<1x16x16xf32> to vector<16x16xf32>
    %cst_267 = arith.constant dense<0.000000e+00> : vector<14x16xf32>
    %264 = tpu.matmul %261, %263, %cst_267 {dimension_numbers = #tpu.dot_dimension_numbers<[1], [0], [0], [1], [0, 0, 1, 1], [], []>} : vector<14x16xf32>, vector<16x16xf32>, vector<14x16xf32> -> vector<14x16xf32>
    %265 = arith.addf %260, %264 : vector<14x16xf32>
    %c2_268 = arith.constant 2 : index
    %c0_269 = arith.constant 0 : index
    %266 = tpu.strided_load %arg20[%c2_268, %c0_269] {strides = array<i32: 4, 1>} : memref<63x16xf32, #tpu.memory_space<vmem>>, vector<14x16xf32>
    %c2_270 = arith.constant 2 : index
    %c0_271 = arith.constant 0 : index
    %c0_272 = arith.constant 0 : index
    %267 = vector.load %arg10[%c2_270, %c0_271, %c0_272] : memref<8x16x16xf32, #tpu.memory_space<vmem>>, vector<1x16x16xf32>
    %268 = vector.shape_cast %267 : vector<1x16x16xf32> to vector<16x16xf32>
    %cst_273 = arith.constant dense<0.000000e+00> : vector<14x16xf32>
    %269 = tpu.matmul %266, %268, %cst_273 {dimension_numbers = #tpu.dot_dimension_numbers<[1], [0], [0], [1], [0, 0, 1, 1], [], []>} : vector<14x16xf32>, vector<16x16xf32>, vector<14x16xf32> -> vector<14x16xf32>
    %270 = arith.addf %265, %269 : vector<14x16xf32>
    %c3_274 = arith.constant 3 : index
    %c0_275 = arith.constant 0 : index
    %271 = tpu.strided_load %arg20[%c3_274, %c0_275] {strides = array<i32: 4, 1>} : memref<63x16xf32, #tpu.memory_space<vmem>>, vector<14x16xf32>
    %c3_276 = arith.constant 3 : index
    %c0_277 = arith.constant 0 : index
    %c0_278 = arith.constant 0 : index
    %272 = vector.load %arg10[%c3_276, %c0_277, %c0_278] : memref<8x16x16xf32, #tpu.memory_space<vmem>>, vector<1x16x16xf32>
    %273 = vector.shape_cast %272 : vector<1x16x16xf32> to vector<16x16xf32>
    %cst_279 = arith.constant dense<0.000000e+00> : vector<14x16xf32>
    %274 = tpu.matmul %271, %273, %cst_279 {dimension_numbers = #tpu.dot_dimension_numbers<[1], [0], [0], [1], [0, 0, 1, 1], [], []>} : vector<14x16xf32>, vector<16x16xf32>, vector<14x16xf32> -> vector<14x16xf32>
    %275 = arith.addf %270, %274 : vector<14x16xf32>
    %c4_280 = arith.constant 4 : index
    %c0_281 = arith.constant 0 : index
    %276 = tpu.strided_load %arg20[%c4_280, %c0_281] {strides = array<i32: 4, 1>} : memref<63x16xf32, #tpu.memory_space<vmem>>, vector<14x16xf32>
    %c4_282 = arith.constant 4 : index
    %c0_283 = arith.constant 0 : index
    %c0_284 = arith.constant 0 : index
    %277 = vector.load %arg10[%c4_282, %c0_283, %c0_284] : memref<8x16x16xf32, #tpu.memory_space<vmem>>, vector<1x16x16xf32>
    %278 = vector.shape_cast %277 : vector<1x16x16xf32> to vector<16x16xf32>
    %cst_285 = arith.constant dense<0.000000e+00> : vector<14x16xf32>
    %279 = tpu.matmul %276, %278, %cst_285 {dimension_numbers = #tpu.dot_dimension_numbers<[1], [0], [0], [1], [0, 0, 1, 1], [], []>} : vector<14x16xf32>, vector<16x16xf32>, vector<14x16xf32> -> vector<14x16xf32>
    %280 = arith.addf %275, %279 : vector<14x16xf32>
    %c5_286 = arith.constant 5 : index
    %c0_287 = arith.constant 0 : index
    %281 = tpu.strided_load %arg20[%c5_286, %c0_287] {strides = array<i32: 4, 1>} : memref<63x16xf32, #tpu.memory_space<vmem>>, vector<14x16xf32>
    %c5_288 = arith.constant 5 : index
    %c0_289 = arith.constant 0 : index
    %c0_290 = arith.constant 0 : index
    %282 = vector.load %arg10[%c5_288, %c0_289, %c0_290] : memref<8x16x16xf32, #tpu.memory_space<vmem>>, vector<1x16x16xf32>
    %283 = vector.shape_cast %282 : vector<1x16x16xf32> to vector<16x16xf32>
    %cst_291 = arith.constant dense<0.000000e+00> : vector<14x16xf32>
    %284 = tpu.matmul %281, %283, %cst_291 {dimension_numbers = #tpu.dot_dimension_numbers<[1], [0], [0], [1], [0, 0, 1, 1], [], []>} : vector<14x16xf32>, vector<16x16xf32>, vector<14x16xf32> -> vector<14x16xf32>
    %285 = arith.addf %280, %284 : vector<14x16xf32>
    %c6_292 = arith.constant 6 : index
    %c0_293 = arith.constant 0 : index
    %286 = tpu.strided_load %arg20[%c6_292, %c0_293] {strides = array<i32: 4, 1>} : memref<63x16xf32, #tpu.memory_space<vmem>>, vector<14x16xf32>
    %c6_294 = arith.constant 6 : index
    %c0_295 = arith.constant 0 : index
    %c0_296 = arith.constant 0 : index
    %287 = vector.load %arg10[%c6_294, %c0_295, %c0_296] : memref<8x16x16xf32, #tpu.memory_space<vmem>>, vector<1x16x16xf32>
    %288 = vector.shape_cast %287 : vector<1x16x16xf32> to vector<16x16xf32>
    %cst_297 = arith.constant dense<0.000000e+00> : vector<14x16xf32>
    %289 = tpu.matmul %286, %288, %cst_297 {dimension_numbers = #tpu.dot_dimension_numbers<[1], [0], [0], [1], [0, 0, 1, 1], [], []>} : vector<14x16xf32>, vector<16x16xf32>, vector<14x16xf32> -> vector<14x16xf32>
    %290 = arith.addf %285, %289 : vector<14x16xf32>
    %c7_298 = arith.constant 7 : index
    %c0_299 = arith.constant 0 : index
    %291 = tpu.strided_load %arg20[%c7_298, %c0_299] {strides = array<i32: 4, 1>} : memref<63x16xf32, #tpu.memory_space<vmem>>, vector<14x16xf32>
    %c7_300 = arith.constant 7 : index
    %c0_301 = arith.constant 0 : index
    %c0_302 = arith.constant 0 : index
    %292 = vector.load %arg10[%c7_300, %c0_301, %c0_302] : memref<8x16x16xf32, #tpu.memory_space<vmem>>, vector<1x16x16xf32>
    %293 = vector.shape_cast %292 : vector<1x16x16xf32> to vector<16x16xf32>
    %cst_303 = arith.constant dense<0.000000e+00> : vector<14x16xf32>
    %294 = tpu.matmul %291, %293, %cst_303 {dimension_numbers = #tpu.dot_dimension_numbers<[1], [0], [0], [1], [0, 0, 1, 1], [], []>} : vector<14x16xf32>, vector<16x16xf32>, vector<14x16xf32> -> vector<14x16xf32>
    %295 = arith.addf %290, %294 : vector<14x16xf32>
    %cst_304 = arith.constant 0.000000e+00 : f32
    %296 = vector.broadcast %cst_304 : f32 to vector<14x16xf32>
    %297 = arith.maximumf %295, %296 : vector<14x16xf32>
    %c0_305 = arith.constant 0 : index
    %c0_306 = arith.constant 0 : index
    %298 = vector.load %arg21[%c0_305, %c0_306] : memref<14x16xf32, #tpu.memory_space<vmem>>, vector<14x16xf32>
    tpu.vector_store %arg21[%c0_305, %c0_306], %297 {strides = array<i32>} : memref<14x16xf32, #tpu.memory_space<vmem>>, vector<14x16xf32>,
    %c0_307 = arith.constant 0 : index
    %c0_308 = arith.constant 0 : index
    %299 = vector.load %arg13[%c0_307, %c0_308] : memref<1x16xf32, #tpu.memory_space<vmem>>, vector<1x16xf32>
    %c0_309 = arith.constant 0 : index
    %c0_310 = arith.constant 0 : index
    %300 = tpu.strided_load %arg21[%c0_309, %c0_310] {strides = array<i32: 2, 1>} : memref<14x16xf32, #tpu.memory_space<vmem>>, vector<6x16xf32>
    %c0_311 = arith.constant 0 : index
    %c0_312 = arith.constant 0 : index
    %c0_313 = arith.constant 0 : index
    %301 = vector.load %arg12[%c0_311, %c0_312, %c0_313] : memref<4x16x16xf32, #tpu.memory_space<vmem>>, vector<1x16x16xf32>
    %302 = vector.shape_cast %301 : vector<1x16x16xf32> to vector<16x16xf32>
    %cst_314 = arith.constant dense<0.000000e+00> : vector<6x16xf32>
    %303 = tpu.matmul %300, %302, %cst_314 {dimension_numbers = #tpu.dot_dimension_numbers<[1], [0], [0], [1], [0, 0, 1, 1], [], []>} : vector<6x16xf32>, vector<16x16xf32>, vector<6x16xf32> -> vector<6x16xf32>
    %304 = vector.broadcast %299 : vector<1x16xf32> to vector<6x16xf32>
    %305 = arith.addf %304, %303 : vector<6x16xf32>
    %c1_315 = arith.constant 1 : index
    %c0_316 = arith.constant 0 : index
    %306 = tpu.strided_load %arg21[%c1_315, %c0_316] {strides = array<i32: 2, 1>} : memref<14x16xf32, #tpu.memory_space<vmem>>, vector<6x16xf32>
    %c1_317 = arith.constant 1 : index
    %c0_318 = arith.constant 0 : index
    %c0_319 = arith.constant 0 : index
    %307 = vector.load %arg12[%c1_317, %c0_318, %c0_319] : memref<4x16x16xf32, #tpu.memory_space<vmem>>, vector<1x16x16xf32>
    %308 = vector.shape_cast %307 : vector<1x16x16xf32> to vector<16x16xf32>
    %cst_320 = arith.constant dense<0.000000e+00> : vector<6x16xf32>
    %309 = tpu.matmul %306, %308, %cst_320 {dimension_numbers = #tpu.dot_dimension_numbers<[1], [0], [0], [1], [0, 0, 1, 1], [], []>} : vector<6x16xf32>, vector<16x16xf32>, vector<6x16xf32> -> vector<6x16xf32>
    %310 = arith.addf %305, %309 : vector<6x16xf32>
    %c2_321 = arith.constant 2 : index
    %c0_322 = arith.constant 0 : index
    %311 = tpu.strided_load %arg21[%c2_321, %c0_322] {strides = array<i32: 2, 1>} : memref<14x16xf32, #tpu.memory_space<vmem>>, vector<6x16xf32>
    %c2_323 = arith.constant 2 : index
    %c0_324 = arith.constant 0 : index
    %c0_325 = arith.constant 0 : index
    %312 = vector.load %arg12[%c2_323, %c0_324, %c0_325] : memref<4x16x16xf32, #tpu.memory_space<vmem>>, vector<1x16x16xf32>
    %313 = vector.shape_cast %312 : vector<1x16x16xf32> to vector<16x16xf32>
    %cst_326 = arith.constant dense<0.000000e+00> : vector<6x16xf32>
    %314 = tpu.matmul %311, %313, %cst_326 {dimension_numbers = #tpu.dot_dimension_numbers<[1], [0], [0], [1], [0, 0, 1, 1], [], []>} : vector<6x16xf32>, vector<16x16xf32>, vector<6x16xf32> -> vector<6x16xf32>
    %315 = arith.addf %310, %314 : vector<6x16xf32>
    %c3_327 = arith.constant 3 : index
    %c0_328 = arith.constant 0 : index
    %316 = tpu.strided_load %arg21[%c3_327, %c0_328] {strides = array<i32: 2, 1>} : memref<14x16xf32, #tpu.memory_space<vmem>>, vector<6x16xf32>
    %c3_329 = arith.constant 3 : index
    %c0_330 = arith.constant 0 : index
    %c0_331 = arith.constant 0 : index
    %317 = vector.load %arg12[%c3_329, %c0_330, %c0_331] : memref<4x16x16xf32, #tpu.memory_space<vmem>>, vector<1x16x16xf32>
    %318 = vector.shape_cast %317 : vector<1x16x16xf32> to vector<16x16xf32>
    %cst_332 = arith.constant dense<0.000000e+00> : vector<6x16xf32>
    %319 = tpu.matmul %316, %318, %cst_332 {dimension_numbers = #tpu.dot_dimension_numbers<[1], [0], [0], [1], [0, 0, 1, 1], [], []>} : vector<6x16xf32>, vector<16x16xf32>, vector<6x16xf32> -> vector<6x16xf32>
    %320 = arith.addf %315, %319 : vector<6x16xf32>
    %cst_333 = arith.constant 0.000000e+00 : f32
    %321 = vector.broadcast %cst_333 : f32 to vector<6x16xf32>
    %322 = arith.maximumf %320, %321 : vector<6x16xf32>
    %c0_334 = arith.constant 0 : index
    %c0_335 = arith.constant 0 : index
    %323 = vector.load %arg22[%c0_334, %c0_335] : memref<6x16xf32, #tpu.memory_space<vmem>>, vector<6x16xf32>
    tpu.vector_store %arg22[%c0_334, %c0_335], %322 {strides = array<i32>} : memref<6x16xf32, #tpu.memory_space<vmem>>, vector<6x16xf32>,
    %c0_336 = arith.constant 0 : index
    %c0_337 = arith.constant 0 : index
    %324 = vector.load %arg15[%c0_336, %c0_337] : memref<1x16xf32, #tpu.memory_space<vmem>>, vector<1x16xf32>
    %c0_338 = arith.constant 0 : index
    %c0_339 = arith.constant 0 : index
    %325 = tpu.strided_load %arg22[%c0_338, %c0_339] {strides = array<i32: 2, 1>} : memref<6x16xf32, #tpu.memory_space<vmem>>, vector<2x16xf32>
    %c0_340 = arith.constant 0 : index
    %c0_341 = arith.constant 0 : index
    %c0_342 = arith.constant 0 : index
    %326 = vector.load %arg14[%c0_340, %c0_341, %c0_342] : memref<4x16x16xf32, #tpu.memory_space<vmem>>, vector<1x16x16xf32>
    %327 = vector.shape_cast %326 : vector<1x16x16xf32> to vector<16x16xf32>
    %cst_343 = arith.constant dense<0.000000e+00> : vector<2x16xf32>
    %328 = tpu.matmul %325, %327, %cst_343 {dimension_numbers = #tpu.dot_dimension_numbers<[1], [0], [0], [1], [0, 0, 1, 1], [], []>} : vector<2x16xf32>, vector<16x16xf32>, vector<2x16xf32> -> vector<2x16xf32>
    %329 = vector.broadcast %324 : vector<1x16xf32> to vector<2x16xf32>
    %330 = arith.addf %329, %328 : vector<2x16xf32>
    %c1_344 = arith.constant 1 : index
    %c0_345 = arith.constant 0 : index
    %331 = tpu.strided_load %arg22[%c1_344, %c0_345] {strides = array<i32: 2, 1>} : memref<6x16xf32, #tpu.memory_space<vmem>>, vector<2x16xf32>
    %c1_346 = arith.constant 1 : index
    %c0_347 = arith.constant 0 : index
    %c0_348 = arith.constant 0 : index
    %332 = vector.load %arg14[%c1_346, %c0_347, %c0_348] : memref<4x16x16xf32, #tpu.memory_space<vmem>>, vector<1x16x16xf32>
    %333 = vector.shape_cast %332 : vector<1x16x16xf32> to vector<16x16xf32>
    %cst_349 = arith.constant dense<0.000000e+00> : vector<2x16xf32>
    %334 = tpu.matmul %331, %333, %cst_349 {dimension_numbers = #tpu.dot_dimension_numbers<[1], [0], [0], [1], [0, 0, 1, 1], [], []>} : vector<2x16xf32>, vector<16x16xf32>, vector<2x16xf32> -> vector<2x16xf32>
    %335 = arith.addf %330, %334 : vector<2x16xf32>
    %c2_350 = arith.constant 2 : index
    %c0_351 = arith.constant 0 : index
    %336 = tpu.strided_load %arg22[%c2_350, %c0_351] {strides = array<i32: 2, 1>} : memref<6x16xf32, #tpu.memory_space<vmem>>, vector<2x16xf32>
    %c2_352 = arith.constant 2 : index
    %c0_353 = arith.constant 0 : index
    %c0_354 = arith.constant 0 : index
    %337 = vector.load %arg14[%c2_352, %c0_353, %c0_354] : memref<4x16x16xf32, #tpu.memory_space<vmem>>, vector<1x16x16xf32>
    %338 = vector.shape_cast %337 : vector<1x16x16xf32> to vector<16x16xf32>
    %cst_355 = arith.constant dense<0.000000e+00> : vector<2x16xf32>
    %339 = tpu.matmul %336, %338, %cst_355 {dimension_numbers = #tpu.dot_dimension_numbers<[1], [0], [0], [1], [0, 0, 1, 1], [], []>} : vector<2x16xf32>, vector<16x16xf32>, vector<2x16xf32> -> vector<2x16xf32>
    %340 = arith.addf %335, %339 : vector<2x16xf32>
    %c3_356 = arith.constant 3 : index
    %c0_357 = arith.constant 0 : index
    %341 = tpu.strided_load %arg22[%c3_356, %c0_357] {strides = array<i32: 2, 1>} : memref<6x16xf32, #tpu.memory_space<vmem>>, vector<2x16xf32>
    %c3_358 = arith.constant 3 : index
    %c0_359 = arith.constant 0 : index
    %c0_360 = arith.constant 0 : index
    %342 = vector.load %arg14[%c3_358, %c0_359, %c0_360] : memref<4x16x16xf32, #tpu.memory_space<vmem>>, vector<1x16x16xf32>
    %343 = vector.shape_cast %342 : vector<1x16x16xf32> to vector<16x16xf32>
    %cst_361 = arith.constant dense<0.000000e+00> : vector<2x16xf32>
    %344 = tpu.matmul %341, %343, %cst_361 {dimension_numbers = #tpu.dot_dimension_numbers<[1], [0], [0], [1], [0, 0, 1, 1], [], []>} : vector<2x16xf32>, vector<16x16xf32>, vector<2x16xf32> -> vector<2x16xf32>
    %345 = arith.addf %340, %344 : vector<2x16xf32>
    %cst_362 = arith.constant 0.000000e+00 : f32
    %346 = vector.broadcast %cst_362 : f32 to vector<2x16xf32>
    %347 = arith.maximumf %345, %346 : vector<2x16xf32>
    %c0_363 = arith.constant 0 : index
    %c0_364 = arith.constant 0 : index
    %348 = vector.load %arg16[%c0_363, %c0_364] : memref<1x16xf32, #tpu.memory_space<vmem>>, vector<1x16xf32>
    %349 = vector.broadcast %348 : vector<1x16xf32> to vector<2x16xf32>
    %350 = arith.mulf %347, %349 : vector<2x16xf32>
    %c0_365 = arith.constant 0 : index
    %c0_366 = arith.constant 0 : index
    %351 = vector.load %arg17[%c0_365, %c0_366] : memref<1x16xf32, #tpu.memory_space<vmem>>, vector<1x16xf32>
    %352 = vector.broadcast %351 : vector<1x16xf32> to vector<2x16xf32>
    %353 = arith.addf %350, %352 : vector<2x16xf32>
    %c1_367 = arith.constant 1 : index
    %c0_368 = arith.constant 0 : index
    %c0_369 = arith.constant 0 : index
    %354 = vector.load %arg18[%c1_367, %c0_368, %c0_369] : memref<2x2x16xf32, #tpu.memory_space<vmem>>, vector<1x2x16xf32>
    %355 = vector.shape_cast %354 : vector<1x2x16xf32> to vector<2x16xf32>
    %356 = vector.shape_cast %353 : vector<2x16xf32> to vector<1x2x16xf32>
    tpu.vector_store %arg18[%c1_367, %c0_368, %c0_369], %356 {strides = array<i32>} : memref<2x2x16xf32, #tpu.memory_space<vmem>>, vector<1x2x16xf32>,
    return
  }
  func.func @transform_0(%arg0: i32, %arg1: memref<2xi32, #tpu.memory_space<smem>>) -> (i32, i32, i32) {
    %c0_i32 = arith.constant 0 : i32
    %c0_i32_0 = arith.constant 0 : i32
    %c0_i32_1 = arith.constant 0 : i32
    return %arg0, %c0_i32, %c0_i32_0 : i32, i32, i32
  }
  func.func @transform_1(%arg0: i32, %arg1: memref<2xi32, #tpu.memory_space<smem>>) -> (i32, i32, i32) {
    %c0_i32 = arith.constant 0 : i32
    %c0_i32_0 = arith.constant 0 : i32
    %c0_i32_1 = arith.constant 0 : i32
    return %arg0, %c0_i32, %c0_i32_0 : i32, i32, i32
  }
  func.func @transform_2(%arg0: i32, %arg1: memref<2xi32, #tpu.memory_space<smem>>) -> (i32, i32) {
    %c0_i32 = arith.constant 0 : i32
    %c0_i32_0 = arith.constant 0 : i32
    %c0_i32_1 = arith.constant 0 : i32
    return %c0_i32, %c0_i32_0 : i32, i32
  }
  func.func @transform_3(%arg0: i32, %arg1: memref<2xi32, #tpu.memory_space<smem>>) -> (i32, i32) {
    %c0_i32 = arith.constant 0 : i32
    %c0_i32_0 = arith.constant 0 : i32
    %c0_i32_1 = arith.constant 0 : i32
    return %c0_i32, %c0_i32_0 : i32, i32
  }
  func.func @transform_4(%arg0: i32, %arg1: memref<2xi32, #tpu.memory_space<smem>>) -> (i32, i32) {
    %c0_i32 = arith.constant 0 : i32
    %c0_i32_0 = arith.constant 0 : i32
    %c0_i32_1 = arith.constant 0 : i32
    return %c0_i32, %c0_i32_0 : i32, i32
  }
  func.func @transform_5(%arg0: i32, %arg1: memref<2xi32, #tpu.memory_space<smem>>) -> (i32, i32) {
    %c0_i32 = arith.constant 0 : i32
    %c0_i32_0 = arith.constant 0 : i32
    %c0_i32_1 = arith.constant 0 : i32
    return %c0_i32, %c0_i32_0 : i32, i32
  }
  func.func @transform_6(%arg0: i32, %arg1: memref<2xi32, #tpu.memory_space<smem>>) -> (i32, i32, i32) {
    %c0_i32 = arith.constant 0 : i32
    %c0_i32_0 = arith.constant 0 : i32
    %c0_i32_1 = arith.constant 0 : i32
    %c0_i32_2 = arith.constant 0 : i32
    return %c0_i32, %c0_i32_0, %c0_i32_1 : i32, i32, i32
  }
  func.func @transform_7(%arg0: i32, %arg1: memref<2xi32, #tpu.memory_space<smem>>) -> (i32, i32) {
    %c0_i32 = arith.constant 0 : i32
    %c0_i32_0 = arith.constant 0 : i32
    %c0_i32_1 = arith.constant 0 : i32
    return %c0_i32, %c0_i32_0 : i32, i32
  }
  func.func @transform_8(%arg0: i32, %arg1: memref<2xi32, #tpu.memory_space<smem>>) -> (i32, i32, i32) {
    %c0_i32 = arith.constant 0 : i32
    %c0_i32_0 = arith.constant 0 : i32
    %c0_i32_1 = arith.constant 0 : i32
    %c0_i32_2 = arith.constant 0 : i32
    return %c0_i32, %c0_i32_0, %c0_i32_1 : i32, i32, i32
  }
  func.func @transform_9(%arg0: i32, %arg1: memref<2xi32, #tpu.memory_space<smem>>) -> (i32, i32) {
    %c0_i32 = arith.constant 0 : i32
    %c0_i32_0 = arith.constant 0 : i32
    %c0_i32_1 = arith.constant 0 : i32
    return %c0_i32, %c0_i32_0 : i32, i32
  }
  func.func @transform_10(%arg0: i32, %arg1: memref<2xi32, #tpu.memory_space<smem>>) -> (i32, i32, i32) {
    %c0_i32 = arith.constant 0 : i32
    %c0_i32_0 = arith.constant 0 : i32
    %c0_i32_1 = arith.constant 0 : i32
    %c0_i32_2 = arith.constant 0 : i32
    return %c0_i32, %c0_i32_0, %c0_i32_1 : i32, i32, i32
  }
  func.func @transform_11(%arg0: i32, %arg1: memref<2xi32, #tpu.memory_space<smem>>) -> (i32, i32) {
    %c0_i32 = arith.constant 0 : i32
    %c0_i32_0 = arith.constant 0 : i32
    %c0_i32_1 = arith.constant 0 : i32
    return %c0_i32, %c0_i32_0 : i32, i32
  }
  func.func @transform_12(%arg0: i32, %arg1: memref<2xi32, #tpu.memory_space<smem>>) -> (i32, i32, i32) {
    %c0_i32 = arith.constant 0 : i32
    %c0_i32_0 = arith.constant 0 : i32
    %c0_i32_1 = arith.constant 0 : i32
    %c0_i32_2 = arith.constant 0 : i32
    return %c0_i32, %c0_i32_0, %c0_i32_1 : i32, i32, i32
  }
  func.func @transform_13(%arg0: i32, %arg1: memref<2xi32, #tpu.memory_space<smem>>) -> (i32, i32) {
    %c0_i32 = arith.constant 0 : i32
    %c0_i32_0 = arith.constant 0 : i32
    %c0_i32_1 = arith.constant 0 : i32
    return %c0_i32, %c0_i32_0 : i32, i32
  }
  func.func @transform_14(%arg0: i32, %arg1: memref<2xi32, #tpu.memory_space<smem>>) -> (i32, i32) {
    %c0_i32 = arith.constant 0 : i32
    %c0_i32_0 = arith.constant 0 : i32
    %c0_i32_1 = arith.constant 0 : i32
    return %c0_i32, %c0_i32_0 : i32, i32
  }
  func.func @transform_15(%arg0: i32, %arg1: memref<2xi32, #tpu.memory_space<smem>>) -> (i32, i32) {
    %c0_i32 = arith.constant 0 : i32
    %c0_i32_0 = arith.constant 0 : i32
    %c0_i32_1 = arith.constant 0 : i32
    return %c0_i32, %c0_i32_0 : i32, i32
  }
  func.func @transform_16(%arg0: i32, %arg1: memref<2xi32, #tpu.memory_space<smem>>) -> (i32, i32, i32) {
    %c0_i32 = arith.constant 0 : i32
    %c0_i32_0 = arith.constant 0 : i32
    %c0_i32_1 = arith.constant 0 : i32
    return %arg0, %c0_i32, %c0_i32_0 : i32, i32, i32
  }
}

</mosaic_0001>

<llo_original>
// kernel: cnn_classifier_forward.1
$region0: #{cnn_classifier_forward.1}
  #allocation0 [shape = 'u32[]', space=smem, size = 0x4, offset = 0x4, fixed_abs, tag = 'smem constant byte address 0x4 - core index']
  #allocation1 [shape = 'u32[144,128]{1,0:T(1,128)}', space=vmem, size = 0x12000, scoped, tag = 'internal scratch']
  #allocation2 [shape = 'f32[256,8]{1,0:T(8,128)}', space=vmem, size = 0x20000, scoped, tag = 'scratch operand']
  #allocation3 [shape = 'f32[63,16]{1,0:T(8,128)}', space=vmem, size = 0x8000, scoped, tag = 'scratch operand']
  #allocation4 [shape = 'f32[14,16]{1,0:T(8,128)}', space=vmem, size = 0x2000, scoped, tag = 'scratch operand']
  #allocation5 [shape = 'f32[6,16]{1,0:T(8,128)}', space=vmem, size = 0x1000, scoped, tag = 'scratch operand']
  #allocation6 [shape = 's32[1]{0}', space=sflag, size = 0x4, scoped, tag = 'scoped memory for cnn_classifier_forward.1']
  #allocation7 [shape = 'u8[512]{0}', space=smem, size = 0x200, scoped, tag = 'prefetched SMEM operand 0']
  %s0 = inlined_call_operand.vmem [shape: s32[2], index: 0, kind: input, shape index: {}]
  %s1 = inlined_call_operand.vmem [shape: f32[2,256,8], index: 1, kind: input, shape index: {}]
  %s2 = inlined_call_operand.vmem [shape: f32[2,256,8], index: 2, kind: input, shape index: {}]
  %s3 = inlined_call_operand.vmem [shape: f32[8,8], index: 3, kind: input, shape index: {}]
  %s4 = inlined_call_operand.vmem [shape: f32[1,8], index: 4, kind: input, shape index: {}]
  %s5 = inlined_call_operand.vmem [shape: f32[8,8], index: 5, kind: input, shape index: {}]
  %s6 = inlined_call_operand.vmem [shape: f32[1,8], index: 6, kind: input, shape index: {}]
  %s7 = inlined_call_operand.vmem [shape: f32[8,8,16], index: 7, kind: input, shape index: {}]
  %s8 = inlined_call_operand.vmem [shape: f32[1,16], index: 8, kind: input, shape index: {}]
  %s9 = inlined_call_operand.vmem [shape: f32[8,16,16], index: 9, kind: input, shape index: {}]
  %s10 = inlined_call_operand.vmem [shape: f32[1,16], index: 10, kind: input, shape index: {}]
  %s11 = inlined_call_operand.vmem [shape: f32[4,16,16], index: 11, kind: input, shape index: {}]
  %s12 = inlined_call_operand.vmem [shape: f32[1,16], index: 12, kind: input, shape index: {}]
  %s13 = inlined_call_operand.vmem [shape: f32[4,16,16], index: 13, kind: input, shape index: {}]
  %s14 = inlined_call_operand.vmem [shape: f32[1,16], index: 14, kind: input, shape index: {}]
  %s15 = inlined_call_operand.vmem [shape: f32[1,16], index: 15, kind: input, shape index: {}]
  %s16 = inlined_call_operand.vmem [shape: f32[1,16], index: 16, kind: input, shape index: {}]
  %s17 = inlined_call_operand.hbm [shape: f32[2,2,16], index: 17, kind: output, shape index: {}]
  %s18 = sld [smem:[#allocation0]]
  $region74: #{cnn_classifier_forward.1} parent=0
    _
  %s20 = ssub.s32 1, %s18
  %s21 = scalar_select 0, %s20, %s18
  %s22 = sshll.u32 %s0, 4
  %s23 = int_to_ptr.vmem [resolvable:$true] %s22
  %25 = dma.vmem_to_smem %s23, 16, [#allocation7], [#allocation6]
  %26 = dma.done [#allocation6], 16
  %27 = sfence
  $region1: #{cnn_classifier_forward.1} parent=0
    #allocation8 [shape = 'u8[2048]{0}', space=vmem, size = 0x800, scoped, tag = 'output window, operand 0, single buffered']
    #allocation9 [shape = 's32[1]{0}', space=sflag, size = 0x4, scoped, tag = 'scoped memory for cnn_classifier_forward.1']
    %28 = vsyncpa [#allocation9], 0
    // Predicated region
    $region2: #{cnn_classifier_forward.1} parent=1 // pred_check
      _
    $region3: #{cnn_classifier_forward.1} parent=1 // pred_check_branch
      %30 = sbr.rel (0) target = $region5
    $region4: #{cnn_classifier_forward.1} parent=1 // pred_region
      _
    $region5: #{cnn_classifier_forward.1} parent=1 // pred_fallthru
      _
    // Predicated region
    $region6: #{cnn_classifier_forward.1} parent=1 // pred_check
      _
    $region7: #{cnn_classifier_forward.1} parent=1 // pred_check_branch
      %32 = sbr.rel (0) target = $region9
    $region8: #{cnn_classifier_forward.1} parent=1 // pred_region
      _
    $region9: #{cnn_classifier_forward.1} parent=1 // pred_fallthru
      _
    // Predicated region
    $region10: #{cnn_classifier_forward.1} parent=1 // pred_check
      _
    $region11: #{cnn_classifier_forward.1} parent=1 // pred_check_branch
      %34 = sbr.rel (0) target = $region13
    $region12: #{cnn_classifier_forward.1} parent=1 // pred_region
      _
    $region13: #{cnn_classifier_forward.1} parent=1 // pred_fallthru
      _
    // Predicated region
    $region14: #{cnn_classifier_forward.1} parent=1 // pred_check
      _
    $region15: #{cnn_classifier_forward.1} parent=1 // pred_check_branch
      %36 = sbr.rel (0) target = $region17
    $region16: #{cnn_classifier_forward.1} parent=1 // pred_region
      _
    $region17: #{cnn_classifier_forward.1} parent=1 // pred_fallthru
      _
    // Predicated region
    $region18: #{cnn_classifier_forward.1} parent=1 // pred_check
      _
    $region19: #{cnn_classifier_forward.1} parent=1 // pred_check_branch
      %38 = sbr.rel (0) target = $region21
    $region20: #{cnn_classifier_forward.1} parent=1 // pred_region
      _
    $region21: #{cnn_classifier_forward.1} parent=1 // pred_fallthru
      _
    // Predicated region
    $region22: #{cnn_classifier_forward.1} parent=1 // pred_check
      _
    $region23: #{cnn_classifier_forward.1} parent=1 // pred_check_branch
      %40 = sbr.rel (0) target = $region25
    $region24: #{cnn_classifier_forward.1} parent=1 // pred_region
      _
    $region25: #{cnn_classifier_forward.1} parent=1 // pred_fallthru
      _
    // Predicated region
    $region26: #{cnn_classifier_forward.1} parent=1 // pred_check
      _
    $region27: #{cnn_classifier_forward.1} parent=1 // pred_check_branch
      %42 = sbr.rel (0) target = $region29
    $region28: #{cnn_classifier_forward.1} parent=1 // pred_region
      _
    $region29: #{cnn_classifier_forward.1} parent=1 // pred_fallthru
      _
    // Predicated region
    $region30: #{cnn_classifier_forward.1} parent=1 // pred_check
      _
    $region31: #{cnn_classifier_forward.1} parent=1 // pred_check_branch
      %44 = sbr.rel (0) target = $region33
    $region32: #{cnn_classifier_forward.1} parent=1 // pred_region
      _
    $region33: #{cnn_classifier_forward.1} parent=1 // pred_fallthru
      _
    // Predicated region
    $region34: #{cnn_classifier_forward.1} parent=1 // pred_check
      _
    $region35: #{cnn_classifier_forward.1} parent=1 // pred_check_branch
      %46 = sbr.rel (0) target = $region37
    $region36: #{cnn_classifier_forward.1} parent=1 // pred_region
      _
    $region37: #{cnn_classifier_forward.1} parent=1 // pred_fallthru
      _
    // Predicated region
    $region38: #{cnn_classifier_forward.1} parent=1 // pred_check
      _
    $region39: #{cnn_classifier_forward.1} parent=1 // pred_check_branch
      %48 = sbr.rel (0) target = $region41
    $region40: #{cnn_classifier_forward.1} parent=1 // pred_region
      _
    $region41: #{cnn_classifier_forward.1} parent=1 // pred_fallthru
      _
    // Predicated region
    $region42: #{cnn_classifier_forward.1} parent=1 // pred_check
      _
    $region43: #{cnn_classifier_forward.1} parent=1 // pred_check_branch
      %50 = sbr.rel (0) target = $region45
    $region44: #{cnn_classifier_forward.1} parent=1 // pred_region
      _
    $region45: #{cnn_classifier_forward.1} parent=1 // pred_fallthru
      _
    // Predicated region
    $region46: #{cnn_classifier_forward.1} parent=1 // pred_check
      _
    $region47: #{cnn_classifier_forward.1} parent=1 // pred_check_branch
      %52 = sbr.rel (0) target = $region49
    $region48: #{cnn_classifier_forward.1} parent=1 // pred_region
      _
    $region49: #{cnn_classifier_forward.1} parent=1 // pred_fallthru
      _
    // Predicated region
    $region50: #{cnn_classifier_forward.1} parent=1 // pred_check
      _
    $region51: #{cnn_classifier_forward.1} parent=1 // pred_check_branch
      %54 = sbr.rel (0) target = $region53
    $region52: #{cnn_classifier_forward.1} parent=1 // pred_region
      _
    $region53: #{cnn_classifier_forward.1} parent=1 // pred_fallthru
      _
    // Predicated region
    $region54: #{cnn_classifier_forward.1} parent=1 // pred_check
      _
    $region55: #{cnn_classifier_forward.1} parent=1 // pred_check_branch
      %56 = sbr.rel (0) target = $region57
    $region56: #{cnn_classifier_forward.1} parent=1 // pred_region
      _
    $region57: #{cnn_classifier_forward.1} parent=1 // pred_fallthru
      _
    // Predicated region
    $region58: #{cnn_classifier_forward.1} parent=1 // pred_check
      _
    $region59: #{cnn_classifier_forward.1} parent=1 // pred_check_branch
      %58 = sbr.rel (0) target = $region61
    $region60: #{cnn_classifier_forward.1} parent=1 // pred_region
      _
    $region61: #{cnn_classifier_forward.1} parent=1 // pred_fallthru
      _
    // Predicated region
    $region62: #{cnn_classifier_forward.1} parent=1 // pred_check
      _
    $region63: #{cnn_classifier_forward.1} parent=1 // pred_check_branch
      %60 = sbr.rel (0) target = $region65
    $region64: #{cnn_classifier_forward.1} parent=1 // pred_region
      _
    $region65: #{cnn_classifier_forward.1} parent=1 // pred_fallthru
      _
    %v61 = vlaneseq
    %v62 = vshrl.u32 %v61, 7
    %v63 = vadd.s32 %v62, 8
    %v64 = vadd.s32 %v62, 16
    %v65 = vadd.s32 %v62, 24
    %v66 = vadd.s32 %v62, 32
    %v67 = vadd.s32 %v62, 40
    %v68 = vadd.s32 %v62, 48
    %v69 = vadd.s32 %v62, 56
    %v70 = vadd.s32 %v62, 64
    %v71 = vadd.s32 %v62, 72
    %v72 = vadd.s32 %v62, 80
    %v73 = vadd.s32 %v62, 88
    %v74 = vadd.s32 %v62, 96
    %v75 = vadd.s32 %v62, 104
    %v76 = vadd.s32 %v62, 112
    %v77 = vadd.s32 %v62, 120
    %v78 = vadd.s32 %v62, 128
    %v79 = vadd.s32 %v62, 136
    %v80 = vadd.s32 %v62, 144
    %v81 = vadd.s32 %v62, 152
    %v82 = vadd.s32 %v62, 160
    %v83 = vadd.s32 %v62, 168
    %v84 = vadd.s32 %v62, 176
    %v85 = vadd.s32 %v62, 184
    %v86 = vadd.s32 %v62, 192
    %v87 = vadd.s32 %v62, 200
    %v88 = vadd.s32 %v62, 208
    %v89 = vadd.s32 %v62, 216
    %v90 = vadd.s32 %v62, 224
    %v91 = vadd.s32 %v62, 232
    %v92 = vadd.s32 %v62, 240
    %v93 = vadd.s32 %v62, 248
    %s94 = smul.u32 0, 2
    %s95 = sld [smem:[#allocation7 + %s94]]
    %v96 = vstv %s95
    %vm97 = vcmp.lt.s32.totalorder %v62, %v96
    %vm98 = vcmp.lt.s32.totalorder %v63, %v96
    %vm99 = vcmp.lt.s32.totalorder %v64, %v96
    %vm100 = vcmp.lt.s32.totalorder %v65, %v96
    %vm101 = vcmp.lt.s32.totalorder %v66, %v96
    %vm102 = vcmp.lt.s32.totalorder %v67, %v96
    %vm103 = vcmp.lt.s32.totalorder %v68, %v96
    %vm104 = vcmp.lt.s32.totalorder %v69, %v96
    %vm105 = vcmp.lt.s32.totalorder %v70, %v96
    %vm106 = vcmp.lt.s32.totalorder %v71, %v96
    %vm107 = vcmp.lt.s32.totalorder %v72, %v96
    %vm108 = vcmp.lt.s32.totalorder %v73, %v96
    %vm109 = vcmp.lt.s32.totalorder %v74, %v96
    %vm110 = vcmp.lt.s32.totalorder %v75, %v96
    %vm111 = vcmp.lt.s32.totalorder %v76, %v96
    %vm112 = vcmp.lt.s32.totalorder %v77, %v96
    %vm113 = vcmp.lt.s32.totalorder %v78, %v96
    %vm114 = vcmp.lt.s32.totalorder %v79, %v96
    %vm115 = vcmp.lt.s32.totalorder %v80, %v96
    %vm116 = vcmp.lt.s32.totalorder %v81, %v96
    %vm117 = vcmp.lt.s32.totalorder %v82, %v96
    %vm118 = vcmp.lt.s32.totalorder %v83, %v96
    %vm119 = vcmp.lt.s32.totalorder %v84, %v96
    %vm120 = vcmp.lt.s32.totalorder %v85, %v96
    %vm121 = vcmp.lt.s32.totalorder %v86, %v96
    %vm122 = vcmp.lt.s32.totalorder %v87, %v96
    %vm123 = vcmp.lt.s32.totalorder %v88, %v96
    %vm124 = vcmp.lt.s32.totalorder %v89, %v96
    %vm125 = vcmp.lt.s32.totalorder %v90, %v96
    %vm126 = vcmp.lt.s32.totalorder %v91, %v96
    %vm127 = vcmp.lt.s32.totalorder %v92, %v96
    %vm128 = vcmp.lt.s32.totalorder %v93, %v96
    %v129 = vsel %vm97, 1, 0
    %v130 = vsel %vm98, 1, 0
    %v131 = vsel %vm99, 1, 0
    %v132 = vsel %vm100, 1, 0
    %v133 = vsel %vm101, 1, 0
    %v134 = vsel %vm102, 1, 0
    %v135 = vsel %vm103, 1, 0
    %v136 = vsel %vm104, 1, 0
    %v137 = vsel %vm105, 1, 0
    %v138 = vsel %vm106, 1, 0
    %v139 = vsel %vm107, 1, 0
    %v140 = vsel %vm108, 1, 0
    %v141 = vsel %vm109, 1, 0
    %v142 = vsel %vm110, 1, 0
    %v143 = vsel %vm111, 1, 0
    %v144 = vsel %vm112, 1, 0
    %v145 = vsel %vm113, 1, 0
    %v146 = vsel %vm114, 1, 0
    %v147 = vsel %vm115, 1, 0
    %v148 = vsel %vm116, 1, 0
    %v149 = vsel %vm117, 1, 0
    %v150 = vsel %vm118, 1, 0
    %v151 = vsel %vm119, 1, 0
    %v152 = vsel %vm120, 1, 0
    %v153 = vsel %vm121, 1, 0
    %v154 = vsel %vm122, 1, 0
    %v155 = vsel %vm123, 1, 0
    %v156 = vsel %vm124, 1, 0
    %v157 = vsel %vm125, 1, 0
    %v158 = vsel %vm126, 1, 0
    %v159 = vsel %vm127, 1, 0
    %v160 = vsel %vm128, 1, 0
    %v161 = vcvt.s32.f32 %v129
    %v162 = vcvt.s32.f32 %v130
    %v163 = vcvt.s32.f32 %v131
    %v164 = vcvt.s32.f32 %v132
    %v165 = vcvt.s32.f32 %v133
    %v166 = vcvt.s32.f32 %v134
    %v167 = vcvt.s32.f32 %v135
    %v168 = vcvt.s32.f32 %v136
    %v169 = vcvt.s32.f32 %v137
    %v170 = vcvt.s32.f32 %v138
    %v171 = vcvt.s32.f32 %v139
    %v172 = vcvt.s32.f32 %v140
    %v173 = vcvt.s32.f32 %v141
    %v174 = vcvt.s32.f32 %v142
    %v175 = vcvt.s32.f32 %v143
    %v176 = vcvt.s32.f32 %v144
    %v177 = vcvt.s32.f32 %v145
    %v178 = vcvt.s32.f32 %v146
    %v179 = vcvt.s32.f32 %v147
    %v180 = vcvt.s32.f32 %v148
    %v181 = vcvt.s32.f32 %v149
    %v182 = vcvt.s32.f32 %v150
    %v183 = vcvt.s32.f32 %v151
    %v184 = vcvt.s32.f32 %v152
    %v185 = vcvt.s32.f32 %v153
    %v186 = vcvt.s32.f32 %v154
    %v187 = vcvt.s32.f32 %v155
    %v188 = vcvt.s32.f32 %v156
    %v189 = vcvt.s32.f32 %v157
    %v190 = vcvt.s32.f32 %v158
    %v191 = vcvt.s32.f32 %v159
    %v192 = vcvt.s32.f32 %v160
    %v193 = vld [vmem:[%s2] sm:$0xff]
    %v194 = vld [vmem:[%s2 + $0x8] sm:$0xff]
    %v195 = vld [vmem:[%s2 + $0x10] sm:$0xff]
    %v196 = vld [vmem:[%s2 + $0x18] sm:$0xff]
    %v197 = vld [vmem:[%s2 + $0x20] sm:$0xff]
    %v198 = vld [vmem:[%s2 + $0x28] sm:$0xff]
    %v199 = vld [vmem:[%s2 + $0x30] sm:$0xff]
    %v200 = vld [vmem:[%s2 + $0x38] sm:$0xff]
    %v201 = vld [vmem:[%s2 + $0x40] sm:$0xff]
    %v202 = vld [vmem:[%s2 + $0x48] sm:$0xff]
    %v203 = vld [vmem:[%s2 + $0x50] sm:$0xff]
    %v204 = vld [vmem:[%s2 + $0x58] sm:$0xff]
    %v205 = vld [vmem:[%s2 + $0x60] sm:$0xff]
    %v206 = vld [vmem:[%s2 + $0x68] sm:$0xff]
    %v207 = vld [vmem:[%s2 + $0x70] sm:$0xff]
    %v208 = vld [vmem:[%s2 + $0x78] sm:$0xff]
    %v209 = vld [vmem:[%s2 + $0x80] sm:$0xff]
    %v210 = vld [vmem:[%s2 + $0x88] sm:$0xff]
    %v211 = vld [vmem:[%s2 + $0x90] sm:$0xff]
    %v212 = vld [vmem:[%s2 + $0x98] sm:$0xff]
    %v213 = vld [vmem:[%s2 + $0xa0] sm:$0xff]
    %v214 = vld [vmem:[%s2 + $0xa8] sm:$0xff]
    %v215 = vld [vmem:[%s2 + $0xb0] sm:$0xff]
    %v216 = vld [vmem:[%s2 + $0xb8] sm:$0xff]
    %v217 = vld [vmem:[%s2 + $0xc0] sm:$0xff]
    %v218 = vld [vmem:[%s2 + $0xc8] sm:$0xff]
    %v219 = vld [vmem:[%s2 + $0xd0] sm:$0xff]
    %v220 = vld [vmem:[%s2 + $0xd8] sm:$0xff]
    %v221 = vld [vmem:[%s2 + $0xe0] sm:$0xff]
    %v222 = vld [vmem:[%s2 + $0xe8] sm:$0xff]
    %v223 = vld [vmem:[%s2 + $0xf0] sm:$0xff]
    %v224 = vld [vmem:[%s2 + $0xf8] sm:$0xff]
    %v225 = vld [vmem:[%s3] sm:$0xff]
    %v226 = vld [vmem:[%s4] sm:$0x1]
    %v228 = vlaneseq
    %v229 = vshrl.u32 %v228, 7
    %v230 = vsub.s32 0, %v229
    %v231 = vrot.slane %v226, %v230
    %vm233 = vcmask 64512
    %v235 = vsel %vm233, %v193, 0
    %v238 = vsel %vm233, %v194, 0
    %v241 = vsel %vm233, %v195, 0
    %v244 = vsel %vm233, %v196, 0
    %v247 = vsel %vm233, %v197, 0
    %v250 = vsel %vm233, %v198, 0
    %v253 = vsel %vm233, %v199, 0
    %v256 = vsel %vm233, %v200, 0
    %v259 = vsel %vm233, %v201, 0
    %v262 = vsel %vm233, %v202, 0
    %v265 = vsel %vm233, %v203, 0
    %v268 = vsel %vm233, %v204, 0
    %v271 = vsel %vm233, %v205, 0
    %v274 = vsel %vm233, %v206, 0
    %v277 = vsel %vm233, %v207, 0
    %v280 = vsel %vm233, %v208, 0
    %v283 = vsel %vm233, %v209, 0
    %v286 = vsel %vm233, %v210, 0
    %v289 = vsel %vm233, %v211, 0
    %v292 = vsel %vm233, %v212, 0
    %v295 = vsel %vm233, %v213, 0
    %v298 = vsel %vm233, %v214, 0
    %v301 = vsel %vm233, %v215, 0
    %v304 = vsel %vm233, %v216, 0
    %v307 = vsel %vm233, %v217, 0
    %v310 = vsel %vm233, %v218, 0
    %v313 = vsel %vm233, %v219, 0
    %v316 = vsel %vm233, %v220, 0
    %v319 = vsel %vm233, %v221, 0
    %v322 = vsel %vm233, %v222, 0
    %v325 = vsel %vm233, %v223, 0
    %v328 = vsel %vm233, %v224, 0
    %330 = vmatprep.subr.mxu0 0.0
    %331 = vmatpush1.msra.mxu0 0.0
    %332 = vmatprep.subr.mxu0 0.0
    %333 = vmatpush1.msra.mxu0 0.0
    %334 = vmatprep.subr.mxu0 0.0
    %335 = vmatpush1.msra.mxu0 0.0
    %336 = vmatprep.subr.mxu0 0.0
    %337 = vmatpush1.msra.mxu0 0.0
    %338 = vmatprep.subr.mxu0 0.0
    %339 = vmatpush1.msra.mxu0 0.0
    %340 = vmatprep.subr.mxu0 0.0
    %341 = vmatpush1.msra.mxu0 0.0
    %342 = vmatprep.subr.mxu0 0.0
    %343 = vmatpush1.msra.mxu0 0.0
    %344 = vmatprep.subr.mxu0 0.0
    %345 = vmatpush1.msra.mxu0 0.0
    %346 = vmatprep.subr.mxu0 0.0
    %347 = vmatpush1.msra.mxu0 0.0
    %348 = vmatprep.subr.mxu0 0.0
    %349 = vmatpush1.msra.mxu0 0.0
    %350 = vmatprep.subr.mxu0 0.0
    %351 = vmatpush1.msra.mxu0 0.0
    %352 = vmatprep.subr.mxu0 0.0
    %353 = vmatpush1.msra.mxu0 0.0
    %354 = vmatprep.subr.mxu0 0.0
    %355 = vmatpush1.msra.mxu0 0.0
    %356 = vmatprep.subr.mxu0 0.0
    %357 = vmatpush1.msra.mxu0 0.0
    %358 = vmatprep.subr.mxu0 0.0
    %359 = vmatpush1.msra.mxu0 0.0
    %360 = vmatprep.subr.mxu0 0.0
    %361 = vmatpush1.msra.mxu0 %v225
    %362 = vmatprep.subr.mxu0 0.0
    %363 = vmatpush2.msra.mxu0 0.0
    %364 = vmatprep.subr.mxu0 0.0
    %365 = vmatpush2.msra.mxu0 0.0
    %366 = vmatprep.subr.mxu0 0.0
    %367 = vmatpush2.msra.mxu0 0.0
    %368 = vmatprep.subr.mxu0 0.0
    %369 = vmatpush2.msra.mxu0 0.0
    %370 = vmatprep.subr.mxu0 0.0
    %371 = vmatpush2.msra.mxu0 0.0
    %372 = vmatprep.subr.mxu0 0.0
    %373 = vmatpush2.msra.mxu0 0.0
    %374 = vmatprep.subr.mxu0 0.0
    %375 = vmatpush2.msra.mxu0 0.0
    %376 = vmatprep.subr.mxu0 0.0
    %377 = vmatpush2.msra.mxu0 0.0
    %378 = vmatprep.subr.mxu0 0.0
    %379 = vmatpush2.msra.mxu0 0.0
    %380 = vmatprep.subr.mxu0 0.0
    %381 = vmatpush2.msra.mxu0 0.0
    %382 = vmatprep.subr.mxu0 0.0
    %383 = vmatpush2.msra.mxu0 0.0
    %384 = vmatprep.subr.mxu0 0.0
    %385 = vmatpush2.msra.mxu0 0.0
    %386 = vmatprep.subr.mxu0 0.0
    %387 = vmatpush2.msra.mxu0 0.0
    %388 = vmatprep.subr.mxu0 0.0
    %389 = vmatpush2.msra.mxu0 0.0
    %390 = vmatprep.subr.mxu0 0.0
    %391 = vmatpush2.msra.mxu0 0.0
    %392 = vmatprep.subr.mxu0 0.0
    %393 = vmatpush2.msra.mxu0 0.0
    %394 = vmatprep.mubr.f32.mxu0 0.0
    %395 = vmatmul.mubr.f32.gmra.mxu0 %v235
    %v396 = vpop.f32.mrf.mxu0
    %v397 = vadd.f32 %v231, %v396
    %v398 = vpop.f32.mrf.mxu0
    %399 = vmatprep.mubr.f32.mxu0 0.0
    %400 = vmatmul.mubr.f32.gmra.mxu0 %v238
    %v401 = vpop.f32.mrf.mxu0
    %v402 = vadd.f32 %v231, %v401
    %v403 = vpop.f32.mrf.mxu0
    %404 = vmatprep.mubr.f32.mxu0 0.0
    %405 = vmatmul.mubr.f32.gmra.mxu0 %v241
    %v406 = vpop.f32.mrf.mxu0
    %v407 = vadd.f32 %v231, %v406
    %v408 = vpop.f32.mrf.mxu0
    %409 = vmatprep.mubr.f32.mxu0 0.0
    %410 = vmatmul.mubr.f32.gmra.mxu0 %v244
    %v411 = vpop.f32.mrf.mxu0
    %v412 = vadd.f32 %v231, %v411
    %v413 = vpop.f32.mrf.mxu0
    %414 = vmatprep.mubr.f32.mxu0 0.0
    %415 = vmatmul.mubr.f32.gmra.mxu0 %v247
    %v416 = vpop.f32.mrf.mxu0
    %v417 = vadd.f32 %v231, %v416
    %v418 = vpop.f32.mrf.mxu0
    %419 = vmatprep.mubr.f32.mxu0 0.0
    %420 = vmatmul.mubr.f32.gmra.mxu0 %v250
    %v421 = vpop.f32.mrf.mxu0
    %v422 = vadd.f32 %v231, %v421
    %v423 = vpop.f32.mrf.mxu0
    %424 = vmatprep.mubr.f32.mxu0 0.0
    %425 = vmatmul.mubr.f32.gmra.mxu0 %v253
    %v426 = vpop.f32.mrf.mxu0
    %v427 = vadd.f32 %v231, %v426
    %v428 = vpop.f32.mrf.mxu0
    %429 = vmatprep.mubr.f32.mxu0 0.0
    %430 = vmatmul.mubr.f32.gmra.mxu0 %v256
    %v431 = vpop.f32.mrf.mxu0
    %v432 = vadd.f32 %v231, %v431
    %v433 = vpop.f32.mrf.mxu0
    %434 = vmatprep.mubr.f32.mxu0 0.0
    %435 = vmatmul.mubr.f32.gmra.mxu0 %v259
    %v436 = vpop.f32.mrf.mxu0
    %v437 = vadd.f32 %v231, %v436
    %v438 = vpop.f32.mrf.mxu0
    %439 = vmatprep.mubr.f32.mxu0 0.0
    %440 = vmatmul.mubr.f32.gmra.mxu0 %v262
    %v441 = vpop.f32.mrf.mxu0
    %v442 = vadd.f32 %v231, %v441
    %v443 = vpop.f32.mrf.mxu0
    %444 = vmatprep.mubr.f32.mxu0 0.0
    %445 = vmatmul.mubr.f32.gmra.mxu0 %v265
    %v446 = vpop.f32.mrf.mxu0
    %v447 = vadd.f32 %v231, %v446
    %v448 = vpop.f32.mrf.mxu0
    %449 = vmatprep.mubr.f32.mxu0 0.0
    %450 = vmatmul.mubr.f32.gmra.mxu0 %v268
    %v451 = vpop.f32.mrf.mxu0
    %v452 = vadd.f32 %v231, %v451
    %v453 = vpop.f32.mrf.mxu0
    %454 = vmatprep.mubr.f32.mxu0 0.0
    %455 = vmatmul.mubr.f32.gmra.mxu0 %v271
    %v456 = vpop.f32.mrf.mxu0
    %v457 = vadd.f32 %v231, %v456
    %v458 = vpop.f32.mrf.mxu0
    %459 = vmatprep.mubr.f32.mxu0 0.0
    %460 = vmatmul.mubr.f32.gmra.mxu0 %v274
    %v461 = vpop.f32.mrf.mxu0
    %v462 = vadd.f32 %v231, %v461
    %v463 = vpop.f32.mrf.mxu0
    %464 = vmatprep.mubr.f32.mxu0 0.0
    %465 = vmatmul.mubr.f32.gmra.mxu0 %v277
    %v466 = vpop.f32.mrf.mxu0
    %v467 = vadd.f32 %v231, %v466
    %v468 = vpop.f32.mrf.mxu0
    %469 = vmatprep.mubr.f32.mxu0 0.0
    %470 = vmatmul.mubr.f32.gmra.mxu0 %v280
    %v471 = vpop.f32.mrf.mxu0
    %v472 = vadd.f32 %v231, %v471
    %v473 = vpop.f32.mrf.mxu0
    %474 = vmatprep.mubr.f32.mxu0 0.0
    %475 = vmatmul.mubr.f32.gmra.mxu0 %v283
    %v476 = vpop.f32.mrf.mxu0
    %v477 = vadd.f32 %v231, %v476
    %v478 = vpop.f32.mrf.mxu0
    %479 = vmatprep.mubr.f32.mxu0 0.0
    %480 = vmatmul.mubr.f32.gmra.mxu0 %v286
    %v481 = vpop.f32.mrf.mxu0
    %v482 = vadd.f32 %v231, %v481
    %v483 = vpop.f32.mrf.mxu0
    %484 = vmatprep.mubr.f32.mxu0 0.0
    %485 = vmatmul.mubr.f32.gmra.mxu0 %v289
    %v486 = vpop.f32.mrf.mxu0
    %v487 = vadd.f32 %v231, %v486
    %v488 = vpop.f32.mrf.mxu0
    %489 = vmatprep.mubr.f32.mxu0 0.0
    %490 = vmatmul.mubr.f32.gmra.mxu0 %v292
    %v491 = vpop.f32.mrf.mxu0
    %v492 = vadd.f32 %v231, %v491
    %v493 = vpop.f32.mrf.mxu0
    %494 = vmatprep.mubr.f32.mxu0 0.0
    %495 = vmatmul.mubr.f32.gmra.mxu0 %v295
    %v496 = vpop.f32.mrf.mxu0
    %v497 = vadd.f32 %v231, %v496
    %v498 = vpop.f32.mrf.mxu0
    %499 = vmatprep.mubr.f32.mxu0 0.0
    %500 = vmatmul.mubr.f32.gmra.mxu0 %v298
    %v501 = vpop.f32.mrf.mxu0
    %v502 = vadd.f32 %v231, %v501
    %v503 = vpop.f32.mrf.mxu0
    %504 = vmatprep.mubr.f32.mxu0 0.0
    %505 = vmatmul.mubr.f32.gmra.mxu0 %v301
    %v506 = vpop.f32.mrf.mxu0
    %v507 = vadd.f32 %v231, %v506
    %v508 = vpop.f32.mrf.mxu0
    %509 = vmatprep.mubr.f32.mxu0 0.0
    %510 = vmatmul.mubr.f32.gmra.mxu0 %v304
    %v511 = vpop.f32.mrf.mxu0
    %v512 = vadd.f32 %v231, %v511
    %v513 = vpop.f32.mrf.mxu0
    %514 = vmatprep.mubr.f32.mxu0 0.0
    %515 = vmatmul.mubr.f32.gmra.mxu0 %v307
    %v516 = vpop.f32.mrf.mxu0
    %v517 = vadd.f32 %v231, %v516
    %v518 = vpop.f32.mrf.mxu0
    %519 = vmatprep.mubr.f32.mxu0 0.0
    %520 = vmatmul.mubr.f32.gmra.mxu0 %v310
    %v521 = vpop.f32.mrf.mxu0
    %v522 = vadd.f32 %v231, %v521
    %v523 = vpop.f32.mrf.mxu0
    %524 = vmatprep.mubr.f32.mxu0 0.0
    %525 = vmatmul.mubr.f32.gmra.mxu0 %v313
    %v526 = vpop.f32.mrf.mxu0
    %v527 = vadd.f32 %v231, %v526
    %v528 = vpop.f32.mrf.mxu0
    %529 = vmatprep.mubr.f32.mxu0 0.0
    %530 = vmatmul.mubr.f32.gmra.mxu0 %v316
    %v531 = vpop.f32.mrf.mxu0
    %v532 = vadd.f32 %v231, %v531
    %v533 = vpop.f32.mrf.mxu0
    %534 = vmatprep.mubr.f32.mxu0 0.0
    %535 = vmatmul.mubr.f32.gmra.mxu0 %v319
    %v536 = vpop.f32.mrf.mxu0
    %v537 = vadd.f32 %v231, %v536
    %v538 = vpop.f32.mrf.mxu0
    %539 = vmatprep.mubr.f32.mxu0 0.0
    %540 = vmatmul.mubr.f32.gmra.mxu0 %v322
    %v541 = vpop.f32.mrf.mxu0
    %v542 = vadd.f32 %v231, %v541
    %v543 = vpop.f32.mrf.mxu0
    %544 = vmatprep.mubr.f32.mxu0 0.0
    %545 = vmatmul.mubr.f32.gmra.mxu0 %v325
    %v546 = vpop.f32.mrf.mxu0
    %v547 = vadd.f32 %v231, %v546
    %v548 = vpop.f32.mrf.mxu0
    %549 = vmatprep.mubr.f32.mxu0 0.0
    %550 = vmatmul.mubr.f32.gmra.mxu0 %v328
    %v551 = vpop.f32.mrf.mxu0
    %v552 = vadd.f32 %v231, %v551
    %v553 = vpop.f32.mrf.mxu0
    %554 = vdwg.mxu0
    %vm555 = vcmp.ge.f32.partialorder %v397, 0.0
    %vm556 = vcmp.ge.f32.partialorder %v402, 0.0
    %vm557 = vcmp.ge.f32.partialorder %v407, 0.0
    %vm558 = vcmp.ge.f32.partialorder %v412, 0.0
    %vm559 = vcmp.ge.f32.partialorder %v417, 0.0
    %vm560 = vcmp.ge.f32.partialorder %v422, 0.0
    %vm561 = vcmp.ge.f32.partialorder %v427, 0.0
    %vm562 = vcmp.ge.f32.partialorder %v432, 0.0
    %vm563 = vcmp.ge.f32.partialorder %v437, 0.0
    %vm564 = vcmp.ge.f32.partialorder %v442, 0.0
    %vm565 = vcmp.ge.f32.partialorder %v447, 0.0
    %vm566 = vcmp.ge.f32.partialorder %v452, 0.0
    %vm567 = vcmp.ge.f32.partialorder %v457, 0.0
    %vm568 = vcmp.ge.f32.partialorder %v462, 0.0
    %vm569 = vcmp.ge.f32.partialorder %v467, 0.0
    %vm570 = vcmp.ge.f32.partialorder %v472, 0.0
    %vm571 = vcmp.ge.f32.partialorder %v477, 0.0
    %vm572 = vcmp.ge.f32.partialorder %v482, 0.0
    %vm573 = vcmp.ge.f32.partialorder %v487, 0.0
    %vm574 = vcmp.ge.f32.partialorder %v492, 0.0
    %vm575 = vcmp.ge.f32.partialorder %v497, 0.0
    %vm576 = vcmp.ge.f32.partialorder %v502, 0.0
    %vm577 = vcmp.ge.f32.partialorder %v507, 0.0
    %vm578 = vcmp.ge.f32.partialorder %v512, 0.0
    %vm579 = vcmp.ge.f32.partialorder %v517, 0.0
    %vm580 = vcmp.ge.f32.partialorder %v522, 0.0
    %vm581 = vcmp.ge.f32.partialorder %v527, 0.0
    %vm582 = vcmp.ge.f32.partialorder %v532, 0.0
    %vm583 = vcmp.ge.f32.partialorder %v537, 0.0
    %vm584 = vcmp.ge.f32.partialorder %v542, 0.0
    %vm585 = vcmp.ge.f32.partialorder %v547, 0.0
    %vm586 = vcmp.ge.f32.partialorder %v552, 0.0
    %v587 = vmul.f32 %v397, 0.01
    %v588 = vmul.f32 %v402, 0.01
    %v589 = vmul.f32 %v407, 0.01
    %v590 = vmul.f32 %v412, 0.01
    %v591 = vmul.f32 %v417, 0.01
    %v592 = vmul.f32 %v422, 0.01
    %v593 = vmul.f32 %v427, 0.01
    %v594 = vmul.f32 %v432, 0.01
    %v595 = vmul.f32 %v437, 0.01
    %v596 = vmul.f32 %v442, 0.01
    %v597 = vmul.f32 %v447, 0.01
    %v598 = vmul.f32 %v452, 0.01
    %v599 = vmul.f32 %v457, 0.01
    %v600 = vmul.f32 %v462, 0.01
    %v601 = vmul.f32 %v467, 0.01
    %v602 = vmul.f32 %v472, 0.01
    %v603 = vmul.f32 %v477, 0.01
    %v604 = vmul.f32 %v482, 0.01
    %v605 = vmul.f32 %v487, 0.01
    %v606 = vmul.f32 %v492, 0.01
    %v607 = vmul.f32 %v497, 0.01
    %v608 = vmul.f32 %v502, 0.01
    %v609 = vmul.f32 %v507, 0.01
    %v610 = vmul.f32 %v512, 0.01
    %v611 = vmul.f32 %v517, 0.01
    %v612 = vmul.f32 %v522, 0.01
    %v613 = vmul.f32 %v527, 0.01
    %v614 = vmul.f32 %v532, 0.01
    %v615 = vmul.f32 %v537, 0.01
    %v616 = vmul.f32 %v542, 0.01
    %v617 = vmul.f32 %v547, 0.01
    %v618 = vmul.f32 %v552, 0.01
    %v619 = vsel %vm555, %v397, %v587
    %v620 = vsel %vm556, %v402, %v588
    %v621 = vsel %vm557, %v407, %v589
    %v622 = vsel %vm558, %v412, %v590
    %v623 = vsel %vm559, %v417, %v591
    %v624 = vsel %vm560, %v422, %v592
    %v625 = vsel %vm561, %v427, %v593
    %v626 = vsel %vm562, %v432, %v594
    %v627 = vsel %vm563, %v437, %v595
    %v628 = vsel %vm564, %v442, %v596
    %v629 = vsel %vm565, %v447, %v597
    %v630 = vsel %vm566, %v452, %v598
    %v631 = vsel %vm567, %v457, %v599
    %v632 = vsel %vm568, %v462, %v600
    %v633 = vsel %vm569, %v467, %v601
    %v634 = vsel %vm570, %v472, %v602
    %v635 = vsel %vm571, %v477, %v603
    %v636 = vsel %vm572, %v482, %v604
    %v637 = vsel %vm573, %v487, %v605
    %v638 = vsel %vm574, %v492, %v606
    %v639 = vsel %vm575, %v497, %v607
    %v640 = vsel %vm576, %v502, %v608
    %v641 = vsel %vm577, %v507, %v609
    %v642 = vsel %vm578, %v512, %v610
    %v643 = vsel %vm579, %v517, %v611
    %v644 = vsel %vm580, %v522, %v612
    %v645 = vsel %vm581, %v527, %v613
    %v646 = vsel %vm582, %v532, %v614
    %v647 = vsel %vm583, %v537, %v615
    %v648 = vsel %vm584, %v542, %v616
    %v649 = vsel %vm585, %v547, %v617
    %v650 = vsel %vm586, %v552, %v618
    %v651 = vld [vmem:[%s5] sm:$0xff]
    %v652 = vld [vmem:[%s6] sm:$0x1]
    %v654 = vlaneseq
    %v655 = vshrl.u32 %v654, 7
    %v656 = vsub.s32 0, %v655
    %v657 = vrot.slane %v652, %v656
    %v660 = vsel %vm233, %v619, 0
    %v663 = vsel %vm233, %v620, 0
    %v666 = vsel %vm233, %v621, 0
    %v669 = vsel %vm233, %v622, 0
    %v672 = vsel %vm233, %v623, 0
    %v675 = vsel %vm233, %v624, 0
    %v678 = vsel %vm233, %v625, 0
    %v681 = vsel %vm233, %v626, 0
    %v684 = vsel %vm233, %v627, 0
    %v687 = vsel %vm233, %v628, 0
    %v690 = vsel %vm233, %v629, 0
    %v693 = vsel %vm233, %v630, 0
    %v696 = vsel %vm233, %v631, 0
    %v699 = vsel %vm233, %v632, 0
    %v702 = vsel %vm233, %v633, 0
    %v705 = vsel %vm233, %v634, 0
    %v708 = vsel %vm233, %v635, 0
    %v711 = vsel %vm233, %v636, 0
    %v714 = vsel %vm233, %v637, 0
    %v717 = vsel %vm233, %v638, 0
    %v720 = vsel %vm233, %v639, 0
    %v723 = vsel %vm233, %v640, 0
    %v726 = vsel %vm233, %v641, 0
    %v729 = vsel %vm233, %v642, 0
    %v732 = vsel %vm233, %v643, 0
    %v735 = vsel %vm233, %v644, 0
    %v738 = vsel %vm233, %v645, 0
    %v741 = vsel %vm233, %v646, 0
    %v744 = vsel %vm233, %v647, 0
    %v747 = vsel %vm233, %v648, 0
    %v750 = vsel %vm233, %v649, 0
    %v753 = vsel %vm233, %v650, 0
    %755 = vmatprep.subr.mxu0 0.0
    %756 = vmatpush1.msra.mxu0 0.0
    %757 = vmatprep.subr.mxu0 0.0
    %758 = vmatpush1.msra.mxu0 0.0
    %759 = vmatprep.subr.mxu0 0.0
    %760 = vmatpush1.msra.mxu0 0.0
    %761 = vmatprep.subr.mxu0 0.0
    %762 = vmatpush1.msra.mxu0 0.0
    %763 = vmatprep.subr.mxu0 0.0
    %764 = vmatpush1.msra.mxu0 0.0
    %765 = vmatprep.subr.mxu0 0.0
    %766 = vmatpush1.msra.mxu0 0.0
    %767 = vmatprep.subr.mxu0 0.0
    %768 = vmatpush1.msra.mxu0 0.0
    %769 = vmatprep.subr.mxu0 0.0
    %770 = vmatpush1.msra.mxu0 0.0
    %771 = vmatprep.subr.mxu0 0.0
    %772 = vmatpush1.msra.mxu0 0.0
    %773 = vmatprep.subr.mxu0 0.0
    %774 = vmatpush1.msra.mxu0 0.0
    %775 = vmatprep.subr.mxu0 0.0
    %776 = vmatpush1.msra.mxu0 0.0
    %777 = vmatprep.subr.mxu0 0.0
    %778 = vmatpush1.msra.mxu0 0.0
    %779 = vmatprep.subr.mxu0 0.0
    %780 = vmatpush1.msra.mxu0 0.0
    %781 = vmatprep.subr.mxu0 0.0
    %782 = vmatpush1.msra.mxu0 0.0
    %783 = vmatprep.subr.mxu0 0.0
    %784 = vmatpush1.msra.mxu0 0.0
    %785 = vmatprep.subr.mxu0 0.0
    %786 = vmatpush1.msra.mxu0 %v651
    %787 = vmatprep.subr.mxu0 0.0
    %788 = vmatpush2.msra.mxu0 0.0
    %789 = vmatprep.subr.mxu0 0.0
    %790 = vmatpush2.msra.mxu0 0.0
    %791 = vmatprep.subr.mxu0 0.0
    %792 = vmatpush2.msra.mxu0 0.0
    %793 = vmatprep.subr.mxu0 0.0
    %794 = vmatpush2.msra.mxu0 0.0
    %795 = vmatprep.subr.mxu0 0.0
    %796 = vmatpush2.msra.mxu0 0.0
    %797 = vmatprep.subr.mxu0 0.0
    %798 = vmatpush2.msra.mxu0 0.0
    %799 = vmatprep.subr.mxu0 0.0
    %800 = vmatpush2.msra.mxu0 0.0
    %801 = vmatprep.subr.mxu0 0.0
    %802 = vmatpush2.msra.mxu0 0.0
    %803 = vmatprep.subr.mxu0 0.0
    %804 = vmatpush2.msra.mxu0 0.0
    %805 = vmatprep.subr.mxu0 0.0
    %806 = vmatpush2.msra.mxu0 0.0
    %807 = vmatprep.subr.mxu0 0.0
    %808 = vmatpush2.msra.mxu0 0.0
    %809 = vmatprep.subr.mxu0 0.0
    %810 = vmatpush2.msra.mxu0 0.0
    %811 = vmatprep.subr.mxu0 0.0
    %812 = vmatpush2.msra.mxu0 0.0
    %813 = vmatprep.subr.mxu0 0.0
    %814 = vmatpush2.msra.mxu0 0.0
    %815 = vmatprep.subr.mxu0 0.0
    %816 = vmatpush2.msra.mxu0 0.0
    %817 = vmatprep.subr.mxu0 0.0
    %818 = vmatpush2.msra.mxu0 0.0
    %819 = vmatprep.mubr.f32.mxu0 0.0
    %820 = vmatmul.mubr.f32.gmra.mxu0 %v660
    %v821 = vpop.f32.mrf.mxu0
    %v822 = vadd.f32 %v657, %v821
    %v823 = vpop.f32.mrf.mxu0
    %824 = vmatprep.mubr.f32.mxu0 0.0
    %825 = vmatmul.mubr.f32.gmra.mxu0 %v663
    %v826 = vpop.f32.mrf.mxu0
    %v827 = vadd.f32 %v657, %v826
    %v828 = vpop.f32.mrf.mxu0
    %829 = vmatprep.mubr.f32.mxu0 0.0
    %830 = vmatmul.mubr.f32.gmra.mxu0 %v666
    %v831 = vpop.f32.mrf.mxu0
    %v832 = vadd.f32 %v657, %v831
    %v833 = vpop.f32.mrf.mxu0
    %834 = vmatprep.mubr.f32.mxu0 0.0
    %835 = vmatmul.mubr.f32.gmra.mxu0 %v669
    %v836 = vpop.f32.mrf.mxu0
    %v837 = vadd.f32 %v657, %v836
    %v838 = vpop.f32.mrf.mxu0
    %839 = vmatprep.mubr.f32.mxu0 0.0
    %840 = vmatmul.mubr.f32.gmra.mxu0 %v672
    %v841 = vpop.f32.mrf.mxu0
    %v842 = vadd.f32 %v657, %v841
    %v843 = vpop.f32.mrf.mxu0
    %844 = vmatprep.mubr.f32.mxu0 0.0
    %845 = vmatmul.mubr.f32.gmra.mxu0 %v675
    %v846 = vpop.f32.mrf.mxu0
    %v847 = vadd.f32 %v657, %v846
    %v848 = vpop.f32.mrf.mxu0
    %849 = vmatprep.mubr.f32.mxu0 0.0
    %850 = vmatmul.mubr.f32.gmra.mxu0 %v678
    %v851 = vpop.f32.mrf.mxu0
    %v852 = vadd.f32 %v657, %v851
    %v853 = vpop.f32.mrf.mxu0
    %854 = vmatprep.mubr.f32.mxu0 0.0
    %855 = vmatmul.mubr.f32.gmra.mxu0 %v681
    %v856 = vpop.f32.mrf.mxu0
    %v857 = vadd.f32 %v657, %v856
    %v858 = vpop.f32.mrf.mxu0
    %859 = vmatprep.mubr.f32.mxu0 0.0
    %860 = vmatmul.mubr.f32.gmra.mxu0 %v684
    %v861 = vpop.f32.mrf.mxu0
    %v862 = vadd.f32 %v657, %v861
    %v863 = vpop.f32.mrf.mxu0
    %864 = vmatprep.mubr.f32.mxu0 0.0
    %865 = vmatmul.mubr.f32.gmra.mxu0 %v687
    %v866 = vpop.f32.mrf.mxu0
    %v867 = vadd.f32 %v657, %v866
    %v868 = vpop.f32.mrf.mxu0
    %869 = vmatprep.mubr.f32.mxu0 0.0
    %870 = vmatmul.mubr.f32.gmra.mxu0 %v690
    %v871 = vpop.f32.mrf.mxu0
    %v872 = vadd.f32 %v657, %v871
    %v873 = vpop.f32.mrf.mxu0
    %874 = vmatprep.mubr.f32.mxu0 0.0
    %875 = vmatmul.mubr.f32.gmra.mxu0 %v693
    %v876 = vpop.f32.mrf.mxu0
    %v877 = vadd.f32 %v657, %v876
    %v878 = vpop.f32.mrf.mxu0
    %879 = vmatprep.mubr.f32.mxu0 0.0
    %880 = vmatmul.mubr.f32.gmra.mxu0 %v696
    %v881 = vpop.f32.mrf.mxu0
    %v882 = vadd.f32 %v657, %v881
    %v883 = vpop.f32.mrf.mxu0
    %884 = vmatprep.mubr.f32.mxu0 0.0
    %885 = vmatmul.mubr.f32.gmra.mxu0 %v699
    %v886 = vpop.f32.mrf.mxu0
    %v887 = vadd.f32 %v657, %v886
    %v888 = vpop.f32.mrf.mxu0
    %889 = vmatprep.mubr.f32.mxu0 0.0
    %890 = vmatmul.mubr.f32.gmra.mxu0 %v702
    %v891 = vpop.f32.mrf.mxu0
    %v892 = vadd.f32 %v657, %v891
    %v893 = vpop.f32.mrf.mxu0
    %894 = vmatprep.mubr.f32.mxu0 0.0
    %895 = vmatmul.mubr.f32.gmra.mxu0 %v705
    %v896 = vpop.f32.mrf.mxu0
    %v897 = vadd.f32 %v657, %v896
    %v898 = vpop.f32.mrf.mxu0
    %899 = vmatprep.mubr.f32.mxu0 0.0
    %900 = vmatmul.mubr.f32.gmra.mxu0 %v708
    %v901 = vpop.f32.mrf.mxu0
    %v902 = vadd.f32 %v657, %v901
    %v903 = vpop.f32.mrf.mxu0
    %904 = vmatprep.mubr.f32.mxu0 0.0
    %905 = vmatmul.mubr.f32.gmra.mxu0 %v711
    %v906 = vpop.f32.mrf.mxu0
    %v907 = vadd.f32 %v657, %v906
    %v908 = vpop.f32.mrf.mxu0
    %909 = vmatprep.mubr.f32.mxu0 0.0
    %910 = vmatmul.mubr.f32.gmra.mxu0 %v714
    %v911 = vpop.f32.mrf.mxu0
    %v912 = vadd.f32 %v657, %v911
    %v913 = vpop.f32.mrf.mxu0
    %914 = vmatprep.mubr.f32.mxu0 0.0
    %915 = vmatmul.mubr.f32.gmra.mxu0 %v717
    %v916 = vpop.f32.mrf.mxu0
    %v917 = vadd.f32 %v657, %v916
    %v918 = vpop.f32.mrf.mxu0
    %919 = vmatprep.mubr.f32.mxu0 0.0
    %920 = vmatmul.mubr.f32.gmra.mxu0 %v720
    %v921 = vpop.f32.mrf.mxu0
    %v922 = vadd.f32 %v657, %v921
    %v923 = vpop.f32.mrf.mxu0
    %924 = vmatprep.mubr.f32.mxu0 0.0
    %925 = vmatmul.mubr.f32.gmra.mxu0 %v723
    %v926 = vpop.f32.mrf.mxu0
    %v927 = vadd.f32 %v657, %v926
    %v928 = vpop.f32.mrf.mxu0
    %929 = vmatprep.mubr.f32.mxu0 0.0
    %930 = vmatmul.mubr.f32.gmra.mxu0 %v726
    %v931 = vpop.f32.mrf.mxu0
    %v932 = vadd.f32 %v657, %v931
    %v933 = vpop.f32.mrf.mxu0
    %934 = vmatprep.mubr.f32.mxu0 0.0
    %935 = vmatmul.mubr.f32.gmra.mxu0 %v729
    %v936 = vpop.f32.mrf.mxu0
    %v937 = vadd.f32 %v657, %v936
    %v938 = vpop.f32.mrf.mxu0
    %939 = vmatprep.mubr.f32.mxu0 0.0
    %940 = vmatmul.mubr.f32.gmra.mxu0 %v732
    %v941 = vpop.f32.mrf.mxu0
    %v942 = vadd.f32 %v657, %v941
    %v943 = vpop.f32.mrf.mxu0
    %944 = vmatprep.mubr.f32.mxu0 0.0
    %945 = vmatmul.mubr.f32.gmra.mxu0 %v735
    %v946 = vpop.f32.mrf.mxu0
    %v947 = vadd.f32 %v657, %v946
    %v948 = vpop.f32.mrf.mxu0
    %949 = vmatprep.mubr.f32.mxu0 0.0
    %950 = vmatmul.mubr.f32.gmra.mxu0 %v738
    %v951 = vpop.f32.mrf.mxu0
    %v952 = vadd.f32 %v657, %v951
    %v953 = vpop.f32.mrf.mxu0
    %954 = vmatprep.mubr.f32.mxu0 0.0
    %955 = vmatmul.mubr.f32.gmra.mxu0 %v741
    %v956 = vpop.f32.mrf.mxu0
    %v957 = vadd.f32 %v657, %v956
    %v958 = vpop.f32.mrf.mxu0
    %959 = vmatprep.mubr.f32.mxu0 0.0
    %960 = vmatmul.mubr.f32.gmra.mxu0 %v744
    %v961 = vpop.f32.mrf.mxu0
    %v962 = vadd.f32 %v657, %v961
    %v963 = vpop.f32.mrf.mxu0
    %964 = vmatprep.mubr.f32.mxu0 0.0
    %965 = vmatmul.mubr.f32.gmra.mxu0 %v747
    %v966 = vpop.f32.mrf.mxu0
    %v967 = vadd.f32 %v657, %v966
    %v968 = vpop.f32.mrf.mxu0
    %969 = vmatprep.mubr.f32.mxu0 0.0
    %970 = vmatmul.mubr.f32.gmra.mxu0 %v750
    %v971 = vpop.f32.mrf.mxu0
    %v972 = vadd.f32 %v657, %v971
    %v973 = vpop.f32.mrf.mxu0
    %974 = vmatprep.mubr.f32.mxu0 0.0
    %975 = vmatmul.mubr.f32.gmra.mxu0 %v753
    %v976 = vpop.f32.mrf.mxu0
    %v977 = vadd.f32 %v657, %v976
    %v978 = vpop.f32.mrf.mxu0
    %979 = vdwg.mxu0
    %v980 = vld [vmem:[%s1] sm:$0xff]
    %v981 = vld [vmem:[%s1 + $0x8] sm:$0xff]
    %v982 = vld [vmem:[%s1 + $0x10] sm:$0xff]
    %v983 = vld [vmem:[%s1 + $0x18] sm:$0xff]
    %v984 = vld [vmem:[%s1 + $0x20] sm:$0xff]
    %v985 = vld [vmem:[%s1 + $0x28] sm:$0xff]
    %v986 = vld [vmem:[%s1 + $0x30] sm:$0xff]
    %v987 = vld [vmem:[%s1 + $0x38] sm:$0xff]
    %v988 = vld [vmem:[%s1 + $0x40] sm:$0xff]
    %v989 = vld [vmem:[%s1 + $0x48] sm:$0xff]
    %v990 = vld [vmem:[%s1 + $0x50] sm:$0xff]
    %v991 = vld [vmem:[%s1 + $0x58] sm:$0xff]
    %v992 = vld [vmem:[%s1 + $0x60] sm:$0xff]
    %v993 = vld [vmem:[%s1 + $0x68] sm:$0xff]
    %v994 = vld [vmem:[%s1 + $0x70] sm:$0xff]
    %v995 = vld [vmem:[%s1 + $0x78] sm:$0xff]
    %v996 = vld [vmem:[%s1 + $0x80] sm:$0xff]
    %v997 = vld [vmem:[%s1 + $0x88] sm:$0xff]
    %v998 = vld [vmem:[%s1 + $0x90] sm:$0xff]
    %v999 = vld [vmem:[%s1 + $0x98] sm:$0xff]
    %v1000 = vld [vmem:[%s1 + $0xa0] sm:$0xff]
    %v1001 = vld [vmem:[%s1 + $0xa8] sm:$0xff]
    %v1002 = vld [vmem:[%s1 + $0xb0] sm:$0xff]
    %v1003 = vld [vmem:[%s1 + $0xb8] sm:$0xff]
    %v1004 = vld [vmem:[%s1 + $0xc0] sm:$0xff]
    %v1005 = vld [vmem:[%s1 + $0xc8] sm:$0xff]
    %v1006 = vld [vmem:[%s1 + $0xd0] sm:$0xff]
    %v1007 = vld [vmem:[%s1 + $0xd8] sm:$0xff]
    %v1008 = vld [vmem:[%s1 + $0xe0] sm:$0xff]
    %v1009 = vld [vmem:[%s1 + $0xe8] sm:$0xff]
    %v1010 = vld [vmem:[%s1 + $0xf0] sm:$0xff]
    %v1011 = vld [vmem:[%s1 + $0xf8] sm:$0xff]
    %v1012 = vadd.f32 %v980, %v822
    %v1013 = vadd.f32 %v981, %v827
    %v1014 = vadd.f32 %v982, %v832
    %v1015 = vadd.f32 %v983, %v837
    %v1016 = vadd.f32 %v984, %v842
    %v1017 = vadd.f32 %v985, %v847
    %v1018 = vadd.f32 %v986, %v852
    %v1019 = vadd.f32 %v987, %v857
    %v1020 = vadd.f32 %v988, %v862
    %v1021 = vadd.f32 %v989, %v867
    %v1022 = vadd.f32 %v990, %v872
    %v1023 = vadd.f32 %v991, %v877
    %v1024 = vadd.f32 %v992, %v882
    %v1025 = vadd.f32 %v993, %v887
    %v1026 = vadd.f32 %v994, %v892
    %v1027 = vadd.f32 %v995, %v897
    %v1028 = vadd.f32 %v996, %v902
    %v1029 = vadd.f32 %v997, %v907
    %v1030 = vadd.f32 %v998, %v912
    %v1031 = vadd.f32 %v999, %v917
    %v1032 = vadd.f32 %v1000, %v922
    %v1033 = vadd.f32 %v1001, %v927
    %v1034 = vadd.f32 %v1002, %v932
    %v1035 = vadd.f32 %v1003, %v937
    %v1036 = vadd.f32 %v1004, %v942
    %v1037 = vadd.f32 %v1005, %v947
    %v1038 = vadd.f32 %v1006, %v952
    %v1039 = vadd.f32 %v1007, %v957
    %v1040 = vadd.f32 %v1008, %v962
    %v1041 = vadd.f32 %v1009, %v967
    %v1042 = vadd.f32 %v1010, %v972
    %v1043 = vadd.f32 %v1011, %v977
    %v1044 = vmul.f32 %v1012, %v161
    %v1045 = vmul.f32 %v1013, %v162
    %v1046 = vmul.f32 %v1014, %v163
    %v1047 = vmul.f32 %v1015, %v164
    %v1048 = vmul.f32 %v1016, %v165
    %v1049 = vmul.f32 %v1017, %v166
    %v1050 = vmul.f32 %v1018, %v167
    %v1051 = vmul.f32 %v1019, %v168
    %v1052 = vmul.f32 %v1020, %v169
    %v1053 = vmul.f32 %v1021, %v170
    %v1054 = vmul.f32 %v1022, %v171
    %v1055 = vmul.f32 %v1023, %v172
    %v1056 = vmul.f32 %v1024, %v173
    %v1057 = vmul.f32 %v1025, %v174
    %v1058 = vmul.f32 %v1026, %v175
    %v1059 = vmul.f32 %v1027, %v176
    %v1060 = vmul.f32 %v1028, %v177
    %v1061 = vmul.f32 %v1029, %v178
    %v1062 = vmul.f32 %v1030, %v179
    %v1063 = vmul.f32 %v1031, %v180
    %v1064 = vmul.f32 %v1032, %v181
    %v1065 = vmul.f32 %v1033, %v182
    %v1066 = vmul.f32 %v1034, %v183
    %v1067 = vmul.f32 %v1035, %v184
    %v1068 = vmul.f32 %v1036, %v185
    %v1069 = vmul.f32 %v1037, %v186
    %v1070 = vmul.f32 %v1038, %v187
    %v1071 = vmul.f32 %v1039, %v188
    %v1072 = vmul.f32 %v1040, %v189
    %v1073 = vmul.f32 %v1041, %v190
    %v1074 = vmul.f32 %v1042, %v191
    %v1075 = vmul.f32 %v1043, %v192
    %1076 = vst.msk [vmem:[#allocation2] sm:$0xff] %vm233, %v1044
    %1077 = vst.msk [vmem:[#allocation2 + $0x8] sm:$0xff] %vm233, %v1045
    %1078 = vst.msk [vmem:[#allocation2 + $0x10] sm:$0xff] %vm233, %v1046
    %1079 = vst.msk [vmem:[#allocation2 + $0x18] sm:$0xff] %vm233, %v1047
    %1080 = vst.msk [vmem:[#allocation2 + $0x20] sm:$0xff] %vm233, %v1048
    %1081 = vst.msk [vmem:[#allocation2 + $0x28] sm:$0xff] %vm233, %v1049
    %1082 = vst.msk [vmem:[#allocation2 + $0x30] sm:$0xff] %vm233, %v1050
    %1083 = vst.msk [vmem:[#allocation2 + $0x38] sm:$0xff] %vm233, %v1051
    %1084 = vst.msk [vmem:[#allocation2 + $0x40] sm:$0xff] %vm233, %v1052
    %1085 = vst.msk [vmem:[#allocation2 + $0x48] sm:$0xff] %vm233, %v1053
    %1086 = vst.msk [vmem:[#allocation2 + $0x50] sm:$0xff] %vm233, %v1054
    %1087 = vst.msk [vmem:[#allocation2 + $0x58] sm:$0xff] %vm233, %v1055
    %1088 = vst.msk [vmem:[#allocation2 + $0x60] sm:$0xff] %vm233, %v1056
    %1089 = vst.msk [vmem:[#allocation2 + $0x68] sm:$0xff] %vm233, %v1057
    %1090 = vst.msk [vmem:[#allocation2 + $0x70] sm:$0xff] %vm233, %v1058
    %1091 = vst.msk [vmem:[#allocation2 + $0x78] sm:$0xff] %vm233, %v1059
    %1092 = vst.msk [vmem:[#allocation2 + $0x80] sm:$0xff] %vm233, %v1060
    %1093 = vst.msk [vmem:[#allocation2 + $0x88] sm:$0xff] %vm233, %v1061
    %1094 = vst.msk [vmem:[#allocation2 + $0x90] sm:$0xff] %vm233, %v1062
    %1095 = vst.msk [vmem:[#allocation2 + $0x98] sm:$0xff] %vm233, %v1063
    %1096 = vst.msk [vmem:[#allocation2 + $0xa0] sm:$0xff] %vm233, %v1064
    %1097 = vst.msk [vmem:[#allocation2 + $0xa8] sm:$0xff] %vm233, %v1065
    %1098 = vst.msk [vmem:[#allocation2 + $0xb0] sm:$0xff] %vm233, %v1066
    %1099 = vst.msk [vmem:[#allocation2 + $0xb8] sm:$0xff] %vm233, %v1067
    %1100 = vst.msk [vmem:[#allocation2 + $0xc0] sm:$0xff] %vm233, %v1068
    %1101 = vst.msk [vmem:[#allocation2 + $0xc8] sm:$0xff] %vm233, %v1069
    %1102 = vst.msk [vmem:[#allocation2 + $0xd0] sm:$0xff] %vm233, %v1070
    %1103 = vst.msk [vmem:[#allocation2 + $0xd8] sm:$0xff] %vm233, %v1071
    %1104 = vst.msk [vmem:[#allocation2 + $0xe0] sm:$0xff] %vm233, %v1072
    %1105 = vst.msk [vmem:[#allocation2 + $0xe8] sm:$0xff] %vm233, %v1073
    %1106 = vst.msk [vmem:[#allocation2 + $0xf0] sm:$0xff] %vm233, %v1074
    %1107 = vst.msk [vmem:[#allocation2 + $0xf8] sm:$0xff] %vm233, %v1075
    %v1108 = vld [vmem:[%s8] sm:$0x1]
    %v1109 = vld [vmem:[#allocation2] ss:$4 sm:$0xff]
    %s1110 = scalar_lea.vmem [#allocation2], 32
    %v1111 = vld [vmem:[%s1110] ss:$4 sm:$0xff]
    %s1112 = scalar_lea.vmem [#allocation2], 64
    %v1113 = vld [vmem:[%s1112] ss:$4 sm:$0xff]
    %s1114 = scalar_lea.vmem [#allocation2], 96
    %v1115 = vld [vmem:[%s1114] ss:$4 sm:$0xff]
    %s1116 = scalar_lea.vmem [#allocation2], 128
    %v1117 = vld [vmem:[%s1116] ss:$4 sm:$0xff]
    %s1118 = scalar_lea.vmem [#allocation2], 160
    %v1119 = vld [vmem:[%s1118] ss:$4 sm:$0xff]
    %s1120 = scalar_lea.vmem [#allocation2], 192
    %v1121 = vld [vmem:[%s1120] ss:$4 sm:$0xff]
    %s1122 = scalar_lea.vmem [#allocation2], 224
    %v1123 = vld [vmem:[%s1122] ss:$4 sm:$0x7f]
    %v1124 = vld [vmem:[%s7] sm:$0xff]
    %v1126 = vsel %vm233, %v1109, 0
    %v1129 = vsel %vm233, %v1111, 0
    %v1132 = vsel %vm233, %v1113, 0
    %v1135 = vsel %vm233, %v1115, 0
    %v1138 = vsel %vm233, %v1117, 0
    %v1141 = vsel %vm233, %v1119, 0
    %v1144 = vsel %vm233, %v1121, 0
    %v1147 = vsel %vm233, %v1123, 0
    %1149 = vmatprep.subr.mxu0 0.0
    %1150 = vmatpush1.msra.mxu0 0.0
    %1151 = vmatprep.subr.mxu0 0.0
    %1152 = vmatpush1.msra.mxu0 0.0
    %1153 = vmatprep.subr.mxu0 0.0
    %1154 = vmatpush1.msra.mxu0 0.0
    %1155 = vmatprep.subr.mxu0 0.0
    %1156 = vmatpush1.msra.mxu0 0.0
    %1157 = vmatprep.subr.mxu0 0.0
    %1158 = vmatpush1.msra.mxu0 0.0
    %1159 = vmatprep.subr.mxu0 0.0
    %1160 = vmatpush1.msra.mxu0 0.0
    %1161 = vmatprep.subr.mxu0 0.0
    %1162 = vmatpush1.msra.mxu0 0.0
    %1163 = vmatprep.subr.mxu0 0.0
    %1164 = vmatpush1.msra.mxu0 0.0
    %1165 = vmatprep.subr.mxu0 0.0
    %1166 = vmatpush1.msra.mxu0 0.0
    %1167 = vmatprep.subr.mxu0 0.0
    %1168 = vmatpush1.msra.mxu0 0.0
    %1169 = vmatprep.subr.mxu0 0.0
    %1170 = vmatpush1.msra.mxu0 0.0
    %1171 = vmatprep.subr.mxu0 0.0
    %1172 = vmatpush1.msra.mxu0 0.0
    %1173 = vmatprep.subr.mxu0 0.0
    %1174 = vmatpush1.msra.mxu0 0.0
    %1175 = vmatprep.subr.mxu0 0.0
    %1176 = vmatpush1.msra.mxu0 0.0
    %1177 = vmatprep.subr.mxu0 0.0
    %1178 = vmatpush1.msra.mxu0 0.0
    %1179 = vmatprep.subr.mxu0 0.0
    %1180 = vmatpush1.msra.mxu0 %v1124
    %1181 = vmatprep.subr.mxu0 0.0
    %1182 = vmatpush2.msra.mxu0 0.0
    %1183 = vmatprep.subr.mxu0 0.0
    %1184 = vmatpush2.msra.mxu0 0.0
    %1185 = vmatprep.subr.mxu0 0.0
    %1186 = vmatpush2.msra.mxu0 0.0
    %1187 = vmatprep.subr.mxu0 0.0
    %1188 = vmatpush2.msra.mxu0 0.0
    %1189 = vmatprep.subr.mxu0 0.0
    %1190 = vmatpush2.msra.mxu0 0.0
    %1191 = vmatprep.subr.mxu0 0.0
    %1192 = vmatpush2.msra.mxu0 0.0
    %1193 = vmatprep.subr.mxu0 0.0
    %1194 = vmatpush2.msra.mxu0 0.0
    %1195 = vmatprep.subr.mxu0 0.0
    %1196 = vmatpush2.msra.mxu0 0.0
    %1197 = vmatprep.subr.mxu0 0.0
    %1198 = vmatpush2.msra.mxu0 0.0
    %1199 = vmatprep.subr.mxu0 0.0
    %1200 = vmatpush2.msra.mxu0 0.0
    %1201 = vmatprep.subr.mxu0 0.0
    %1202 = vmatpush2.msra.mxu0 0.0
    %1203 = vmatprep.subr.mxu0 0.0
    %1204 = vmatpush2.msra.mxu0 0.0
    %1205 = vmatprep.subr.mxu0 0.0
    %1206 = vmatpush2.msra.mxu0 0.0
    %1207 = vmatprep.subr.mxu0 0.0
    %1208 = vmatpush2.msra.mxu0 0.0
    %1209 = vmatprep.subr.mxu0 0.0
    %1210 = vmatpush2.msra.mxu0 0.0
    %1211 = vmatprep.subr.mxu0 0.0
    %1212 = vmatpush2.msra.mxu0 0.0
    %1213 = vmatprep.mubr.f32.mxu0 0.0
    %1214 = vmatmul.mubr.f32.gmra.mxu0 %v1126
    %v1215 = vpop.f32.mrf.mxu0
    %v1216 = vadd.f32 0.0, %v1215
    %v1217 = vpop.f32.mrf.mxu0
    %1218 = vmatprep.mubr.f32.mxu0 0.0
    %1219 = vmatmul.mubr.f32.gmra.mxu0 %v1129
    %v1220 = vpop.f32.mrf.mxu0
    %v1221 = vadd.f32 0.0, %v1220
    %v1222 = vpop.f32.mrf.mxu0
    %1223 = vmatprep.mubr.f32.mxu0 0.0
    %1224 = vmatmul.mubr.f32.gmra.mxu0 %v1132
    %v1225 = vpop.f32.mrf.mxu0
    %v1226 = vadd.f32 0.0, %v1225
    %v1227 = vpop.f32.mrf.mxu0
    %1228 = vmatprep.mubr.f32.mxu0 0.0
    %1229 = vmatmul.mubr.f32.gmra.mxu0 %v1135
    %v1230 = vpop.f32.mrf.mxu0
    %v1231 = vadd.f32 0.0, %v1230
    %v1232 = vpop.f32.mrf.mxu0
    %1233 = vmatprep.mubr.f32.mxu0 0.0
    %1234 = vmatmul.mubr.f32.gmra.mxu0 %v1138
    %v1235 = vpop.f32.mrf.mxu0
    %v1236 = vadd.f32 0.0, %v1235
    %v1237 = vpop.f32.mrf.mxu0
    %1238 = vmatprep.mubr.f32.mxu0 0.0
    %1239 = vmatmul.mubr.f32.gmra.mxu0 %v1141
    %v1240 = vpop.f32.mrf.mxu0
    %v1241 = vadd.f32 0.0, %v1240
    %v1242 = vpop.f32.mrf.mxu0
    %1243 = vmatprep.mubr.f32.mxu0 0.0
    %1244 = vmatmul.mubr.f32.gmra.mxu0 %v1144
    %v1245 = vpop.f32.mrf.mxu0
    %v1246 = vadd.f32 0.0, %v1245
    %v1247 = vpop.f32.mrf.mxu0
    %1248 = vmatprep.mubr.f32.mxu0 0.0
    %1249 = vmatmul.mubr.f32.gmra.mxu0 %v1147
    %v1250 = vpop.f32.mrf.mxu0
    %v1251 = vadd.f32 0.0, %v1250
    %v1252 = vpop.f32.mrf.mxu0
    %1253 = vdwg.mxu0
    %v1255 = vlaneseq
    %v1256 = vshrl.u32 %v1255, 7
    %v1257 = vsub.s32 0, %v1256
    %v1258 = vrot.slane %v1108, %v1257
    %v1260 = vadd.f32 %v1258, %v1216
    %v1261 = vadd.f32 %v1258, %v1221
    %v1262 = vadd.f32 %v1258, %v1226
    %v1263 = vadd.f32 %v1258, %v1231
    %v1264 = vadd.f32 %v1258, %v1236
    %v1265 = vadd.f32 %v1258, %v1241
    %v1266 = vadd.f32 %v1258, %v1246
    %v1267 = vadd.f32 %v1258, %v1251
    %s1268 = scalar_lea.vmem [#allocation2], 1
    %v1269 = vld [vmem:[%s1268] ss:$4 sm:$0xff]
    %s1270 = scalar_lea.vmem [#allocation2], 33
    %v1271 = vld [vmem:[%s1270] ss:$4 sm:$0xff]
    %s1272 = scalar_lea.vmem [#allocation2], 65
    %v1273 = vld [vmem:[%s1272] ss:$4 sm:$0xff]
    %s1274 = scalar_lea.vmem [#allocation2], 97
    %v1275 = vld [vmem:[%s1274] ss:$4 sm:$0xff]
    %s1276 = scalar_lea.vmem [#allocation2], 129
    %v1277 = vld [vmem:[%s1276] ss:$4 sm:$0xff]
    %s1278 = scalar_lea.vmem [#allocation2], 161
    %v1279 = vld [vmem:[%s1278] ss:$4 sm:$0xff]
    %s1280 = scalar_lea.vmem [#allocation2], 193
    %v1281 = vld [vmem:[%s1280] ss:$4 sm:$0xff]
    %s1282 = scalar_lea.vmem [#allocation2], 225
    %v1283 = vld [vmem:[%s1282] ss:$4 sm:$0x7f]
    %s1284 = scalar_lea.vmem %s7, 8
    %v1285 = vld [vmem:[%s1284] sm:$0xff]
    %v1287 = vsel %vm233, %v1269, 0
    %v1290 = vsel %vm233, %v1271, 0
    %v1293 = vsel %vm233, %v1273, 0
    %v1296 = vsel %vm233, %v1275, 0
    %v1299 = vsel %vm233, %v1277, 0
    %v1302 = vsel %vm233, %v1279, 0
    %v1305 = vsel %vm233, %v1281, 0
    %v1308 = vsel %vm233, %v1283, 0
    %1310 = vmatprep.subr.mxu0 0.0
    %1311 = vmatpush1.msra.mxu0 0.0
    %1312 = vmatprep.subr.mxu0 0.0
    %1313 = vmatpush1.msra.mxu0 0.0
    %1314 = vmatprep.subr.mxu0 0.0
    %1315 = vmatpush1.msra.mxu0 0.0
    %1316 = vmatprep.subr.mxu0 0.0
    %1317 = vmatpush1.msra.mxu0 0.0
    %1318 = vmatprep.subr.mxu0 0.0
    %1319 = vmatpush1.msra.mxu0 0.0
    %1320 = vmatprep.subr.mxu0 0.0
    %1321 = vmatpush1.msra.mxu0 0.0
    %1322 = vmatprep.subr.mxu0 0.0
    %1323 = vmatpush1.msra.mxu0 0.0
    %1324 = vmatprep.subr.mxu0 0.0
    %1325 = vmatpush1.msra.mxu0 0.0
    %1326 = vmatprep.subr.mxu0 0.0
    %1327 = vmatpush1.msra.mxu0 0.0
    %1328 = vmatprep.subr.mxu0 0.0
    %1329 = vmatpush1.msra.mxu0 0.0
    %1330 = vmatprep.subr.mxu0 0.0
    %1331 = vmatpush1.msra.mxu0 0.0
    %1332 = vmatprep.subr.mxu0 0.0
    %1333 = vmatpush1.msra.mxu0 0.0
    %1334 = vmatprep.subr.mxu0 0.0
    %1335 = vmatpush1.msra.mxu0 0.0
    %1336 = vmatprep.subr.mxu0 0.0
    %1337 = vmatpush1.msra.mxu0 0.0
    %1338 = vmatprep.subr.mxu0 0.0
    %1339 = vmatpush1.msra.mxu0 0.0
    %1340 = vmatprep.subr.mxu0 0.0
    %1341 = vmatpush1.msra.mxu0 %v1285
    %1342 = vmatprep.subr.mxu0 0.0
    %1343 = vmatpush2.msra.mxu0 0.0
    %1344 = vmatprep.subr.mxu0 0.0
    %1345 = vmatpush2.msra.mxu0 0.0
    %1346 = vmatprep.subr.mxu0 0.0
    %1347 = vmatpush2.msra.mxu0 0.0
    %1348 = vmatprep.subr.mxu0 0.0
    %1349 = vmatpush2.msra.mxu0 0.0
    %1350 = vmatprep.subr.mxu0 0.0
    %1351 = vmatpush2.msra.mxu0 0.0
    %1352 = vmatprep.subr.mxu0 0.0
    %1353 = vmatpush2.msra.mxu0 0.0
    %1354 = vmatprep.subr.mxu0 0.0
    %1355 = vmatpush2.msra.mxu0 0.0
    %1356 = vmatprep.subr.mxu0 0.0
    %1357 = vmatpush2.msra.mxu0 0.0
    %1358 = vmatprep.subr.mxu0 0.0
    %1359 = vmatpush2.msra.mxu0 0.0
    %1360 = vmatprep.subr.mxu0 0.0
    %1361 = vmatpush2.msra.mxu0 0.0
    %1362 = vmatprep.subr.mxu0 0.0
    %1363 = vmatpush2.msra.mxu0 0.0
    %1364 = vmatprep.subr.mxu0 0.0
    %1365 = vmatpush2.msra.mxu0 0.0
    %1366 = vmatprep.subr.mxu0 0.0
    %1367 = vmatpush2.msra.mxu0 0.0
    %1368 = vmatprep.subr.mxu0 0.0
    %1369 = vmatpush2.msra.mxu0 0.0
    %1370 = vmatprep.subr.mxu0 0.0
    %1371 = vmatpush2.msra.mxu0 0.0
    %1372 = vmatprep.subr.mxu0 0.0
    %1373 = vmatpush2.msra.mxu0 0.0
    %1374 = vmatprep.mubr.f32.mxu0 0.0
    %1375 = vmatmul.mubr.f32.gmra.mxu0 %v1287
    %v1376 = vpop.f32.mrf.mxu0
    %v1377 = vadd.f32 0.0, %v1376
    %v1378 = vpop.f32.mrf.mxu0
    %1379 = vmatprep.mubr.f32.mxu0 0.0
    %1380 = vmatmul.mubr.f32.gmra.mxu0 %v1290
    %v1381 = vpop.f32.mrf.mxu0
    %v1382 = vadd.f32 0.0, %v1381
    %v1383 = vpop.f32.mrf.mxu0
    %1384 = vmatprep.mubr.f32.mxu0 0.0
    %1385 = vmatmul.mubr.f32.gmra.mxu0 %v1293
    %v1386 = vpop.f32.mrf.mxu0
    %v1387 = vadd.f32 0.0, %v1386
    %v1388 = vpop.f32.mrf.mxu0
    %1389 = vmatprep.mubr.f32.mxu0 0.0
    %1390 = vmatmul.mubr.f32.gmra.mxu0 %v1296
    %v1391 = vpop.f32.mrf.mxu0
    %v1392 = vadd.f32 0.0, %v1391
    %v1393 = vpop.f32.mrf.mxu0
    %1394 = vmatprep.mubr.f32.mxu0 0.0
    %1395 = vmatmul.mubr.f32.gmra.mxu0 %v1299
    %v1396 = vpop.f32.mrf.mxu0
    %v1397 = vadd.f32 0.0, %v1396
    %v1398 = vpop.f32.mrf.mxu0
    %1399 = vmatprep.mubr.f32.mxu0 0.0
    %1400 = vmatmul.mubr.f32.gmra.mxu0 %v1302
    %v1401 = vpop.f32.mrf.mxu0
    %v1402 = vadd.f32 0.0, %v1401
    %v1403 = vpop.f32.mrf.mxu0
    %1404 = vmatprep.mubr.f32.mxu0 0.0
    %1405 = vmatmul.mubr.f32.gmra.mxu0 %v1305
    %v1406 = vpop.f32.mrf.mxu0
    %v1407 = vadd.f32 0.0, %v1406
    %v1408 = vpop.f32.mrf.mxu0
    %1409 = vmatprep.mubr.f32.mxu0 0.0
    %1410 = vmatmul.mubr.f32.gmra.mxu0 %v1308
    %v1411 = vpop.f32.mrf.mxu0
    %v1412 = vadd.f32 0.0, %v1411
    %v1413 = vpop.f32.mrf.mxu0
    %1414 = vdwg.mxu0
    %v1415 = vadd.f32 %v1260, %v1377
    %v1416 = vadd.f32 %v1261, %v1382
    %v1417 = vadd.f32 %v1262, %v1387
    %v1418 = vadd.f32 %v1263, %v1392
    %v1419 = vadd.f32 %v1264, %v1397
    %v1420 = vadd.f32 %v1265, %v1402
    %v1421 = vadd.f32 %v1266, %v1407
    %v1422 = vadd.f32 %v1267, %v1412
    %s1423 = scalar_lea.vmem [#allocation2], 2
    %v1424 = vld [vmem:[%s1423] ss:$4 sm:$0xff]
    %s1425 = scalar_lea.vmem [#allocation2], 34
    %v1426 = vld [vmem:[%s1425] ss:$4 sm:$0xff]
    %s1427 = scalar_lea.vmem [#allocation2], 66
    %v1428 = vld [vmem:[%s1427] ss:$4 sm:$0xff]
    %s1429 = scalar_lea.vmem [#allocation2], 98
    %v1430 = vld [vmem:[%s1429] ss:$4 sm:$0xff]
    %s1431 = scalar_lea.vmem [#allocation2], 130
    %v1432 = vld [vmem:[%s1431] ss:$4 sm:$0xff]
    %s1433 = scalar_lea.vmem [#allocation2], 162
    %v1434 = vld [vmem:[%s1433] ss:$4 sm:$0xff]
    %s1435 = scalar_lea.vmem [#allocation2], 194
    %v1436 = vld [vmem:[%s1435] ss:$4 sm:$0xff]
    %s1437 = scalar_lea.vmem [#allocation2], 226
    %v1438 = vld [vmem:[%s1437] ss:$4 sm:$0x7f]
    %s1439 = scalar_lea.vmem %s7, 16
    %v1440 = vld [vmem:[%s1439] sm:$0xff]
    %v1442 = vsel %vm233, %v1424, 0
    %v1445 = vsel %vm233, %v1426, 0
    %v1448 = vsel %vm233, %v1428, 0
    %v1451 = vsel %vm233, %v1430, 0
    %v1454 = vsel %vm233, %v1432, 0
    %v1457 = vsel %vm233, %v1434, 0
    %v1460 = vsel %vm233, %v1436, 0
    %v1463 = vsel %vm233, %v1438, 0
    %1465 = vmatprep.subr.mxu0 0.0
    %1466 = vmatpush1.msra.mxu0 0.0
    %1467 = vmatprep.subr.mxu0 0.0
    %1468 = vmatpush1.msra.mxu0 0.0
    %1469 = vmatprep.subr.mxu0 0.0
    %1470 = vmatpush1.msra.mxu0 0.0
    %1471 = vmatprep.subr.mxu0 0.0
    %1472 = vmatpush1.msra.mxu0 0.0
    %1473 = vmatprep.subr.mxu0 0.0
    %1474 = vmatpush1.msra.mxu0 0.0
    %1475 = vmatprep.subr.mxu0 0.0
    %1476 = vmatpush1.msra.mxu0 0.0
    %1477 = vmatprep.subr.mxu0 0.0
    %1478 = vmatpush1.msra.mxu0 0.0
    %1479 = vmatprep.subr.mxu0 0.0
    %1480 = vmatpush1.msra.mxu0 0.0
    %1481 = vmatprep.subr.mxu0 0.0
    %1482 = vmatpush1.msra.mxu0 0.0
    %1483 = vmatprep.subr.mxu0 0.0
    %1484 = vmatpush1.msra.mxu0 0.0
    %1485 = vmatprep.subr.mxu0 0.0
    %1486 = vmatpush1.msra.mxu0 0.0
    %1487 = vmatprep.subr.mxu0 0.0
    %1488 = vmatpush1.msra.mxu0 0.0
    %1489 = vmatprep.subr.mxu0 0.0
    %1490 = vmatpush1.msra.mxu0 0.0
    %1491 = vmatprep.subr.mxu0 0.0
    %1492 = vmatpush1.msra.mxu0 0.0
    %1493 = vmatprep.subr.mxu0 0.0
    %1494 = vmatpush1.msra.mxu0 0.0
    %1495 = vmatprep.subr.mxu0 0.0
    %1496 = vmatpush1.msra.mxu0 %v1440
    %1497 = vmatprep.subr.mxu0 0.0
    %1498 = vmatpush2.msra.mxu0 0.0
    %1499 = vmatprep.subr.mxu0 0.0
    %1500 = vmatpush2.msra.mxu0 0.0
    %1501 = vmatprep.subr.mxu0 0.0
    %1502 = vmatpush2.msra.mxu0 0.0
    %1503 = vmatprep.subr.mxu0 0.0
    %1504 = vmatpush2.msra.mxu0 0.0
    %1505 = vmatprep.subr.mxu0 0.0
    %1506 = vmatpush2.msra.mxu0 0.0
    %1507 = vmatprep.subr.mxu0 0.0
    %1508 = vmatpush2.msra.mxu0 0.0
    %1509 = vmatprep.subr.mxu0 0.0
    %1510 = vmatpush2.msra.mxu0 0.0
    %1511 = vmatprep.subr.mxu0 0.0
    %1512 = vmatpush2.msra.mxu0 0.0
    %1513 = vmatprep.subr.mxu0 0.0
    %1514 = vmatpush2.msra.mxu0 0.0
    %1515 = vmatprep.subr.mxu0 0.0
    %1516 = vmatpush2.msra.mxu0 0.0
    %1517 = vmatprep.subr.mxu0 0.0
    %1518 = vmatpush2.msra.mxu0 0.0
    %1519 = vmatprep.subr.mxu0 0.0
    %1520 = vmatpush2.msra.mxu0 0.0
    %1521 = vmatprep.subr.mxu0 0.0
    %1522 = vmatpush2.msra.mxu0 0.0
    %1523 = vmatprep.subr.mxu0 0.0
    %1524 = vmatpush2.msra.mxu0 0.0
    %1525 = vmatprep.subr.mxu0 0.0
    %1526 = vmatpush2.msra.mxu0 0.0
    %1527 = vmatprep.subr.mxu0 0.0
    %1528 = vmatpush2.msra.mxu0 0.0
    %1529 = vmatprep.mubr.f32.mxu0 0.0
    %1530 = vmatmul.mubr.f32.gmra.mxu0 %v1442
    %v1531 = vpop.f32.mrf.mxu0
    %v1532 = vadd.f32 0.0, %v1531
    %v1533 = vpop.f32.mrf.mxu0
    %1534 = vmatprep.mubr.f32.mxu0 0.0
    %1535 = vmatmul.mubr.f32.gmra.mxu0 %v1445
    %v1536 = vpop.f32.mrf.mxu0
    %v1537 = vadd.f32 0.0, %v1536
    %v1538 = vpop.f32.mrf.mxu0
    %1539 = vmatprep.mubr.f32.mxu0 0.0
    %1540 = vmatmul.mubr.f32.gmra.mxu0 %v1448
    %v1541 = vpop.f32.mrf.mxu0
    %v1542 = vadd.f32 0.0, %v1541
    %v1543 = vpop.f32.mrf.mxu0
    %1544 = vmatprep.mubr.f32.mxu0 0.0
    %1545 = vmatmul.mubr.f32.gmra.mxu0 %v1451
    %v1546 = vpop.f32.mrf.mxu0
    %v1547 = vadd.f32 0.0, %v1546
    %v1548 = vpop.f32.mrf.mxu0
    %1549 = vmatprep.mubr.f32.mxu0 0.0
    %1550 = vmatmul.mubr.f32.gmra.mxu0 %v1454
    %v1551 = vpop.f32.mrf.mxu0
    %v1552 = vadd.f32 0.0, %v1551
    %v1553 = vpop.f32.mrf.mxu0
    %1554 = vmatprep.mubr.f32.mxu0 0.0
    %1555 = vmatmul.mubr.f32.gmra.mxu0 %v1457
    %v1556 = vpop.f32.mrf.mxu0
    %v1557 = vadd.f32 0.0, %v1556
    %v1558 = vpop.f32.mrf.mxu0
    %1559 = vmatprep.mubr.f32.mxu0 0.0
    %1560 = vmatmul.mubr.f32.gmra.mxu0 %v1460
    %v1561 = vpop.f32.mrf.mxu0
    %v1562 = vadd.f32 0.0, %v1561
    %v1563 = vpop.f32.mrf.mxu0
    %1564 = vmatprep.mubr.f32.mxu0 0.0
    %1565 = vmatmul.mubr.f32.gmra.mxu0 %v1463
    %v1566 = vpop.f32.mrf.mxu0
    %v1567 = vadd.f32 0.0, %v1566
    %v1568 = vpop.f32.mrf.mxu0
    %1569 = vdwg.mxu0
    %v1570 = vadd.f32 %v1415, %v1532
    %v1571 = vadd.f32 %v1416, %v1537
    %v1572 = vadd.f32 %v1417, %v1542
    %v1573 = vadd.f32 %v1418, %v1547
    %v1574 = vadd.f32 %v1419, %v1552
    %v1575 = vadd.f32 %v1420, %v1557
    %v1576 = vadd.f32 %v1421, %v1562
    %v1577 = vadd.f32 %v1422, %v1567
    %s1578 = scalar_lea.vmem [#allocation2], 3
    %v1579 = vld [vmem:[%s1578] ss:$4 sm:$0xff]
    %s1580 = scalar_lea.vmem [#allocation2], 35
    %v1581 = vld [vmem:[%s1580] ss:$4 sm:$0xff]
    %s1582 = scalar_lea.vmem [#allocation2], 67
    %v1583 = vld [vmem:[%s1582] ss:$4 sm:$0xff]
    %s1584 = scalar_lea.vmem [#allocation2], 99
    %v1585 = vld [vmem:[%s1584] ss:$4 sm:$0xff]
    %s1586 = scalar_lea.vmem [#allocation2], 131
    %v1587 = vld [vmem:[%s1586] ss:$4 sm:$0xff]
    %s1588 = scalar_lea.vmem [#allocation2], 163
    %v1589 = vld [vmem:[%s1588] ss:$4 sm:$0xff]
    %s1590 = scalar_lea.vmem [#allocation2], 195
    %v1591 = vld [vmem:[%s1590] ss:$4 sm:$0xff]
    %s1592 = scalar_lea.vmem [#allocation2], 227
    %v1593 = vld [vmem:[%s1592] ss:$4 sm:$0x7f]
    %s1594 = scalar_lea.vmem %s7, 24
    %v1595 = vld [vmem:[%s1594] sm:$0xff]
    %v1597 = vsel %vm233, %v1579, 0
    %v1600 = vsel %vm233, %v1581, 0
    %v1603 = vsel %vm233, %v1583, 0
    %v1606 = vsel %vm233, %v1585, 0
    %v1609 = vsel %vm233, %v1587, 0
    %v1612 = vsel %vm233, %v1589, 0
    %v1615 = vsel %vm233, %v1591, 0
    %v1618 = vsel %vm233, %v1593, 0
    %1620 = vmatprep.subr.mxu0 0.0
    %1621 = vmatpush1.msra.mxu0 0.0
    %1622 = vmatprep.subr.mxu0 0.0
    %1623 = vmatpush1.msra.mxu0 0.0
    %1624 = vmatprep.subr.mxu0 0.0
    %1625 = vmatpush1.msra.mxu0 0.0
    %1626 = vmatprep.subr.mxu0 0.0
    %1627 = vmatpush1.msra.mxu0 0.0
    %1628 = vmatprep.subr.mxu0 0.0
    %1629 = vmatpush1.msra.mxu0 0.0
    %1630 = vmatprep.subr.mxu0 0.0
    %1631 = vmatpush1.msra.mxu0 0.0
    %1632 = vmatprep.subr.mxu0 0.0
    %1633 = vmatpush1.msra.mxu0 0.0
    %1634 = vmatprep.subr.mxu0 0.0
    %1635 = vmatpush1.msra.mxu0 0.0
    %1636 = vmatprep.subr.mxu0 0.0
    %1637 = vmatpush1.msra.mxu0 0.0
    %1638 = vmatprep.subr.mxu0 0.0
    %1639 = vmatpush1.msra.mxu0 0.0
    %1640 = vmatprep.subr.mxu0 0.0
    %1641 = vmatpush1.msra.mxu0 0.0
    %1642 = vmatprep.subr.mxu0 0.0
    %1643 = vmatpush1.msra.mxu0 0.0
    %1644 = vmatprep.subr.mxu0 0.0
    %1645 = vmatpush1.msra.mxu0 0.0
    %1646 = vmatprep.subr.mxu0 0.0
    %1647 = vmatpush1.msra.mxu0 0.0
    %1648 = vmatprep.subr.mxu0 0.0
    %1649 = vmatpush1.msra.mxu0 0.0
    %1650 = vmatprep.subr.mxu0 0.0
    %1651 = vmatpush1.msra.mxu0 %v1595
    %1652 = vmatprep.subr.mxu0 0.0
    %1653 = vmatpush2.msra.mxu0 0.0
    %1654 = vmatprep.subr.mxu0 0.0
    %1655 = vmatpush2.msra.mxu0 0.0
    %1656 = vmatprep.subr.mxu0 0.0
    %1657 = vmatpush2.msra.mxu0 0.0
    %1658 = vmatprep.subr.mxu0 0.0
    %1659 = vmatpush2.msra.mxu0 0.0
    %1660 = vmatprep.subr.mxu0 0.0
    %1661 = vmatpush2.msra.mxu0 0.0
    %1662 = vmatprep.subr.mxu0 0.0
    %1663 = vmatpush2.msra.mxu0 0.0
    %1664 = vmatprep.subr.mxu0 0.0
    %1665 = vmatpush2.msra.mxu0 0.0
    %1666 = vmatprep.subr.mxu0 0.0
    %1667 = vmatpush2.msra.mxu0 0.0
    %1668 = vmatprep.subr.mxu0 0.0
    %1669 = vmatpush2.msra.mxu0 0.0
    %1670 = vmatprep.subr.mxu0 0.0
    %1671 = vmatpush2.msra.mxu0 0.0
    %1672 = vmatprep.subr.mxu0 0.0
    %1673 = vmatpush2.msra.mxu0 0.0
    %1674 = vmatprep.subr.mxu0 0.0
    %1675 = vmatpush2.msra.mxu0 0.0
    %1676 = vmatprep.subr.mxu0 0.0
    %1677 = vmatpush2.msra.mxu0 0.0
    %1678 = vmatprep.subr.mxu0 0.0
    %1679 = vmatpush2.msra.mxu0 0.0
    %1680 = vmatprep.subr.mxu0 0.0
    %1681 = vmatpush2.msra.mxu0 0.0
    %1682 = vmatprep.subr.mxu0 0.0
    %1683 = vmatpush2.msra.mxu0 0.0
    %1684 = vmatprep.mubr.f32.mxu0 0.0
    %1685 = vmatmul.mubr.f32.gmra.mxu0 %v1597
    %v1686 = vpop.f32.mrf.mxu0
    %v1687 = vadd.f32 0.0, %v1686
    %v1688 = vpop.f32.mrf.mxu0
    %1689 = vmatprep.mubr.f32.mxu0 0.0
    %1690 = vmatmul.mubr.f32.gmra.mxu0 %v1600
    %v1691 = vpop.f32.mrf.mxu0
    %v1692 = vadd.f32 0.0, %v1691
    %v1693 = vpop.f32.mrf.mxu0
    %1694 = vmatprep.mubr.f32.mxu0 0.0
    %1695 = vmatmul.mubr.f32.gmra.mxu0 %v1603
    %v1696 = vpop.f32.mrf.mxu0
    %v1697 = vadd.f32 0.0, %v1696
    %v1698 = vpop.f32.mrf.mxu0
    %1699 = vmatprep.mubr.f32.mxu0 0.0
    %1700 = vmatmul.mubr.f32.gmra.mxu0 %v1606
    %v1701 = vpop.f32.mrf.mxu0
    %v1702 = vadd.f32 0.0, %v1701
    %v1703 = vpop.f32.mrf.mxu0
    %1704 = vmatprep.mubr.f32.mxu0 0.0
    %1705 = vmatmul.mubr.f32.gmra.mxu0 %v1609
    %v1706 = vpop.f32.mrf.mxu0
    %v1707 = vadd.f32 0.0, %v1706
    %v1708 = vpop.f32.mrf.mxu0
    %1709 = vmatprep.mubr.f32.mxu0 0.0
    %1710 = vmatmul.mubr.f32.gmra.mxu0 %v1612
    %v1711 = vpop.f32.mrf.mxu0
    %v1712 = vadd.f32 0.0, %v1711
    %v1713 = vpop.f32.mrf.mxu0
    %1714 = vmatprep.mubr.f32.mxu0 0.0
    %1715 = vmatmul.mubr.f32.gmra.mxu0 %v1615
    %v1716 = vpop.f32.mrf.mxu0
    %v1717 = vadd.f32 0.0, %v1716
    %v1718 = vpop.f32.mrf.mxu0
    %1719 = vmatprep.mubr.f32.mxu0 0.0
    %1720 = vmatmul.mubr.f32.gmra.mxu0 %v1618
    %v1721 = vpop.f32.mrf.mxu0
    %v1722 = vadd.f32 0.0, %v1721
    %v1723 = vpop.f32.mrf.mxu0
    %1724 = vdwg.mxu0
    %v1725 = vadd.f32 %v1570, %v1687
    %v1726 = vadd.f32 %v1571, %v1692
    %v1727 = vadd.f32 %v1572, %v1697
    %v1728 = vadd.f32 %v1573, %v1702
    %v1729 = vadd.f32 %v1574, %v1707
    %v1730 = vadd.f32 %v1575, %v1712
    %v1731 = vadd.f32 %v1576, %v1717
    %v1732 = vadd.f32 %v1577, %v1722
    %s1733 = scalar_lea.vmem [#allocation2], 4
    %v1734 = vld [vmem:[%s1733] ss:$4 sm:$0xff]
    %s1735 = scalar_lea.vmem [#allocation2], 36
    %v1736 = vld [vmem:[%s1735] ss:$4 sm:$0xff]
    %s1737 = scalar_lea.vmem [#allocation2], 68
    %v1738 = vld [vmem:[%s1737] ss:$4 sm:$0xff]
    %s1739 = scalar_lea.vmem [#allocation2], 100
    %v1740 = vld [vmem:[%s1739] ss:$4 sm:$0xff]
    %s1741 = scalar_lea.vmem [#allocation2], 132
    %v1742 = vld [vmem:[%s1741] ss:$4 sm:$0xff]
    %s1743 = scalar_lea.vmem [#allocation2], 164
    %v1744 = vld [vmem:[%s1743] ss:$4 sm:$0xff]
    %s1745 = scalar_lea.vmem [#allocation2], 196
    %v1746 = vld [vmem:[%s1745] ss:$4 sm:$0xff]
    %s1747 = scalar_lea.vmem [#allocation2], 228
    %v1748 = vld [vmem:[%s1747] ss:$4 sm:$0x7f]
    %s1749 = scalar_lea.vmem %s7, 32
    %v1750 = vld [vmem:[%s1749] sm:$0xff]
    %v1752 = vsel %vm233, %v1734, 0
    %v1755 = vsel %vm233, %v1736, 0
    %v1758 = vsel %vm233, %v1738, 0
    %v1761 = vsel %vm233, %v1740, 0
    %v1764 = vsel %vm233, %v1742, 0
    %v1767 = vsel %vm233, %v1744, 0
    %v1770 = vsel %vm233, %v1746, 0
    %v1773 = vsel %vm233, %v1748, 0
    %1775 = vmatprep.subr.mxu0 0.0
    %1776 = vmatpush1.msra.mxu0 0.0
    %1777 = vmatprep.subr.mxu0 0.0
    %1778 = vmatpush1.msra.mxu0 0.0
    %1779 = vmatprep.subr.mxu0 0.0
    %1780 = vmatpush1.msra.mxu0 0.0
    %1781 = vmatprep.subr.mxu0 0.0
    %1782 = vmatpush1.msra.mxu0 0.0
    %1783 = vmatprep.subr.mxu0 0.0
    %1784 = vmatpush1.msra.mxu0 0.0
    %1785 = vmatprep.subr.mxu0 0.0
    %1786 = vmatpush1.msra.mxu0 0.0
    %1787 = vmatprep.subr.mxu0 0.0
    %1788 = vmatpush1.msra.mxu0 0.0
    %1789 = vmatprep.subr.mxu0 0.0
    %1790 = vmatpush1.msra.mxu0 0.0
    %1791 = vmatprep.subr.mxu0 0.0
    %1792 = vmatpush1.msra.mxu0 0.0
    %1793 = vmatprep.subr.mxu0 0.0
    %1794 = vmatpush1.msra.mxu0 0.0
    %1795 = vmatprep.subr.mxu0 0.0
    %1796 = vmatpush1.msra.mxu0 0.0
    %1797 = vmatprep.subr.mxu0 0.0
    %1798 = vmatpush1.msra.mxu0 0.0
    %1799 = vmatprep.subr.mxu0 0.0
    %1800 = vmatpush1.msra.mxu0 0.0
    %1801 = vmatprep.subr.mxu0 0.0
    %1802 = vmatpush1.msra.mxu0 0.0
    %1803 = vmatprep.subr.mxu0 0.0
    %1804 = vmatpush1.msra.mxu0 0.0
    %1805 = vmatprep.subr.mxu0 0.0
    %1806 = vmatpush1.msra.mxu0 %v1750
    %1807 = vmatprep.subr.mxu0 0.0
    %1808 = vmatpush2.msra.mxu0 0.0
    %1809 = vmatprep.subr.mxu0 0.0
    %1810 = vmatpush2.msra.mxu0 0.0
    %1811 = vmatprep.subr.mxu0 0.0
    %1812 = vmatpush2.msra.mxu0 0.0
    %1813 = vmatprep.subr.mxu0 0.0
    %1814 = vmatpush2.msra.mxu0 0.0
    %1815 = vmatprep.subr.mxu0 0.0
    %1816 = vmatpush2.msra.mxu0 0.0
    %1817 = vmatprep.subr.mxu0 0.0
    %1818 = vmatpush2.msra.mxu0 0.0
    %1819 = vmatprep.subr.mxu0 0.0
    %1820 = vmatpush2.msra.mxu0 0.0
    %1821 = vmatprep.subr.mxu0 0.0
    %1822 = vmatpush2.msra.mxu0 0.0
    %1823 = vmatprep.subr.mxu0 0.0
    %1824 = vmatpush2.msra.mxu0 0.0
    %1825 = vmatprep.subr.mxu0 0.0
    %1826 = vmatpush2.msra.mxu0 0.0
    %1827 = vmatprep.subr.mxu0 0.0
    %1828 = vmatpush2.msra.mxu0 0.0
    %1829 = vmatprep.subr.mxu0 0.0
    %1830 = vmatpush2.msra.mxu0 0.0
    %1831 = vmatprep.subr.mxu0 0.0
    %1832 = vmatpush2.msra.mxu0 0.0
    %1833 = vmatprep.subr.mxu0 0.0
    %1834 = vmatpush2.msra.mxu0 0.0
    %1835 = vmatprep.subr.mxu0 0.0
    %1836 = vmatpush2.msra.mxu0 0.0
    %1837 = vmatprep.subr.mxu0 0.0
    %1838 = vmatpush2.msra.mxu0 0.0
    %1839 = vmatprep.mubr.f32.mxu0 0.0
    %1840 = vmatmul.mubr.f32.gmra.mxu0 %v1752
    %v1841 = vpop.f32.mrf.mxu0
    %v1842 = vadd.f32 0.0, %v1841
    %v1843 = vpop.f32.mrf.mxu0
    %1844 = vmatprep.mubr.f32.mxu0 0.0
    %1845 = vmatmul.mubr.f32.gmra.mxu0 %v1755
    %v1846 = vpop.f32.mrf.mxu0
    %v1847 = vadd.f32 0.0, %v1846
    %v1848 = vpop.f32.mrf.mxu0
    %1849 = vmatprep.mubr.f32.mxu0 0.0
    %1850 = vmatmul.mubr.f32.gmra.mxu0 %v1758
    %v1851 = vpop.f32.mrf.mxu0
    %v1852 = vadd.f32 0.0, %v1851
    %v1853 = vpop.f32.mrf.mxu0
    %1854 = vmatprep.mubr.f32.mxu0 0.0
    %1855 = vmatmul.mubr.f32.gmra.mxu0 %v1761
    %v1856 = vpop.f32.mrf.mxu0
    %v1857 = vadd.f32 0.0, %v1856
    %v1858 = vpop.f32.mrf.mxu0
    %1859 = vmatprep.mubr.f32.mxu0 0.0
    %1860 = vmatmul.mubr.f32.gmra.mxu0 %v1764
    %v1861 = vpop.f32.mrf.mxu0
    %v1862 = vadd.f32 0.0, %v1861
    %v1863 = vpop.f32.mrf.mxu0
    %1864 = vmatprep.mubr.f32.mxu0 0.0
    %1865 = vmatmul.mubr.f32.gmra.mxu0 %v1767
    %v1866 = vpop.f32.mrf.mxu0
    %v1867 = vadd.f32 0.0, %v1866
    %v1868 = vpop.f32.mrf.mxu0
    %1869 = vmatprep.mubr.f32.mxu0 0.0
    %1870 = vmatmul.mubr.f32.gmra.mxu0 %v1770
    %v1871 = vpop.f32.mrf.mxu0
    %v1872 = vadd.f32 0.0, %v1871
    %v1873 = vpop.f32.mrf.mxu0
    %1874 = vmatprep.mubr.f32.mxu0 0.0
    %1875 = vmatmul.mubr.f32.gmra.mxu0 %v1773
    %v1876 = vpop.f32.mrf.mxu0
    %v1877 = vadd.f32 0.0, %v1876
    %v1878 = vpop.f32.mrf.mxu0
    %1879 = vdwg.mxu0
    %v1880 = vadd.f32 %v1725, %v1842
    %v1881 = vadd.f32 %v1726, %v1847
    %v1882 = vadd.f32 %v1727, %v1852
    %v1883 = vadd.f32 %v1728, %v1857
    %v1884 = vadd.f32 %v1729, %v1862
    %v1885 = vadd.f32 %v1730, %v1867
    %v1886 = vadd.f32 %v1731, %v1872
    %v1887 = vadd.f32 %v1732, %v1877
    %s1888 = scalar_lea.vmem [#allocation2], 5
    %v1889 = vld [vmem:[%s1888] ss:$4 sm:$0xff]
    %s1890 = scalar_lea.vmem [#allocation2], 37
    %v1891 = vld [vmem:[%s1890] ss:$4 sm:$0xff]
    %s1892 = scalar_lea.vmem [#allocation2], 69
    %v1893 = vld [vmem:[%s1892] ss:$4 sm:$0xff]
    %s1894 = scalar_lea.vmem [#allocation2], 101
    %v1895 = vld [vmem:[%s1894] ss:$4 sm:$0xff]
    %s1896 = scalar_lea.vmem [#allocation2], 133
    %v1897 = vld [vmem:[%s1896] ss:$4 sm:$0xff]
    %s1898 = scalar_lea.vmem [#allocation2], 165
    %v1899 = vld [vmem:[%s1898] ss:$4 sm:$0xff]
    %s1900 = scalar_lea.vmem [#allocation2], 197
    %v1901 = vld [vmem:[%s1900] ss:$4 sm:$0xff]
    %s1902 = scalar_lea.vmem [#allocation2], 229
    %v1903 = vld [vmem:[%s1902] ss:$4 sm:$0x7f]
    %s1904 = scalar_lea.vmem %s7, 40
    %v1905 = vld [vmem:[%s1904] sm:$0xff]
    %v1907 = vsel %vm233, %v1889, 0
    %v1910 = vsel %vm233, %v1891, 0
    %v1913 = vsel %vm233, %v1893, 0
    %v1916 = vsel %vm233, %v1895, 0
    %v1919 = vsel %vm233, %v1897, 0
    %v1922 = vsel %vm233, %v1899, 0
    %v1925 = vsel %vm233, %v1901, 0
    %v1928 = vsel %vm233, %v1903, 0
    %1930 = vmatprep.subr.mxu0 0.0
    %1931 = vmatpush1.msra.mxu0 0.0
    %1932 = vmatprep.subr.mxu0 0.0
    %1933 = vmatpush1.msra.mxu0 0.0
    %1934 = vmatprep.subr.mxu0 0.0
    %1935 = vmatpush1.msra.mxu0 0.0
    %1936 = vmatprep.subr.mxu0 0.0
    %1937 = vmatpush1.msra.mxu0 0.0
    %1938 = vmatprep.subr.mxu0 0.0
    %1939 = vmatpush1.msra.mxu0 0.0
    %1940 = vmatprep.subr.mxu0 0.0
    %1941 = vmatpush1.msra.mxu0 0.0
    %1942 = vmatprep.subr.mxu0 0.0
    %1943 = vmatpush1.msra.mxu0 0.0
    %1944 = vmatprep.subr.mxu0 0.0
    %1945 = vmatpush1.msra.mxu0 0.0
    %1946 = vmatprep.subr.mxu0 0.0
    %1947 = vmatpush1.msra.mxu0 0.0
    %1948 = vmatprep.subr.mxu0 0.0
    %1949 = vmatpush1.msra.mxu0 0.0
    %1950 = vmatprep.subr.mxu0 0.0
    %1951 = vmatpush1.msra.mxu0 0.0
    %1952 = vmatprep.subr.mxu0 0.0
    %1953 = vmatpush1.msra.mxu0 0.0
    %1954 = vmatprep.subr.mxu0 0.0
    %1955 = vmatpush1.msra.mxu0 0.0
    %1956 = vmatprep.subr.mxu0 0.0
    %1957 = vmatpush1.msra.mxu0 0.0
    %1958 = vmatprep.subr.mxu0 0.0
    %1959 = vmatpush1.msra.mxu0 0.0
    %1960 = vmatprep.subr.mxu0 0.0
    %1961 = vmatpush1.msra.mxu0 %v1905
    %1962 = vmatprep.subr.mxu0 0.0
    %1963 = vmatpush2.msra.mxu0 0.0
    %1964 = vmatprep.subr.mxu0 0.0
    %1965 = vmatpush2.msra.mxu0 0.0
    %1966 = vmatprep.subr.mxu0 0.0
    %1967 = vmatpush2.msra.mxu0 0.0
    %1968 = vmatprep.subr.mxu0 0.0
    %1969 = vmatpush2.msra.mxu0 0.0
    %1970 = vmatprep.subr.mxu0 0.0
    %1971 = vmatpush2.msra.mxu0 0.0
    %1972 = vmatprep.subr.mxu0 0.0
    %1973 = vmatpush2.msra.mxu0 0.0
    %1974 = vmatprep.subr.mxu0 0.0
    %1975 = vmatpush2.msra.mxu0 0.0
    %1976 = vmatprep.subr.mxu0 0.0
    %1977 = vmatpush2.msra.mxu0 0.0
    %1978 = vmatprep.subr.mxu0 0.0
    %1979 = vmatpush2.msra.mxu0 0.0
    %1980 = vmatprep.subr.mxu0 0.0
    %1981 = vmatpush2.msra.mxu0 0.0
    %1982 = vmatprep.subr.mxu0 0.0
    %1983 = vmatpush2.msra.mxu0 0.0
    %1984 = vmatprep.subr.mxu0 0.0
    %1985 = vmatpush2.msra.mxu0 0.0
    %1986 = vmatprep.subr.mxu0 0.0
    %1987 = vmatpush2.msra.mxu0 0.0
    %1988 = vmatprep.subr.mxu0 0.0
    %1989 = vmatpush2.msra.mxu0 0.0
    %1990 = vmatprep.subr.mxu0 0.0
    %1991 = vmatpush2.msra.mxu0 0.0
    %1992 = vmatprep.subr.mxu0 0.0
    %1993 = vmatpush2.msra.mxu0 0.0
    %1994 = vmatprep.mubr.f32.mxu0 0.0
    %1995 = vmatmul.mubr.f32.gmra.mxu0 %v1907
    %v1996 = vpop.f32.mrf.mxu0
    %v1997 = vadd.f32 0.0, %v1996
    %v1998 = vpop.f32.mrf.mxu0
    %1999 = vmatprep.mubr.f32.mxu0 0.0
    %2000 = vmatmul.mubr.f32.gmra.mxu0 %v1910
    %v2001 = vpop.f32.mrf.mxu0
    %v2002 = vadd.f32 0.0, %v2001
    %v2003 = vpop.f32.mrf.mxu0
    %2004 = vmatprep.mubr.f32.mxu0 0.0
    %2005 = vmatmul.mubr.f32.gmra.mxu0 %v1913
    %v2006 = vpop.f32.mrf.mxu0
    %v2007 = vadd.f32 0.0, %v2006
    %v2008 = vpop.f32.mrf.mxu0
    %2009 = vmatprep.mubr.f32.mxu0 0.0
    %2010 = vmatmul.mubr.f32.gmra.mxu0 %v1916
    %v2011 = vpop.f32.mrf.mxu0
    %v2012 = vadd.f32 0.0, %v2011
    %v2013 = vpop.f32.mrf.mxu0
    %2014 = vmatprep.mubr.f32.mxu0 0.0
    %2015 = vmatmul.mubr.f32.gmra.mxu0 %v1919
    %v2016 = vpop.f32.mrf.mxu0
    %v2017 = vadd.f32 0.0, %v2016
    %v2018 = vpop.f32.mrf.mxu0
    %2019 = vmatprep.mubr.f32.mxu0 0.0
    %2020 = vmatmul.mubr.f32.gmra.mxu0 %v1922
    %v2021 = vpop.f32.mrf.mxu0
    %v2022 = vadd.f32 0.0, %v2021
    %v2023 = vpop.f32.mrf.mxu0
    %2024 = vmatprep.mubr.f32.mxu0 0.0
    %2025 = vmatmul.mubr.f32.gmra.mxu0 %v1925
    %v2026 = vpop.f32.mrf.mxu0
    %v2027 = vadd.f32 0.0, %v2026
    %v2028 = vpop.f32.mrf.mxu0
    %2029 = vmatprep.mubr.f32.mxu0 0.0
    %2030 = vmatmul.mubr.f32.gmra.mxu0 %v1928
    %v2031 = vpop.f32.mrf.mxu0
    %v2032 = vadd.f32 0.0, %v2031
    %v2033 = vpop.f32.mrf.mxu0
    %2034 = vdwg.mxu0
    %v2035 = vadd.f32 %v1880, %v1997
    %v2036 = vadd.f32 %v1881, %v2002
    %v2037 = vadd.f32 %v1882, %v2007
    %v2038 = vadd.f32 %v1883, %v2012
    %v2039 = vadd.f32 %v1884, %v2017
    %v2040 = vadd.f32 %v1885, %v2022
    %v2041 = vadd.f32 %v1886, %v2027
    %v2042 = vadd.f32 %v1887, %v2032
    %s2043 = scalar_lea.vmem [#allocation2], 6
    %v2044 = vld [vmem:[%s2043] ss:$4 sm:$0xff]
    %s2045 = scalar_lea.vmem [#allocation2], 38
    %v2046 = vld [vmem:[%s2045] ss:$4 sm:$0xff]
    %s2047 = scalar_lea.vmem [#allocation2], 70
    %v2048 = vld [vmem:[%s2047] ss:$4 sm:$0xff]
    %s2049 = scalar_lea.vmem [#allocation2], 102
    %v2050 = vld [vmem:[%s2049] ss:$4 sm:$0xff]
    %s2051 = scalar_lea.vmem [#allocation2], 134
    %v2052 = vld [vmem:[%s2051] ss:$4 sm:$0xff]
    %s2053 = scalar_lea.vmem [#allocation2], 166
    %v2054 = vld [vmem:[%s2053] ss:$4 sm:$0xff]
    %s2055 = scalar_lea.vmem [#allocation2], 198
    %v2056 = vld [vmem:[%s2055] ss:$4 sm:$0xff]
    %s2057 = scalar_lea.vmem [#allocation2], 230
    %v2058 = vld [vmem:[%s2057] ss:$4 sm:$0x7f]
    %s2059 = scalar_lea.vmem %s7, 48
    %v2060 = vld [vmem:[%s2059] sm:$0xff]
    %v2062 = vsel %vm233, %v2044, 0
    %v2065 = vsel %vm233, %v2046, 0
    %v2068 = vsel %vm233, %v2048, 0
    %v2071 = vsel %vm233, %v2050, 0
    %v2074 = vsel %vm233, %v2052, 0
    %v2077 = vsel %vm233, %v2054, 0
    %v2080 = vsel %vm233, %v2056, 0
    %v2083 = vsel %vm233, %v2058, 0
    %2085 = vmatprep.subr.mxu0 0.0
    %2086 = vmatpush1.msra.mxu0 0.0
    %2087 = vmatprep.subr.mxu0 0.0
    %2088 = vmatpush1.msra.mxu0 0.0
    %2089 = vmatprep.subr.mxu0 0.0
    %2090 = vmatpush1.msra.mxu0 0.0
    %2091 = vmatprep.subr.mxu0 0.0
    %2092 = vmatpush1.msra.mxu0 0.0
    %2093 = vmatprep.subr.mxu0 0.0
    %2094 = vmatpush1.msra.mxu0 0.0
    %2095 = vmatprep.subr.mxu0 0.0
    %2096 = vmatpush1.msra.mxu0 0.0
    %2097 = vmatprep.subr.mxu0 0.0
    %2098 = vmatpush1.msra.mxu0 0.0
    %2099 = vmatprep.subr.mxu0 0.0
    %2100 = vmatpush1.msra.mxu0 0.0
    %2101 = vmatprep.subr.mxu0 0.0
    %2102 = vmatpush1.msra.mxu0 0.0
    %2103 = vmatprep.subr.mxu0 0.0
    %2104 = vmatpush1.msra.mxu0 0.0
    %2105 = vmatprep.subr.mxu0 0.0
    %2106 = vmatpush1.msra.mxu0 0.0
    %2107 = vmatprep.subr.mxu0 0.0
    %2108 = vmatpush1.msra.mxu0 0.0
    %2109 = vmatprep.subr.mxu0 0.0
    %2110 = vmatpush1.msra.mxu0 0.0
    %2111 = vmatprep.subr.mxu0 0.0
    %2112 = vmatpush1.msra.mxu0 0.0
    %2113 = vmatprep.subr.mxu0 0.0
    %2114 = vmatpush1.msra.mxu0 0.0
    %2115 = vmatprep.subr.mxu0 0.0
    %2116 = vmatpush1.msra.mxu0 %v2060
    %2117 = vmatprep.subr.mxu0 0.0
    %2118 = vmatpush2.msra.mxu0 0.0
    %2119 = vmatprep.subr.mxu0 0.0
    %2120 = vmatpush2.msra.mxu0 0.0
    %2121 = vmatprep.subr.mxu0 0.0
    %2122 = vmatpush2.msra.mxu0 0.0
    %2123 = vmatprep.subr.mxu0 0.0
    %2124 = vmatpush2.msra.mxu0 0.0
    %2125 = vmatprep.subr.mxu0 0.0
    %2126 = vmatpush2.msra.mxu0 0.0
    %2127 = vmatprep.subr.mxu0 0.0
    %2128 = vmatpush2.msra.mxu0 0.0
    %2129 = vmatprep.subr.mxu0 0.0
    %2130 = vmatpush2.msra.mxu0 0.0
    %2131 = vmatprep.subr.mxu0 0.0
    %2132 = vmatpush2.msra.mxu0 0.0
    %2133 = vmatprep.subr.mxu0 0.0
    %2134 = vmatpush2.msra.mxu0 0.0
    %2135 = vmatprep.subr.mxu0 0.0
    %2136 = vmatpush2.msra.mxu0 0.0
    %2137 = vmatprep.subr.mxu0 0.0
    %2138 = vmatpush2.msra.mxu0 0.0
    %2139 = vmatprep.subr.mxu0 0.0
    %2140 = vmatpush2.msra.mxu0 0.0
    %2141 = vmatprep.subr.mxu0 0.0
    %2142 = vmatpush2.msra.mxu0 0.0
    %2143 = vmatprep.subr.mxu0 0.0
    %2144 = vmatpush2.msra.mxu0 0.0
    %2145 = vmatprep.subr.mxu0 0.0
    %2146 = vmatpush2.msra.mxu0 0.0
    %2147 = vmatprep.subr.mxu0 0.0
    %2148 = vmatpush2.msra.mxu0 0.0
    %2149 = vmatprep.mubr.f32.mxu0 0.0
    %2150 = vmatmul.mubr.f32.gmra.mxu0 %v2062
    %v2151 = vpop.f32.mrf.mxu0
    %v2152 = vadd.f32 0.0, %v2151
    %v2153 = vpop.f32.mrf.mxu0
    %2154 = vmatprep.mubr.f32.mxu0 0.0
    %2155 = vmatmul.mubr.f32.gmra.mxu0 %v2065
    %v2156 = vpop.f32.mrf.mxu0
    %v2157 = vadd.f32 0.0, %v2156
    %v2158 = vpop.f32.mrf.mxu0
    %2159 = vmatprep.mubr.f32.mxu0 0.0
    %2160 = vmatmul.mubr.f32.gmra.mxu0 %v2068
    %v2161 = vpop.f32.mrf.mxu0
    %v2162 = vadd.f32 0.0, %v2161
    %v2163 = vpop.f32.mrf.mxu0
    %2164 = vmatprep.mubr.f32.mxu0 0.0
    %2165 = vmatmul.mubr.f32.gmra.mxu0 %v2071
    %v2166 = vpop.f32.mrf.mxu0
    %v2167 = vadd.f32 0.0, %v2166
    %v2168 = vpop.f32.mrf.mxu0
    %2169 = vmatprep.mubr.f32.mxu0 0.0
    %2170 = vmatmul.mubr.f32.gmra.mxu0 %v2074
    %v2171 = vpop.f32.mrf.mxu0
    %v2172 = vadd.f32 0.0, %v2171
    %v2173 = vpop.f32.mrf.mxu0
    %2174 = vmatprep.mubr.f32.mxu0 0.0
    %2175 = vmatmul.mubr.f32.gmra.mxu0 %v2077
    %v2176 = vpop.f32.mrf.mxu0
    %v2177 = vadd.f32 0.0, %v2176
    %v2178 = vpop.f32.mrf.mxu0
    %2179 = vmatprep.mubr.f32.mxu0 0.0
    %2180 = vmatmul.mubr.f32.gmra.mxu0 %v2080
    %v2181 = vpop.f32.mrf.mxu0
    %v2182 = vadd.f32 0.0, %v2181
    %v2183 = vpop.f32.mrf.mxu0
    %2184 = vmatprep.mubr.f32.mxu0 0.0
    %2185 = vmatmul.mubr.f32.gmra.mxu0 %v2083
    %v2186 = vpop.f32.mrf.mxu0
    %v2187 = vadd.f32 0.0, %v2186
    %v2188 = vpop.f32.mrf.mxu0
    %2189 = vdwg.mxu0
    %v2190 = vadd.f32 %v2035, %v2152
    %v2191 = vadd.f32 %v2036, %v2157
    %v2192 = vadd.f32 %v2037, %v2162
    %v2193 = vadd.f32 %v2038, %v2167
    %v2194 = vadd.f32 %v2039, %v2172
    %v2195 = vadd.f32 %v2040, %v2177
    %v2196 = vadd.f32 %v2041, %v2182
    %v2197 = vadd.f32 %v2042, %v2187
    %s2198 = scalar_lea.vmem [#allocation2], 7
    %v2199 = vld [vmem:[%s2198] ss:$4 sm:$0xff]
    %s2200 = scalar_lea.vmem [#allocation2], 39
    %v2201 = vld [vmem:[%s2200] ss:$4 sm:$0xff]
    %s2202 = scalar_lea.vmem [#allocation2], 71
    %v2203 = vld [vmem:[%s2202] ss:$4 sm:$0xff]
    %s2204 = scalar_lea.vmem [#allocation2], 103
    %v2205 = vld [vmem:[%s2204] ss:$4 sm:$0xff]
    %s2206 = scalar_lea.vmem [#allocation2], 135
    %v2207 = vld [vmem:[%s2206] ss:$4 sm:$0xff]
    %s2208 = scalar_lea.vmem [#allocation2], 167
    %v2209 = vld [vmem:[%s2208] ss:$4 sm:$0xff]
    %s2210 = scalar_lea.vmem [#allocation2], 199
    %v2211 = vld [vmem:[%s2210] ss:$4 sm:$0xff]
    %s2212 = scalar_lea.vmem [#allocation2], 231
    %v2213 = vld [vmem:[%s2212] ss:$4 sm:$0x7f]
    %s2214 = scalar_lea.vmem %s7, 56
    %v2215 = vld [vmem:[%s2214] sm:$0xff]
    %v2217 = vsel %vm233, %v2199, 0
    %v2220 = vsel %vm233, %v2201, 0
    %v2223 = vsel %vm233, %v2203, 0
    %v2226 = vsel %vm233, %v2205, 0
    %v2229 = vsel %vm233, %v2207, 0
    %v2232 = vsel %vm233, %v2209, 0
    %v2235 = vsel %vm233, %v2211, 0
    %v2238 = vsel %vm233, %v2213, 0
    %2240 = vmatprep.subr.mxu0 0.0
    %2241 = vmatpush1.msra.mxu0 0.0
    %2242 = vmatprep.subr.mxu0 0.0
    %2243 = vmatpush1.msra.mxu0 0.0
    %2244 = vmatprep.subr.mxu0 0.0
    %2245 = vmatpush1.msra.mxu0 0.0
    %2246 = vmatprep.subr.mxu0 0.0
    %2247 = vmatpush1.msra.mxu0 0.0
    %2248 = vmatprep.subr.mxu0 0.0
    %2249 = vmatpush1.msra.mxu0 0.0
    %2250 = vmatprep.subr.mxu0 0.0
    %2251 = vmatpush1.msra.mxu0 0.0
    %2252 = vmatprep.subr.mxu0 0.0
    %2253 = vmatpush1.msra.mxu0 0.0
    %2254 = vmatprep.subr.mxu0 0.0
    %2255 = vmatpush1.msra.mxu0 0.0
    %2256 = vmatprep.subr.mxu0 0.0
    %2257 = vmatpush1.msra.mxu0 0.0
    %2258 = vmatprep.subr.mxu0 0.0
    %2259 = vmatpush1.msra.mxu0 0.0
    %2260 = vmatprep.subr.mxu0 0.0
    %2261 = vmatpush1.msra.mxu0 0.0
    %2262 = vmatprep.subr.mxu0 0.0
    %2263 = vmatpush1.msra.mxu0 0.0
    %2264 = vmatprep.subr.mxu0 0.0
    %2265 = vmatpush1.msra.mxu0 0.0
    %2266 = vmatprep.subr.mxu0 0.0
    %2267 = vmatpush1.msra.mxu0 0.0
    %2268 = vmatprep.subr.mxu0 0.0
    %2269 = vmatpush1.msra.mxu0 0.0
    %2270 = vmatprep.subr.mxu0 0.0
    %2271 = vmatpush1.msra.mxu0 %v2215
    %2272 = vmatprep.subr.mxu0 0.0
    %2273 = vmatpush2.msra.mxu0 0.0
    %2274 = vmatprep.subr.mxu0 0.0
    %2275 = vmatpush2.msra.mxu0 0.0
    %2276 = vmatprep.subr.mxu0 0.0
    %2277 = vmatpush2.msra.mxu0 0.0
    %2278 = vmatprep.subr.mxu0 0.0
    %2279 = vmatpush2.msra.mxu0 0.0
    %2280 = vmatprep.subr.mxu0 0.0
    %2281 = vmatpush2.msra.mxu0 0.0
    %2282 = vmatprep.subr.mxu0 0.0
    %2283 = vmatpush2.msra.mxu0 0.0
    %2284 = vmatprep.subr.mxu0 0.0
    %2285 = vmatpush2.msra.mxu0 0.0
    %2286 = vmatprep.subr.mxu0 0.0
    %2287 = vmatpush2.msra.mxu0 0.0
    %2288 = vmatprep.subr.mxu0 0.0
    %2289 = vmatpush2.msra.mxu0 0.0
    %2290 = vmatprep.subr.mxu0 0.0
    %2291 = vmatpush2.msra.mxu0 0.0
    %2292 = vmatprep.subr.mxu0 0.0
    %2293 = vmatpush2.msra.mxu0 0.0
    %2294 = vmatprep.subr.mxu0 0.0
    %2295 = vmatpush2.msra.mxu0 0.0
    %2296 = vmatprep.subr.mxu0 0.0
    %2297 = vmatpush2.msra.mxu0 0.0
    %2298 = vmatprep.subr.mxu0 0.0
    %2299 = vmatpush2.msra.mxu0 0.0
    %2300 = vmatprep.subr.mxu0 0.0
    %2301 = vmatpush2.msra.mxu0 0.0
    %2302 = vmatprep.subr.mxu0 0.0
    %2303 = vmatpush2.msra.mxu0 0.0
    %2304 = vmatprep.mubr.f32.mxu0 0.0
    %2305 = vmatmul.mubr.f32.gmra.mxu0 %v2217
    %v2306 = vpop.f32.mrf.mxu0
    %v2307 = vadd.f32 0.0, %v2306
    %v2308 = vpop.f32.mrf.mxu0
    %2309 = vmatprep.mubr.f32.mxu0 0.0
    %2310 = vmatmul.mubr.f32.gmra.mxu0 %v2220
    %v2311 = vpop.f32.mrf.mxu0
    %v2312 = vadd.f32 0.0, %v2311
    %v2313 = vpop.f32.mrf.mxu0
    %2314 = vmatprep.mubr.f32.mxu0 0.0
    %2315 = vmatmul.mubr.f32.gmra.mxu0 %v2223
    %v2316 = vpop.f32.mrf.mxu0
    %v2317 = vadd.f32 0.0, %v2316
    %v2318 = vpop.f32.mrf.mxu0
    %2319 = vmatprep.mubr.f32.mxu0 0.0
    %2320 = vmatmul.mubr.f32.gmra.mxu0 %v2226
    %v2321 = vpop.f32.mrf.mxu0
    %v2322 = vadd.f32 0.0, %v2321
    %v2323 = vpop.f32.mrf.mxu0
    %2324 = vmatprep.mubr.f32.mxu0 0.0
    %2325 = vmatmul.mubr.f32.gmra.mxu0 %v2229
    %v2326 = vpop.f32.mrf.mxu0
    %v2327 = vadd.f32 0.0, %v2326
    %v2328 = vpop.f32.mrf.mxu0
    %2329 = vmatprep.mubr.f32.mxu0 0.0
    %2330 = vmatmul.mubr.f32.gmra.mxu0 %v2232
    %v2331 = vpop.f32.mrf.mxu0
    %v2332 = vadd.f32 0.0, %v2331
    %v2333 = vpop.f32.mrf.mxu0
    %2334 = vmatprep.mubr.f32.mxu0 0.0
    %2335 = vmatmul.mubr.f32.gmra.mxu0 %v2235
    %v2336 = vpop.f32.mrf.mxu0
    %v2337 = vadd.f32 0.0, %v2336
    %v2338 = vpop.f32.mrf.mxu0
    %2339 = vmatprep.mubr.f32.mxu0 0.0
    %2340 = vmatmul.mubr.f32.gmra.mxu0 %v2238
    %v2341 = vpop.f32.mrf.mxu0
    %v2342 = vadd.f32 0.0, %v2341
    %v2343 = vpop.f32.mrf.mxu0
    %2344 = vdwg.mxu0
    %v2345 = vadd.f32 %v2190, %v2307
    %v2346 = vadd.f32 %v2191, %v2312
    %v2347 = vadd.f32 %v2192, %v2317
    %v2348 = vadd.f32 %v2193, %v2322
    %v2349 = vadd.f32 %v2194, %v2327
    %v2350 = vadd.f32 %v2195, %v2332
    %v2351 = vadd.f32 %v2196, %v2337
    %v2352 = vadd.f32 %v2197, %v2342
    %v2353 = vmax.f32 %v2345, 0.0
    %v2354 = vmax.f32 %v2346, 0.0
    %v2355 = vmax.f32 %v2347, 0.0
    %v2356 = vmax.f32 %v2348, 0.0
    %v2357 = vmax.f32 %v2349, 0.0
    %v2358 = vmax.f32 %v2350, 0.0
    %v2359 = vmax.f32 %v2351, 0.0
    %v2360 = vmax.f32 %v2352, 0.0
    %vm2361 = vcmask 130048
    %2362 = vst.msk [vmem:[#allocation3] sm:$0xff] %vm2361, %v2353
    %2363 = vst.msk [vmem:[#allocation3 + $0x8] sm:$0xff] %vm2361, %v2354
    %2364 = vst.msk [vmem:[#allocation3 + $0x10] sm:$0xff] %vm2361, %v2355
    %2365 = vst.msk [vmem:[#allocation3 + $0x18] sm:$0xff] %vm2361, %v2356
    %2366 = vst.msk [vmem:[#allocation3 + $0x20] sm:$0xff] %vm2361, %v2357
    %2367 = vst.msk [vmem:[#allocation3 + $0x28] sm:$0xff] %vm2361, %v2358
    %2368 = vst.msk [vmem:[#allocation3 + $0x30] sm:$0xff] %vm2361, %v2359
    %vm2369 = vcmask 129024
    %2370 = vst.msk [vmem:[#allocation3 + $0x38] sm:$0x7f] %vm2369, %v2360
    %v2371 = vld [vmem:[%s10] sm:$0x1]
    %v2372 = vld [vmem:[#allocation3] ss:$4 sm:$0xff]
    %s2373 = scalar_lea.vmem [#allocation3], 32
    %v2374 = vld [vmem:[%s2373] ss:$4 sm:$0x3f]
    %v2375 = vld [vmem:[%s9] sm:$0xff]
    %v2376 = vld [vmem:[%s9 + $0x8] sm:$0xff]
    %v2378 = vsel %vm2361, %v2372, 0
    %v2381 = vsel %vm2361, %v2374, 0
    %2383 = vmatprep.subr.mxu0 0.0
    %2384 = vmatpush1.msra.mxu0 0.0
    %2385 = vmatprep.subr.mxu0 0.0
    %2386 = vmatpush1.msra.mxu0 0.0
    %2387 = vmatprep.subr.mxu0 0.0
    %2388 = vmatpush1.msra.mxu0 0.0
    %2389 = vmatprep.subr.mxu0 0.0
    %2390 = vmatpush1.msra.mxu0 0.0
    %2391 = vmatprep.subr.mxu0 0.0
    %2392 = vmatpush1.msra.mxu0 0.0
    %2393 = vmatprep.subr.mxu0 0.0
    %2394 = vmatpush1.msra.mxu0 0.0
    %2395 = vmatprep.subr.mxu0 0.0
    %2396 = vmatpush1.msra.mxu0 0.0
    %2397 = vmatprep.subr.mxu0 0.0
    %2398 = vmatpush1.msra.mxu0 0.0
    %2399 = vmatprep.subr.mxu0 0.0
    %2400 = vmatpush1.msra.mxu0 0.0
    %2401 = vmatprep.subr.mxu0 0.0
    %2402 = vmatpush1.msra.mxu0 0.0
    %2403 = vmatprep.subr.mxu0 0.0
    %2404 = vmatpush1.msra.mxu0 0.0
    %2405 = vmatprep.subr.mxu0 0.0
    %2406 = vmatpush1.msra.mxu0 0.0
    %2407 = vmatprep.subr.mxu0 0.0
    %2408 = vmatpush1.msra.mxu0 0.0
    %2409 = vmatprep.subr.mxu0 0.0
    %2410 = vmatpush1.msra.mxu0 0.0
    %2411 = vmatprep.subr.mxu0 0.0
    %2412 = vmatpush1.msra.mxu0 %v2376
    %2413 = vmatprep.subr.mxu0 0.0
    %2414 = vmatpush1.msra.mxu0 %v2375
    %2415 = vmatprep.subr.mxu0 0.0
    %2416 = vmatpush2.msra.mxu0 0.0
    %2417 = vmatprep.subr.mxu0 0.0
    %2418 = vmatpush2.msra.mxu0 0.0
    %2419 = vmatprep.subr.mxu0 0.0
    %2420 = vmatpush2.msra.mxu0 0.0
    %2421 = vmatprep.subr.mxu0 0.0
    %2422 = vmatpush2.msra.mxu0 0.0
    %2423 = vmatprep.subr.mxu0 0.0
    %2424 = vmatpush2.msra.mxu0 0.0
    %2425 = vmatprep.subr.mxu0 0.0
    %2426 = vmatpush2.msra.mxu0 0.0
    %2427 = vmatprep.subr.mxu0 0.0
    %2428 = vmatpush2.msra.mxu0 0.0
    %2429 = vmatprep.subr.mxu0 0.0
    %2430 = vmatpush2.msra.mxu0 0.0
    %2431 = vmatprep.subr.mxu0 0.0
    %2432 = vmatpush2.msra.mxu0 0.0
    %2433 = vmatprep.subr.mxu0 0.0
    %2434 = vmatpush2.msra.mxu0 0.0
    %2435 = vmatprep.subr.mxu0 0.0
    %2436 = vmatpush2.msra.mxu0 0.0
    %2437 = vmatprep.subr.mxu0 0.0
    %2438 = vmatpush2.msra.mxu0 0.0
    %2439 = vmatprep.subr.mxu0 0.0
    %2440 = vmatpush2.msra.mxu0 0.0
    %2441 = vmatprep.subr.mxu0 0.0
    %2442 = vmatpush2.msra.mxu0 0.0
    %2443 = vmatprep.subr.mxu0 0.0
    %2444 = vmatpush2.msra.mxu0 0.0
    %2445 = vmatprep.subr.mxu0 0.0
    %2446 = vmatpush2.msra.mxu0 0.0
    %2447 = vmatprep.mubr.f32.mxu0 0.0
    %2448 = vmatmul.mubr.f32.gmra.mxu0 %v2378
    %v2449 = vpop.f32.mrf.mxu0
    %v2450 = vadd.f32 0.0, %v2449
    %v2451 = vpop.f32.mrf.mxu0
    %2452 = vmatprep.mubr.f32.mxu0 0.0
    %2453 = vmatmul.mubr.f32.gmra.mxu0 %v2381
    %v2454 = vpop.f32.mrf.mxu0
    %v2455 = vadd.f32 0.0, %v2454
    %v2456 = vpop.f32.mrf.mxu0
    %2457 = vdwg.mxu0
    %v2459 = vlaneseq
    %v2460 = vshrl.u32 %v2459, 7
    %v2461 = vsub.s32 0, %v2460
    %v2462 = vrot.slane %v2371, %v2461
    %v2464 = vadd.f32 %v2462, %v2450
    %v2465 = vadd.f32 %v2462, %v2455
    %s2466 = scalar_lea.vmem [#allocation3], 1
    %v2467 = vld [vmem:[%s2466] ss:$4 sm:$0xff]
    %s2468 = scalar_lea.vmem [#allocation3], 33
    %v2469 = vld [vmem:[%s2468] ss:$4 sm:$0x3f]
    %s2470 = scalar_lea.vmem %s9, 16
    %v2471 = vld [vmem:[%s2470] sm:$0xff]
    %v2472 = vld [vmem:[%s2470 + $0x8] sm:$0xff]
    %v2474 = vsel %vm2361, %v2467, 0
    %v2477 = vsel %vm2361, %v2469, 0
    %2479 = vmatprep.subr.mxu0 0.0
    %2480 = vmatpush1.msra.mxu0 0.0
    %2481 = vmatprep.subr.mxu0 0.0
    %2482 = vmatpush1.msra.mxu0 0.0
    %2483 = vmatprep.subr.mxu0 0.0
    %2484 = vmatpush1.msra.mxu0 0.0
    %2485 = vmatprep.subr.mxu0 0.0
    %2486 = vmatpush1.msra.mxu0 0.0
    %2487 = vmatprep.subr.mxu0 0.0
    %2488 = vmatpush1.msra.mxu0 0.0
    %2489 = vmatprep.subr.mxu0 0.0
    %2490 = vmatpush1.msra.mxu0 0.0
    %2491 = vmatprep.subr.mxu0 0.0
    %2492 = vmatpush1.msra.mxu0 0.0
    %2493 = vmatprep.subr.mxu0 0.0
    %2494 = vmatpush1.msra.mxu0 0.0
    %2495 = vmatprep.subr.mxu0 0.0
    %2496 = vmatpush1.msra.mxu0 0.0
    %2497 = vmatprep.subr.mxu0 0.0
    %2498 = vmatpush1.msra.mxu0 0.0
    %2499 = vmatprep.subr.mxu0 0.0
    %2500 = vmatpush1.msra.mxu0 0.0
    %2501 = vmatprep.subr.mxu0 0.0
    %2502 = vmatpush1.msra.mxu0 0.0
    %2503 = vmatprep.subr.mxu0 0.0
    %2504 = vmatpush1.msra.mxu0 0.0
    %2505 = vmatprep.subr.mxu0 0.0
    %2506 = vmatpush1.msra.mxu0 0.0
    %2507 = vmatprep.subr.mxu0 0.0
    %2508 = vmatpush1.msra.mxu0 %v2472
    %2509 = vmatprep.subr.mxu0 0.0
    %2510 = vmatpush1.msra.mxu0 %v2471
    %2511 = vmatprep.subr.mxu0 0.0
    %2512 = vmatpush2.msra.mxu0 0.0
    %2513 = vmatprep.subr.mxu0 0.0
    %2514 = vmatpush2.msra.mxu0 0.0
    %2515 = vmatprep.subr.mxu0 0.0
    %2516 = vmatpush2.msra.mxu0 0.0
    %2517 = vmatprep.subr.mxu0 0.0
    %2518 = vmatpush2.msra.mxu0 0.0
    %2519 = vmatprep.subr.mxu0 0.0
    %2520 = vmatpush2.msra.mxu0 0.0
    %2521 = vmatprep.subr.mxu0 0.0
    %2522 = vmatpush2.msra.mxu0 0.0
    %2523 = vmatprep.subr.mxu0 0.0
    %2524 = vmatpush2.msra.mxu0 0.0
    %2525 = vmatprep.subr.mxu0 0.0
    %2526 = vmatpush2.msra.mxu0 0.0
    %2527 = vmatprep.subr.mxu0 0.0
    %2528 = vmatpush2.msra.mxu0 0.0
    %2529 = vmatprep.subr.mxu0 0.0
    %2530 = vmatpush2.msra.mxu0 0.0
    %2531 = vmatprep.subr.mxu0 0.0
    %2532 = vmatpush2.msra.mxu0 0.0
    %2533 = vmatprep.subr.mxu0 0.0
    %2534 = vmatpush2.msra.mxu0 0.0
    %2535 = vmatprep.subr.mxu0 0.0
    %2536 = vmatpush2.msra.mxu0 0.0
    %2537 = vmatprep.subr.mxu0 0.0
    %2538 = vmatpush2.msra.mxu0 0.0
    %2539 = vmatprep.subr.mxu0 0.0
    %2540 = vmatpush2.msra.mxu0 0.0
    %2541 = vmatprep.subr.mxu0 0.0
    %2542 = vmatpush2.msra.mxu0 0.0
    %2543 = vmatprep.mubr.f32.mxu0 0.0
    %2544 = vmatmul.mubr.f32.gmra.mxu0 %v2474
    %v2545 = vpop.f32.mrf.mxu0
    %v2546 = vadd.f32 0.0, %v2545
    %v2547 = vpop.f32.mrf.mxu0
    %2548 = vmatprep.mubr.f32.mxu0 0.0
    %2549 = vmatmul.mubr.f32.gmra.mxu0 %v2477
    %v2550 = vpop.f32.mrf.mxu0
    %v2551 = vadd.f32 0.0, %v2550
    %v2552 = vpop.f32.mrf.mxu0
    %2553 = vdwg.mxu0
    %v2554 = vadd.f32 %v2464, %v2546
    %v2555 = vadd.f32 %v2465, %v2551
    %s2556 = scalar_lea.vmem [#allocation3], 2
    %v2557 = vld [vmem:[%s2556] ss:$4 sm:$0xff]
    %s2558 = scalar_lea.vmem [#allocation3], 34
    %v2559 = vld [vmem:[%s2558] ss:$4 sm:$0x3f]
    %s2560 = scalar_lea.vmem %s9, 32
    %v2561 = vld [vmem:[%s2560] sm:$0xff]
    %v2562 = vld [vmem:[%s2560 + $0x8] sm:$0xff]
    %v2564 = vsel %vm2361, %v2557, 0
    %v2567 = vsel %vm2361, %v2559, 0
    %2569 = vmatprep.subr.mxu0 0.0
    %2570 = vmatpush1.msra.mxu0 0.0
    %2571 = vmatprep.subr.mxu0 0.0
    %2572 = vmatpush1.msra.mxu0 0.0
    %2573 = vmatprep.subr.mxu0 0.0
    %2574 = vmatpush1.msra.mxu0 0.0
    %2575 = vmatprep.subr.mxu0 0.0
    %2576 = vmatpush1.msra.mxu0 0.0
    %2577 = vmatprep.subr.mxu0 0.0
    %2578 = vmatpush1.msra.mxu0 0.0
    %2579 = vmatprep.subr.mxu0 0.0
    %2580 = vmatpush1.msra.mxu0 0.0
    %2581 = vmatprep.subr.mxu0 0.0
    %2582 = vmatpush1.msra.mxu0 0.0
    %2583 = vmatprep.subr.mxu0 0.0
    %2584 = vmatpush1.msra.mxu0 0.0
    %2585 = vmatprep.subr.mxu0 0.0
    %2586 = vmatpush1.msra.mxu0 0.0
    %2587 = vmatprep.subr.mxu0 0.0
    %2588 = vmatpush1.msra.mxu0 0.0
    %2589 = vmatprep.subr.mxu0 0.0
    %2590 = vmatpush1.msra.mxu0 0.0
    %2591 = vmatprep.subr.mxu0 0.0
    %2592 = vmatpush1.msra.mxu0 0.0
    %2593 = vmatprep.subr.mxu0 0.0
    %2594 = vmatpush1.msra.mxu0 0.0
    %2595 = vmatprep.subr.mxu0 0.0
    %2596 = vmatpush1.msra.mxu0 0.0
    %2597 = vmatprep.subr.mxu0 0.0
    %2598 = vmatpush1.msra.mxu0 %v2562
    %2599 = vmatprep.subr.mxu0 0.0
    %2600 = vmatpush1.msra.mxu0 %v2561
    %2601 = vmatprep.subr.mxu0 0.0
    %2602 = vmatpush2.msra.mxu0 0.0
    %2603 = vmatprep.subr.mxu0 0.0
    %2604 = vmatpush2.msra.mxu0 0.0
    %2605 = vmatprep.subr.mxu0 0.0
    %2606 = vmatpush2.msra.mxu0 0.0
    %2607 = vmatprep.subr.mxu0 0.0
    %2608 = vmatpush2.msra.mxu0 0.0
    %2609 = vmatprep.subr.mxu0 0.0
    %2610 = vmatpush2.msra.mxu0 0.0
    %2611 = vmatprep.subr.mxu0 0.0
    %2612 = vmatpush2.msra.mxu0 0.0
    %2613 = vmatprep.subr.mxu0 0.0
    %2614 = vmatpush2.msra.mxu0 0.0
    %2615 = vmatprep.subr.mxu0 0.0
    %2616 = vmatpush2.msra.mxu0 0.0
    %2617 = vmatprep.subr.mxu0 0.0
    %2618 = vmatpush2.msra.mxu0 0.0
    %2619 = vmatprep.subr.mxu0 0.0
    %2620 = vmatpush2.msra.mxu0 0.0
    %2621 = vmatprep.subr.mxu0 0.0
    %2622 = vmatpush2.msra.mxu0 0.0
    %2623 = vmatprep.subr.mxu0 0.0
    %2624 = vmatpush2.msra.mxu0 0.0
    %2625 = vmatprep.subr.mxu0 0.0
    %2626 = vmatpush2.msra.mxu0 0.0
    %2627 = vmatprep.subr.mxu0 0.0
    %2628 = vmatpush2.msra.mxu0 0.0
    %2629 = vmatprep.subr.mxu0 0.0
    %2630 = vmatpush2.msra.mxu0 0.0
    %2631 = vmatprep.subr.mxu0 0.0
    %2632 = vmatpush2.msra.mxu0 0.0
    %2633 = vmatprep.mubr.f32.mxu0 0.0
    %2634 = vmatmul.mubr.f32.gmra.mxu0 %v2564
    %v2635 = vpop.f32.mrf.mxu0
    %v2636 = vadd.f32 0.0, %v2635
    %v2637 = vpop.f32.mrf.mxu0
    %2638 = vmatprep.mubr.f32.mxu0 0.0
    %2639 = vmatmul.mubr.f32.gmra.mxu0 %v2567
    %v2640 = vpop.f32.mrf.mxu0
    %v2641 = vadd.f32 0.0, %v2640
    %v2642 = vpop.f32.mrf.mxu0
    %2643 = vdwg.mxu0
    %v2644 = vadd.f32 %v2554, %v2636
    %v2645 = vadd.f32 %v2555, %v2641
    %s2646 = scalar_lea.vmem [#allocation3], 3
    %v2647 = vld [vmem:[%s2646] ss:$4 sm:$0xff]
    %s2648 = scalar_lea.vmem [#allocation3], 35
    %v2649 = vld [vmem:[%s2648] ss:$4 sm:$0x3f]
    %s2650 = scalar_lea.vmem %s9, 48
    %v2651 = vld [vmem:[%s2650] sm:$0xff]
    %v2652 = vld [vmem:[%s2650 + $0x8] sm:$0xff]
    %v2654 = vsel %vm2361, %v2647, 0
    %v2657 = vsel %vm2361, %v2649, 0
    %2659 = vmatprep.subr.mxu0 0.0
    %2660 = vmatpush1.msra.mxu0 0.0
    %2661 = vmatprep.subr.mxu0 0.0
    %2662 = vmatpush1.msra.mxu0 0.0
    %2663 = vmatprep.subr.mxu0 0.0
    %2664 = vmatpush1.msra.mxu0 0.0
    %2665 = vmatprep.subr.mxu0 0.0
    %2666 = vmatpush1.msra.mxu0 0.0
    %2667 = vmatprep.subr.mxu0 0.0
    %2668 = vmatpush1.msra.mxu0 0.0
    %2669 = vmatprep.subr.mxu0 0.0
    %2670 = vmatpush1.msra.mxu0 0.0
    %2671 = vmatprep.subr.mxu0 0.0
    %2672 = vmatpush1.msra.mxu0 0.0
    %2673 = vmatprep.subr.mxu0 0.0
    %2674 = vmatpush1.msra.mxu0 0.0
    %2675 = vmatprep.subr.mxu0 0.0
    %2676 = vmatpush1.msra.mxu0 0.0
    %2677 = vmatprep.subr.mxu0 0.0
    %2678 = vmatpush1.msra.mxu0 0.0
    %2679 = vmatprep.subr.mxu0 0.0
    %2680 = vmatpush1.msra.mxu0 0.0
    %2681 = vmatprep.subr.mxu0 0.0
    %2682 = vmatpush1.msra.mxu0 0.0
    %2683 = vmatprep.subr.mxu0 0.0
    %2684 = vmatpush1.msra.mxu0 0.0
    %2685 = vmatprep.subr.mxu0 0.0
    %2686 = vmatpush1.msra.mxu0 0.0
    %2687 = vmatprep.subr.mxu0 0.0
    %2688 = vmatpush1.msra.mxu0 %v2652
    %2689 = vmatprep.subr.mxu0 0.0
    %2690 = vmatpush1.msra.mxu0 %v2651
    %2691 = vmatprep.subr.mxu0 0.0
    %2692 = vmatpush2.msra.mxu0 0.0
    %2693 = vmatprep.subr.mxu0 0.0
    %2694 = vmatpush2.msra.mxu0 0.0
    %2695 = vmatprep.subr.mxu0 0.0
    %2696 = vmatpush2.msra.mxu0 0.0
    %2697 = vmatprep.subr.mxu0 0.0
    %2698 = vmatpush2.msra.mxu0 0.0
    %2699 = vmatprep.subr.mxu0 0.0
    %2700 = vmatpush2.msra.mxu0 0.0
    %2701 = vmatprep.subr.mxu0 0.0
    %2702 = vmatpush2.msra.mxu0 0.0
    %2703 = vmatprep.subr.mxu0 0.0
    %2704 = vmatpush2.msra.mxu0 0.0
    %2705 = vmatprep.subr.mxu0 0.0
    %2706 = vmatpush2.msra.mxu0 0.0
    %2707 = vmatprep.subr.mxu0 0.0
    %2708 = vmatpush2.msra.mxu0 0.0
    %2709 = vmatprep.subr.mxu0 0.0
    %2710 = vmatpush2.msra.mxu0 0.0
    %2711 = vmatprep.subr.mxu0 0.0
    %2712 = vmatpush2.msra.mxu0 0.0
    %2713 = vmatprep.subr.mxu0 0.0
    %2714 = vmatpush2.msra.mxu0 0.0
    %2715 = vmatprep.subr.mxu0 0.0
    %2716 = vmatpush2.msra.mxu0 0.0
    %2717 = vmatprep.subr.mxu0 0.0
    %2718 = vmatpush2.msra.mxu0 0.0
    %2719 = vmatprep.subr.mxu0 0.0
    %2720 = vmatpush2.msra.mxu0 0.0
    %2721 = vmatprep.subr.mxu0 0.0
    %2722 = vmatpush2.msra.mxu0 0.0
    %2723 = vmatprep.mubr.f32.mxu0 0.0
    %2724 = vmatmul.mubr.f32.gmra.mxu0 %v2654
    %v2725 = vpop.f32.mrf.mxu0
    %v2726 = vadd.f32 0.0, %v2725
    %v2727 = vpop.f32.mrf.mxu0
    %2728 = vmatprep.mubr.f32.mxu0 0.0
    %2729 = vmatmul.mubr.f32.gmra.mxu0 %v2657
    %v2730 = vpop.f32.mrf.mxu0
    %v2731 = vadd.f32 0.0, %v2730
    %v2732 = vpop.f32.mrf.mxu0
    %2733 = vdwg.mxu0
    %v2734 = vadd.f32 %v2644, %v2726
    %v2735 = vadd.f32 %v2645, %v2731
    %s2736 = scalar_lea.vmem [#allocation3], 4
    %v2737 = vld [vmem:[%s2736] ss:$4 sm:$0xff]
    %s2738 = scalar_lea.vmem [#allocation3], 36
    %v2739 = vld [vmem:[%s2738] ss:$4 sm:$0x3f]
    %s2740 = scalar_lea.vmem %s9, 64
    %v2741 = vld [vmem:[%s2740] sm:$0xff]
    %v2742 = vld [vmem:[%s2740 + $0x8] sm:$0xff]
    %v2744 = vsel %vm2361, %v2737, 0
    %v2747 = vsel %vm2361, %v2739, 0
    %2749 = vmatprep.subr.mxu0 0.0
    %2750 = vmatpush1.msra.mxu0 0.0
    %2751 = vmatprep.subr.mxu0 0.0
    %2752 = vmatpush1.msra.mxu0 0.0
    %2753 = vmatprep.subr.mxu0 0.0
    %2754 = vmatpush1.msra.mxu0 0.0
    %2755 = vmatprep.subr.mxu0 0.0
    %2756 = vmatpush1.msra.mxu0 0.0
    %2757 = vmatprep.subr.mxu0 0.0
    %2758 = vmatpush1.msra.mxu0 0.0
    %2759 = vmatprep.subr.mxu0 0.0
    %2760 = vmatpush1.msra.mxu0 0.0
    %2761 = vmatprep.subr.mxu0 0.0
    %2762 = vmatpush1.msra.mxu0 0.0
    %2763 = vmatprep.subr.mxu0 0.0
    %2764 = vmatpush1.msra.mxu0 0.0
    %2765 = vmatprep.subr.mxu0 0.0
    %2766 = vmatpush1.msra.mxu0 0.0
    %2767 = vmatprep.subr.mxu0 0.0
    %2768 = vmatpush1.msra.mxu0 0.0
    %2769 = vmatprep.subr.mxu0 0.0
    %2770 = vmatpush1.msra.mxu0 0.0
    %2771 = vmatprep.subr.mxu0 0.0
    %2772 = vmatpush1.msra.mxu0 0.0
    %2773 = vmatprep.subr.mxu0 0.0
    %2774 = vmatpush1.msra.mxu0 0.0
    %2775 = vmatprep.subr.mxu0 0.0
    %2776 = vmatpush1.msra.mxu0 0.0
    %2777 = vmatprep.subr.mxu0 0.0
    %2778 = vmatpush1.msra.mxu0 %v2742
    %2779 = vmatprep.subr.mxu0 0.0
    %2780 = vmatpush1.msra.mxu0 %v2741
    %2781 = vmatprep.subr.mxu0 0.0
    %2782 = vmatpush2.msra.mxu0 0.0
    %2783 = vmatprep.subr.mxu0 0.0
    %2784 = vmatpush2.msra.mxu0 0.0
    %2785 = vmatprep.subr.mxu0 0.0
    %2786 = vmatpush2.msra.mxu0 0.0
    %2787 = vmatprep.subr.mxu0 0.0
    %2788 = vmatpush2.msra.mxu0 0.0
    %2789 = vmatprep.subr.mxu0 0.0
    %2790 = vmatpush2.msra.mxu0 0.0
    %2791 = vmatprep.subr.mxu0 0.0
    %2792 = vmatpush2.msra.mxu0 0.0
    %2793 = vmatprep.subr.mxu0 0.0
    %2794 = vmatpush2.msra.mxu0 0.0
    %2795 = vmatprep.subr.mxu0 0.0
    %2796 = vmatpush2.msra.mxu0 0.0
    %2797 = vmatprep.subr.mxu0 0.0
    %2798 = vmatpush2.msra.mxu0 0.0
    %2799 = vmatprep.subr.mxu0 0.0
    %2800 = vmatpush2.msra.mxu0 0.0
    %2801 = vmatprep.subr.mxu0 0.0
    %2802 = vmatpush2.msra.mxu0 0.0
    %2803 = vmatprep.subr.mxu0 0.0
    %2804 = vmatpush2.msra.mxu0 0.0
    %2805 = vmatprep.subr.mxu0 0.0
    %2806 = vmatpush2.msra.mxu0 0.0
    %2807 = vmatprep.subr.mxu0 0.0
    %2808 = vmatpush2.msra.mxu0 0.0
    %2809 = vmatprep.subr.mxu0 0.0
    %2810 = vmatpush2.msra.mxu0 0.0
    %2811 = vmatprep.subr.mxu0 0.0
    %2812 = vmatpush2.msra.mxu0 0.0
    %2813 = vmatprep.mubr.f32.mxu0 0.0
    %2814 = vmatmul.mubr.f32.gmra.mxu0 %v2744
    %v2815 = vpop.f32.mrf.mxu0
    %v2816 = vadd.f32 0.0, %v2815
    %v2817 = vpop.f32.mrf.mxu0
    %2818 = vmatprep.mubr.f32.mxu0 0.0
    %2819 = vmatmul.mubr.f32.gmra.mxu0 %v2747
    %v2820 = vpop.f32.mrf.mxu0
    %v2821 = vadd.f32 0.0, %v2820
    %v2822 = vpop.f32.mrf.mxu0
    %2823 = vdwg.mxu0
    %v2824 = vadd.f32 %v2734, %v2816
    %v2825 = vadd.f32 %v2735, %v2821
    %s2826 = scalar_lea.vmem [#allocation3], 5
    %v2827 = vld [vmem:[%s2826] ss:$4 sm:$0xff]
    %s2828 = scalar_lea.vmem [#allocation3], 37
    %v2829 = vld [vmem:[%s2828] ss:$4 sm:$0x3f]
    %s2830 = scalar_lea.vmem %s9, 80
    %v2831 = vld [vmem:[%s2830] sm:$0xff]
    %v2832 = vld [vmem:[%s2830 + $0x8] sm:$0xff]
    %v2834 = vsel %vm2361, %v2827, 0
    %v2837 = vsel %vm2361, %v2829, 0
    %2839 = vmatprep.subr.mxu0 0.0
    %2840 = vmatpush1.msra.mxu0 0.0
    %2841 = vmatprep.subr.mxu0 0.0
    %2842 = vmatpush1.msra.mxu0 0.0
    %2843 = vmatprep.subr.mxu0 0.0
    %2844 = vmatpush1.msra.mxu0 0.0
    %2845 = vmatprep.subr.mxu0 0.0
    %2846 = vmatpush1.msra.mxu0 0.0
    %2847 = vmatprep.subr.mxu0 0.0
    %2848 = vmatpush1.msra.mxu0 0.0
    %2849 = vmatprep.subr.mxu0 0.0
    %2850 = vmatpush1.msra.mxu0 0.0
    %2851 = vmatprep.subr.mxu0 0.0
    %2852 = vmatpush1.msra.mxu0 0.0
    %2853 = vmatprep.subr.mxu0 0.0
    %2854 = vmatpush1.msra.mxu0 0.0
    %2855 = vmatprep.subr.mxu0 0.0
    %2856 = vmatpush1.msra.mxu0 0.0
    %2857 = vmatprep.subr.mxu0 0.0
    %2858 = vmatpush1.msra.mxu0 0.0
    %2859 = vmatprep.subr.mxu0 0.0
    %2860 = vmatpush1.msra.mxu0 0.0
    %2861 = vmatprep.subr.mxu0 0.0
    %2862 = vmatpush1.msra.mxu0 0.0
    %2863 = vmatprep.subr.mxu0 0.0
    %2864 = vmatpush1.msra.mxu0 0.0
    %2865 = vmatprep.subr.mxu0 0.0
    %2866 = vmatpush1.msra.mxu0 0.0
    %2867 = vmatprep.subr.mxu0 0.0
    %2868 = vmatpush1.msra.mxu0 %v2832
    %2869 = vmatprep.subr.mxu0 0.0
    %2870 = vmatpush1.msra.mxu0 %v2831
    %2871 = vmatprep.subr.mxu0 0.0
    %2872 = vmatpush2.msra.mxu0 0.0
    %2873 = vmatprep.subr.mxu0 0.0
    %2874 = vmatpush2.msra.mxu0 0.0
    %2875 = vmatprep.subr.mxu0 0.0
    %2876 = vmatpush2.msra.mxu0 0.0
    %2877 = vmatprep.subr.mxu0 0.0
    %2878 = vmatpush2.msra.mxu0 0.0
    %2879 = vmatprep.subr.mxu0 0.0
    %2880 = vmatpush2.msra.mxu0 0.0
    %2881 = vmatprep.subr.mxu0 0.0
    %2882 = vmatpush2.msra.mxu0 0.0
    %2883 = vmatprep.subr.mxu0 0.0
    %2884 = vmatpush2.msra.mxu0 0.0
    %2885 = vmatprep.subr.mxu0 0.0
    %2886 = vmatpush2.msra.mxu0 0.0
    %2887 = vmatprep.subr.mxu0 0.0
    %2888 = vmatpush2.msra.mxu0 0.0
    %2889 = vmatprep.subr.mxu0 0.0
    %2890 = vmatpush2.msra.mxu0 0.0
    %2891 = vmatprep.subr.mxu0 0.0
    %2892 = vmatpush2.msra.mxu0 0.0
    %2893 = vmatprep.subr.mxu0 0.0
    %2894 = vmatpush2.msra.mxu0 0.0
    %2895 = vmatprep.subr.mxu0 0.0
    %2896 = vmatpush2.msra.mxu0 0.0
    %2897 = vmatprep.subr.mxu0 0.0
    %2898 = vmatpush2.msra.mxu0 0.0
    %2899 = vmatprep.subr.mxu0 0.0
    %2900 = vmatpush2.msra.mxu0 0.0
    %2901 = vmatprep.subr.mxu0 0.0
    %2902 = vmatpush2.msra.mxu0 0.0
    %2903 = vmatprep.mubr.f32.mxu0 0.0
    %2904 = vmatmul.mubr.f32.gmra.mxu0 %v2834
    %v2905 = vpop.f32.mrf.mxu0
    %v2906 = vadd.f32 0.0, %v2905
    %v2907 = vpop.f32.mrf.mxu0
    %2908 = vmatprep.mubr.f32.mxu0 0.0
    %2909 = vmatmul.mubr.f32.gmra.mxu0 %v2837
    %v2910 = vpop.f32.mrf.mxu0
    %v2911 = vadd.f32 0.0, %v2910
    %v2912 = vpop.f32.mrf.mxu0
    %2913 = vdwg.mxu0
    %v2914 = vadd.f32 %v2824, %v2906
    %v2915 = vadd.f32 %v2825, %v2911
    %s2916 = scalar_lea.vmem [#allocation3], 6
    %v2917 = vld [vmem:[%s2916] ss:$4 sm:$0xff]
    %s2918 = scalar_lea.vmem [#allocation3], 38
    %v2919 = vld [vmem:[%s2918] ss:$4 sm:$0x3f]
    %s2920 = scalar_lea.vmem %s9, 96
    %v2921 = vld [vmem:[%s2920] sm:$0xff]
    %v2922 = vld [vmem:[%s2920 + $0x8] sm:$0xff]
    %v2924 = vsel %vm2361, %v2917, 0
    %v2927 = vsel %vm2361, %v2919, 0
    %2929 = vmatprep.subr.mxu0 0.0
    %2930 = vmatpush1.msra.mxu0 0.0
    %2931 = vmatprep.subr.mxu0 0.0
    %2932 = vmatpush1.msra.mxu0 0.0
    %2933 = vmatprep.subr.mxu0 0.0
    %2934 = vmatpush1.msra.mxu0 0.0
    %2935 = vmatprep.subr.mxu0 0.0
    %2936 = vmatpush1.msra.mxu0 0.0
    %2937 = vmatprep.subr.mxu0 0.0
    %2938 = vmatpush1.msra.mxu0 0.0
    %2939 = vmatprep.subr.mxu0 0.0
    %2940 = vmatpush1.msra.mxu0 0.0
    %2941 = vmatprep.subr.mxu0 0.0
    %2942 = vmatpush1.msra.mxu0 0.0
    %2943 = vmatprep.subr.mxu0 0.0
    %2944 = vmatpush1.msra.mxu0 0.0
    %2945 = vmatprep.subr.mxu0 0.0
    %2946 = vmatpush1.msra.mxu0 0.0
    %2947 = vmatprep.subr.mxu0 0.0
    %2948 = vmatpush1.msra.mxu0 0.0
    %2949 = vmatprep.subr.mxu0 0.0
    %2950 = vmatpush1.msra.mxu0 0.0
    %2951 = vmatprep.subr.mxu0 0.0
    %2952 = vmatpush1.msra.mxu0 0.0
    %2953 = vmatprep.subr.mxu0 0.0
    %2954 = vmatpush1.msra.mxu0 0.0
    %2955 = vmatprep.subr.mxu0 0.0
    %2956 = vmatpush1.msra.mxu0 0.0
    %2957 = vmatprep.subr.mxu0 0.0
    %2958 = vmatpush1.msra.mxu0 %v2922
    %2959 = vmatprep.subr.mxu0 0.0
    %2960 = vmatpush1.msra.mxu0 %v2921
    %2961 = vmatprep.subr.mxu0 0.0
    %2962 = vmatpush2.msra.mxu0 0.0
    %2963 = vmatprep.subr.mxu0 0.0
    %2964 = vmatpush2.msra.mxu0 0.0
    %2965 = vmatprep.subr.mxu0 0.0
    %2966 = vmatpush2.msra.mxu0 0.0
    %2967 = vmatprep.subr.mxu0 0.0
    %2968 = vmatpush2.msra.mxu0 0.0
    %2969 = vmatprep.subr.mxu0 0.0
    %2970 = vmatpush2.msra.mxu0 0.0
    %2971 = vmatprep.subr.mxu0 0.0
    %2972 = vmatpush2.msra.mxu0 0.0
    %2973 = vmatprep.subr.mxu0 0.0
    %2974 = vmatpush2.msra.mxu0 0.0
    %2975 = vmatprep.subr.mxu0 0.0
    %2976 = vmatpush2.msra.mxu0 0.0
    %2977 = vmatprep.subr.mxu0 0.0
    %2978 = vmatpush2.msra.mxu0 0.0
    %2979 = vmatprep.subr.mxu0 0.0
    %2980 = vmatpush2.msra.mxu0 0.0
    %2981 = vmatprep.subr.mxu0 0.0
    %2982 = vmatpush2.msra.mxu0 0.0
    %2983 = vmatprep.subr.mxu0 0.0
    %2984 = vmatpush2.msra.mxu0 0.0
    %2985 = vmatprep.subr.mxu0 0.0
    %2986 = vmatpush2.msra.mxu0 0.0
    %2987 = vmatprep.subr.mxu0 0.0
    %2988 = vmatpush2.msra.mxu0 0.0
    %2989 = vmatprep.subr.mxu0 0.0
    %2990 = vmatpush2.msra.mxu0 0.0
    %2991 = vmatprep.subr.mxu0 0.0
    %2992 = vmatpush2.msra.mxu0 0.0
    %2993 = vmatprep.mubr.f32.mxu0 0.0
    %2994 = vmatmul.mubr.f32.gmra.mxu0 %v2924
    %v2995 = vpop.f32.mrf.mxu0
    %v2996 = vadd.f32 0.0, %v2995
    %v2997 = vpop.f32.mrf.mxu0
    %2998 = vmatprep.mubr.f32.mxu0 0.0
    %2999 = vmatmul.mubr.f32.gmra.mxu0 %v2927
    %v3000 = vpop.f32.mrf.mxu0
    %v3001 = vadd.f32 0.0, %v3000
    %v3002 = vpop.f32.mrf.mxu0
    %3003 = vdwg.mxu0
    %v3004 = vadd.f32 %v2914, %v2996
    %v3005 = vadd.f32 %v2915, %v3001
    %s3006 = scalar_lea.vmem [#allocation3], 7
    %v3007 = vld [vmem:[%s3006] ss:$4 sm:$0xff]
    %s3008 = scalar_lea.vmem [#allocation3], 39
    %v3009 = vld [vmem:[%s3008] ss:$4 sm:$0x3f]
    %s3010 = scalar_lea.vmem %s9, 112
    %v3011 = vld [vmem:[%s3010] sm:$0xff]
    %v3012 = vld [vmem:[%s3010 + $0x8] sm:$0xff]
    %v3014 = vsel %vm2361, %v3007, 0
    %v3017 = vsel %vm2361, %v3009, 0
    %3019 = vmatprep.subr.mxu0 0.0
    %3020 = vmatpush1.msra.mxu0 0.0
    %3021 = vmatprep.subr.mxu0 0.0
    %3022 = vmatpush1.msra.mxu0 0.0
    %3023 = vmatprep.subr.mxu0 0.0
    %3024 = vmatpush1.msra.mxu0 0.0
    %3025 = vmatprep.subr.mxu0 0.0
    %3026 = vmatpush1.msra.mxu0 0.0
    %3027 = vmatprep.subr.mxu0 0.0
    %3028 = vmatpush1.msra.mxu0 0.0
    %3029 = vmatprep.subr.mxu0 0.0
    %3030 = vmatpush1.msra.mxu0 0.0
    %3031 = vmatprep.subr.mxu0 0.0
    %3032 = vmatpush1.msra.mxu0 0.0
    %3033 = vmatprep.subr.mxu0 0.0
    %3034 = vmatpush1.msra.mxu0 0.0
    %3035 = vmatprep.subr.mxu0 0.0
    %3036 = vmatpush1.msra.mxu0 0.0
    %3037 = vmatprep.subr.mxu0 0.0
    %3038 = vmatpush1.msra.mxu0 0.0
    %3039 = vmatprep.subr.mxu0 0.0
    %3040 = vmatpush1.msra.mxu0 0.0
    %3041 = vmatprep.subr.mxu0 0.0
    %3042 = vmatpush1.msra.mxu0 0.0
    %3043 = vmatprep.subr.mxu0 0.0
    %3044 = vmatpush1.msra.mxu0 0.0
    %3045 = vmatprep.subr.mxu0 0.0
    %3046 = vmatpush1.msra.mxu0 0.0
    %3047 = vmatprep.subr.mxu0 0.0
    %3048 = vmatpush1.msra.mxu0 %v3012
    %3049 = vmatprep.subr.mxu0 0.0
    %3050 = vmatpush1.msra.mxu0 %v3011
    %3051 = vmatprep.subr.mxu0 0.0
    %3052 = vmatpush2.msra.mxu0 0.0
    %3053 = vmatprep.subr.mxu0 0.0
    %3054 = vmatpush2.msra.mxu0 0.0
    %3055 = vmatprep.subr.mxu0 0.0
    %3056 = vmatpush2.msra.mxu0 0.0
    %3057 = vmatprep.subr.mxu0 0.0
    %3058 = vmatpush2.msra.mxu0 0.0
    %3059 = vmatprep.subr.mxu0 0.0
    %3060 = vmatpush2.msra.mxu0 0.0
    %3061 = vmatprep.subr.mxu0 0.0
    %3062 = vmatpush2.msra.mxu0 0.0
    %3063 = vmatprep.subr.mxu0 0.0
    %3064 = vmatpush2.msra.mxu0 0.0
    %3065 = vmatprep.subr.mxu0 0.0
    %3066 = vmatpush2.msra.mxu0 0.0
    %3067 = vmatprep.subr.mxu0 0.0
    %3068 = vmatpush2.msra.mxu0 0.0
    %3069 = vmatprep.subr.mxu0 0.0
    %3070 = vmatpush2.msra.mxu0 0.0
    %3071 = vmatprep.subr.mxu0 0.0
    %3072 = vmatpush2.msra.mxu0 0.0
    %3073 = vmatprep.subr.mxu0 0.0
    %3074 = vmatpush2.msra.mxu0 0.0
    %3075 = vmatprep.subr.mxu0 0.0
    %3076 = vmatpush2.msra.mxu0 0.0
    %3077 = vmatprep.subr.mxu0 0.0
    %3078 = vmatpush2.msra.mxu0 0.0
    %3079 = vmatprep.subr.mxu0 0.0
    %3080 = vmatpush2.msra.mxu0 0.0
    %3081 = vmatprep.subr.mxu0 0.0
    %3082 = vmatpush2.msra.mxu0 0.0
    %3083 = vmatprep.mubr.f32.mxu0 0.0
    %3084 = vmatmul.mubr.f32.gmra.mxu0 %v3014
    %v3085 = vpop.f32.mrf.mxu0
    %v3086 = vadd.f32 0.0, %v3085
    %v3087 = vpop.f32.mrf.mxu0
    %3088 = vmatprep.mubr.f32.mxu0 0.0
    %3089 = vmatmul.mubr.f32.gmra.mxu0 %v3017
    %v3090 = vpop.f32.mrf.mxu0
    %v3091 = vadd.f32 0.0, %v3090
    %v3092 = vpop.f32.mrf.mxu0
    %3093 = vdwg.mxu0
    %v3094 = vadd.f32 %v3004, %v3086
    %v3095 = vadd.f32 %v3005, %v3091
    %v3096 = vmax.f32 %v3094, 0.0
    %v3097 = vmax.f32 %v3095, 0.0
    %3098 = vst.msk [vmem:[#allocation4] sm:$0xff] %vm2361, %v3096
    %vm3099 = vcmask 128000
    %3100 = vst.msk [vmem:[#allocation4 + $0x8] sm:$0x3f] %vm3099, %v3097
    %v3101 = vld [vmem:[%s12] sm:$0x1]
    %v3102 = vld [vmem:[#allocation4] ss:$2 sm:$0x3f]
    %v3103 = vld [vmem:[%s11] sm:$0xff]
    %v3104 = vld [vmem:[%s11 + $0x8] sm:$0xff]
    %v3106 = vsel %vm2361, %v3102, 0
    %3108 = vmatprep.subr.mxu0 0.0
    %3109 = vmatpush1.msra.mxu0 0.0
    %3110 = vmatprep.subr.mxu0 0.0
    %3111 = vmatpush1.msra.mxu0 0.0
    %3112 = vmatprep.subr.mxu0 0.0
    %3113 = vmatpush1.msra.mxu0 0.0
    %3114 = vmatprep.subr.mxu0 0.0
    %3115 = vmatpush1.msra.mxu0 0.0
    %3116 = vmatprep.subr.mxu0 0.0
    %3117 = vmatpush1.msra.mxu0 0.0
    %3118 = vmatprep.subr.mxu0 0.0
    %3119 = vmatpush1.msra.mxu0 0.0
    %3120 = vmatprep.subr.mxu0 0.0
    %3121 = vmatpush1.msra.mxu0 0.0
    %3122 = vmatprep.subr.mxu0 0.0
    %3123 = vmatpush1.msra.mxu0 0.0
    %3124 = vmatprep.subr.mxu0 0.0
    %3125 = vmatpush1.msra.mxu0 0.0
    %3126 = vmatprep.subr.mxu0 0.0
    %3127 = vmatpush1.msra.mxu0 0.0
    %3128 = vmatprep.subr.mxu0 0.0
    %3129 = vmatpush1.msra.mxu0 0.0
    %3130 = vmatprep.subr.mxu0 0.0
    %3131 = vmatpush1.msra.mxu0 0.0
    %3132 = vmatprep.subr.mxu0 0.0
    %3133 = vmatpush1.msra.mxu0 0.0
    %3134 = vmatprep.subr.mxu0 0.0
    %3135 = vmatpush1.msra.mxu0 0.0
    %3136 = vmatprep.subr.mxu0 0.0
    %3137 = vmatpush1.msra.mxu0 %v3104
    %3138 = vmatprep.subr.mxu0 0.0
    %3139 = vmatpush1.msra.mxu0 %v3103
    %3140 = vmatprep.subr.mxu0 0.0
    %3141 = vmatpush2.msra.mxu0 0.0
    %3142 = vmatprep.subr.mxu0 0.0
    %3143 = vmatpush2.msra.mxu0 0.0
    %3144 = vmatprep.subr.mxu0 0.0
    %3145 = vmatpush2.msra.mxu0 0.0
    %3146 = vmatprep.subr.mxu0 0.0
    %3147 = vmatpush2.msra.mxu0 0.0
    %3148 = vmatprep.subr.mxu0 0.0
    %3149 = vmatpush2.msra.mxu0 0.0
    %3150 = vmatprep.subr.mxu0 0.0
    %3151 = vmatpush2.msra.mxu0 0.0
    %3152 = vmatprep.subr.mxu0 0.0
    %3153 = vmatpush2.msra.mxu0 0.0
    %3154 = vmatprep.subr.mxu0 0.0
    %3155 = vmatpush2.msra.mxu0 0.0
    %3156 = vmatprep.subr.mxu0 0.0
    %3157 = vmatpush2.msra.mxu0 0.0
    %3158 = vmatprep.subr.mxu0 0.0
    %3159 = vmatpush2.msra.mxu0 0.0
    %3160 = vmatprep.subr.mxu0 0.0
    %3161 = vmatpush2.msra.mxu0 0.0
    %3162 = vmatprep.subr.mxu0 0.0
    %3163 = vmatpush2.msra.mxu0 0.0
    %3164 = vmatprep.subr.mxu0 0.0
    %3165 = vmatpush2.msra.mxu0 0.0
    %3166 = vmatprep.subr.mxu0 0.0
    %3167 = vmatpush2.msra.mxu0 0.0
    %3168 = vmatprep.subr.mxu0 0.0
    %3169 = vmatpush2.msra.mxu0 0.0
    %3170 = vmatprep.subr.mxu0 0.0
    %3171 = vmatpush2.msra.mxu0 0.0
    %3172 = vmatprep.mubr.f32.mxu0 0.0
    %3173 = vmatmul.mubr.f32.gmra.mxu0 %v3106
    %v3174 = vpop.f32.mrf.mxu0
    %v3175 = vadd.f32 0.0, %v3174
    %v3176 = vpop.f32.mrf.mxu0
    %3177 = vdwg.mxu0
    %v3179 = vlaneseq
    %v3180 = vshrl.u32 %v3179, 7
    %v3181 = vsub.s32 0, %v3180
    %v3182 = vrot.slane %v3101, %v3181
    %v3184 = vadd.f32 %v3182, %v3175
    %s3185 = scalar_lea.vmem [#allocation4], 1
    %v3186 = vld [vmem:[%s3185] ss:$2 sm:$0x3f]
    %s3187 = scalar_lea.vmem %s11, 16
    %v3188 = vld [vmem:[%s3187] sm:$0xff]
    %v3189 = vld [vmem:[%s3187 + $0x8] sm:$0xff]
    %v3191 = vsel %vm2361, %v3186, 0
    %3193 = vmatprep.subr.mxu0 0.0
    %3194 = vmatpush1.msra.mxu0 0.0
    %3195 = vmatprep.subr.mxu0 0.0
    %3196 = vmatpush1.msra.mxu0 0.0
    %3197 = vmatprep.subr.mxu0 0.0
    %3198 = vmatpush1.msra.mxu0 0.0
    %3199 = vmatprep.subr.mxu0 0.0
    %3200 = vmatpush1.msra.mxu0 0.0
    %3201 = vmatprep.subr.mxu0 0.0
    %3202 = vmatpush1.msra.mxu0 0.0
    %3203 = vmatprep.subr.mxu0 0.0
    %3204 = vmatpush1.msra.mxu0 0.0
    %3205 = vmatprep.subr.mxu0 0.0
    %3206 = vmatpush1.msra.mxu0 0.0
    %3207 = vmatprep.subr.mxu0 0.0
    %3208 = vmatpush1.msra.mxu0 0.0
    %3209 = vmatprep.subr.mxu0 0.0
    %3210 = vmatpush1.msra.mxu0 0.0
    %3211 = vmatprep.subr.mxu0 0.0
    %3212 = vmatpush1.msra.mxu0 0.0
    %3213 = vmatprep.subr.mxu0 0.0
    %3214 = vmatpush1.msra.mxu0 0.0
    %3215 = vmatprep.subr.mxu0 0.0
    %3216 = vmatpush1.msra.mxu0 0.0
    %3217 = vmatprep.subr.mxu0 0.0
    %3218 = vmatpush1.msra.mxu0 0.0
    %3219 = vmatprep.subr.mxu0 0.0
    %3220 = vmatpush1.msra.mxu0 0.0
    %3221 = vmatprep.subr.mxu0 0.0
    %3222 = vmatpush1.msra.mxu0 %v3189
    %3223 = vmatprep.subr.mxu0 0.0
    %3224 = vmatpush1.msra.mxu0 %v3188
    %3225 = vmatprep.subr.mxu0 0.0
    %3226 = vmatpush2.msra.mxu0 0.0
    %3227 = vmatprep.subr.mxu0 0.0
    %3228 = vmatpush2.msra.mxu0 0.0
    %3229 = vmatprep.subr.mxu0 0.0
    %3230 = vmatpush2.msra.mxu0 0.0
    %3231 = vmatprep.subr.mxu0 0.0
    %3232 = vmatpush2.msra.mxu0 0.0
    %3233 = vmatprep.subr.mxu0 0.0
    %3234 = vmatpush2.msra.mxu0 0.0
    %3235 = vmatprep.subr.mxu0 0.0
    %3236 = vmatpush2.msra.mxu0 0.0
    %3237 = vmatprep.subr.mxu0 0.0
    %3238 = vmatpush2.msra.mxu0 0.0
    %3239 = vmatprep.subr.mxu0 0.0
    %3240 = vmatpush2.msra.mxu0 0.0
    %3241 = vmatprep.subr.mxu0 0.0
    %3242 = vmatpush2.msra.mxu0 0.0
    %3243 = vmatprep.subr.mxu0 0.0
    %3244 = vmatpush2.msra.mxu0 0.0
    %3245 = vmatprep.subr.mxu0 0.0
    %3246 = vmatpush2.msra.mxu0 0.0
    %3247 = vmatprep.subr.mxu0 0.0
    %3248 = vmatpush2.msra.mxu0 0.0
    %3249 = vmatprep.subr.mxu0 0.0
    %3250 = vmatpush2.msra.mxu0 0.0
    %3251 = vmatprep.subr.mxu0 0.0
    %3252 = vmatpush2.msra.mxu0 0.0
    %3253 = vmatprep.subr.mxu0 0.0
    %3254 = vmatpush2.msra.mxu0 0.0
    %3255 = vmatprep.subr.mxu0 0.0
    %3256 = vmatpush2.msra.mxu0 0.0
    %3257 = vmatprep.mubr.f32.mxu0 0.0
    %3258 = vmatmul.mubr.f32.gmra.mxu0 %v3191
    %v3259 = vpop.f32.mrf.mxu0
    %v3260 = vadd.f32 0.0, %v3259
    %v3261 = vpop.f32.mrf.mxu0
    %3262 = vdwg.mxu0
    %v3263 = vadd.f32 %v3184, %v3260
    %s3264 = scalar_lea.vmem [#allocation4], 2
    %v3265 = vld [vmem:[%s3264] ss:$2 sm:$0x3f]
    %s3266 = scalar_lea.vmem %s11, 32
    %v3267 = vld [vmem:[%s3266] sm:$0xff]
    %v3268 = vld [vmem:[%s3266 + $0x8] sm:$0xff]
    %v3270 = vsel %vm2361, %v3265, 0
    %3272 = vmatprep.subr.mxu0 0.0
    %3273 = vmatpush1.msra.mxu0 0.0
    %3274 = vmatprep.subr.mxu0 0.0
    %3275 = vmatpush1.msra.mxu0 0.0
    %3276 = vmatprep.subr.mxu0 0.0
    %3277 = vmatpush1.msra.mxu0 0.0
    %3278 = vmatprep.subr.mxu0 0.0
    %3279 = vmatpush1.msra.mxu0 0.0
    %3280 = vmatprep.subr.mxu0 0.0
    %3281 = vmatpush1.msra.mxu0 0.0
    %3282 = vmatprep.subr.mxu0 0.0
    %3283 = vmatpush1.msra.mxu0 0.0
    %3284 = vmatprep.subr.mxu0 0.0
    %3285 = vmatpush1.msra.mxu0 0.0
    %3286 = vmatprep.subr.mxu0 0.0
    %3287 = vmatpush1.msra.mxu0 0.0
    %3288 = vmatprep.subr.mxu0 0.0
    %3289 = vmatpush1.msra.mxu0 0.0
    %3290 = vmatprep.subr.mxu0 0.0
    %3291 = vmatpush1.msra.mxu0 0.0
    %3292 = vmatprep.subr.mxu0 0.0
    %3293 = vmatpush1.msra.mxu0 0.0
    %3294 = vmatprep.subr.mxu0 0.0
    %3295 = vmatpush1.msra.mxu0 0.0
    %3296 = vmatprep.subr.mxu0 0.0
    %3297 = vmatpush1.msra.mxu0 0.0
    %3298 = vmatprep.subr.mxu0 0.0
    %3299 = vmatpush1.msra.mxu0 0.0
    %3300 = vmatprep.subr.mxu0 0.0
    %3301 = vmatpush1.msra.mxu0 %v3268
    %3302 = vmatprep.subr.mxu0 0.0
    %3303 = vmatpush1.msra.mxu0 %v3267
    %3304 = vmatprep.subr.mxu0 0.0
    %3305 = vmatpush2.msra.mxu0 0.0
    %3306 = vmatprep.subr.mxu0 0.0
    %3307 = vmatpush2.msra.mxu0 0.0
    %3308 = vmatprep.subr.mxu0 0.0
    %3309 = vmatpush2.msra.mxu0 0.0
    %3310 = vmatprep.subr.mxu0 0.0
    %3311 = vmatpush2.msra.mxu0 0.0
    %3312 = vmatprep.subr.mxu0 0.0
    %3313 = vmatpush2.msra.mxu0 0.0
    %3314 = vmatprep.subr.mxu0 0.0
    %3315 = vmatpush2.msra.mxu0 0.0
    %3316 = vmatprep.subr.mxu0 0.0
    %3317 = vmatpush2.msra.mxu0 0.0
    %3318 = vmatprep.subr.mxu0 0.0
    %3319 = vmatpush2.msra.mxu0 0.0
    %3320 = vmatprep.subr.mxu0 0.0
    %3321 = vmatpush2.msra.mxu0 0.0
    %3322 = vmatprep.subr.mxu0 0.0
    %3323 = vmatpush2.msra.mxu0 0.0
    %3324 = vmatprep.subr.mxu0 0.0
    %3325 = vmatpush2.msra.mxu0 0.0
    %3326 = vmatprep.subr.mxu0 0.0
    %3327 = vmatpush2.msra.mxu0 0.0
    %3328 = vmatprep.subr.mxu0 0.0
    %3329 = vmatpush2.msra.mxu0 0.0
    %3330 = vmatprep.subr.mxu0 0.0
    %3331 = vmatpush2.msra.mxu0 0.0
    %3332 = vmatprep.subr.mxu0 0.0
    %3333 = vmatpush2.msra.mxu0 0.0
    %3334 = vmatprep.subr.mxu0 0.0
    %3335 = vmatpush2.msra.mxu0 0.0
    %3336 = vmatprep.mubr.f32.mxu0 0.0
    %3337 = vmatmul.mubr.f32.gmra.mxu0 %v3270
    %v3338 = vpop.f32.mrf.mxu0
    %v3339 = vadd.f32 0.0, %v3338
    %v3340 = vpop.f32.mrf.mxu0
    %3341 = vdwg.mxu0
    %v3342 = vadd.f32 %v3263, %v3339
    %s3343 = scalar_lea.vmem [#allocation4], 3
    %v3344 = vld [vmem:[%s3343] ss:$2 sm:$0x3f]
    %s3345 = scalar_lea.vmem %s11, 48
    %v3346 = vld [vmem:[%s3345] sm:$0xff]
    %v3347 = vld [vmem:[%s3345 + $0x8] sm:$0xff]
    %v3349 = vsel %vm2361, %v3344, 0
    %3351 = vmatprep.subr.mxu0 0.0
    %3352 = vmatpush1.msra.mxu0 0.0
    %3353 = vmatprep.subr.mxu0 0.0
    %3354 = vmatpush1.msra.mxu0 0.0
    %3355 = vmatprep.subr.mxu0 0.0
    %3356 = vmatpush1.msra.mxu0 0.0
    %3357 = vmatprep.subr.mxu0 0.0
    %3358 = vmatpush1.msra.mxu0 0.0
    %3359 = vmatprep.subr.mxu0 0.0
    %3360 = vmatpush1.msra.mxu0 0.0
    %3361 = vmatprep.subr.mxu0 0.0
    %3362 = vmatpush1.msra.mxu0 0.0
    %3363 = vmatprep.subr.mxu0 0.0
    %3364 = vmatpush1.msra.mxu0 0.0
    %3365 = vmatprep.subr.mxu0 0.0
    %3366 = vmatpush1.msra.mxu0 0.0
    %3367 = vmatprep.subr.mxu0 0.0
    %3368 = vmatpush1.msra.mxu0 0.0
    %3369 = vmatprep.subr.mxu0 0.0
    %3370 = vmatpush1.msra.mxu0 0.0
    %3371 = vmatprep.subr.mxu0 0.0
    %3372 = vmatpush1.msra.mxu0 0.0
    %3373 = vmatprep.subr.mxu0 0.0
    %3374 = vmatpush1.msra.mxu0 0.0
    %3375 = vmatprep.subr.mxu0 0.0
    %3376 = vmatpush1.msra.mxu0 0.0
    %3377 = vmatprep.subr.mxu0 0.0
    %3378 = vmatpush1.msra.mxu0 0.0
    %3379 = vmatprep.subr.mxu0 0.0
    %3380 = vmatpush1.msra.mxu0 %v3347
    %3381 = vmatprep.subr.mxu0 0.0
    %3382 = vmatpush1.msra.mxu0 %v3346
    %3383 = vmatprep.subr.mxu0 0.0
    %3384 = vmatpush2.msra.mxu0 0.0
    %3385 = vmatprep.subr.mxu0 0.0
    %3386 = vmatpush2.msra.mxu0 0.0
    %3387 = vmatprep.subr.mxu0 0.0
    %3388 = vmatpush2.msra.mxu0 0.0
    %3389 = vmatprep.subr.mxu0 0.0
    %3390 = vmatpush2.msra.mxu0 0.0
    %3391 = vmatprep.subr.mxu0 0.0
    %3392 = vmatpush2.msra.mxu0 0.0
    %3393 = vmatprep.subr.mxu0 0.0
    %3394 = vmatpush2.msra.mxu0 0.0
    %3395 = vmatprep.subr.mxu0 0.0
    %3396 = vmatpush2.msra.mxu0 0.0
    %3397 = vmatprep.subr.mxu0 0.0
    %3398 = vmatpush2.msra.mxu0 0.0
    %3399 = vmatprep.subr.mxu0 0.0
    %3400 = vmatpush2.msra.mxu0 0.0
    %3401 = vmatprep.subr.mxu0 0.0
    %3402 = vmatpush2.msra.mxu0 0.0
    %3403 = vmatprep.subr.mxu0 0.0
    %3404 = vmatpush2.msra.mxu0 0.0
    %3405 = vmatprep.subr.mxu0 0.0
    %3406 = vmatpush2.msra.mxu0 0.0
    %3407 = vmatprep.subr.mxu0 0.0
    %3408 = vmatpush2.msra.mxu0 0.0
    %3409 = vmatprep.subr.mxu0 0.0
    %3410 = vmatpush2.msra.mxu0 0.0
    %3411 = vmatprep.subr.mxu0 0.0
    %3412 = vmatpush2.msra.mxu0 0.0
    %3413 = vmatprep.subr.mxu0 0.0
    %3414 = vmatpush2.msra.mxu0 0.0
    %3415 = vmatprep.mubr.f32.mxu0 0.0
    %3416 = vmatmul.mubr.f32.gmra.mxu0 %v3349
    %v3417 = vpop.f32.mrf.mxu0
    %v3418 = vadd.f32 0.0, %v3417
    %v3419 = vpop.f32.mrf.mxu0
    %3420 = vdwg.mxu0
    %v3421 = vadd.f32 %v3342, %v3418
    %v3422 = vmax.f32 %v3421, 0.0
    %3423 = vst.msk [vmem:[#allocation5] sm:$0x3f] %vm3099, %v3422
    %v3424 = vld [vmem:[%s14] sm:$0x1]
    %v3425 = vld [vmem:[#allocation5] ss:$2 sm:$0x3]
    %v3426 = vld [vmem:[%s13] sm:$0xff]
    %v3427 = vld [vmem:[%s13 + $0x8] sm:$0xff]
    %v3429 = vsel %vm2361, %v3425, 0
    %3431 = vmatprep.subr.mxu0 0.0
    %3432 = vmatpush1.msra.mxu0 0.0
    %3433 = vmatprep.subr.mxu0 0.0
    %3434 = vmatpush1.msra.mxu0 0.0
    %3435 = vmatprep.subr.mxu0 0.0
    %3436 = vmatpush1.msra.mxu0 0.0
    %3437 = vmatprep.subr.mxu0 0.0
    %3438 = vmatpush1.msra.mxu0 0.0
    %3439 = vmatprep.subr.mxu0 0.0
    %3440 = vmatpush1.msra.mxu0 0.0
    %3441 = vmatprep.subr.mxu0 0.0
    %3442 = vmatpush1.msra.mxu0 0.0
    %3443 = vmatprep.subr.mxu0 0.0
    %3444 = vmatpush1.msra.mxu0 0.0
    %3445 = vmatprep.subr.mxu0 0.0
    %3446 = vmatpush1.msra.mxu0 0.0
    %3447 = vmatprep.subr.mxu0 0.0
    %3448 = vmatpush1.msra.mxu0 0.0
    %3449 = vmatprep.subr.mxu0 0.0
    %3450 = vmatpush1.msra.mxu0 0.0
    %3451 = vmatprep.subr.mxu0 0.0
    %3452 = vmatpush1.msra.mxu0 0.0
    %3453 = vmatprep.subr.mxu0 0.0
    %3454 = vmatpush1.msra.mxu0 0.0
    %3455 = vmatprep.subr.mxu0 0.0
    %3456 = vmatpush1.msra.mxu0 0.0
    %3457 = vmatprep.subr.mxu0 0.0
    %3458 = vmatpush1.msra.mxu0 0.0
    %3459 = vmatprep.subr.mxu0 0.0
    %3460 = vmatpush1.msra.mxu0 %v3427
    %3461 = vmatprep.subr.mxu0 0.0
    %3462 = vmatpush1.msra.mxu0 %v3426
    %3463 = vmatprep.subr.mxu0 0.0
    %3464 = vmatpush2.msra.mxu0 0.0
    %3465 = vmatprep.subr.mxu0 0.0
    %3466 = vmatpush2.msra.mxu0 0.0
    %3467 = vmatprep.subr.mxu0 0.0
    %3468 = vmatpush2.msra.mxu0 0.0
    %3469 = vmatprep.subr.mxu0 0.0
    %3470 = vmatpush2.msra.mxu0 0.0
    %3471 = vmatprep.subr.mxu0 0.0
    %3472 = vmatpush2.msra.mxu0 0.0
    %3473 = vmatprep.subr.mxu0 0.0
    %3474 = vmatpush2.msra.mxu0 0.0
    %3475 = vmatprep.subr.mxu0 0.0
    %3476 = vmatpush2.msra.mxu0 0.0
    %3477 = vmatprep.subr.mxu0 0.0
    %3478 = vmatpush2.msra.mxu0 0.0
    %3479 = vmatprep.subr.mxu0 0.0
    %3480 = vmatpush2.msra.mxu0 0.0
    %3481 = vmatprep.subr.mxu0 0.0
    %3482 = vmatpush2.msra.mxu0 0.0
    %3483 = vmatprep.subr.mxu0 0.0
    %3484 = vmatpush2.msra.mxu0 0.0
    %3485 = vmatprep.subr.mxu0 0.0
    %3486 = vmatpush2.msra.mxu0 0.0
    %3487 = vmatprep.subr.mxu0 0.0
    %3488 = vmatpush2.msra.mxu0 0.0
    %3489 = vmatprep.subr.mxu0 0.0
    %3490 = vmatpush2.msra.mxu0 0.0
    %3491 = vmatprep.subr.mxu0 0.0
    %3492 = vmatpush2.msra.mxu0 0.0
    %3493 = vmatprep.subr.mxu0 0.0
    %3494 = vmatpush2.msra.mxu0 0.0
    %3495 = vmatprep.mubr.f32.mxu0 0.0
    %3496 = vmatmul.mubr.f32.gmra.mxu0 %v3429
    %v3497 = vpop.f32.mrf.mxu0
    %v3498 = vadd.f32 0.0, %v3497
    %v3499 = vpop.f32.mrf.mxu0
    %3500 = vdwg.mxu0
    %v3502 = vlaneseq
    %v3503 = vshrl.u32 %v3502, 7
    %v3504 = vsub.s32 0, %v3503
    %v3505 = vrot.slane %v3424, %v3504
    %v3507 = vadd.f32 %v3505, %v3498
    %s3508 = scalar_lea.vmem [#allocation5], 1
    %v3509 = vld [vmem:[%s3508] ss:$2 sm:$0x3]
    %s3510 = scalar_lea.vmem %s13, 16
    %v3511 = vld [vmem:[%s3510] sm:$0xff]
    %v3512 = vld [vmem:[%s3510 + $0x8] sm:$0xff]
    %v3514 = vsel %vm2361, %v3509, 0
    %3516 = vmatprep.subr.mxu0 0.0
    %3517 = vmatpush1.msra.mxu0 0.0
    %3518 = vmatprep.subr.mxu0 0.0
    %3519 = vmatpush1.msra.mxu0 0.0
    %3520 = vmatprep.subr.mxu0 0.0
    %3521 = vmatpush1.msra.mxu0 0.0
    %3522 = vmatprep.subr.mxu0 0.0
    %3523 = vmatpush1.msra.mxu0 0.0
    %3524 = vmatprep.subr.mxu0 0.0
    %3525 = vmatpush1.msra.mxu0 0.0
    %3526 = vmatprep.subr.mxu0 0.0
    %3527 = vmatpush1.msra.mxu0 0.0
    %3528 = vmatprep.subr.mxu0 0.0
    %3529 = vmatpush1.msra.mxu0 0.0
    %3530 = vmatprep.subr.mxu0 0.0
    %3531 = vmatpush1.msra.mxu0 0.0
    %3532 = vmatprep.subr.mxu0 0.0
    %3533 = vmatpush1.msra.mxu0 0.0
    %3534 = vmatprep.subr.mxu0 0.0
    %3535 = vmatpush1.msra.mxu0 0.0
    %3536 = vmatprep.subr.mxu0 0.0
    %3537 = vmatpush1.msra.mxu0 0.0
    %3538 = vmatprep.subr.mxu0 0.0
    %3539 = vmatpush1.msra.mxu0 0.0
    %3540 = vmatprep.subr.mxu0 0.0
    %3541 = vmatpush1.msra.mxu0 0.0
    %3542 = vmatprep.subr.mxu0 0.0
    %3543 = vmatpush1.msra.mxu0 0.0
    %3544 = vmatprep.subr.mxu0 0.0
    %3545 = vmatpush1.msra.mxu0 %v3512
    %3546 = vmatprep.subr.mxu0 0.0
    %3547 = vmatpush1.msra.mxu0 %v3511
    %3548 = vmatprep.subr.mxu0 0.0
    %3549 = vmatpush2.msra.mxu0 0.0
    %3550 = vmatprep.subr.mxu0 0.0
    %3551 = vmatpush2.msra.mxu0 0.0
    %3552 = vmatprep.subr.mxu0 0.0
    %3553 = vmatpush2.msra.mxu0 0.0
    %3554 = vmatprep.subr.mxu0 0.0
    %3555 = vmatpush2.msra.mxu0 0.0
    %3556 = vmatprep.subr.mxu0 0.0
    %3557 = vmatpush2.msra.mxu0 0.0
    %3558 = vmatprep.subr.mxu0 0.0
    %3559 = vmatpush2.msra.mxu0 0.0
    %3560 = vmatprep.subr.mxu0 0.0
    %3561 = vmatpush2.msra.mxu0 0.0
    %3562 = vmatprep.subr.mxu0 0.0
    %3563 = vmatpush2.msra.mxu0 0.0
    %3564 = vmatprep.subr.mxu0 0.0
    %3565 = vmatpush2.msra.mxu0 0.0
    %3566 = vmatprep.subr.mxu0 0.0
    %3567 = vmatpush2.msra.mxu0 0.0
    %3568 = vmatprep.subr.mxu0 0.0
    %3569 = vmatpush2.msra.mxu0 0.0
    %3570 = vmatprep.subr.mxu0 0.0
    %3571 = vmatpush2.msra.mxu0 0.0
    %3572 = vmatprep.subr.mxu0 0.0
    %3573 = vmatpush2.msra.mxu0 0.0
    %3574 = vmatprep.subr.mxu0 0.0
    %3575 = vmatpush2.msra.mxu0 0.0
    %3576 = vmatprep.subr.mxu0 0.0
    %3577 = vmatpush2.msra.mxu0 0.0
    %3578 = vmatprep.subr.mxu0 0.0
    %3579 = vmatpush2.msra.mxu0 0.0
    %3580 = vmatprep.mubr.f32.mxu0 0.0
    %3581 = vmatmul.mubr.f32.gmra.mxu0 %v3514
    %v3582 = vpop.f32.mrf.mxu0
    %v3583 = vadd.f32 0.0, %v3582
    %v3584 = vpop.f32.mrf.mxu0
    %3585 = vdwg.mxu0
    %v3586 = vadd.f32 %v3507, %v3583
    %s3587 = scalar_lea.vmem [#allocation5], 2
    %v3588 = vld [vmem:[%s3587] ss:$2 sm:$0x3]
    %s3589 = scalar_lea.vmem %s13, 32
    %v3590 = vld [vmem:[%s3589] sm:$0xff]
    %v3591 = vld [vmem:[%s3589 + $0x8] sm:$0xff]
    %v3593 = vsel %vm2361, %v3588, 0
    %3595 = vmatprep.subr.mxu0 0.0
    %3596 = vmatpush1.msra.mxu0 0.0
    %3597 = vmatprep.subr.mxu0 0.0
    %3598 = vmatpush1.msra.mxu0 0.0
    %3599 = vmatprep.subr.mxu0 0.0
    %3600 = vmatpush1.msra.mxu0 0.0
    %3601 = vmatprep.subr.mxu0 0.0
    %3602 = vmatpush1.msra.mxu0 0.0
    %3603 = vmatprep.subr.mxu0 0.0
    %3604 = vmatpush1.msra.mxu0 0.0
    %3605 = vmatprep.subr.mxu0 0.0
    %3606 = vmatpush1.msra.mxu0 0.0
    %3607 = vmatprep.subr.mxu0 0.0
    %3608 = vmatpush1.msra.mxu0 0.0
    %3609 = vmatprep.subr.mxu0 0.0
    %3610 = vmatpush1.msra.mxu0 0.0
    %3611 = vmatprep.subr.mxu0 0.0
    %3612 = vmatpush1.msra.mxu0 0.0
    %3613 = vmatprep.subr.mxu0 0.0
    %3614 = vmatpush1.msra.mxu0 0.0
    %3615 = vmatprep.subr.mxu0 0.0
    %3616 = vmatpush1.msra.mxu0 0.0
    %3617 = vmatprep.subr.mxu0 0.0
    %3618 = vmatpush1.msra.mxu0 0.0
    %3619 = vmatprep.subr.mxu0 0.0
    %3620 = vmatpush1.msra.mxu0 0.0
    %3621 = vmatprep.subr.mxu0 0.0
    %3622 = vmatpush1.msra.mxu0 0.0
    %3623 = vmatprep.subr.mxu0 0.0
    %3624 = vmatpush1.msra.mxu0 %v3591
    %3625 = vmatprep.subr.mxu0 0.0
    %3626 = vmatpush1.msra.mxu0 %v3590
    %3627 = vmatprep.subr.mxu0 0.0
    %3628 = vmatpush2.msra.mxu0 0.0
    %3629 = vmatprep.subr.mxu0 0.0
    %3630 = vmatpush2.msra.mxu0 0.0
    %3631 = vmatprep.subr.mxu0 0.0
    %3632 = vmatpush2.msra.mxu0 0.0
    %3633 = vmatprep.subr.mxu0 0.0
    %3634 = vmatpush2.msra.mxu0 0.0
    %3635 = vmatprep.subr.mxu0 0.0
    %3636 = vmatpush2.msra.mxu0 0.0
    %3637 = vmatprep.subr.mxu0 0.0
    %3638 = vmatpush2.msra.mxu0 0.0
    %3639 = vmatprep.subr.mxu0 0.0
    %3640 = vmatpush2.msra.mxu0 0.0
    %3641 = vmatprep.subr.mxu0 0.0
    %3642 = vmatpush2.msra.mxu0 0.0
    %3643 = vmatprep.subr.mxu0 0.0
    %3644 = vmatpush2.msra.mxu0 0.0
    %3645 = vmatprep.subr.mxu0 0.0
    %3646 = vmatpush2.msra.mxu0 0.0
    %3647 = vmatprep.subr.mxu0 0.0
    %3648 = vmatpush2.msra.mxu0 0.0
    %3649 = vmatprep.subr.mxu0 0.0
    %3650 = vmatpush2.msra.mxu0 0.0
    %3651 = vmatprep.subr.mxu0 0.0
    %3652 = vmatpush2.msra.mxu0 0.0
    %3653 = vmatprep.subr.mxu0 0.0
    %3654 = vmatpush2.msra.mxu0 0.0
    %3655 = vmatprep.subr.mxu0 0.0
    %3656 = vmatpush2.msra.mxu0 0.0
    %3657 = vmatprep.subr.mxu0 0.0
    %3658 = vmatpush2.msra.mxu0 0.0
    %3659 = vmatprep.mubr.f32.mxu0 0.0
    %3660 = vmatmul.mubr.f32.gmra.mxu0 %v3593
    %v3661 = vpop.f32.mrf.mxu0
    %v3662 = vadd.f32 0.0, %v3661
    %v3663 = vpop.f32.mrf.mxu0
    %3664 = vdwg.mxu0
    %v3665 = vadd.f32 %v3586, %v3662
    %s3666 = scalar_lea.vmem [#allocation5], 3
    %v3667 = vld [vmem:[%s3666] ss:$2 sm:$0x3]
    %s3668 = scalar_lea.vmem %s13, 48
    %v3669 = vld [vmem:[%s3668] sm:$0xff]
    %v3670 = vld [vmem:[%s3668 + $0x8] sm:$0xff]
    %v3672 = vsel %vm2361, %v3667, 0
    %3674 = vmatprep.subr.mxu0 0.0
    %3675 = vmatpush1.msra.mxu0 0.0
    %3676 = vmatprep.subr.mxu0 0.0
    %3677 = vmatpush1.msra.mxu0 0.0
    %3678 = vmatprep.subr.mxu0 0.0
    %3679 = vmatpush1.msra.mxu0 0.0
    %3680 = vmatprep.subr.mxu0 0.0
    %3681 = vmatpush1.msra.mxu0 0.0
    %3682 = vmatprep.subr.mxu0 0.0
    %3683 = vmatpush1.msra.mxu0 0.0
    %3684 = vmatprep.subr.mxu0 0.0
    %3685 = vmatpush1.msra.mxu0 0.0
    %3686 = vmatprep.subr.mxu0 0.0
    %3687 = vmatpush1.msra.mxu0 0.0
    %3688 = vmatprep.subr.mxu0 0.0
    %3689 = vmatpush1.msra.mxu0 0.0
    %3690 = vmatprep.subr.mxu0 0.0
    %3691 = vmatpush1.msra.mxu0 0.0
    %3692 = vmatprep.subr.mxu0 0.0
    %3693 = vmatpush1.msra.mxu0 0.0
    %3694 = vmatprep.subr.mxu0 0.0
    %3695 = vmatpush1.msra.mxu0 0.0
    %3696 = vmatprep.subr.mxu0 0.0
    %3697 = vmatpush1.msra.mxu0 0.0
    %3698 = vmatprep.subr.mxu0 0.0
    %3699 = vmatpush1.msra.mxu0 0.0
    %3700 = vmatprep.subr.mxu0 0.0
    %3701 = vmatpush1.msra.mxu0 0.0
    %3702 = vmatprep.subr.mxu0 0.0
    %3703 = vmatpush1.msra.mxu0 %v3670
    %3704 = vmatprep.subr.mxu0 0.0
    %3705 = vmatpush1.msra.mxu0 %v3669
    %3706 = vmatprep.subr.mxu0 0.0
    %3707 = vmatpush2.msra.mxu0 0.0
    %3708 = vmatprep.subr.mxu0 0.0
    %3709 = vmatpush2.msra.mxu0 0.0
    %3710 = vmatprep.subr.mxu0 0.0
    %3711 = vmatpush2.msra.mxu0 0.0
    %3712 = vmatprep.subr.mxu0 0.0
    %3713 = vmatpush2.msra.mxu0 0.0
    %3714 = vmatprep.subr.mxu0 0.0
    %3715 = vmatpush2.msra.mxu0 0.0
    %3716 = vmatprep.subr.mxu0 0.0
    %3717 = vmatpush2.msra.mxu0 0.0
    %3718 = vmatprep.subr.mxu0 0.0
    %3719 = vmatpush2.msra.mxu0 0.0
    %3720 = vmatprep.subr.mxu0 0.0
    %3721 = vmatpush2.msra.mxu0 0.0
    %3722 = vmatprep.subr.mxu0 0.0
    %3723 = vmatpush2.msra.mxu0 0.0
    %3724 = vmatprep.subr.mxu0 0.0
    %3725 = vmatpush2.msra.mxu0 0.0
    %3726 = vmatprep.subr.mxu0 0.0
    %3727 = vmatpush2.msra.mxu0 0.0
    %3728 = vmatprep.subr.mxu0 0.0
    %3729 = vmatpush2.msra.mxu0 0.0
    %3730 = vmatprep.subr.mxu0 0.0
    %3731 = vmatpush2.msra.mxu0 0.0
    %3732 = vmatprep.subr.mxu0 0.0
    %3733 = vmatpush2.msra.mxu0 0.0
    %3734 = vmatprep.subr.mxu0 0.0
    %3735 = vmatpush2.msra.mxu0 0.0
    %3736 = vmatprep.subr.mxu0 0.0
    %3737 = vmatpush2.msra.mxu0 0.0
    %3738 = vmatprep.mubr.f32.mxu0 0.0
    %3739 = vmatmul.mubr.f32.gmra.mxu0 %v3672
    %v3740 = vpop.f32.mrf.mxu0
    %v3741 = vadd.f32 0.0, %v3740
    %v3742 = vpop.f32.mrf.mxu0
    %3743 = vdwg.mxu0
    %v3744 = vadd.f32 %v3665, %v3741
    %v3745 = vmax.f32 %v3744, 0.0
    %v3746 = vld [vmem:[%s15] sm:$0x1]
    %v3748 = vlaneseq
    %v3749 = vshrl.u32 %v3748, 7
    %v3750 = vsub.s32 0, %v3749
    %v3751 = vrot.slane %v3746, %v3750
    %v3753 = vmul.f32 %v3745, %v3751
    %v3754 = vld [vmem:[%s16] sm:$0x1]
    %v3756 = vlaneseq
    %v3757 = vshrl.u32 %v3756, 7
    %v3758 = vsub.s32 0, %v3757
    %v3759 = vrot.slane %v3754, %v3758
    %v3761 = vadd.f32 %v3753, %v3759
    %vm3762 = vcmask 123904
    %3763 = vst.msk [vmem:[#allocation8] sm:$0x3] %vm3762, %v3761
    %s3764 = sadd.s32 %s94, 1
    %s3765 = sld [smem:[#allocation7 + %s3764]]
    %v3766 = vstv %s3765
    %vm3767 = vcmp.lt.s32.totalorder %v62, %v3766
    %vm3768 = vcmp.lt.s32.totalorder %v63, %v3766
    %vm3769 = vcmp.lt.s32.totalorder %v64, %v3766
    %vm3770 = vcmp.lt.s32.totalorder %v65, %v3766
    %vm3771 = vcmp.lt.s32.totalorder %v66, %v3766
    %vm3772 = vcmp.lt.s32.totalorder %v67, %v3766
    %vm3773 = vcmp.lt.s32.totalorder %v68, %v3766
    %vm3774 = vcmp.lt.s32.totalorder %v69, %v3766
    %vm3775 = vcmp.lt.s32.totalorder %v70, %v3766
    %vm3776 = vcmp.lt.s32.totalorder %v71, %v3766
    %vm3777 = vcmp.lt.s32.totalorder %v72, %v3766
    %vm3778 = vcmp.lt.s32.totalorder %v73, %v3766
    %vm3779 = vcmp.lt.s32.totalorder %v74, %v3766
    %vm3780 = vcmp.lt.s32.totalorder %v75, %v3766
    %vm3781 = vcmp.lt.s32.totalorder %v76, %v3766
    %vm3782 = vcmp.lt.s32.totalorder %v77, %v3766
    %vm3783 = vcmp.lt.s32.totalorder %v78, %v3766
    %vm3784 = vcmp.lt.s32.totalorder %v79, %v3766
    %vm3785 = vcmp.lt.s32.totalorder %v80, %v3766
    %vm3786 = vcmp.lt.s32.totalorder %v81, %v3766
    %vm3787 = vcmp.lt.s32.totalorder %v82, %v3766
    %vm3788 = vcmp.lt.s32.totalorder %v83, %v3766
    %vm3789 = vcmp.lt.s32.totalorder %v84, %v3766
    %vm3790 = vcmp.lt.s32.totalorder %v85, %v3766
    %vm3791 = vcmp.lt.s32.totalorder %v86, %v3766
    %vm3792 = vcmp.lt.s32.totalorder %v87, %v3766
    %vm3793 = vcmp.lt.s32.totalorder %v88, %v3766
    %vm3794 = vcmp.lt.s32.totalorder %v89, %v3766
    %vm3795 = vcmp.lt.s32.totalorder %v90, %v3766
    %vm3796 = vcmp.lt.s32.totalorder %v91, %v3766
    %vm3797 = vcmp.lt.s32.totalorder %v92, %v3766
    %vm3798 = vcmp.lt.s32.totalorder %v93, %v3766
    %v3799 = vsel %vm3767, 1, 0
    %v3800 = vsel %vm3768, 1, 0
    %v3801 = vsel %vm3769, 1, 0
    %v3802 = vsel %vm3770, 1, 0
    %v3803 = vsel %vm3771, 1, 0
    %v3804 = vsel %vm3772, 1, 0
    %v3805 = vsel %vm3773, 1, 0
    %v3806 = vsel %vm3774, 1, 0
    %v3807 = vsel %vm3775, 1, 0
    %v3808 = vsel %vm3776, 1, 0
    %v3809 = vsel %vm3777, 1, 0
    %v3810 = vsel %vm3778, 1, 0
    %v3811 = vsel %vm3779, 1, 0
    %v3812 = vsel %vm3780, 1, 0
    %v3813 = vsel %vm3781, 1, 0
    %v3814 = vsel %vm3782, 1, 0
    %v3815 = vsel %vm3783, 1, 0
    %v3816 = vsel %vm3784, 1, 0
    %v3817 = vsel %vm3785, 1, 0
    %v3818 = vsel %vm3786, 1, 0
    %v3819 = vsel %vm3787, 1, 0
    %v3820 = vsel %vm3788, 1, 0
    %v3821 = vsel %vm3789, 1, 0
    %v3822 = vsel %vm3790, 1, 0
    %v3823 = vsel %vm3791, 1, 0
    %v3824 = vsel %vm3792, 1, 0
    %v3825 = vsel %vm3793, 1, 0
    %v3826 = vsel %vm3794, 1, 0
    %v3827 = vsel %vm3795, 1, 0
    %v3828 = vsel %vm3796, 1, 0
    %v3829 = vsel %vm3797, 1, 0
    %v3830 = vsel %vm3798, 1, 0
    %v3831 = vcvt.s32.f32 %v3799
    %v3832 = vcvt.s32.f32 %v3800
    %v3833 = vcvt.s32.f32 %v3801
    %v3834 = vcvt.s32.f32 %v3802
    %v3835 = vcvt.s32.f32 %v3803
    %v3836 = vcvt.s32.f32 %v3804
    %v3837 = vcvt.s32.f32 %v3805
    %v3838 = vcvt.s32.f32 %v3806
    %v3839 = vcvt.s32.f32 %v3807
    %v3840 = vcvt.s32.f32 %v3808
    %v3841 = vcvt.s32.f32 %v3809
    %v3842 = vcvt.s32.f32 %v3810
    %v3843 = vcvt.s32.f32 %v3811
    %v3844 = vcvt.s32.f32 %v3812
    %v3845 = vcvt.s32.f32 %v3813
    %v3846 = vcvt.s32.f32 %v3814
    %v3847 = vcvt.s32.f32 %v3815
    %v3848 = vcvt.s32.f32 %v3816
    %v3849 = vcvt.s32.f32 %v3817
    %v3850 = vcvt.s32.f32 %v3818
    %v3851 = vcvt.s32.f32 %v3819
    %v3852 = vcvt.s32.f32 %v3820
    %v3853 = vcvt.s32.f32 %v3821
    %v3854 = vcvt.s32.f32 %v3822
    %v3855 = vcvt.s32.f32 %v3823
    %v3856 = vcvt.s32.f32 %v3824
    %v3857 = vcvt.s32.f32 %v3825
    %v3858 = vcvt.s32.f32 %v3826
    %v3859 = vcvt.s32.f32 %v3827
    %v3860 = vcvt.s32.f32 %v3828
    %v3861 = vcvt.s32.f32 %v3829
    %v3862 = vcvt.s32.f32 %v3830
    %s3863 = scalar_lea.vmem %s2, 256
    %v3864 = vld [vmem:[%s3863] sm:$0xff]
    %v3865 = vld [vmem:[%s3863 + $0x8] sm:$0xff]
    %v3866 = vld [vmem:[%s3863 + $0x10] sm:$0xff]
    %v3867 = vld [vmem:[%s3863 + $0x18] sm:$0xff]
    %v3868 = vld [vmem:[%s3863 + $0x20] sm:$0xff]
    %v3869 = vld [vmem:[%s3863 + $0x28] sm:$0xff]
    %v3870 = vld [vmem:[%s3863 + $0x30] sm:$0xff]
    %v3871 = vld [vmem:[%s3863 + $0x38] sm:$0xff]
    %v3872 = vld [vmem:[%s3863 + $0x40] sm:$0xff]
    %v3873 = vld [vmem:[%s3863 + $0x48] sm:$0xff]
    %v3874 = vld [vmem:[%s3863 + $0x50] sm:$0xff]
    %v3875 = vld [vmem:[%s3863 + $0x58] sm:$0xff]
    %v3876 = vld [vmem:[%s3863 + $0x60] sm:$0xff]
    %v3877 = vld [vmem:[%s3863 + $0x68] sm:$0xff]
    %v3878 = vld [vmem:[%s3863 + $0x70] sm:$0xff]
    %v3879 = vld [vmem:[%s3863 + $0x78] sm:$0xff]
    %v3880 = vld [vmem:[%s3863 + $0x80] sm:$0xff]
    %v3881 = vld [vmem:[%s3863 + $0x88] sm:$0xff]
    %v3882 = vld [vmem:[%s3863 + $0x90] sm:$0xff]
    %v3883 = vld [vmem:[%s3863 + $0x98] sm:$0xff]
    %v3884 = vld [vmem:[%s3863 + $0xa0] sm:$0xff]
    %v3885 = vld [vmem:[%s3863 + $0xa8] sm:$0xff]
    %v3886 = vld [vmem:[%s3863 + $0xb0] sm:$0xff]
    %v3887 = vld [vmem:[%s3863 + $0xb8] sm:$0xff]
    %v3888 = vld [vmem:[%s3863 + $0xc0] sm:$0xff]
    %v3889 = vld [vmem:[%s3863 + $0xc8] sm:$0xff]
    %v3890 = vld [vmem:[%s3863 + $0xd0] sm:$0xff]
    %v3891 = vld [vmem:[%s3863 + $0xd8] sm:$0xff]
    %v3892 = vld [vmem:[%s3863 + $0xe0] sm:$0xff]
    %v3893 = vld [vmem:[%s3863 + $0xe8] sm:$0xff]
    %v3894 = vld [vmem:[%s3863 + $0xf0] sm:$0xff]
    %v3895 = vld [vmem:[%s3863 + $0xf8] sm:$0xff]
    %v3896 = vld [vmem:[%s3] sm:$0xff]
    %v3897 = vld [vmem:[%s4] sm:$0x1]
    %v3899 = vlaneseq
    %v3900 = vshrl.u32 %v3899, 7
    %v3901 = vsub.s32 0, %v3900
    %v3902 = vrot.slane %v3897, %v3901
    %v3905 = vsel %vm233, %v3864, 0
    %v3908 = vsel %vm233, %v3865, 0
    %v3911 = vsel %vm233, %v3866, 0
    %v3914 = vsel %vm233, %v3867, 0
    %v3917 = vsel %vm233, %v3868, 0
    %v3920 = vsel %vm233, %v3869, 0
    %v3923 = vsel %vm233, %v3870, 0
    %v3926 = vsel %vm233, %v3871, 0
    %v3929 = vsel %vm233, %v3872, 0
    %v3932 = vsel %vm233, %v3873, 0
    %v3935 = vsel %vm233, %v3874, 0
    %v3938 = vsel %vm233, %v3875, 0
    %v3941 = vsel %vm233, %v3876, 0
    %v3944 = vsel %vm233, %v3877, 0
    %v3947 = vsel %vm233, %v3878, 0
    %v3950 = vsel %vm233, %v3879, 0
    %v3953 = vsel %vm233, %v3880, 0
    %v3956 = vsel %vm233, %v3881, 0
    %v3959 = vsel %vm233, %v3882, 0
    %v3962 = vsel %vm233, %v3883, 0
    %v3965 = vsel %vm233, %v3884, 0
    %v3968 = vsel %vm233, %v3885, 0
    %v3971 = vsel %vm233, %v3886, 0
    %v3974 = vsel %vm233, %v3887, 0
    %v3977 = vsel %vm233, %v3888, 0
    %v3980 = vsel %vm233, %v3889, 0
    %v3983 = vsel %vm233, %v3890, 0
    %v3986 = vsel %vm233, %v3891, 0
    %v3989 = vsel %vm233, %v3892, 0
    %v3992 = vsel %vm233, %v3893, 0
    %v3995 = vsel %vm233, %v3894, 0
    %v3998 = vsel %vm233, %v3895, 0
    %4000 = vmatprep.subr.mxu0 0.0
    %4001 = vmatpush1.msra.mxu0 0.0
    %4002 = vmatprep.subr.mxu0 0.0
    %4003 = vmatpush1.msra.mxu0 0.0
    %4004 = vmatprep.subr.mxu0 0.0
    %4005 = vmatpush1.msra.mxu0 0.0
    %4006 = vmatprep.subr.mxu0 0.0
    %4007 = vmatpush1.msra.mxu0 0.0
    %4008 = vmatprep.subr.mxu0 0.0
    %4009 = vmatpush1.msra.mxu0 0.0
    %4010 = vmatprep.subr.mxu0 0.0
    %4011 = vmatpush1.msra.mxu0 0.0
    %4012 = vmatprep.subr.mxu0 0.0
    %4013 = vmatpush1.msra.mxu0 0.0
    %4014 = vmatprep.subr.mxu0 0.0
    %4015 = vmatpush1.msra.mxu0 0.0
    %4016 = vmatprep.subr.mxu0 0.0
    %4017 = vmatpush1.msra.mxu0 0.0
    %4018 = vmatprep.subr.mxu0 0.0
    %4019 = vmatpush1.msra.mxu0 0.0
    %4020 = vmatprep.subr.mxu0 0.0
    %4021 = vmatpush1.msra.mxu0 0.0
    %4022 = vmatprep.subr.mxu0 0.0
    %4023 = vmatpush1.msra.mxu0 0.0
    %4024 = vmatprep.subr.mxu0 0.0
    %4025 = vmatpush1.msra.mxu0 0.0
    %4026 = vmatprep.subr.mxu0 0.0
    %4027 = vmatpush1.msra.mxu0 0.0
    %4028 = vmatprep.subr.mxu0 0.0
    %4029 = vmatpush1.msra.mxu0 0.0
    %4030 = vmatprep.subr.mxu0 0.0
    %4031 = vmatpush1.msra.mxu0 %v3896
    %4032 = vmatprep.subr.mxu0 0.0
    %4033 = vmatpush2.msra.mxu0 0.0
    %4034 = vmatprep.subr.mxu0 0.0
    %4035 = vmatpush2.msra.mxu0 0.0
    %4036 = vmatprep.subr.mxu0 0.0
    %4037 = vmatpush2.msra.mxu0 0.0
    %4038 = vmatprep.subr.mxu0 0.0
    %4039 = vmatpush2.msra.mxu0 0.0
    %4040 = vmatprep.subr.mxu0 0.0
    %4041 = vmatpush2.msra.mxu0 0.0
    %4042 = vmatprep.subr.mxu0 0.0
    %4043 = vmatpush2.msra.mxu0 0.0
    %4044 = vmatprep.subr.mxu0 0.0
    %4045 = vmatpush2.msra.mxu0 0.0
    %4046 = vmatprep.subr.mxu0 0.0
    %4047 = vmatpush2.msra.mxu0 0.0
    %4048 = vmatprep.subr.mxu0 0.0
    %4049 = vmatpush2.msra.mxu0 0.0
    %4050 = vmatprep.subr.mxu0 0.0
    %4051 = vmatpush2.msra.mxu0 0.0
    %4052 = vmatprep.subr.mxu0 0.0
    %4053 = vmatpush2.msra.mxu0 0.0
    %4054 = vmatprep.subr.mxu0 0.0
    %4055 = vmatpush2.msra.mxu0 0.0
    %4056 = vmatprep.subr.mxu0 0.0
    %4057 = vmatpush2.msra.mxu0 0.0
    %4058 = vmatprep.subr.mxu0 0.0
    %4059 = vmatpush2.msra.mxu0 0.0
    %4060 = vmatprep.subr.mxu0 0.0
    %4061 = vmatpush2.msra.mxu0 0.0
    %4062 = vmatprep.subr.mxu0 0.0
    %4063 = vmatpush2.msra.mxu0 0.0
    %4064 = vmatprep.mubr.f32.mxu0 0.0
    %4065 = vmatmul.mubr.f32.gmra.mxu0 %v3905
    %v4066 = vpop.f32.mrf.mxu0
    %v4067 = vadd.f32 %v3902, %v4066
    %v4068 = vpop.f32.mrf.mxu0
    %4069 = vmatprep.mubr.f32.mxu0 0.0
    %4070 = vmatmul.mubr.f32.gmra.mxu0 %v3908
    %v4071 = vpop.f32.mrf.mxu0
    %v4072 = vadd.f32 %v3902, %v4071
    %v4073 = vpop.f32.mrf.mxu0
    %4074 = vmatprep.mubr.f32.mxu0 0.0
    %4075 = vmatmul.mubr.f32.gmra.mxu0 %v3911
    %v4076 = vpop.f32.mrf.mxu0
    %v4077 = vadd.f32 %v3902, %v4076
    %v4078 = vpop.f32.mrf.mxu0
    %4079 = vmatprep.mubr.f32.mxu0 0.0
    %4080 = vmatmul.mubr.f32.gmra.mxu0 %v3914
    %v4081 = vpop.f32.mrf.mxu0
    %v4082 = vadd.f32 %v3902, %v4081
    %v4083 = vpop.f32.mrf.mxu0
    %4084 = vmatprep.mubr.f32.mxu0 0.0
    %4085 = vmatmul.mubr.f32.gmra.mxu0 %v3917
    %v4086 = vpop.f32.mrf.mxu0
    %v4087 = vadd.f32 %v3902, %v4086
    %v4088 = vpop.f32.mrf.mxu0
    %4089 = vmatprep.mubr.f32.mxu0 0.0
    %4090 = vmatmul.mubr.f32.gmra.mxu0 %v3920
    %v4091 = vpop.f32.mrf.mxu0
    %v4092 = vadd.f32 %v3902, %v4091
    %v4093 = vpop.f32.mrf.mxu0
    %4094 = vmatprep.mubr.f32.mxu0 0.0
    %4095 = vmatmul.mubr.f32.gmra.mxu0 %v3923
    %v4096 = vpop.f32.mrf.mxu0
    %v4097 = vadd.f32 %v3902, %v4096
    %v4098 = vpop.f32.mrf.mxu0
    %4099 = vmatprep.mubr.f32.mxu0 0.0
    %4100 = vmatmul.mubr.f32.gmra.mxu0 %v3926
    %v4101 = vpop.f32.mrf.mxu0
    %v4102 = vadd.f32 %v3902, %v4101
    %v4103 = vpop.f32.mrf.mxu0
    %4104 = vmatprep.mubr.f32.mxu0 0.0
    %4105 = vmatmul.mubr.f32.gmra.mxu0 %v3929
    %v4106 = vpop.f32.mrf.mxu0
    %v4107 = vadd.f32 %v3902, %v4106
    %v4108 = vpop.f32.mrf.mxu0
    %4109 = vmatprep.mubr.f32.mxu0 0.0
    %4110 = vmatmul.mubr.f32.gmra.mxu0 %v3932
    %v4111 = vpop.f32.mrf.mxu0
    %v4112 = vadd.f32 %v3902, %v4111
    %v4113 = vpop.f32.mrf.mxu0
    %4114 = vmatprep.mubr.f32.mxu0 0.0
    %4115 = vmatmul.mubr.f32.gmra.mxu0 %v3935
    %v4116 = vpop.f32.mrf.mxu0
    %v4117 = vadd.f32 %v3902, %v4116
    %v4118 = vpop.f32.mrf.mxu0
    %4119 = vmatprep.mubr.f32.mxu0 0.0
    %4120 = vmatmul.mubr.f32.gmra.mxu0 %v3938
    %v4121 = vpop.f32.mrf.mxu0
    %v4122 = vadd.f32 %v3902, %v4121
    %v4123 = vpop.f32.mrf.mxu0
    %4124 = vmatprep.mubr.f32.mxu0 0.0
    %4125 = vmatmul.mubr.f32.gmra.mxu0 %v3941
    %v4126 = vpop.f32.mrf.mxu0
    %v4127 = vadd.f32 %v3902, %v4126
    %v4128 = vpop.f32.mrf.mxu0
    %4129 = vmatprep.mubr.f32.mxu0 0.0
    %4130 = vmatmul.mubr.f32.gmra.mxu0 %v3944
    %v4131 = vpop.f32.mrf.mxu0
    %v4132 = vadd.f32 %v3902, %v4131
    %v4133 = vpop.f32.mrf.mxu0
    %4134 = vmatprep.mubr.f32.mxu0 0.0
    %4135 = vmatmul.mubr.f32.gmra.mxu0 %v3947
    %v4136 = vpop.f32.mrf.mxu0
    %v4137 = vadd.f32 %v3902, %v4136
    %v4138 = vpop.f32.mrf.mxu0
    %4139 = vmatprep.mubr.f32.mxu0 0.0
    %4140 = vmatmul.mubr.f32.gmra.mxu0 %v3950
    %v4141 = vpop.f32.mrf.mxu0
    %v4142 = vadd.f32 %v3902, %v4141
    %v4143 = vpop.f32.mrf.mxu0
    %4144 = vmatprep.mubr.f32.mxu0 0.0
    %4145 = vmatmul.mubr.f32.gmra.mxu0 %v3953
    %v4146 = vpop.f32.mrf.mxu0
    %v4147 = vadd.f32 %v3902, %v4146
    %v4148 = vpop.f32.mrf.mxu0
    %4149 = vmatprep.mubr.f32.mxu0 0.0
    %4150 = vmatmul.mubr.f32.gmra.mxu0 %v3956
    %v4151 = vpop.f32.mrf.mxu0
    %v4152 = vadd.f32 %v3902, %v4151
    %v4153 = vpop.f32.mrf.mxu0
    %4154 = vmatprep.mubr.f32.mxu0 0.0
    %4155 = vmatmul.mubr.f32.gmra.mxu0 %v3959
    %v4156 = vpop.f32.mrf.mxu0
    %v4157 = vadd.f32 %v3902, %v4156
    %v4158 = vpop.f32.mrf.mxu0
    %4159 = vmatprep.mubr.f32.mxu0 0.0
    %4160 = vmatmul.mubr.f32.gmra.mxu0 %v3962
    %v4161 = vpop.f32.mrf.mxu0
    %v4162 = vadd.f32 %v3902, %v4161
    %v4163 = vpop.f32.mrf.mxu0
    %4164 = vmatprep.mubr.f32.mxu0 0.0
    %4165 = vmatmul.mubr.f32.gmra.mxu0 %v3965
    %v4166 = vpop.f32.mrf.mxu0
    %v4167 = vadd.f32 %v3902, %v4166
    %v4168 = vpop.f32.mrf.mxu0
    %4169 = vmatprep.mubr.f32.mxu0 0.0
    %4170 = vmatmul.mubr.f32.gmra.mxu0 %v3968
    %v4171 = vpop.f32.mrf.mxu0
    %v4172 = vadd.f32 %v3902, %v4171
    %v4173 = vpop.f32.mrf.mxu0
    %4174 = vmatprep.mubr.f32.mxu0 0.0
    %4175 = vmatmul.mubr.f32.gmra.mxu0 %v3971
    %v4176 = vpop.f32.mrf.mxu0
    %v4177 = vadd.f32 %v3902, %v4176
    %v4178 = vpop.f32.mrf.mxu0
    %4179 = vmatprep.mubr.f32.mxu0 0.0
    %4180 = vmatmul.mubr.f32.gmra.mxu0 %v3974
    %v4181 = vpop.f32.mrf.mxu0
    %v4182 = vadd.f32 %v3902, %v4181
    %v4183 = vpop.f32.mrf.mxu0
    %4184 = vmatprep.mubr.f32.mxu0 0.0
    %4185 = vmatmul.mubr.f32.gmra.mxu0 %v3977
    %v4186 = vpop.f32.mrf.mxu0
    %v4187 = vadd.f32 %v3902, %v4186
    %v4188 = vpop.f32.mrf.mxu0
    %4189 = vmatprep.mubr.f32.mxu0 0.0
    %4190 = vmatmul.mubr.f32.gmra.mxu0 %v3980
    %v4191 = vpop.f32.mrf.mxu0
    %v4192 = vadd.f32 %v3902, %v4191
    %v4193 = vpop.f32.mrf.mxu0
    %4194 = vmatprep.mubr.f32.mxu0 0.0
    %4195 = vmatmul.mubr.f32.gmra.mxu0 %v3983
    %v4196 = vpop.f32.mrf.mxu0
    %v4197 = vadd.f32 %v3902, %v4196
    %v4198 = vpop.f32.mrf.mxu0
    %4199 = vmatprep.mubr.f32.mxu0 0.0
    %4200 = vmatmul.mubr.f32.gmra.mxu0 %v3986
    %v4201 = vpop.f32.mrf.mxu0
    %v4202 = vadd.f32 %v3902, %v4201
    %v4203 = vpop.f32.mrf.mxu0
    %4204 = vmatprep.mubr.f32.mxu0 0.0
    %4205 = vmatmul.mubr.f32.gmra.mxu0 %v3989
    %v4206 = vpop.f32.mrf.mxu0
    %v4207 = vadd.f32 %v3902, %v4206
    %v4208 = vpop.f32.mrf.mxu0
    %4209 = vmatprep.mubr.f32.mxu0 0.0
    %4210 = vmatmul.mubr.f32.gmra.mxu0 %v3992
    %v4211 = vpop.f32.mrf.mxu0
    %v4212 = vadd.f32 %v3902, %v4211
    %v4213 = vpop.f32.mrf.mxu0
    %4214 = vmatprep.mubr.f32.mxu0 0.0
    %4215 = vmatmul.mubr.f32.gmra.mxu0 %v3995
    %v4216 = vpop.f32.mrf.mxu0
    %v4217 = vadd.f32 %v3902, %v4216
    %v4218 = vpop.f32.mrf.mxu0
    %4219 = vmatprep.mubr.f32.mxu0 0.0
    %4220 = vmatmul.mubr.f32.gmra.mxu0 %v3998
    %v4221 = vpop.f32.mrf.mxu0
    %v4222 = vadd.f32 %v3902, %v4221
    %v4223 = vpop.f32.mrf.mxu0
    %4224 = vdwg.mxu0
    %vm4225 = vcmp.ge.f32.partialorder %v4067, 0.0
    %vm4226 = vcmp.ge.f32.partialorder %v4072, 0.0
    %vm4227 = vcmp.ge.f32.partialorder %v4077, 0.0
    %vm4228 = vcmp.ge.f32.partialorder %v4082, 0.0
    %vm4229 = vcmp.ge.f32.partialorder %v4087, 0.0
    %vm4230 = vcmp.ge.f32.partialorder %v4092, 0.0
    %vm4231 = vcmp.ge.f32.partialorder %v4097, 0.0
    %vm4232 = vcmp.ge.f32.partialorder %v4102, 0.0
    %vm4233 = vcmp.ge.f32.partialorder %v4107, 0.0
    %vm4234 = vcmp.ge.f32.partialorder %v4112, 0.0
    %vm4235 = vcmp.ge.f32.partialorder %v4117, 0.0
    %vm4236 = vcmp.ge.f32.partialorder %v4122, 0.0
    %vm4237 = vcmp.ge.f32.partialorder %v4127, 0.0
    %vm4238 = vcmp.ge.f32.partialorder %v4132, 0.0
    %vm4239 = vcmp.ge.f32.partialorder %v4137, 0.0
    %vm4240 = vcmp.ge.f32.partialorder %v4142, 0.0
    %vm4241 = vcmp.ge.f32.partialorder %v4147, 0.0
    %vm4242 = vcmp.ge.f32.partialorder %v4152, 0.0
    %vm4243 = vcmp.ge.f32.partialorder %v4157, 0.0
    %vm4244 = vcmp.ge.f32.partialorder %v4162, 0.0
    %vm4245 = vcmp.ge.f32.partialorder %v4167, 0.0
    %vm4246 = vcmp.ge.f32.partialorder %v4172, 0.0
    %vm4247 = vcmp.ge.f32.partialorder %v4177, 0.0
    %vm4248 = vcmp.ge.f32.partialorder %v4182, 0.0
    %vm4249 = vcmp.ge.f32.partialorder %v4187, 0.0
    %vm4250 = vcmp.ge.f32.partialorder %v4192, 0.0
    %vm4251 = vcmp.ge.f32.partialorder %v4197, 0.0
    %vm4252 = vcmp.ge.f32.partialorder %v4202, 0.0
    %vm4253 = vcmp.ge.f32.partialorder %v4207, 0.0
    %vm4254 = vcmp.ge.f32.partialorder %v4212, 0.0
    %vm4255 = vcmp.ge.f32.partialorder %v4217, 0.0
    %vm4256 = vcmp.ge.f32.partialorder %v4222, 0.0
    %v4257 = vmul.f32 %v4067, 0.01
    %v4258 = vmul.f32 %v4072, 0.01
    %v4259 = vmul.f32 %v4077, 0.01
    %v4260 = vmul.f32 %v4082, 0.01
    %v4261 = vmul.f32 %v4087, 0.01
    %v4262 = vmul.f32 %v4092, 0.01
    %v4263 = vmul.f32 %v4097, 0.01
    %v4264 = vmul.f32 %v4102, 0.01
    %v4265 = vmul.f32 %v4107, 0.01
    %v4266 = vmul.f32 %v4112, 0.01
    %v4267 = vmul.f32 %v4117, 0.01
    %v4268 = vmul.f32 %v4122, 0.01
    %v4269 = vmul.f32 %v4127, 0.01
    %v4270 = vmul.f32 %v4132, 0.01
    %v4271 = vmul.f32 %v4137, 0.01
    %v4272 = vmul.f32 %v4142, 0.01
    %v4273 = vmul.f32 %v4147, 0.01
    %v4274 = vmul.f32 %v4152, 0.01
    %v4275 = vmul.f32 %v4157, 0.01
    %v4276 = vmul.f32 %v4162, 0.01
    %v4277 = vmul.f32 %v4167, 0.01
    %v4278 = vmul.f32 %v4172, 0.01
    %v4279 = vmul.f32 %v4177, 0.01
    %v4280 = vmul.f32 %v4182, 0.01
    %v4281 = vmul.f32 %v4187, 0.01
    %v4282 = vmul.f32 %v4192, 0.01
    %v4283 = vmul.f32 %v4197, 0.01
    %v4284 = vmul.f32 %v4202, 0.01
    %v4285 = vmul.f32 %v4207, 0.01
    %v4286 = vmul.f32 %v4212, 0.01
    %v4287 = vmul.f32 %v4217, 0.01
    %v4288 = vmul.f32 %v4222, 0.01
    %v4289 = vsel %vm4225, %v4067, %v4257
    %v4290 = vsel %vm4226, %v4072, %v4258
    %v4291 = vsel %vm4227, %v4077, %v4259
    %v4292 = vsel %vm4228, %v4082, %v4260
    %v4293 = vsel %vm4229, %v4087, %v4261
    %v4294 = vsel %vm4230, %v4092, %v4262
    %v4295 = vsel %vm4231, %v4097, %v4263
    %v4296 = vsel %vm4232, %v4102, %v4264
    %v4297 = vsel %vm4233, %v4107, %v4265
    %v4298 = vsel %vm4234, %v4112, %v4266
    %v4299 = vsel %vm4235, %v4117, %v4267
    %v4300 = vsel %vm4236, %v4122, %v4268
    %v4301 = vsel %vm4237, %v4127, %v4269
    %v4302 = vsel %vm4238, %v4132, %v4270
    %v4303 = vsel %vm4239, %v4137, %v4271
    %v4304 = vsel %vm4240, %v4142, %v4272
    %v4305 = vsel %vm4241, %v4147, %v4273
    %v4306 = vsel %vm4242, %v4152, %v4274
    %v4307 = vsel %vm4243, %v4157, %v4275
    %v4308 = vsel %vm4244, %v4162, %v4276
    %v4309 = vsel %vm4245, %v4167, %v4277
    %v4310 = vsel %vm4246, %v4172, %v4278
    %v4311 = vsel %vm4247, %v4177, %v4279
    %v4312 = vsel %vm4248, %v4182, %v4280
    %v4313 = vsel %vm4249, %v4187, %v4281
    %v4314 = vsel %vm4250, %v4192, %v4282
    %v4315 = vsel %vm4251, %v4197, %v4283
    %v4316 = vsel %vm4252, %v4202, %v4284
    %v4317 = vsel %vm4253, %v4207, %v4285
    %v4318 = vsel %vm4254, %v4212, %v4286
    %v4319 = vsel %vm4255, %v4217, %v4287
    %v4320 = vsel %vm4256, %v4222, %v4288
    %v4321 = vld [vmem:[%s5] sm:$0xff]
    %v4322 = vld [vmem:[%s6] sm:$0x1]
    %v4324 = vlaneseq
    %v4325 = vshrl.u32 %v4324, 7
    %v4326 = vsub.s32 0, %v4325
    %v4327 = vrot.slane %v4322, %v4326
    %v4330 = vsel %vm233, %v4289, 0
    %v4333 = vsel %vm233, %v4290, 0
    %v4336 = vsel %vm233, %v4291, 0
    %v4339 = vsel %vm233, %v4292, 0
    %v4342 = vsel %vm233, %v4293, 0
    %v4345 = vsel %vm233, %v4294, 0
    %v4348 = vsel %vm233, %v4295, 0
    %v4351 = vsel %vm233, %v4296, 0
    %v4354 = vsel %vm233, %v4297, 0
    %v4357 = vsel %vm233, %v4298, 0
    %v4360 = vsel %vm233, %v4299, 0
    %v4363 = vsel %vm233, %v4300, 0
    %v4366 = vsel %vm233, %v4301, 0
    %v4369 = vsel %vm233, %v4302, 0
    %v4372 = vsel %vm233, %v4303, 0
    %v4375 = vsel %vm233, %v4304, 0
    %v4378 = vsel %vm233, %v4305, 0
    %v4381 = vsel %vm233, %v4306, 0
    %v4384 = vsel %vm233, %v4307, 0
    %v4387 = vsel %vm233, %v4308, 0
    %v4390 = vsel %vm233, %v4309, 0
    %v4393 = vsel %vm233, %v4310, 0
    %v4396 = vsel %vm233, %v4311, 0
    %v4399 = vsel %vm233, %v4312, 0
    %v4402 = vsel %vm233, %v4313, 0
    %v4405 = vsel %vm233, %v4314, 0
    %v4408 = vsel %vm233, %v4315, 0
    %v4411 = vsel %vm233, %v4316, 0
    %v4414 = vsel %vm233, %v4317, 0
    %v4417 = vsel %vm233, %v4318, 0
    %v4420 = vsel %vm233, %v4319, 0
    %v4423 = vsel %vm233, %v4320, 0
    %4425 = vmatprep.subr.mxu0 0.0
    %4426 = vmatpush1.msra.mxu0 0.0
    %4427 = vmatprep.subr.mxu0 0.0
    %4428 = vmatpush1.msra.mxu0 0.0
    %4429 = vmatprep.subr.mxu0 0.0
    %4430 = vmatpush1.msra.mxu0 0.0
    %4431 = vmatprep.subr.mxu0 0.0
    %4432 = vmatpush1.msra.mxu0 0.0
    %4433 = vmatprep.subr.mxu0 0.0
    %4434 = vmatpush1.msra.mxu0 0.0
    %4435 = vmatprep.subr.mxu0 0.0
    %4436 = vmatpush1.msra.mxu0 0.0
    %4437 = vmatprep.subr.mxu0 0.0
    %4438 = vmatpush1.msra.mxu0 0.0
    %4439 = vmatprep.subr.mxu0 0.0
    %4440 = vmatpush1.msra.mxu0 0.0
    %4441 = vmatprep.subr.mxu0 0.0
    %4442 = vmatpush1.msra.mxu0 0.0
    %4443 = vmatprep.subr.mxu0 0.0
    %4444 = vmatpush1.msra.mxu0 0.0
    %4445 = vmatprep.subr.mxu0 0.0
    %4446 = vmatpush1.msra.mxu0 0.0
    %4447 = vmatprep.subr.mxu0 0.0
    %4448 = vmatpush1.msra.mxu0 0.0
    %4449 = vmatprep.subr.mxu0 0.0
    %4450 = vmatpush1.msra.mxu0 0.0
    %4451 = vmatprep.subr.mxu0 0.0
    %4452 = vmatpush1.msra.mxu0 0.0
    %4453 = vmatprep.subr.mxu0 0.0
    %4454 = vmatpush1.msra.mxu0 0.0
    %4455 = vmatprep.subr.mxu0 0.0
    %4456 = vmatpush1.msra.mxu0 %v4321
    %4457 = vmatprep.subr.mxu0 0.0
    %4458 = vmatpush2.msra.mxu0 0.0
    %4459 = vmatprep.subr.mxu0 0.0
    %4460 = vmatpush2.msra.mxu0 0.0
    %4461 = vmatprep.subr.mxu0 0.0
    %4462 = vmatpush2.msra.mxu0 0.0
    %4463 = vmatprep.subr.mxu0 0.0
    %4464 = vmatpush2.msra.mxu0 0.0
    %4465 = vmatprep.subr.mxu0 0.0
    %4466 = vmatpush2.msra.mxu0 0.0
    %4467 = vmatprep.subr.mxu0 0.0
    %4468 = vmatpush2.msra.mxu0 0.0
    %4469 = vmatprep.subr.mxu0 0.0
    %4470 = vmatpush2.msra.mxu0 0.0
    %4471 = vmatprep.subr.mxu0 0.0
    %4472 = vmatpush2.msra.mxu0 0.0
    %4473 = vmatprep.subr.mxu0 0.0
    %4474 = vmatpush2.msra.mxu0 0.0
    %4475 = vmatprep.subr.mxu0 0.0
    %4476 = vmatpush2.msra.mxu0 0.0
    %4477 = vmatprep.subr.mxu0 0.0
    %4478 = vmatpush2.msra.mxu0 0.0
    %4479 = vmatprep.subr.mxu0 0.0
    %4480 = vmatpush2.msra.mxu0 0.0
    %4481 = vmatprep.subr.mxu0 0.0
    %4482 = vmatpush2.msra.mxu0 0.0
    %4483 = vmatprep.subr.mxu0 0.0
    %4484 = vmatpush2.msra.mxu0 0.0
    %4485 = vmatprep.subr.mxu0 0.0
    %4486 = vmatpush2.msra.mxu0 0.0
    %4487 = vmatprep.subr.mxu0 0.0
    %4488 = vmatpush2.msra.mxu0 0.0
    %4489 = vmatprep.mubr.f32.mxu0 0.0
    %4490 = vmatmul.mubr.f32.gmra.mxu0 %v4330
    %v4491 = vpop.f32.mrf.mxu0
    %v4492 = vadd.f32 %v4327, %v4491
    %v4493 = vpop.f32.mrf.mxu0
    %4494 = vmatprep.mubr.f32.mxu0 0.0
    %4495 = vmatmul.mubr.f32.gmra.mxu0 %v4333
    %v4496 = vpop.f32.mrf.mxu0
    %v4497 = vadd.f32 %v4327, %v4496
    %v4498 = vpop.f32.mrf.mxu0
    %4499 = vmatprep.mubr.f32.mxu0 0.0
    %4500 = vmatmul.mubr.f32.gmra.mxu0 %v4336
    %v4501 = vpop.f32.mrf.mxu0
    %v4502 = vadd.f32 %v4327, %v4501
    %v4503 = vpop.f32.mrf.mxu0
    %4504 = vmatprep.mubr.f32.mxu0 0.0
    %4505 = vmatmul.mubr.f32.gmra.mxu0 %v4339
    %v4506 = vpop.f32.mrf.mxu0
    %v4507 = vadd.f32 %v4327, %v4506
    %v4508 = vpop.f32.mrf.mxu0
    %4509 = vmatprep.mubr.f32.mxu0 0.0
    %4510 = vmatmul.mubr.f32.gmra.mxu0 %v4342
    %v4511 = vpop.f32.mrf.mxu0
    %v4512 = vadd.f32 %v4327, %v4511
    %v4513 = vpop.f32.mrf.mxu0
    %4514 = vmatprep.mubr.f32.mxu0 0.0
    %4515 = vmatmul.mubr.f32.gmra.mxu0 %v4345
    %v4516 = vpop.f32.mrf.mxu0
    %v4517 = vadd.f32 %v4327, %v4516
    %v4518 = vpop.f32.mrf.mxu0
    %4519 = vmatprep.mubr.f32.mxu0 0.0
    %4520 = vmatmul.mubr.f32.gmra.mxu0 %v4348
    %v4521 = vpop.f32.mrf.mxu0
    %v4522 = vadd.f32 %v4327, %v4521
    %v4523 = vpop.f32.mrf.mxu0
    %4524 = vmatprep.mubr.f32.mxu0 0.0
    %4525 = vmatmul.mubr.f32.gmra.mxu0 %v4351
    %v4526 = vpop.f32.mrf.mxu0
    %v4527 = vadd.f32 %v4327, %v4526
    %v4528 = vpop.f32.mrf.mxu0
    %4529 = vmatprep.mubr.f32.mxu0 0.0
    %4530 = vmatmul.mubr.f32.gmra.mxu0 %v4354
    %v4531 = vpop.f32.mrf.mxu0
    %v4532 = vadd.f32 %v4327, %v4531
    %v4533 = vpop.f32.mrf.mxu0
    %4534 = vmatprep.mubr.f32.mxu0 0.0
    %4535 = vmatmul.mubr.f32.gmra.mxu0 %v4357
    %v4536 = vpop.f32.mrf.mxu0
    %v4537 = vadd.f32 %v4327, %v4536
    %v4538 = vpop.f32.mrf.mxu0
    %4539 = vmatprep.mubr.f32.mxu0 0.0
    %4540 = vmatmul.mubr.f32.gmra.mxu0 %v4360
    %v4541 = vpop.f32.mrf.mxu0
    %v4542 = vadd.f32 %v4327, %v4541
    %v4543 = vpop.f32.mrf.mxu0
    %4544 = vmatprep.mubr.f32.mxu0 0.0
    %4545 = vmatmul.mubr.f32.gmra.mxu0 %v4363
    %v4546 = vpop.f32.mrf.mxu0
    %v4547 = vadd.f32 %v4327, %v4546
    %v4548 = vpop.f32.mrf.mxu0
    %4549 = vmatprep.mubr.f32.mxu0 0.0
    %4550 = vmatmul.mubr.f32.gmra.mxu0 %v4366
    %v4551 = vpop.f32.mrf.mxu0
    %v4552 = vadd.f32 %v4327, %v4551
    %v4553 = vpop.f32.mrf.mxu0
    %4554 = vmatprep.mubr.f32.mxu0 0.0
    %4555 = vmatmul.mubr.f32.gmra.mxu0 %v4369
    %v4556 = vpop.f32.mrf.mxu0
    %v4557 = vadd.f32 %v4327, %v4556
    %v4558 = vpop.f32.mrf.mxu0
    %4559 = vmatprep.mubr.f32.mxu0 0.0
    %4560 = vmatmul.mubr.f32.gmra.mxu0 %v4372
    %v4561 = vpop.f32.mrf.mxu0
    %v4562 = vadd.f32 %v4327, %v4561
    %v4563 = vpop.f32.mrf.mxu0
    %4564 = vmatprep.mubr.f32.mxu0 0.0
    %4565 = vmatmul.mubr.f32.gmra.mxu0 %v4375
    %v4566 = vpop.f32.mrf.mxu0
    %v4567 = vadd.f32 %v4327, %v4566
    %v4568 = vpop.f32.mrf.mxu0
    %4569 = vmatprep.mubr.f32.mxu0 0.0
    %4570 = vmatmul.mubr.f32.gmra.mxu0 %v4378
    %v4571 = vpop.f32.mrf.mxu0
    %v4572 = vadd.f32 %v4327, %v4571
    %v4573 = vpop.f32.mrf.mxu0
    %4574 = vmatprep.mubr.f32.mxu0 0.0
    %4575 = vmatmul.mubr.f32.gmra.mxu0 %v4381
    %v4576 = vpop.f32.mrf.mxu0
    %v4577 = vadd.f32 %v4327, %v4576
    %v4578 = vpop.f32.mrf.mxu0
    %4579 = vmatprep.mubr.f32.mxu0 0.0
    %4580 = vmatmul.mubr.f32.gmra.mxu0 %v4384
    %v4581 = vpop.f32.mrf.mxu0
    %v4582 = vadd.f32 %v4327, %v4581
    %v4583 = vpop.f32.mrf.mxu0
    %4584 = vmatprep.mubr.f32.mxu0 0.0
    %4585 = vmatmul.mubr.f32.gmra.mxu0 %v4387
    %v4586 = vpop.f32.mrf.mxu0
    %v4587 = vadd.f32 %v4327, %v4586
    %v4588 = vpop.f32.mrf.mxu0
    %4589 = vmatprep.mubr.f32.mxu0 0.0
    %4590 = vmatmul.mubr.f32.gmra.mxu0 %v4390
    %v4591 = vpop.f32.mrf.mxu0
    %v4592 = vadd.f32 %v4327, %v4591
    %v4593 = vpop.f32.mrf.mxu0
    %4594 = vmatprep.mubr.f32.mxu0 0.0
    %4595 = vmatmul.mubr.f32.gmra.mxu0 %v4393
    %v4596 = vpop.f32.mrf.mxu0
    %v4597 = vadd.f32 %v4327, %v4596
    %v4598 = vpop.f32.mrf.mxu0
    %4599 = vmatprep.mubr.f32.mxu0 0.0
    %4600 = vmatmul.mubr.f32.gmra.mxu0 %v4396
    %v4601 = vpop.f32.mrf.mxu0
    %v4602 = vadd.f32 %v4327, %v4601
    %v4603 = vpop.f32.mrf.mxu0
    %4604 = vmatprep.mubr.f32.mxu0 0.0
    %4605 = vmatmul.mubr.f32.gmra.mxu0 %v4399
    %v4606 = vpop.f32.mrf.mxu0
    %v4607 = vadd.f32 %v4327, %v4606
    %v4608 = vpop.f32.mrf.mxu0
    %4609 = vmatprep.mubr.f32.mxu0 0.0
    %4610 = vmatmul.mubr.f32.gmra.mxu0 %v4402
    %v4611 = vpop.f32.mrf.mxu0
    %v4612 = vadd.f32 %v4327, %v4611
    %v4613 = vpop.f32.mrf.mxu0
    %4614 = vmatprep.mubr.f32.mxu0 0.0
    %4615 = vmatmul.mubr.f32.gmra.mxu0 %v4405
    %v4616 = vpop.f32.mrf.mxu0
    %v4617 = vadd.f32 %v4327, %v4616
    %v4618 = vpop.f32.mrf.mxu0
    %4619 = vmatprep.mubr.f32.mxu0 0.0
    %4620 = vmatmul.mubr.f32.gmra.mxu0 %v4408
    %v4621 = vpop.f32.mrf.mxu0
    %v4622 = vadd.f32 %v4327, %v4621
    %v4623 = vpop.f32.mrf.mxu0
    %4624 = vmatprep.mubr.f32.mxu0 0.0
    %4625 = vmatmul.mubr.f32.gmra.mxu0 %v4411
    %v4626 = vpop.f32.mrf.mxu0
    %v4627 = vadd.f32 %v4327, %v4626
    %v4628 = vpop.f32.mrf.mxu0
    %4629 = vmatprep.mubr.f32.mxu0 0.0
    %4630 = vmatmul.mubr.f32.gmra.mxu0 %v4414
    %v4631 = vpop.f32.mrf.mxu0
    %v4632 = vadd.f32 %v4327, %v4631
    %v4633 = vpop.f32.mrf.mxu0
    %4634 = vmatprep.mubr.f32.mxu0 0.0
    %4635 = vmatmul.mubr.f32.gmra.mxu0 %v4417
    %v4636 = vpop.f32.mrf.mxu0
    %v4637 = vadd.f32 %v4327, %v4636
    %v4638 = vpop.f32.mrf.mxu0
    %4639 = vmatprep.mubr.f32.mxu0 0.0
    %4640 = vmatmul.mubr.f32.gmra.mxu0 %v4420
    %v4641 = vpop.f32.mrf.mxu0
    %v4642 = vadd.f32 %v4327, %v4641
    %v4643 = vpop.f32.mrf.mxu0
    %4644 = vmatprep.mubr.f32.mxu0 0.0
    %4645 = vmatmul.mubr.f32.gmra.mxu0 %v4423
    %v4646 = vpop.f32.mrf.mxu0
    %v4647 = vadd.f32 %v4327, %v4646
    %v4648 = vpop.f32.mrf.mxu0
    %4649 = vdwg.mxu0
    %s4650 = scalar_lea.vmem %s1, 256
    %v4651 = vld [vmem:[%s4650] sm:$0xff]
    %v4652 = vld [vmem:[%s4650 + $0x8] sm:$0xff]
    %v4653 = vld [vmem:[%s4650 + $0x10] sm:$0xff]
    %v4654 = vld [vmem:[%s4650 + $0x18] sm:$0xff]
    %v4655 = vld [vmem:[%s4650 + $0x20] sm:$0xff]
    %v4656 = vld [vmem:[%s4650 + $0x28] sm:$0xff]
    %v4657 = vld [vmem:[%s4650 + $0x30] sm:$0xff]
    %v4658 = vld [vmem:[%s4650 + $0x38] sm:$0xff]
    %v4659 = vld [vmem:[%s4650 + $0x40] sm:$0xff]
    %v4660 = vld [vmem:[%s4650 + $0x48] sm:$0xff]
    %v4661 = vld [vmem:[%s4650 + $0x50] sm:$0xff]
    %v4662 = vld [vmem:[%s4650 + $0x58] sm:$0xff]
    %v4663 = vld [vmem:[%s4650 + $0x60] sm:$0xff]
    %v4664 = vld [vmem:[%s4650 + $0x68] sm:$0xff]
    %v4665 = vld [vmem:[%s4650 + $0x70] sm:$0xff]
    %v4666 = vld [vmem:[%s4650 + $0x78] sm:$0xff]
    %v4667 = vld [vmem:[%s4650 + $0x80] sm:$0xff]
    %v4668 = vld [vmem:[%s4650 + $0x88] sm:$0xff]
    %v4669 = vld [vmem:[%s4650 + $0x90] sm:$0xff]
    %v4670 = vld [vmem:[%s4650 + $0x98] sm:$0xff]
    %v4671 = vld [vmem:[%s4650 + $0xa0] sm:$0xff]
    %v4672 = vld [vmem:[%s4650 + $0xa8] sm:$0xff]
    %v4673 = vld [vmem:[%s4650 + $0xb0] sm:$0xff]
    %v4674 = vld [vmem:[%s4650 + $0xb8] sm:$0xff]
    %v4675 = vld [vmem:[%s4650 + $0xc0] sm:$0xff]
    %v4676 = vld [vmem:[%s4650 + $0xc8] sm:$0xff]
    %v4677 = vld [vmem:[%s4650 + $0xd0] sm:$0xff]
    %v4678 = vld [vmem:[%s4650 + $0xd8] sm:$0xff]
    %v4679 = vld [vmem:[%s4650 + $0xe0] sm:$0xff]
    %v4680 = vld [vmem:[%s4650 + $0xe8] sm:$0xff]
    %v4681 = vld [vmem:[%s4650 + $0xf0] sm:$0xff]
    %v4682 = vld [vmem:[%s4650 + $0xf8] sm:$0xff]
    %v4683 = vadd.f32 %v4651, %v4492
    %v4684 = vadd.f32 %v4652, %v4497
    %v4685 = vadd.f32 %v4653, %v4502
    %v4686 = vadd.f32 %v4654, %v4507
    %v4687 = vadd.f32 %v4655, %v4512
    %v4688 = vadd.f32 %v4656, %v4517
    %v4689 = vadd.f32 %v4657, %v4522
    %v4690 = vadd.f32 %v4658, %v4527
    %v4691 = vadd.f32 %v4659, %v4532
    %v4692 = vadd.f32 %v4660, %v4537
    %v4693 = vadd.f32 %v4661, %v4542
    %v4694 = vadd.f32 %v4662, %v4547
    %v4695 = vadd.f32 %v4663, %v4552
    %v4696 = vadd.f32 %v4664, %v4557
    %v4697 = vadd.f32 %v4665, %v4562
    %v4698 = vadd.f32 %v4666, %v4567
    %v4699 = vadd.f32 %v4667, %v4572
    %v4700 = vadd.f32 %v4668, %v4577
    %v4701 = vadd.f32 %v4669, %v4582
    %v4702 = vadd.f32 %v4670, %v4587
    %v4703 = vadd.f32 %v4671, %v4592
    %v4704 = vadd.f32 %v4672, %v4597
    %v4705 = vadd.f32 %v4673, %v4602
    %v4706 = vadd.f32 %v4674, %v4607
    %v4707 = vadd.f32 %v4675, %v4612
    %v4708 = vadd.f32 %v4676, %v4617
    %v4709 = vadd.f32 %v4677, %v4622
    %v4710 = vadd.f32 %v4678, %v4627
    %v4711 = vadd.f32 %v4679, %v4632
    %v4712 = vadd.f32 %v4680, %v4637
    %v4713 = vadd.f32 %v4681, %v4642
    %v4714 = vadd.f32 %v4682, %v4647
    %v4715 = vmul.f32 %v4683, %v3831
    %v4716 = vmul.f32 %v4684, %v3832
    %v4717 = vmul.f32 %v4685, %v3833
    %v4718 = vmul.f32 %v4686, %v3834
    %v4719 = vmul.f32 %v4687, %v3835
    %v4720 = vmul.f32 %v4688, %v3836
    %v4721 = vmul.f32 %v4689, %v3837
    %v4722 = vmul.f32 %v4690, %v3838
    %v4723 = vmul.f32 %v4691, %v3839
    %v4724 = vmul.f32 %v4692, %v3840
    %v4725 = vmul.f32 %v4693, %v3841
    %v4726 = vmul.f32 %v4694, %v3842
    %v4727 = vmul.f32 %v4695, %v3843
    %v4728 = vmul.f32 %v4696, %v3844
    %v4729 = vmul.f32 %v4697, %v3845
    %v4730 = vmul.f32 %v4698, %v3846
    %v4731 = vmul.f32 %v4699, %v3847
    %v4732 = vmul.f32 %v4700, %v3848
    %v4733 = vmul.f32 %v4701, %v3849
    %v4734 = vmul.f32 %v4702, %v3850
    %v4735 = vmul.f32 %v4703, %v3851
    %v4736 = vmul.f32 %v4704, %v3852
    %v4737 = vmul.f32 %v4705, %v3853
    %v4738 = vmul.f32 %v4706, %v3854
    %v4739 = vmul.f32 %v4707, %v3855
    %v4740 = vmul.f32 %v4708, %v3856
    %v4741 = vmul.f32 %v4709, %v3857
    %v4742 = vmul.f32 %v4710, %v3858
    %v4743 = vmul.f32 %v4711, %v3859
    %v4744 = vmul.f32 %v4712, %v3860
    %v4745 = vmul.f32 %v4713, %v3861
    %v4746 = vmul.f32 %v4714, %v3862
    %4747 = vst.msk [vmem:[#allocation2] sm:$0xff] %vm233, %v4715
    %4748 = vst.msk [vmem:[#allocation2 + $0x8] sm:$0xff] %vm233, %v4716
    %4749 = vst.msk [vmem:[#allocation2 + $0x10] sm:$0xff] %vm233, %v4717
    %4750 = vst.msk [vmem:[#allocation2 + $0x18] sm:$0xff] %vm233, %v4718
    %4751 = vst.msk [vmem:[#allocation2 + $0x20] sm:$0xff] %vm233, %v4719
    %4752 = vst.msk [vmem:[#allocation2 + $0x28] sm:$0xff] %vm233, %v4720
    %4753 = vst.msk [vmem:[#allocation2 + $0x30] sm:$0xff] %vm233, %v4721
    %4754 = vst.msk [vmem:[#allocation2 + $0x38] sm:$0xff] %vm233, %v4722
    %4755 = vst.msk [vmem:[#allocation2 + $0x40] sm:$0xff] %vm233, %v4723
    %4756 = vst.msk [vmem:[#allocation2 + $0x48] sm:$0xff] %vm233, %v4724
    %4757 = vst.msk [vmem:[#allocation2 + $0x50] sm:$0xff] %vm233, %v4725
    %4758 = vst.msk [vmem:[#allocation2 + $0x58] sm:$0xff] %vm233, %v4726
    %4759 = vst.msk [vmem:[#allocation2 + $0x60] sm:$0xff] %vm233, %v4727
    %4760 = vst.msk [vmem:[#allocation2 + $0x68] sm:$0xff] %vm233, %v4728
    %4761 = vst.msk [vmem:[#allocation2 + $0x70] sm:$0xff] %vm233, %v4729
    %4762 = vst.msk [vmem:[#allocation2 + $0x78] sm:$0xff] %vm233, %v4730
    %4763 = vst.msk [vmem:[#allocation2 + $0x80] sm:$0xff] %vm233, %v4731
    %4764 = vst.msk [vmem:[#allocation2 + $0x88] sm:$0xff] %vm233, %v4732
    %4765 = vst.msk [vmem:[#allocation2 + $0x90] sm:$0xff] %vm233, %v4733
    %4766 = vst.msk [vmem:[#allocation2 + $0x98] sm:$0xff] %vm233, %v4734
    %4767 = vst.msk [vmem:[#allocation2 + $0xa0] sm:$0xff] %vm233, %v4735
    %4768 = vst.msk [vmem:[#allocation2 + $0xa8] sm:$0xff] %vm233, %v4736
    %4769 = vst.msk [vmem:[#allocation2 + $0xb0] sm:$0xff] %vm233, %v4737
    %4770 = vst.msk [vmem:[#allocation2 + $0xb8] sm:$0xff] %vm233, %v4738
    %4771 = vst.msk [vmem:[#allocation2 + $0xc0] sm:$0xff] %vm233, %v4739
    %4772 = vst.msk [vmem:[#allocation2 + $0xc8] sm:$0xff] %vm233, %v4740
    %4773 = vst.msk [vmem:[#allocation2 + $0xd0] sm:$0xff] %vm233, %v4741
    %4774 = vst.msk [vmem:[#allocation2 + $0xd8] sm:$0xff] %vm233, %v4742
    %4775 = vst.msk [vmem:[#allocation2 + $0xe0] sm:$0xff] %vm233, %v4743
    %4776 = vst.msk [vmem:[#allocation2 + $0xe8] sm:$0xff] %vm233, %v4744
    %4777 = vst.msk [vmem:[#allocation2 + $0xf0] sm:$0xff] %vm233, %v4745
    %4778 = vst.msk [vmem:[#allocation2 + $0xf8] sm:$0xff] %vm233, %v4746
    %v4779 = vld [vmem:[%s8] sm:$0x1]
    %v4780 = vld [vmem:[#allocation2] ss:$4 sm:$0xff]
    %v4781 = vld [vmem:[%s1110] ss:$4 sm:$0xff]
    %v4782 = vld [vmem:[%s1112] ss:$4 sm:$0xff]
    %v4783 = vld [vmem:[%s1114] ss:$4 sm:$0xff]
    %v4784 = vld [vmem:[%s1116] ss:$4 sm:$0xff]
    %v4785 = vld [vmem:[%s1118] ss:$4 sm:$0xff]
    %v4786 = vld [vmem:[%s1120] ss:$4 sm:$0xff]
    %v4787 = vld [vmem:[%s1122] ss:$4 sm:$0x7f]
    %v4788 = vld [vmem:[%s7] sm:$0xff]
    %v4790 = vsel %vm233, %v4780, 0
    %v4793 = vsel %vm233, %v4781, 0
    %v4796 = vsel %vm233, %v4782, 0
    %v4799 = vsel %vm233, %v4783, 0
    %v4802 = vsel %vm233, %v4784, 0
    %v4805 = vsel %vm233, %v4785, 0
    %v4808 = vsel %vm233, %v4786, 0
    %v4811 = vsel %vm233, %v4787, 0
    %4813 = vmatprep.subr.mxu0 0.0
    %4814 = vmatpush1.msra.mxu0 0.0
    %4815 = vmatprep.subr.mxu0 0.0
    %4816 = vmatpush1.msra.mxu0 0.0
    %4817 = vmatprep.subr.mxu0 0.0
    %4818 = vmatpush1.msra.mxu0 0.0
    %4819 = vmatprep.subr.mxu0 0.0
    %4820 = vmatpush1.msra.mxu0 0.0
    %4821 = vmatprep.subr.mxu0 0.0
    %4822 = vmatpush1.msra.mxu0 0.0
    %4823 = vmatprep.subr.mxu0 0.0
    %4824 = vmatpush1.msra.mxu0 0.0
    %4825 = vmatprep.subr.mxu0 0.0
    %4826 = vmatpush1.msra.mxu0 0.0
    %4827 = vmatprep.subr.mxu0 0.0
    %4828 = vmatpush1.msra.mxu0 0.0
    %4829 = vmatprep.subr.mxu0 0.0
    %4830 = vmatpush1.msra.mxu0 0.0
    %4831 = vmatprep.subr.mxu0 0.0
    %4832 = vmatpush1.msra.mxu0 0.0
    %4833 = vmatprep.subr.mxu0 0.0
    %4834 = vmatpush1.msra.mxu0 0.0
    %4835 = vmatprep.subr.mxu0 0.0
    %4836 = vmatpush1.msra.mxu0 0.0
    %4837 = vmatprep.subr.mxu0 0.0
    %4838 = vmatpush1.msra.mxu0 0.0
    %4839 = vmatprep.subr.mxu0 0.0
    %4840 = vmatpush1.msra.mxu0 0.0
    %4841 = vmatprep.subr.mxu0 0.0
    %4842 = vmatpush1.msra.mxu0 0.0
    %4843 = vmatprep.subr.mxu0 0.0
    %4844 = vmatpush1.msra.mxu0 %v4788
    %4845 = vmatprep.subr.mxu0 0.0
    %4846 = vmatpush2.msra.mxu0 0.0
    %4847 = vmatprep.subr.mxu0 0.0
    %4848 = vmatpush2.msra.mxu0 0.0
    %4849 = vmatprep.subr.mxu0 0.0
    %4850 = vmatpush2.msra.mxu0 0.0
    %4851 = vmatprep.subr.mxu0 0.0
    %4852 = vmatpush2.msra.mxu0 0.0
    %4853 = vmatprep.subr.mxu0 0.0
    %4854 = vmatpush2.msra.mxu0 0.0
    %4855 = vmatprep.subr.mxu0 0.0
    %4856 = vmatpush2.msra.mxu0 0.0
    %4857 = vmatprep.subr.mxu0 0.0
    %4858 = vmatpush2.msra.mxu0 0.0
    %4859 = vmatprep.subr.mxu0 0.0
    %4860 = vmatpush2.msra.mxu0 0.0
    %4861 = vmatprep.subr.mxu0 0.0
    %4862 = vmatpush2.msra.mxu0 0.0
    %4863 = vmatprep.subr.mxu0 0.0
    %4864 = vmatpush2.msra.mxu0 0.0
    %4865 = vmatprep.subr.mxu0 0.0
    %4866 = vmatpush2.msra.mxu0 0.0
    %4867 = vmatprep.subr.mxu0 0.0
    %4868 = vmatpush2.msra.mxu0 0.0
    %4869 = vmatprep.subr.mxu0 0.0
    %4870 = vmatpush2.msra.mxu0 0.0
    %4871 = vmatprep.subr.mxu0 0.0
    %4872 = vmatpush2.msra.mxu0 0.0
    %4873 = vmatprep.subr.mxu0 0.0
    %4874 = vmatpush2.msra.mxu0 0.0
    %4875 = vmatprep.subr.mxu0 0.0
    %4876 = vmatpush2.msra.mxu0 0.0
    %4877 = vmatprep.mubr.f32.mxu0 0.0
    %4878 = vmatmul.mubr.f32.gmra.mxu0 %v4790
    %v4879 = vpop.f32.mrf.mxu0
    %v4880 = vadd.f32 0.0, %v4879
    %v4881 = vpop.f32.mrf.mxu0
    %4882 = vmatprep.mubr.f32.mxu0 0.0
    %4883 = vmatmul.mubr.f32.gmra.mxu0 %v4793
    %v4884 = vpop.f32.mrf.mxu0
    %v4885 = vadd.f32 0.0, %v4884
    %v4886 = vpop.f32.mrf.mxu0
    %4887 = vmatprep.mubr.f32.mxu0 0.0
    %4888 = vmatmul.mubr.f32.gmra.mxu0 %v4796
    %v4889 = vpop.f32.mrf.mxu0
    %v4890 = vadd.f32 0.0, %v4889
    %v4891 = vpop.f32.mrf.mxu0
    %4892 = vmatprep.mubr.f32.mxu0 0.0
    %4893 = vmatmul.mubr.f32.gmra.mxu0 %v4799
    %v4894 = vpop.f32.mrf.mxu0
    %v4895 = vadd.f32 0.0, %v4894
    %v4896 = vpop.f32.mrf.mxu0
    %4897 = vmatprep.mubr.f32.mxu0 0.0
    %4898 = vmatmul.mubr.f32.gmra.mxu0 %v4802
    %v4899 = vpop.f32.mrf.mxu0
    %v4900 = vadd.f32 0.0, %v4899
    %v4901 = vpop.f32.mrf.mxu0
    %4902 = vmatprep.mubr.f32.mxu0 0.0
    %4903 = vmatmul.mubr.f32.gmra.mxu0 %v4805
    %v4904 = vpop.f32.mrf.mxu0
    %v4905 = vadd.f32 0.0, %v4904
    %v4906 = vpop.f32.mrf.mxu0
    %4907 = vmatprep.mubr.f32.mxu0 0.0
    %4908 = vmatmul.mubr.f32.gmra.mxu0 %v4808
    %v4909 = vpop.f32.mrf.mxu0
    %v4910 = vadd.f32 0.0, %v4909
    %v4911 = vpop.f32.mrf.mxu0
    %4912 = vmatprep.mubr.f32.mxu0 0.0
    %4913 = vmatmul.mubr.f32.gmra.mxu0 %v4811
    %v4914 = vpop.f32.mrf.mxu0
    %v4915 = vadd.f32 0.0, %v4914
    %v4916 = vpop.f32.mrf.mxu0
    %4917 = vdwg.mxu0
    %v4919 = vlaneseq
    %v4920 = vshrl.u32 %v4919, 7
    %v4921 = vsub.s32 0, %v4920
    %v4922 = vrot.slane %v4779, %v4921
    %v4924 = vadd.f32 %v4922, %v4880
    %v4925 = vadd.f32 %v4922, %v4885
    %v4926 = vadd.f32 %v4922, %v4890
    %v4927 = vadd.f32 %v4922, %v4895
    %v4928 = vadd.f32 %v4922, %v4900
    %v4929 = vadd.f32 %v4922, %v4905
    %v4930 = vadd.f32 %v4922, %v4910
    %v4931 = vadd.f32 %v4922, %v4915
    %v4932 = vld [vmem:[%s1268] ss:$4 sm:$0xff]
    %v4933 = vld [vmem:[%s1270] ss:$4 sm:$0xff]
    %v4934 = vld [vmem:[%s1272] ss:$4 sm:$0xff]
    %v4935 = vld [vmem:[%s1274] ss:$4 sm:$0xff]
    %v4936 = vld [vmem:[%s1276] ss:$4 sm:$0xff]
    %v4937 = vld [vmem:[%s1278] ss:$4 sm:$0xff]
    %v4938 = vld [vmem:[%s1280] ss:$4 sm:$0xff]
    %v4939 = vld [vmem:[%s1282] ss:$4 sm:$0x7f]
    %v4940 = vld [vmem:[%s1284] sm:$0xff]
    %v4942 = vsel %vm233, %v4932, 0
    %v4945 = vsel %vm233, %v4933, 0
    %v4948 = vsel %vm233, %v4934, 0
    %v4951 = vsel %vm233, %v4935, 0
    %v4954 = vsel %vm233, %v4936, 0
    %v4957 = vsel %vm233, %v4937, 0
    %v4960 = vsel %vm233, %v4938, 0
    %v4963 = vsel %vm233, %v4939, 0
    %4965 = vmatprep.subr.mxu0 0.0
    %4966 = vmatpush1.msra.mxu0 0.0
    %4967 = vmatprep.subr.mxu0 0.0
    %4968 = vmatpush1.msra.mxu0 0.0
    %4969 = vmatprep.subr.mxu0 0.0
    %4970 = vmatpush1.msra.mxu0 0.0
    %4971 = vmatprep.subr.mxu0 0.0
    %4972 = vmatpush1.msra.mxu0 0.0
    %4973 = vmatprep.subr.mxu0 0.0
    %4974 = vmatpush1.msra.mxu0 0.0
    %4975 = vmatprep.subr.mxu0 0.0
    %4976 = vmatpush1.msra.mxu0 0.0
    %4977 = vmatprep.subr.mxu0 0.0
    %4978 = vmatpush1.msra.mxu0 0.0
    %4979 = vmatprep.subr.mxu0 0.0
    %4980 = vmatpush1.msra.mxu0 0.0
    %4981 = vmatprep.subr.mxu0 0.0
    %4982 = vmatpush1.msra.mxu0 0.0
    %4983 = vmatprep.subr.mxu0 0.0
    %4984 = vmatpush1.msra.mxu0 0.0
    %4985 = vmatprep.subr.mxu0 0.0
    %4986 = vmatpush1.msra.mxu0 0.0
    %4987 = vmatprep.subr.mxu0 0.0
    %4988 = vmatpush1.msra.mxu0 0.0
    %4989 = vmatprep.subr.mxu0 0.0
    %4990 = vmatpush1.msra.mxu0 0.0
    %4991 = vmatprep.subr.mxu0 0.0
    %4992 = vmatpush1.msra.mxu0 0.0
    %4993 = vmatprep.subr.mxu0 0.0
    %4994 = vmatpush1.msra.mxu0 0.0
    %4995 = vmatprep.subr.mxu0 0.0
    %4996 = vmatpush1.msra.mxu0 %v4940
    %4997 = vmatprep.subr.mxu0 0.0
    %4998 = vmatpush2.msra.mxu0 0.0
    %4999 = vmatprep.subr.mxu0 0.0
    %5000 = vmatpush2.msra.mxu0 0.0
    %5001 = vmatprep.subr.mxu0 0.0
    %5002 = vmatpush2.msra.mxu0 0.0
    %5003 = vmatprep.subr.mxu0 0.0
    %5004 = vmatpush2.msra.mxu0 0.0
    %5005 = vmatprep.subr.mxu0 0.0
    %5006 = vmatpush2.msra.mxu0 0.0
    %5007 = vmatprep.subr.mxu0 0.0
    %5008 = vmatpush2.msra.mxu0 0.0
    %5009 = vmatprep.subr.mxu0 0.0
    %5010 = vmatpush2.msra.mxu0 0.0
    %5011 = vmatprep.subr.mxu0 0.0
    %5012 = vmatpush2.msra.mxu0 0.0
    %5013 = vmatprep.subr.mxu0 0.0
    %5014 = vmatpush2.msra.mxu0 0.0
    %5015 = vmatprep.subr.mxu0 0.0
    %5016 = vmatpush2.msra.mxu0 0.0
    %5017 = vmatprep.subr.mxu0 0.0
    %5018 = vmatpush2.msra.mxu0 0.0
    %5019 = vmatprep.subr.mxu0 0.0
    %5020 = vmatpush2.msra.mxu0 0.0
    %5021 = vmatprep.subr.mxu0 0.0
    %5022 = vmatpush2.msra.mxu0 0.0
    %5023 = vmatprep.subr.mxu0 0.0
    %5024 = vmatpush2.msra.mxu0 0.0
    %5025 = vmatprep.subr.mxu0 0.0
    %5026 = vmatpush2.msra.mxu0 0.0
    %5027 = vmatprep.subr.mxu0 0.0
    %5028 = vmatpush2.msra.mxu0 0.0
    %5029 = vmatprep.mubr.f32.mxu0 0.0
    %5030 = vmatmul.mubr.f32.gmra.mxu0 %v4942
    %v5031 = vpop.f32.mrf.mxu0
    %v5032 = vadd.f32 0.0, %v5031
    %v5033 = vpop.f32.mrf.mxu0
    %5034 = vmatprep.mubr.f32.mxu0 0.0
    %5035 = vmatmul.mubr.f32.gmra.mxu0 %v4945
    %v5036 = vpop.f32.mrf.mxu0
    %v5037 = vadd.f32 0.0, %v5036
    %v5038 = vpop.f32.mrf.mxu0
    %5039 = vmatprep.mubr.f32.mxu0 0.0
    %5040 = vmatmul.mubr.f32.gmra.mxu0 %v4948
    %v5041 = vpop.f32.mrf.mxu0
    %v5042 = vadd.f32 0.0, %v5041
    %v5043 = vpop.f32.mrf.mxu0
    %5044 = vmatprep.mubr.f32.mxu0 0.0
    %5045 = vmatmul.mubr.f32.gmra.mxu0 %v4951
    %v5046 = vpop.f32.mrf.mxu0
    %v5047 = vadd.f32 0.0, %v5046
    %v5048 = vpop.f32.mrf.mxu0
    %5049 = vmatprep.mubr.f32.mxu0 0.0
    %5050 = vmatmul.mubr.f32.gmra.mxu0 %v4954
    %v5051 = vpop.f32.mrf.mxu0
    %v5052 = vadd.f32 0.0, %v5051
    %v5053 = vpop.f32.mrf.mxu0
    %5054 = vmatprep.mubr.f32.mxu0 0.0
    %5055 = vmatmul.mubr.f32.gmra.mxu0 %v4957
    %v5056 = vpop.f32.mrf.mxu0
    %v5057 = vadd.f32 0.0, %v5056
    %v5058 = vpop.f32.mrf.mxu0
    %5059 = vmatprep.mubr.f32.mxu0 0.0
    %5060 = vmatmul.mubr.f32.gmra.mxu0 %v4960
    %v5061 = vpop.f32.mrf.mxu0
    %v5062 = vadd.f32 0.0, %v5061
    %v5063 = vpop.f32.mrf.mxu0
    %5064 = vmatprep.mubr.f32.mxu0 0.0
    %5065 = vmatmul.mubr.f32.gmra.mxu0 %v4963
    %v5066 = vpop.f32.mrf.mxu0
    %v5067 = vadd.f32 0.0, %v5066
    %v5068 = vpop.f32.mrf.mxu0
    %5069 = vdwg.mxu0
    %v5070 = vadd.f32 %v4924, %v5032
    %v5071 = vadd.f32 %v4925, %v5037
    %v5072 = vadd.f32 %v4926, %v5042
    %v5073 = vadd.f32 %v4927, %v5047
    %v5074 = vadd.f32 %v4928, %v5052
    %v5075 = vadd.f32 %v4929, %v5057
    %v5076 = vadd.f32 %v4930, %v5062
    %v5077 = vadd.f32 %v4931, %v5067
    %v5078 = vld [vmem:[%s1423] ss:$4 sm:$0xff]
    %v5079 = vld [vmem:[%s1425] ss:$4 sm:$0xff]
    %v5080 = vld [vmem:[%s1427] ss:$4 sm:$0xff]
    %v5081 = vld [vmem:[%s1429] ss:$4 sm:$0xff]
    %v5082 = vld [vmem:[%s1431] ss:$4 sm:$0xff]
    %v5083 = vld [vmem:[%s1433] ss:$4 sm:$0xff]
    %v5084 = vld [vmem:[%s1435] ss:$4 sm:$0xff]
    %v5085 = vld [vmem:[%s1437] ss:$4 sm:$0x7f]
    %v5086 = vld [vmem:[%s1439] sm:$0xff]
    %v5088 = vsel %vm233, %v5078, 0
    %v5091 = vsel %vm233, %v5079, 0
    %v5094 = vsel %vm233, %v5080, 0
    %v5097 = vsel %vm233, %v5081, 0
    %v5100 = vsel %vm233, %v5082, 0
    %v5103 = vsel %vm233, %v5083, 0
    %v5106 = vsel %vm233, %v5084, 0
    %v5109 = vsel %vm233, %v5085, 0
    %5111 = vmatprep.subr.mxu0 0.0
    %5112 = vmatpush1.msra.mxu0 0.0
    %5113 = vmatprep.subr.mxu0 0.0
    %5114 = vmatpush1.msra.mxu0 0.0
    %5115 = vmatprep.subr.mxu0 0.0
    %5116 = vmatpush1.msra.mxu0 0.0
    %5117 = vmatprep.subr.mxu0 0.0
    %5118 = vmatpush1.msra.mxu0 0.0
    %5119 = vmatprep.subr.mxu0 0.0
    %5120 = vmatpush1.msra.mxu0 0.0
    %5121 = vmatprep.subr.mxu0 0.0
    %5122 = vmatpush1.msra.mxu0 0.0
    %5123 = vmatprep.subr.mxu0 0.0
    %5124 = vmatpush1.msra.mxu0 0.0
    %5125 = vmatprep.subr.mxu0 0.0
    %5126 = vmatpush1.msra.mxu0 0.0
    %5127 = vmatprep.subr.mxu0 0.0
    %5128 = vmatpush1.msra.mxu0 0.0
    %5129 = vmatprep.subr.mxu0 0.0
    %5130 = vmatpush1.msra.mxu0 0.0
    %5131 = vmatprep.subr.mxu0 0.0
    %5132 = vmatpush1.msra.mxu0 0.0
    %5133 = vmatprep.subr.mxu0 0.0
    %5134 = vmatpush1.msra.mxu0 0.0
    %5135 = vmatprep.subr.mxu0 0.0
    %5136 = vmatpush1.msra.mxu0 0.0
    %5137 = vmatprep.subr.mxu0 0.0
    %5138 = vmatpush1.msra.mxu0 0.0
    %5139 = vmatprep.subr.mxu0 0.0
    %5140 = vmatpush1.msra.mxu0 0.0
    %5141 = vmatprep.subr.mxu0 0.0
    %5142 = vmatpush1.msra.mxu0 %v5086
    %5143 = vmatprep.subr.mxu0 0.0
    %5144 = vmatpush2.msra.mxu0 0.0
    %5145 = vmatprep.subr.mxu0 0.0
    %5146 = vmatpush2.msra.mxu0 0.0
    %5147 = vmatprep.subr.mxu0 0.0
    %5148 = vmatpush2.msra.mxu0 0.0
    %5149 = vmatprep.subr.mxu0 0.0
    %5150 = vmatpush2.msra.mxu0 0.0
    %5151 = vmatprep.subr.mxu0 0.0
    %5152 = vmatpush2.msra.mxu0 0.0
    %5153 = vmatprep.subr.mxu0 0.0
    %5154 = vmatpush2.msra.mxu0 0.0
    %5155 = vmatprep.subr.mxu0 0.0
    %5156 = vmatpush2.msra.mxu0 0.0
    %5157 = vmatprep.subr.mxu0 0.0
    %5158 = vmatpush2.msra.mxu0 0.0
    %5159 = vmatprep.subr.mxu0 0.0
    %5160 = vmatpush2.msra.mxu0 0.0
    %5161 = vmatprep.subr.mxu0 0.0
    %5162 = vmatpush2.msra.mxu0 0.0
    %5163 = vmatprep.subr.mxu0 0.0
    %5164 = vmatpush2.msra.mxu0 0.0
    %5165 = vmatprep.subr.mxu0 0.0
    %5166 = vmatpush2.msra.mxu0 0.0
    %5167 = vmatprep.subr.mxu0 0.0
    %5168 = vmatpush2.msra.mxu0 0.0
    %5169 = vmatprep.subr.mxu0 0.0
    %5170 = vmatpush2.msra.mxu0 0.0
    %5171 = vmatprep.subr.mxu0 0.0
    %5172 = vmatpush2.msra.mxu0 0.0
    %5173 = vmatprep.subr.mxu0 0.0
    %5174 = vmatpush2.msra.mxu0 0.0
    %5175 = vmatprep.mubr.f32.mxu0 0.0
    %5176 = vmatmul.mubr.f32.gmra.mxu0 %v5088
    %v5177 = vpop.f32.mrf.mxu0
    %v5178 = vadd.f32 0.0, %v5177
    %v5179 = vpop.f32.mrf.mxu0
    %5180 = vmatprep.mubr.f32.mxu0 0.0
    %5181 = vmatmul.mubr.f32.gmra.mxu0 %v5091
    %v5182 = vpop.f32.mrf.mxu0
    %v5183 = vadd.f32 0.0, %v5182
    %v5184 = vpop.f32.mrf.mxu0
    %5185 = vmatprep.mubr.f32.mxu0 0.0
    %5186 = vmatmul.mubr.f32.gmra.mxu0 %v5094
    %v5187 = vpop.f32.mrf.mxu0
    %v5188 = vadd.f32 0.0, %v5187
    %v5189 = vpop.f32.mrf.mxu0
    %5190 = vmatprep.mubr.f32.mxu0 0.0
    %5191 = vmatmul.mubr.f32.gmra.mxu0 %v5097
    %v5192 = vpop.f32.mrf.mxu0
    %v5193 = vadd.f32 0.0, %v5192
    %v5194 = vpop.f32.mrf.mxu0
    %5195 = vmatprep.mubr.f32.mxu0 0.0
    %5196 = vmatmul.mubr.f32.gmra.mxu0 %v5100
    %v5197 = vpop.f32.mrf.mxu0
    %v5198 = vadd.f32 0.0, %v5197
    %v5199 = vpop.f32.mrf.mxu0
    %5200 = vmatprep.mubr.f32.mxu0 0.0
    %5201 = vmatmul.mubr.f32.gmra.mxu0 %v5103
    %v5202 = vpop.f32.mrf.mxu0
    %v5203 = vadd.f32 0.0, %v5202
    %v5204 = vpop.f32.mrf.mxu0
    %5205 = vmatprep.mubr.f32.mxu0 0.0
    %5206 = vmatmul.mubr.f32.gmra.mxu0 %v5106
    %v5207 = vpop.f32.mrf.mxu0
    %v5208 = vadd.f32 0.0, %v5207
    %v5209 = vpop.f32.mrf.mxu0
    %5210 = vmatprep.mubr.f32.mxu0 0.0
    %5211 = vmatmul.mubr.f32.gmra.mxu0 %v5109
    %v5212 = vpop.f32.mrf.mxu0
    %v5213 = vadd.f32 0.0, %v5212
    %v5214 = vpop.f32.mrf.mxu0
    %5215 = vdwg.mxu0
    %v5216 = vadd.f32 %v5070, %v5178
    %v5217 = vadd.f32 %v5071, %v5183
    %v5218 = vadd.f32 %v5072, %v5188
    %v5219 = vadd.f32 %v5073, %v5193
    %v5220 = vadd.f32 %v5074, %v5198
    %v5221 = vadd.f32 %v5075, %v5203
    %v5222 = vadd.f32 %v5076, %v5208
    %v5223 = vadd.f32 %v5077, %v5213
    %v5224 = vld [vmem:[%s1578] ss:$4 sm:$0xff]
    %v5225 = vld [vmem:[%s1580] ss:$4 sm:$0xff]
    %v5226 = vld [vmem:[%s1582] ss:$4 sm:$0xff]
    %v5227 = vld [vmem:[%s1584] ss:$4 sm:$0xff]
    %v5228 = vld [vmem:[%s1586] ss:$4 sm:$0xff]
    %v5229 = vld [vmem:[%s1588] ss:$4 sm:$0xff]
    %v5230 = vld [vmem:[%s1590] ss:$4 sm:$0xff]
    %v5231 = vld [vmem:[%s1592] ss:$4 sm:$0x7f]
    %v5232 = vld [vmem:[%s1594] sm:$0xff]
    %v5234 = vsel %vm233, %v5224, 0
    %v5237 = vsel %vm233, %v5225, 0
    %v5240 = vsel %vm233, %v5226, 0
    %v5243 = vsel %vm233, %v5227, 0
    %v5246 = vsel %vm233, %v5228, 0
    %v5249 = vsel %vm233, %v5229, 0
    %v5252 = vsel %vm233, %v5230, 0
    %v5255 = vsel %vm233, %v5231, 0
    %5257 = vmatprep.subr.mxu0 0.0
    %5258 = vmatpush1.msra.mxu0 0.0
    %5259 = vmatprep.subr.mxu0 0.0
    %5260 = vmatpush1.msra.mxu0 0.0
    %5261 = vmatprep.subr.mxu0 0.0
    %5262 = vmatpush1.msra.mxu0 0.0
    %5263 = vmatprep.subr.mxu0 0.0
    %5264 = vmatpush1.msra.mxu0 0.0
    %5265 = vmatprep.subr.mxu0 0.0
    %5266 = vmatpush1.msra.mxu0 0.0
    %5267 = vmatprep.subr.mxu0 0.0
    %5268 = vmatpush1.msra.mxu0 0.0
    %5269 = vmatprep.subr.mxu0 0.0
    %5270 = vmatpush1.msra.mxu0 0.0
    %5271 = vmatprep.subr.mxu0 0.0
    %5272 = vmatpush1.msra.mxu0 0.0
    %5273 = vmatprep.subr.mxu0 0.0
    %5274 = vmatpush1.msra.mxu0 0.0
    %5275 = vmatprep.subr.mxu0 0.0
    %5276 = vmatpush1.msra.mxu0 0.0
    %5277 = vmatprep.subr.mxu0 0.0
    %5278 = vmatpush1.msra.mxu0 0.0
    %5279 = vmatprep.subr.mxu0 0.0
    %5280 = vmatpush1.msra.mxu0 0.0
    %5281 = vmatprep.subr.mxu0 0.0
    %5282 = vmatpush1.msra.mxu0 0.0
    %5283 = vmatprep.subr.mxu0 0.0
    %5284 = vmatpush1.msra.mxu0 0.0
    %5285 = vmatprep.subr.mxu0 0.0
    %5286 = vmatpush1.msra.mxu0 0.0
    %5287 = vmatprep.subr.mxu0 0.0
    %5288 = vmatpush1.msra.mxu0 %v5232
    %5289 = vmatprep.subr.mxu0 0.0
    %5290 = vmatpush2.msra.mxu0 0.0
    %5291 = vmatprep.subr.mxu0 0.0
    %5292 = vmatpush2.msra.mxu0 0.0
    %5293 = vmatprep.subr.mxu0 0.0
    %5294 = vmatpush2.msra.mxu0 0.0
    %5295 = vmatprep.subr.mxu0 0.0
    %5296 = vmatpush2.msra.mxu0 0.0
    %5297 = vmatprep.subr.mxu0 0.0
    %5298 = vmatpush2.msra.mxu0 0.0
    %5299 = vmatprep.subr.mxu0 0.0
    %5300 = vmatpush2.msra.mxu0 0.0
    %5301 = vmatprep.subr.mxu0 0.0
    %5302 = vmatpush2.msra.mxu0 0.0
    %5303 = vmatprep.subr.mxu0 0.0
    %5304 = vmatpush2.msra.mxu0 0.0
    %5305 = vmatprep.subr.mxu0 0.0
    %5306 = vmatpush2.msra.mxu0 0.0
    %5307 = vmatprep.subr.mxu0 0.0
    %5308 = vmatpush2.msra.mxu0 0.0
    %5309 = vmatprep.subr.mxu0 0.0
    %5310 = vmatpush2.msra.mxu0 0.0
    %5311 = vmatprep.subr.mxu0 0.0
    %5312 = vmatpush2.msra.mxu0 0.0
    %5313 = vmatprep.subr.mxu0 0.0
    %5314 = vmatpush2.msra.mxu0 0.0
    %5315 = vmatprep.subr.mxu0 0.0
    %5316 = vmatpush2.msra.mxu0 0.0
    %5317 = vmatprep.subr.mxu0 0.0
    %5318 = vmatpush2.msra.mxu0 0.0
    %5319 = vmatprep.subr.mxu0 0.0
    %5320 = vmatpush2.msra.mxu0 0.0
    %5321 = vmatprep.mubr.f32.mxu0 0.0
    %5322 = vmatmul.mubr.f32.gmra.mxu0 %v5234
    %v5323 = vpop.f32.mrf.mxu0
    %v5324 = vadd.f32 0.0, %v5323
    %v5325 = vpop.f32.mrf.mxu0
    %5326 = vmatprep.mubr.f32.mxu0 0.0
    %5327 = vmatmul.mubr.f32.gmra.mxu0 %v5237
    %v5328 = vpop.f32.mrf.mxu0
    %v5329 = vadd.f32 0.0, %v5328
    %v5330 = vpop.f32.mrf.mxu0
    %5331 = vmatprep.mubr.f32.mxu0 0.0
    %5332 = vmatmul.mubr.f32.gmra.mxu0 %v5240
    %v5333 = vpop.f32.mrf.mxu0
    %v5334 = vadd.f32 0.0, %v5333
    %v5335 = vpop.f32.mrf.mxu0
    %5336 = vmatprep.mubr.f32.mxu0 0.0
    %5337 = vmatmul.mubr.f32.gmra.mxu0 %v5243
    %v5338 = vpop.f32.mrf.mxu0
    %v5339 = vadd.f32 0.0, %v5338
    %v5340 = vpop.f32.mrf.mxu0
    %5341 = vmatprep.mubr.f32.mxu0 0.0
    %5342 = vmatmul.mubr.f32.gmra.mxu0 %v5246
    %v5343 = vpop.f32.mrf.mxu0
    %v5344 = vadd.f32 0.0, %v5343
    %v5345 = vpop.f32.mrf.mxu0
    %5346 = vmatprep.mubr.f32.mxu0 0.0
    %5347 = vmatmul.mubr.f32.gmra.mxu0 %v5249
    %v5348 = vpop.f32.mrf.mxu0
    %v5349 = vadd.f32 0.0, %v5348
    %v5350 = vpop.f32.mrf.mxu0
    %5351 = vmatprep.mubr.f32.mxu0 0.0
    %5352 = vmatmul.mubr.f32.gmra.mxu0 %v5252
    %v5353 = vpop.f32.mrf.mxu0
    %v5354 = vadd.f32 0.0, %v5353
    %v5355 = vpop.f32.mrf.mxu0
    %5356 = vmatprep.mubr.f32.mxu0 0.0
    %5357 = vmatmul.mubr.f32.gmra.mxu0 %v5255
    %v5358 = vpop.f32.mrf.mxu0
    %v5359 = vadd.f32 0.0, %v5358
    %v5360 = vpop.f32.mrf.mxu0
    %5361 = vdwg.mxu0
    %v5362 = vadd.f32 %v5216, %v5324
    %v5363 = vadd.f32 %v5217, %v5329
    %v5364 = vadd.f32 %v5218, %v5334
    %v5365 = vadd.f32 %v5219, %v5339
    %v5366 = vadd.f32 %v5220, %v5344
    %v5367 = vadd.f32 %v5221, %v5349
    %v5368 = vadd.f32 %v5222, %v5354
    %v5369 = vadd.f32 %v5223, %v5359
    %v5370 = vld [vmem:[%s1733] ss:$4 sm:$0xff]
    %v5371 = vld [vmem:[%s1735] ss:$4 sm:$0xff]
    %v5372 = vld [vmem:[%s1737] ss:$4 sm:$0xff]
    %v5373 = vld [vmem:[%s1739] ss:$4 sm:$0xff]
    %v5374 = vld [vmem:[%s1741] ss:$4 sm:$0xff]
    %v5375 = vld [vmem:[%s1743] ss:$4 sm:$0xff]
    %v5376 = vld [vmem:[%s1745] ss:$4 sm:$0xff]
    %v5377 = vld [vmem:[%s1747] ss:$4 sm:$0x7f]
    %v5378 = vld [vmem:[%s1749] sm:$0xff]
    %v5380 = vsel %vm233, %v5370, 0
    %v5383 = vsel %vm233, %v5371, 0
    %v5386 = vsel %vm233, %v5372, 0
    %v5389 = vsel %vm233, %v5373, 0
    %v5392 = vsel %vm233, %v5374, 0
    %v5395 = vsel %vm233, %v5375, 0
    %v5398 = vsel %vm233, %v5376, 0
    %v5401 = vsel %vm233, %v5377, 0
    %5403 = vmatprep.subr.mxu0 0.0
    %5404 = vmatpush1.msra.mxu0 0.0
    %5405 = vmatprep.subr.mxu0 0.0
    %5406 = vmatpush1.msra.mxu0 0.0
    %5407 = vmatprep.subr.mxu0 0.0
    %5408 = vmatpush1.msra.mxu0 0.0
    %5409 = vmatprep.subr.mxu0 0.0
    %5410 = vmatpush1.msra.mxu0 0.0
    %5411 = vmatprep.subr.mxu0 0.0
    %5412 = vmatpush1.msra.mxu0 0.0
    %5413 = vmatprep.subr.mxu0 0.0
    %5414 = vmatpush1.msra.mxu0 0.0
    %5415 = vmatprep.subr.mxu0 0.0
    %5416 = vmatpush1.msra.mxu0 0.0
    %5417 = vmatprep.subr.mxu0 0.0
    %5418 = vmatpush1.msra.mxu0 0.0
    %5419 = vmatprep.subr.mxu0 0.0
    %5420 = vmatpush1.msra.mxu0 0.0
    %5421 = vmatprep.subr.mxu0 0.0
    %5422 = vmatpush1.msra.mxu0 0.0
    %5423 = vmatprep.subr.mxu0 0.0
    %5424 = vmatpush1.msra.mxu0 0.0
    %5425 = vmatprep.subr.mxu0 0.0
    %5426 = vmatpush1.msra.mxu0 0.0
    %5427 = vmatprep.subr.mxu0 0.0
    %5428 = vmatpush1.msra.mxu0 0.0
    %5429 = vmatprep.subr.mxu0 0.0
    %5430 = vmatpush1.msra.mxu0 0.0
    %5431 = vmatprep.subr.mxu0 0.0
    %5432 = vmatpush1.msra.mxu0 0.0
    %5433 = vmatprep.subr.mxu0 0.0
    %5434 = vmatpush1.msra.mxu0 %v5378
    %5435 = vmatprep.subr.mxu0 0.0
    %5436 = vmatpush2.msra.mxu0 0.0
    %5437 = vmatprep.subr.mxu0 0.0
    %5438 = vmatpush2.msra.mxu0 0.0
    %5439 = vmatprep.subr.mxu0 0.0
    %5440 = vmatpush2.msra.mxu0 0.0
    %5441 = vmatprep.subr.mxu0 0.0
    %5442 = vmatpush2.msra.mxu0 0.0
    %5443 = vmatprep.subr.mxu0 0.0
    %5444 = vmatpush2.msra.mxu0 0.0
    %5445 = vmatprep.subr.mxu0 0.0
    %5446 = vmatpush2.msra.mxu0 0.0
    %5447 = vmatprep.subr.mxu0 0.0
    %5448 = vmatpush2.msra.mxu0 0.0
    %5449 = vmatprep.subr.mxu0 0.0
    %5450 = vmatpush2.msra.mxu0 0.0
    %5451 = vmatprep.subr.mxu0 0.0
    %5452 = vmatpush2.msra.mxu0 0.0
    %5453 = vmatprep.subr.mxu0 0.0
    %5454 = vmatpush2.msra.mxu0 0.0
    %5455 = vmatprep.subr.mxu0 0.0
    %5456 = vmatpush2.msra.mxu0 0.0
    %5457 = vmatprep.subr.mxu0 0.0
    %5458 = vmatpush2.msra.mxu0 0.0
    %5459 = vmatprep.subr.mxu0 0.0
    %5460 = vmatpush2.msra.mxu0 0.0
    %5461 = vmatprep.subr.mxu0 0.0
    %5462 = vmatpush2.msra.mxu0 0.0
    %5463 = vmatprep.subr.mxu0 0.0
    %5464 = vmatpush2.msra.mxu0 0.0
    %5465 = vmatprep.subr.mxu0 0.0
    %5466 = vmatpush2.msra.mxu0 0.0
    %5467 = vmatprep.mubr.f32.mxu0 0.0
    %5468 = vmatmul.mubr.f32.gmra.mxu0 %v5380
    %v5469 = vpop.f32.mrf.mxu0
    %v5470 = vadd.f32 0.0, %v5469
    %v5471 = vpop.f32.mrf.mxu0
    %5472 = vmatprep.mubr.f32.mxu0 0.0
    %5473 = vmatmul.mubr.f32.gmra.mxu0 %v5383
    %v5474 = vpop.f32.mrf.mxu0
    %v5475 = vadd.f32 0.0, %v5474
    %v5476 = vpop.f32.mrf.mxu0
    %5477 = vmatprep.mubr.f32.mxu0 0.0
    %5478 = vmatmul.mubr.f32.gmra.mxu0 %v5386
    %v5479 = vpop.f32.mrf.mxu0
    %v5480 = vadd.f32 0.0, %v5479
    %v5481 = vpop.f32.mrf.mxu0
    %5482 = vmatprep.mubr.f32.mxu0 0.0
    %5483 = vmatmul.mubr.f32.gmra.mxu0 %v5389
    %v5484 = vpop.f32.mrf.mxu0
    %v5485 = vadd.f32 0.0, %v5484
    %v5486 = vpop.f32.mrf.mxu0
    %5487 = vmatprep.mubr.f32.mxu0 0.0
    %5488 = vmatmul.mubr.f32.gmra.mxu0 %v5392
    %v5489 = vpop.f32.mrf.mxu0
    %v5490 = vadd.f32 0.0, %v5489
    %v5491 = vpop.f32.mrf.mxu0
    %5492 = vmatprep.mubr.f32.mxu0 0.0
    %5493 = vmatmul.mubr.f32.gmra.mxu0 %v5395
    %v5494 = vpop.f32.mrf.mxu0
    %v5495 = vadd.f32 0.0, %v5494
    %v5496 = vpop.f32.mrf.mxu0
    %5497 = vmatprep.mubr.f32.mxu0 0.0
    %5498 = vmatmul.mubr.f32.gmra.mxu0 %v5398
    %v5499 = vpop.f32.mrf.mxu0
    %v5500 = vadd.f32 0.0, %v5499
    %v5501 = vpop.f32.mrf.mxu0
    %5502 = vmatprep.mubr.f32.mxu0 0.0
    %5503 = vmatmul.mubr.f32.gmra.mxu0 %v5401
    %v5504 = vpop.f32.mrf.mxu0
    %v5505 = vadd.f32 0.0, %v5504
    %v5506 = vpop.f32.mrf.mxu0
    %5507 = vdwg.mxu0
    %v5508 = vadd.f32 %v5362, %v5470
    %v5509 = vadd.f32 %v5363, %v5475
    %v5510 = vadd.f32 %v5364, %v5480
    %v5511 = vadd.f32 %v5365, %v5485
    %v5512 = vadd.f32 %v5366, %v5490
    %v5513 = vadd.f32 %v5367, %v5495
    %v5514 = vadd.f32 %v5368, %v5500
    %v5515 = vadd.f32 %v5369, %v5505
    %v5516 = vld [vmem:[%s1888] ss:$4 sm:$0xff]
    %v5517 = vld [vmem:[%s1890] ss:$4 sm:$0xff]
    %v5518 = vld [vmem:[%s1892] ss:$4 sm:$0xff]
    %v5519 = vld [vmem:[%s1894] ss:$4 sm:$0xff]
    %v5520 = vld [vmem:[%s1896] ss:$4 sm:$0xff]
    %v5521 = vld [vmem:[%s1898] ss:$4 sm:$0xff]
    %v5522 = vld [vmem:[%s1900] ss:$4 sm:$0xff]
    %v5523 = vld [vmem:[%s1902] ss:$4 sm:$0x7f]
    %v5524 = vld [vmem:[%s1904] sm:$0xff]
    %v5526 = vsel %vm233, %v5516, 0
    %v5529 = vsel %vm233, %v5517, 0
    %v5532 = vsel %vm233, %v5518, 0
    %v5535 = vsel %vm233, %v5519, 0
    %v5538 = vsel %vm233, %v5520, 0
    %v5541 = vsel %vm233, %v5521, 0
    %v5544 = vsel %vm233, %v5522, 0
    %v5547 = vsel %vm233, %v5523, 0
    %5549 = vmatprep.subr.mxu0 0.0
    %5550 = vmatpush1.msra.mxu0 0.0
    %5551 = vmatprep.subr.mxu0 0.0
    %5552 = vmatpush1.msra.mxu0 0.0
    %5553 = vmatprep.subr.mxu0 0.0
    %5554 = vmatpush1.msra.mxu0 0.0
    %5555 = vmatprep.subr.mxu0 0.0
    %5556 = vmatpush1.msra.mxu0 0.0
    %5557 = vmatprep.subr.mxu0 0.0
    %5558 = vmatpush1.msra.mxu0 0.0
    %5559 = vmatprep.subr.mxu0 0.0
    %5560 = vmatpush1.msra.mxu0 0.0
    %5561 = vmatprep.subr.mxu0 0.0
    %5562 = vmatpush1.msra.mxu0 0.0
    %5563 = vmatprep.subr.mxu0 0.0
    %5564 = vmatpush1.msra.mxu0 0.0
    %5565 = vmatprep.subr.mxu0 0.0
    %5566 = vmatpush1.msra.mxu0 0.0
    %5567 = vmatprep.subr.mxu0 0.0
    %5568 = vmatpush1.msra.mxu0 0.0
    %5569 = vmatprep.subr.mxu0 0.0
    %5570 = vmatpush1.msra.mxu0 0.0
    %5571 = vmatprep.subr.mxu0 0.0
    %5572 = vmatpush1.msra.mxu0 0.0
    %5573 = vmatprep.subr.mxu0 0.0
    %5574 = vmatpush1.msra.mxu0 0.0
    %5575 = vmatprep.subr.mxu0 0.0
    %5576 = vmatpush1.msra.mxu0 0.0
    %5577 = vmatprep.subr.mxu0 0.0
    %5578 = vmatpush1.msra.mxu0 0.0
    %5579 = vmatprep.subr.mxu0 0.0
    %5580 = vmatpush1.msra.mxu0 %v5524
    %5581 = vmatprep.subr.mxu0 0.0
    %5582 = vmatpush2.msra.mxu0 0.0
    %5583 = vmatprep.subr.mxu0 0.0
    %5584 = vmatpush2.msra.mxu0 0.0
    %5585 = vmatprep.subr.mxu0 0.0
    %5586 = vmatpush2.msra.mxu0 0.0
    %5587 = vmatprep.subr.mxu0 0.0
    %5588 = vmatpush2.msra.mxu0 0.0
    %5589 = vmatprep.subr.mxu0 0.0
    %5590 = vmatpush2.msra.mxu0 0.0
    %5591 = vmatprep.subr.mxu0 0.0
    %5592 = vmatpush2.msra.mxu0 0.0
    %5593 = vmatprep.subr.mxu0 0.0
    %5594 = vmatpush2.msra.mxu0 0.0
    %5595 = vmatprep.subr.mxu0 0.0
    %5596 = vmatpush2.msra.mxu0 0.0
    %5597 = vmatprep.subr.mxu0 0.0
    %5598 = vmatpush2.msra.mxu0 0.0
    %5599 = vmatprep.subr.mxu0 0.0
    %5600 = vmatpush2.msra.mxu0 0.0
    %5601 = vmatprep.subr.mxu0 0.0
    %5602 = vmatpush2.msra.mxu0 0.0
    %5603 = vmatprep.subr.mxu0 0.0
    %5604 = vmatpush2.msra.mxu0 0.0
    %5605 = vmatprep.subr.mxu0 0.0
    %5606 = vmatpush2.msra.mxu0 0.0
    %5607 = vmatprep.subr.mxu0 0.0
    %5608 = vmatpush2.msra.mxu0 0.0
    %5609 = vmatprep.subr.mxu0 0.0
    %5610 = vmatpush2.msra.mxu0 0.0
    %5611 = vmatprep.subr.mxu0 0.0
    %5612 = vmatpush2.msra.mxu0 0.0
    %5613 = vmatprep.mubr.f32.mxu0 0.0
    %5614 = vmatmul.mubr.f32.gmra.mxu0 %v5526
    %v5615 = vpop.f32.mrf.mxu0
    %v5616 = vadd.f32 0.0, %v5615
    %v5617 = vpop.f32.mrf.mxu0
    %5618 = vmatprep.mubr.f32.mxu0 0.0
    %5619 = vmatmul.mubr.f32.gmra.mxu0 %v5529
    %v5620 = vpop.f32.mrf.mxu0
    %v5621 = vadd.f32 0.0, %v5620
    %v5622 = vpop.f32.mrf.mxu0
    %5623 = vmatprep.mubr.f32.mxu0 0.0
    %5624 = vmatmul.mubr.f32.gmra.mxu0 %v5532
    %v5625 = vpop.f32.mrf.mxu0
    %v5626 = vadd.f32 0.0, %v5625
    %v5627 = vpop.f32.mrf.mxu0
    %5628 = vmatprep.mubr.f32.mxu0 0.0
    %5629 = vmatmul.mubr.f32.gmra.mxu0 %v5535
    %v5630 = vpop.f32.mrf.mxu0
    %v5631 = vadd.f32 0.0, %v5630
    %v5632 = vpop.f32.mrf.mxu0
    %5633 = vmatprep.mubr.f32.mxu0 0.0
    %5634 = vmatmul.mubr.f32.gmra.mxu0 %v5538
    %v5635 = vpop.f32.mrf.mxu0
    %v5636 = vadd.f32 0.0, %v5635
    %v5637 = vpop.f32.mrf.mxu0
    %5638 = vmatprep.mubr.f32.mxu0 0.0
    %5639 = vmatmul.mubr.f32.gmra.mxu0 %v5541
    %v5640 = vpop.f32.mrf.mxu0
    %v5641 = vadd.f32 0.0, %v5640
    %v5642 = vpop.f32.mrf.mxu0
    %5643 = vmatprep.mubr.f32.mxu0 0.0
    %5644 = vmatmul.mubr.f32.gmra.mxu0 %v5544
    %v5645 = vpop.f32.mrf.mxu0
    %v5646 = vadd.f32 0.0, %v5645
    %v5647 = vpop.f32.mrf.mxu0
    %5648 = vmatprep.mubr.f32.mxu0 0.0
    %5649 = vmatmul.mubr.f32.gmra.mxu0 %v5547
    %v5650 = vpop.f32.mrf.mxu0
    %v5651 = vadd.f32 0.0, %v5650
    %v5652 = vpop.f32.mrf.mxu0
    %5653 = vdwg.mxu0
    %v5654 = vadd.f32 %v5508, %v5616
    %v5655 = vadd.f32 %v5509, %v5621
    %v5656 = vadd.f32 %v5510, %v5626
    %v5657 = vadd.f32 %v5511, %v5631
    %v5658 = vadd.f32 %v5512, %v5636
    %v5659 = vadd.f32 %v5513, %v5641
    %v5660 = vadd.f32 %v5514, %v5646
    %v5661 = vadd.f32 %v5515, %v5651
    %v5662 = vld [vmem:[%s2043] ss:$4 sm:$0xff]
    %v5663 = vld [vmem:[%s2045] ss:$4 sm:$0xff]
    %v5664 = vld [vmem:[%s2047] ss:$4 sm:$0xff]
    %v5665 = vld [vmem:[%s2049] ss:$4 sm:$0xff]
    %v5666 = vld [vmem:[%s2051] ss:$4 sm:$0xff]
    %v5667 = vld [vmem:[%s2053] ss:$4 sm:$0xff]
    %v5668 = vld [vmem:[%s2055] ss:$4 sm:$0xff]
    %v5669 = vld [vmem:[%s2057] ss:$4 sm:$0x7f]
    %v5670 = vld [vmem:[%s2059] sm:$0xff]
    %v5672 = vsel %vm233, %v5662, 0
    %v5675 = vsel %vm233, %v5663, 0
    %v5678 = vsel %vm233, %v5664, 0
    %v5681 = vsel %vm233, %v5665, 0
    %v5684 = vsel %vm233, %v5666, 0
    %v5687 = vsel %vm233, %v5667, 0
    %v5690 = vsel %vm233, %v5668, 0
    %v5693 = vsel %vm233, %v5669, 0
    %5695 = vmatprep.subr.mxu0 0.0
    %5696 = vmatpush1.msra.mxu0 0.0
    %5697 = vmatprep.subr.mxu0 0.0
    %5698 = vmatpush1.msra.mxu0 0.0
    %5699 = vmatprep.subr.mxu0 0.0
    %5700 = vmatpush1.msra.mxu0 0.0
    %5701 = vmatprep.subr.mxu0 0.0
    %5702 = vmatpush1.msra.mxu0 0.0
    %5703 = vmatprep.subr.mxu0 0.0
    %5704 = vmatpush1.msra.mxu0 0.0
    %5705 = vmatprep.subr.mxu0 0.0
    %5706 = vmatpush1.msra.mxu0 0.0
    %5707 = vmatprep.subr.mxu0 0.0
    %5708 = vmatpush1.msra.mxu0 0.0
    %5709 = vmatprep.subr.mxu0 0.0
    %5710 = vmatpush1.msra.mxu0 0.0
    %5711 = vmatprep.subr.mxu0 0.0
    %5712 = vmatpush1.msra.mxu0 0.0
    %5713 = vmatprep.subr.mxu0 0.0
    %5714 = vmatpush1.msra.mxu0 0.0
    %5715 = vmatprep.subr.mxu0 0.0
    %5716 = vmatpush1.msra.mxu0 0.0
    %5717 = vmatprep.subr.mxu0 0.0
    %5718 = vmatpush1.msra.mxu0 0.0
    %5719 = vmatprep.subr.mxu0 0.0
    %5720 = vmatpush1.msra.mxu0 0.0
    %5721 = vmatprep.subr.mxu0 0.0
    %5722 = vmatpush1.msra.mxu0 0.0
    %5723 = vmatprep.subr.mxu0 0.0
    %5724 = vmatpush1.msra.mxu0 0.0
    %5725 = vmatprep.subr.mxu0 0.0
    %5726 = vmatpush1.msra.mxu0 %v5670
    %5727 = vmatprep.subr.mxu0 0.0
    %5728 = vmatpush2.msra.mxu0 0.0
    %5729 = vmatprep.subr.mxu0 0.0
    %5730 = vmatpush2.msra.mxu0 0.0
    %5731 = vmatprep.subr.mxu0 0.0
    %5732 = vmatpush2.msra.mxu0 0.0
    %5733 = vmatprep.subr.mxu0 0.0
    %5734 = vmatpush2.msra.mxu0 0.0
    %5735 = vmatprep.subr.mxu0 0.0
    %5736 = vmatpush2.msra.mxu0 0.0
    %5737 = vmatprep.subr.mxu0 0.0
    %5738 = vmatpush2.msra.mxu0 0.0
    %5739 = vmatprep.subr.mxu0 0.0
    %5740 = vmatpush2.msra.mxu0 0.0
    %5741 = vmatprep.subr.mxu0 0.0
    %5742 = vmatpush2.msra.mxu0 0.0
    %5743 = vmatprep.subr.mxu0 0.0
    %5744 = vmatpush2.msra.mxu0 0.0
    %5745 = vmatprep.subr.mxu0 0.0
    %5746 = vmatpush2.msra.mxu0 0.0
    %5747 = vmatprep.subr.mxu0 0.0
    %5748 = vmatpush2.msra.mxu0 0.0
    %5749 = vmatprep.subr.mxu0 0.0
    %5750 = vmatpush2.msra.mxu0 0.0
    %5751 = vmatprep.subr.mxu0 0.0
    %5752 = vmatpush2.msra.mxu0 0.0
    %5753 = vmatprep.subr.mxu0 0.0
    %5754 = vmatpush2.msra.mxu0 0.0
    %5755 = vmatprep.subr.mxu0 0.0
    %5756 = vmatpush2.msra.mxu0 0.0
    %5757 = vmatprep.subr.mxu0 0.0
    %5758 = vmatpush2.msra.mxu0 0.0
    %5759 = vmatprep.mubr.f32.mxu0 0.0
    %5760 = vmatmul.mubr.f32.gmra.mxu0 %v5672
    %v5761 = vpop.f32.mrf.mxu0
    %v5762 = vadd.f32 0.0, %v5761
    %v5763 = vpop.f32.mrf.mxu0
    %5764 = vmatprep.mubr.f32.mxu0 0.0
    %5765 = vmatmul.mubr.f32.gmra.mxu0 %v5675
    %v5766 = vpop.f32.mrf.mxu0
    %v5767 = vadd.f32 0.0, %v5766
    %v5768 = vpop.f32.mrf.mxu0
    %5769 = vmatprep.mubr.f32.mxu0 0.0
    %5770 = vmatmul.mubr.f32.gmra.mxu0 %v5678
    %v5771 = vpop.f32.mrf.mxu0
    %v5772 = vadd.f32 0.0, %v5771
    %v5773 = vpop.f32.mrf.mxu0
    %5774 = vmatprep.mubr.f32.mxu0 0.0
    %5775 = vmatmul.mubr.f32.gmra.mxu0 %v5681
    %v5776 = vpop.f32.mrf.mxu0
    %v5777 = vadd.f32 0.0, %v5776
    %v5778 = vpop.f32.mrf.mxu0
    %5779 = vmatprep.mubr.f32.mxu0 0.0
    %5780 = vmatmul.mubr.f32.gmra.mxu0 %v5684
    %v5781 = vpop.f32.mrf.mxu0
    %v5782 = vadd.f32 0.0, %v5781
    %v5783 = vpop.f32.mrf.mxu0
    %5784 = vmatprep.mubr.f32.mxu0 0.0
    %5785 = vmatmul.mubr.f32.gmra.mxu0 %v5687
    %v5786 = vpop.f32.mrf.mxu0
    %v5787 = vadd.f32 0.0, %v5786
    %v5788 = vpop.f32.mrf.mxu0
    %5789 = vmatprep.mubr.f32.mxu0 0.0
    %5790 = vmatmul.mubr.f32.gmra.mxu0 %v5690
    %v5791 = vpop.f32.mrf.mxu0
    %v5792 = vadd.f32 0.0, %v5791
    %v5793 = vpop.f32.mrf.mxu0
    %5794 = vmatprep.mubr.f32.mxu0 0.0
    %5795 = vmatmul.mubr.f32.gmra.mxu0 %v5693
    %v5796 = vpop.f32.mrf.mxu0
    %v5797 = vadd.f32 0.0, %v5796
    %v5798 = vpop.f32.mrf.mxu0
    %5799 = vdwg.mxu0
    %v5800 = vadd.f32 %v5654, %v5762
    %v5801 = vadd.f32 %v5655, %v5767
    %v5802 = vadd.f32 %v5656, %v5772
    %v5803 = vadd.f32 %v5657, %v5777
    %v5804 = vadd.f32 %v5658, %v5782
    %v5805 = vadd.f32 %v5659, %v5787
    %v5806 = vadd.f32 %v5660, %v5792
    %v5807 = vadd.f32 %v5661, %v5797
    %v5808 = vld [vmem:[%s2198] ss:$4 sm:$0xff]
    %v5809 = vld [vmem:[%s2200] ss:$4 sm:$0xff]
    %v5810 = vld [vmem:[%s2202] ss:$4 sm:$0xff]
    %v5811 = vld [vmem:[%s2204] ss:$4 sm:$0xff]
    %v5812 = vld [vmem:[%s2206] ss:$4 sm:$0xff]
    %v5813 = vld [vmem:[%s2208] ss:$4 sm:$0xff]
    %v5814 = vld [vmem:[%s2210] ss:$4 sm:$0xff]
    %v5815 = vld [vmem:[%s2212] ss:$4 sm:$0x7f]
    %v5816 = vld [vmem:[%s2214] sm:$0xff]
    %v5818 = vsel %vm233, %v5808, 0
    %v5821 = vsel %vm233, %v5809, 0
    %v5824 = vsel %vm233, %v5810, 0
    %v5827 = vsel %vm233, %v5811, 0
    %v5830 = vsel %vm233, %v5812, 0
    %v5833 = vsel %vm233, %v5813, 0
    %v5836 = vsel %vm233, %v5814, 0
    %v5839 = vsel %vm233, %v5815, 0
    %5841 = vmatprep.subr.mxu0 0.0
    %5842 = vmatpush1.msra.mxu0 0.0
    %5843 = vmatprep.subr.mxu0 0.0
    %5844 = vmatpush1.msra.mxu0 0.0
    %5845 = vmatprep.subr.mxu0 0.0
    %5846 = vmatpush1.msra.mxu0 0.0
    %5847 = vmatprep.subr.mxu0 0.0
    %5848 = vmatpush1.msra.mxu0 0.0
    %5849 = vmatprep.subr.mxu0 0.0
    %5850 = vmatpush1.msra.mxu0 0.0
    %5851 = vmatprep.subr.mxu0 0.0
    %5852 = vmatpush1.msra.mxu0 0.0
    %5853 = vmatprep.subr.mxu0 0.0
    %5854 = vmatpush1.msra.mxu0 0.0
    %5855 = vmatprep.subr.mxu0 0.0
    %5856 = vmatpush1.msra.mxu0 0.0
    %5857 = vmatprep.subr.mxu0 0.0
    %5858 = vmatpush1.msra.mxu0 0.0
    %5859 = vmatprep.subr.mxu0 0.0
    %5860 = vmatpush1.msra.mxu0 0.0
    %5861 = vmatprep.subr.mxu0 0.0
    %5862 = vmatpush1.msra.mxu0 0.0
    %5863 = vmatprep.subr.mxu0 0.0
    %5864 = vmatpush1.msra.mxu0 0.0
    %5865 = vmatprep.subr.mxu0 0.0
    %5866 = vmatpush1.msra.mxu0 0.0
    %5867 = vmatprep.subr.mxu0 0.0
    %5868 = vmatpush1.msra.mxu0 0.0
    %5869 = vmatprep.subr.mxu0 0.0
    %5870 = vmatpush1.msra.mxu0 0.0
    %5871 = vmatprep.subr.mxu0 0.0
    %5872 = vmatpush1.msra.mxu0 %v5816
    %5873 = vmatprep.subr.mxu0 0.0
    %5874 = vmatpush2.msra.mxu0 0.0
    %5875 = vmatprep.subr.mxu0 0.0
    %5876 = vmatpush2.msra.mxu0 0.0
    %5877 = vmatprep.subr.mxu0 0.0
    %5878 = vmatpush2.msra.mxu0 0.0
    %5879 = vmatprep.subr.mxu0 0.0
    %5880 = vmatpush2.msra.mxu0 0.0
    %5881 = vmatprep.subr.mxu0 0.0
    %5882 = vmatpush2.msra.mxu0 0.0
    %5883 = vmatprep.subr.mxu0 0.0
    %5884 = vmatpush2.msra.mxu0 0.0
    %5885 = vmatprep.subr.mxu0 0.0
    %5886 = vmatpush2.msra.mxu0 0.0
    %5887 = vmatprep.subr.mxu0 0.0
    %5888 = vmatpush2.msra.mxu0 0.0
    %5889 = vmatprep.subr.mxu0 0.0
    %5890 = vmatpush2.msra.mxu0 0.0
    %5891 = vmatprep.subr.mxu0 0.0
    %5892 = vmatpush2.msra.mxu0 0.0
    %5893 = vmatprep.subr.mxu0 0.0
    %5894 = vmatpush2.msra.mxu0 0.0
    %5895 = vmatprep.subr.mxu0 0.0
    %5896 = vmatpush2.msra.mxu0 0.0
    %5897 = vmatprep.subr.mxu0 0.0
    %5898 = vmatpush2.msra.mxu0 0.0
    %5899 = vmatprep.subr.mxu0 0.0
    %5900 = vmatpush2.msra.mxu0 0.0
    %5901 = vmatprep.subr.mxu0 0.0
    %5902 = vmatpush2.msra.mxu0 0.0
    %5903 = vmatprep.subr.mxu0 0.0
    %5904 = vmatpush2.msra.mxu0 0.0
    %5905 = vmatprep.mubr.f32.mxu0 0.0
    %5906 = vmatmul.mubr.f32.gmra.mxu0 %v5818
    %v5907 = vpop.f32.mrf.mxu0
    %v5908 = vadd.f32 0.0, %v5907
    %v5909 = vpop.f32.mrf.mxu0
    %5910 = vmatprep.mubr.f32.mxu0 0.0
    %5911 = vmatmul.mubr.f32.gmra.mxu0 %v5821
    %v5912 = vpop.f32.mrf.mxu0
    %v5913 = vadd.f32 0.0, %v5912
    %v5914 = vpop.f32.mrf.mxu0
    %5915 = vmatprep.mubr.f32.mxu0 0.0
    %5916 = vmatmul.mubr.f32.gmra.mxu0 %v5824
    %v5917 = vpop.f32.mrf.mxu0
    %v5918 = vadd.f32 0.0, %v5917
    %v5919 = vpop.f32.mrf.mxu0
    %5920 = vmatprep.mubr.f32.mxu0 0.0
    %5921 = vmatmul.mubr.f32.gmra.mxu0 %v5827
    %v5922 = vpop.f32.mrf.mxu0
    %v5923 = vadd.f32 0.0, %v5922
    %v5924 = vpop.f32.mrf.mxu0
    %5925 = vmatprep.mubr.f32.mxu0 0.0
    %5926 = vmatmul.mubr.f32.gmra.mxu0 %v5830
    %v5927 = vpop.f32.mrf.mxu0
    %v5928 = vadd.f32 0.0, %v5927
    %v5929 = vpop.f32.mrf.mxu0
    %5930 = vmatprep.mubr.f32.mxu0 0.0
    %5931 = vmatmul.mubr.f32.gmra.mxu0 %v5833
    %v5932 = vpop.f32.mrf.mxu0
    %v5933 = vadd.f32 0.0, %v5932
    %v5934 = vpop.f32.mrf.mxu0
    %5935 = vmatprep.mubr.f32.mxu0 0.0
    %5936 = vmatmul.mubr.f32.gmra.mxu0 %v5836
    %v5937 = vpop.f32.mrf.mxu0
    %v5938 = vadd.f32 0.0, %v5937
    %v5939 = vpop.f32.mrf.mxu0
    %5940 = vmatprep.mubr.f32.mxu0 0.0
    %5941 = vmatmul.mubr.f32.gmra.mxu0 %v5839
    %v5942 = vpop.f32.mrf.mxu0
    %v5943 = vadd.f32 0.0, %v5942
    %v5944 = vpop.f32.mrf.mxu0
    %5945 = vdwg.mxu0
    %v5946 = vadd.f32 %v5800, %v5908
    %v5947 = vadd.f32 %v5801, %v5913
    %v5948 = vadd.f32 %v5802, %v5918
    %v5949 = vadd.f32 %v5803, %v5923
    %v5950 = vadd.f32 %v5804, %v5928
    %v5951 = vadd.f32 %v5805, %v5933
    %v5952 = vadd.f32 %v5806, %v5938
    %v5953 = vadd.f32 %v5807, %v5943
    %v5954 = vmax.f32 %v5946, 0.0
    %v5955 = vmax.f32 %v5947, 0.0
    %v5956 = vmax.f32 %v5948, 0.0
    %v5957 = vmax.f32 %v5949, 0.0
    %v5958 = vmax.f32 %v5950, 0.0
    %v5959 = vmax.f32 %v5951, 0.0
    %v5960 = vmax.f32 %v5952, 0.0
    %v5961 = vmax.f32 %v5953, 0.0
    %5962 = vst.msk [vmem:[#allocation3] sm:$0xff] %vm2361, %v5954
    %5963 = vst.msk [vmem:[#allocation3 + $0x8] sm:$0xff] %vm2361, %v5955
    %5964 = vst.msk [vmem:[#allocation3 + $0x10] sm:$0xff] %vm2361, %v5956
    %5965 = vst.msk [vmem:[#allocation3 + $0x18] sm:$0xff] %vm2361, %v5957
    %5966 = vst.msk [vmem:[#allocation3 + $0x20] sm:$0xff] %vm2361, %v5958
    %5967 = vst.msk [vmem:[#allocation3 + $0x28] sm:$0xff] %vm2361, %v5959
    %5968 = vst.msk [vmem:[#allocation3 + $0x30] sm:$0xff] %vm2361, %v5960
    %5969 = vst.msk [vmem:[#allocation3 + $0x38] sm:$0x7f] %vm2369, %v5961
    %v5970 = vld [vmem:[%s10] sm:$0x1]
    %v5971 = vld [vmem:[#allocation3] ss:$4 sm:$0xff]
    %v5972 = vld [vmem:[%s2373] ss:$4 sm:$0x3f]
    %v5973 = vld [vmem:[%s9] sm:$0xff]
    %v5974 = vld [vmem:[%s9 + $0x8] sm:$0xff]
    %v5976 = vsel %vm2361, %v5971, 0
    %v5979 = vsel %vm2361, %v5972, 0
    %5981 = vmatprep.subr.mxu0 0.0
    %5982 = vmatpush1.msra.mxu0 0.0
    %5983 = vmatprep.subr.mxu0 0.0
    %5984 = vmatpush1.msra.mxu0 0.0
    %5985 = vmatprep.subr.mxu0 0.0
    %5986 = vmatpush1.msra.mxu0 0.0
    %5987 = vmatprep.subr.mxu0 0.0
    %5988 = vmatpush1.msra.mxu0 0.0
    %5989 = vmatprep.subr.mxu0 0.0
    %5990 = vmatpush1.msra.mxu0 0.0
    %5991 = vmatprep.subr.mxu0 0.0
    %5992 = vmatpush1.msra.mxu0 0.0
    %5993 = vmatprep.subr.mxu0 0.0
    %5994 = vmatpush1.msra.mxu0 0.0
    %5995 = vmatprep.subr.mxu0 0.0
    %5996 = vmatpush1.msra.mxu0 0.0
    %5997 = vmatprep.subr.mxu0 0.0
    %5998 = vmatpush1.msra.mxu0 0.0
    %5999 = vmatprep.subr.mxu0 0.0
    %6000 = vmatpush1.msra.mxu0 0.0
    %6001 = vmatprep.subr.mxu0 0.0
    %6002 = vmatpush1.msra.mxu0 0.0
    %6003 = vmatprep.subr.mxu0 0.0
    %6004 = vmatpush1.msra.mxu0 0.0
    %6005 = vmatprep.subr.mxu0 0.0
    %6006 = vmatpush1.msra.mxu0 0.0
    %6007 = vmatprep.subr.mxu0 0.0
    %6008 = vmatpush1.msra.mxu0 0.0
    %6009 = vmatprep.subr.mxu0 0.0
    %6010 = vmatpush1.msra.mxu0 %v5974
    %6011 = vmatprep.subr.mxu0 0.0
    %6012 = vmatpush1.msra.mxu0 %v5973
    %6013 = vmatprep.subr.mxu0 0.0
    %6014 = vmatpush2.msra.mxu0 0.0
    %6015 = vmatprep.subr.mxu0 0.0
    %6016 = vmatpush2.msra.mxu0 0.0
    %6017 = vmatprep.subr.mxu0 0.0
    %6018 = vmatpush2.msra.mxu0 0.0
    %6019 = vmatprep.subr.mxu0 0.0
    %6020 = vmatpush2.msra.mxu0 0.0
    %6021 = vmatprep.subr.mxu0 0.0
    %6022 = vmatpush2.msra.mxu0 0.0
    %6023 = vmatprep.subr.mxu0 0.0
    %6024 = vmatpush2.msra.mxu0 0.0
    %6025 = vmatprep.subr.mxu0 0.0
    %6026 = vmatpush2.msra.mxu0 0.0
    %6027 = vmatprep.subr.mxu0 0.0
    %6028 = vmatpush2.msra.mxu0 0.0
    %6029 = vmatprep.subr.mxu0 0.0
    %6030 = vmatpush2.msra.mxu0 0.0
    %6031 = vmatprep.subr.mxu0 0.0
    %6032 = vmatpush2.msra.mxu0 0.0
    %6033 = vmatprep.subr.mxu0 0.0
    %6034 = vmatpush2.msra.mxu0 0.0
    %6035 = vmatprep.subr.mxu0 0.0
    %6036 = vmatpush2.msra.mxu0 0.0
    %6037 = vmatprep.subr.mxu0 0.0
    %6038 = vmatpush2.msra.mxu0 0.0
    %6039 = vmatprep.subr.mxu0 0.0
    %6040 = vmatpush2.msra.mxu0 0.0
    %6041 = vmatprep.subr.mxu0 0.0
    %6042 = vmatpush2.msra.mxu0 0.0
    %6043 = vmatprep.subr.mxu0 0.0
    %6044 = vmatpush2.msra.mxu0 0.0
    %6045 = vmatprep.mubr.f32.mxu0 0.0
    %6046 = vmatmul.mubr.f32.gmra.mxu0 %v5976
    %v6047 = vpop.f32.mrf.mxu0
    %v6048 = vadd.f32 0.0, %v6047
    %v6049 = vpop.f32.mrf.mxu0
    %6050 = vmatprep.mubr.f32.mxu0 0.0
    %6051 = vmatmul.mubr.f32.gmra.mxu0 %v5979
    %v6052 = vpop.f32.mrf.mxu0
    %v6053 = vadd.f32 0.0, %v6052
    %v6054 = vpop.f32.mrf.mxu0
    %6055 = vdwg.mxu0
    %v6057 = vlaneseq
    %v6058 = vshrl.u32 %v6057, 7
    %v6059 = vsub.s32 0, %v6058
    %v6060 = vrot.slane %v5970, %v6059
    %v6062 = vadd.f32 %v6060, %v6048
    %v6063 = vadd.f32 %v6060, %v6053
    %v6064 = vld [vmem:[%s2466] ss:$4 sm:$0xff]
    %v6065 = vld [vmem:[%s2468] ss:$4 sm:$0x3f]
    %v6066 = vld [vmem:[%s2470] sm:$0xff]
    %v6067 = vld [vmem:[%s2470 + $0x8] sm:$0xff]
    %v6069 = vsel %vm2361, %v6064, 0
    %v6072 = vsel %vm2361, %v6065, 0
    %6074 = vmatprep.subr.mxu0 0.0
    %6075 = vmatpush1.msra.mxu0 0.0
    %6076 = vmatprep.subr.mxu0 0.0
    %6077 = vmatpush1.msra.mxu0 0.0
    %6078 = vmatprep.subr.mxu0 0.0
    %6079 = vmatpush1.msra.mxu0 0.0
    %6080 = vmatprep.subr.mxu0 0.0
    %6081 = vmatpush1.msra.mxu0 0.0
    %6082 = vmatprep.subr.mxu0 0.0
    %6083 = vmatpush1.msra.mxu0 0.0
    %6084 = vmatprep.subr.mxu0 0.0
    %6085 = vmatpush1.msra.mxu0 0.0
    %6086 = vmatprep.subr.mxu0 0.0
    %6087 = vmatpush1.msra.mxu0 0.0
    %6088 = vmatprep.subr.mxu0 0.0
    %6089 = vmatpush1.msra.mxu0 0.0
    %6090 = vmatprep.subr.mxu0 0.0
    %6091 = vmatpush1.msra.mxu0 0.0
    %6092 = vmatprep.subr.mxu0 0.0
    %6093 = vmatpush1.msra.mxu0 0.0
    %6094 = vmatprep.subr.mxu0 0.0
    %6095 = vmatpush1.msra.mxu0 0.0
    %6096 = vmatprep.subr.mxu0 0.0
    %6097 = vmatpush1.msra.mxu0 0.0
    %6098 = vmatprep.subr.mxu0 0.0
    %6099 = vmatpush1.msra.mxu0 0.0
    %6100 = vmatprep.subr.mxu0 0.0
    %6101 = vmatpush1.msra.mxu0 0.0
    %6102 = vmatprep.subr.mxu0 0.0
    %6103 = vmatpush1.msra.mxu0 %v6067
    %6104 = vmatprep.subr.mxu0 0.0
    %6105 = vmatpush1.msra.mxu0 %v6066
    %6106 = vmatprep.subr.mxu0 0.0
    %6107 = vmatpush2.msra.mxu0 0.0
    %6108 = vmatprep.subr.mxu0 0.0
    %6109 = vmatpush2.msra.mxu0 0.0
    %6110 = vmatprep.subr.mxu0 0.0
    %6111 = vmatpush2.msra.mxu0 0.0
    %6112 = vmatprep.subr.mxu0 0.0
    %6113 = vmatpush2.msra.mxu0 0.0
    %6114 = vmatprep.subr.mxu0 0.0
    %6115 = vmatpush2.msra.mxu0 0.0
    %6116 = vmatprep.subr.mxu0 0.0
    %6117 = vmatpush2.msra.mxu0 0.0
    %6118 = vmatprep.subr.mxu0 0.0
    %6119 = vmatpush2.msra.mxu0 0.0
    %6120 = vmatprep.subr.mxu0 0.0
    %6121 = vmatpush2.msra.mxu0 0.0
    %6122 = vmatprep.subr.mxu0 0.0
    %6123 = vmatpush2.msra.mxu0 0.0
    %6124 = vmatprep.subr.mxu0 0.0
    %6125 = vmatpush2.msra.mxu0 0.0
    %6126 = vmatprep.subr.mxu0 0.0
    %6127 = vmatpush2.msra.mxu0 0.0
    %6128 = vmatprep.subr.mxu0 0.0
    %6129 = vmatpush2.msra.mxu0 0.0
    %6130 = vmatprep.subr.mxu0 0.0
    %6131 = vmatpush2.msra.mxu0 0.0
    %6132 = vmatprep.subr.mxu0 0.0
    %6133 = vmatpush2.msra.mxu0 0.0
    %6134 = vmatprep.subr.mxu0 0.0
    %6135 = vmatpush2.msra.mxu0 0.0
    %6136 = vmatprep.subr.mxu0 0.0
    %6137 = vmatpush2.msra.mxu0 0.0
    %6138 = vmatprep.mubr.f32.mxu0 0.0
    %6139 = vmatmul.mubr.f32.gmra.mxu0 %v6069
    %v6140 = vpop.f32.mrf.mxu0
    %v6141 = vadd.f32 0.0, %v6140
    %v6142 = vpop.f32.mrf.mxu0
    %6143 = vmatprep.mubr.f32.mxu0 0.0
    %6144 = vmatmul.mubr.f32.gmra.mxu0 %v6072
    %v6145 = vpop.f32.mrf.mxu0
    %v6146 = vadd.f32 0.0, %v6145
    %v6147 = vpop.f32.mrf.mxu0
    %6148 = vdwg.mxu0
    %v6149 = vadd.f32 %v6062, %v6141
    %v6150 = vadd.f32 %v6063, %v6146
    %v6151 = vld [vmem:[%s2556] ss:$4 sm:$0xff]
    %v6152 = vld [vmem:[%s2558] ss:$4 sm:$0x3f]
    %v6153 = vld [vmem:[%s2560] sm:$0xff]
    %v6154 = vld [vmem:[%s2560 + $0x8] sm:$0xff]
    %v6156 = vsel %vm2361, %v6151, 0
    %v6159 = vsel %vm2361, %v6152, 0
    %6161 = vmatprep.subr.mxu0 0.0
    %6162 = vmatpush1.msra.mxu0 0.0
    %6163 = vmatprep.subr.mxu0 0.0
    %6164 = vmatpush1.msra.mxu0 0.0
    %6165 = vmatprep.subr.mxu0 0.0
    %6166 = vmatpush1.msra.mxu0 0.0
    %6167 = vmatprep.subr.mxu0 0.0
    %6168 = vmatpush1.msra.mxu0 0.0
    %6169 = vmatprep.subr.mxu0 0.0
    %6170 = vmatpush1.msra.mxu0 0.0
    %6171 = vmatprep.subr.mxu0 0.0
    %6172 = vmatpush1.msra.mxu0 0.0
    %6173 = vmatprep.subr.mxu0 0.0
    %6174 = vmatpush1.msra.mxu0 0.0
    %6175 = vmatprep.subr.mxu0 0.0
    %6176 = vmatpush1.msra.mxu0 0.0
    %6177 = vmatprep.subr.mxu0 0.0
    %6178 = vmatpush1.msra.mxu0 0.0
    %6179 = vmatprep.subr.mxu0 0.0
    %6180 = vmatpush1.msra.mxu0 0.0
    %6181 = vmatprep.subr.mxu0 0.0
    %6182 = vmatpush1.msra.mxu0 0.0
    %6183 = vmatprep.subr.mxu0 0.0
    %6184 = vmatpush1.msra.mxu0 0.0
    %6185 = vmatprep.subr.mxu0 0.0
    %6186 = vmatpush1.msra.mxu0 0.0
    %6187 = vmatprep.subr.mxu0 0.0
    %6188 = vmatpush1.msra.mxu0 0.0
    %6189 = vmatprep.subr.mxu0 0.0
    %6190 = vmatpush1.msra.mxu0 %v6154
    %6191 = vmatprep.subr.mxu0 0.0
    %6192 = vmatpush1.msra.mxu0 %v6153
    %6193 = vmatprep.subr.mxu0 0.0
    %6194 = vmatpush2.msra.mxu0 0.0
    %6195 = vmatprep.subr.mxu0 0.0
    %6196 = vmatpush2.msra.mxu0 0.0
    %6197 = vmatprep.subr.mxu0 0.0
    %6198 = vmatpush2.msra.mxu0 0.0
    %6199 = vmatprep.subr.mxu0 0.0
    %6200 = vmatpush2.msra.mxu0 0.0
    %6201 = vmatprep.subr.mxu0 0.0
    %6202 = vmatpush2.msra.mxu0 0.0
    %6203 = vmatprep.subr.mxu0 0.0
    %6204 = vmatpush2.msra.mxu0 0.0
    %6205 = vmatprep.subr.mxu0 0.0
    %6206 = vmatpush2.msra.mxu0 0.0
    %6207 = vmatprep.subr.mxu0 0.0
    %6208 = vmatpush2.msra.mxu0 0.0
    %6209 = vmatprep.subr.mxu0 0.0
    %6210 = vmatpush2.msra.mxu0 0.0
    %6211 = vmatprep.subr.mxu0 0.0
    %6212 = vmatpush2.msra.mxu0 0.0
    %6213 = vmatprep.subr.mxu0 0.0
    %6214 = vmatpush2.msra.mxu0 0.0
    %6215 = vmatprep.subr.mxu0 0.0
    %6216 = vmatpush2.msra.mxu0 0.0
    %6217 = vmatprep.subr.mxu0 0.0
    %6218 = vmatpush2.msra.mxu0 0.0
    %6219 = vmatprep.subr.mxu0 0.0
    %6220 = vmatpush2.msra.mxu0 0.0
    %6221 = vmatprep.subr.mxu0 0.0
    %6222 = vmatpush2.msra.mxu0 0.0
    %6223 = vmatprep.subr.mxu0 0.0
    %6224 = vmatpush2.msra.mxu0 0.0
    %6225 = vmatprep.mubr.f32.mxu0 0.0
    %6226 = vmatmul.mubr.f32.gmra.mxu0 %v6156
    %v6227 = vpop.f32.mrf.mxu0
    %v6228 = vadd.f32 0.0, %v6227
    %v6229 = vpop.f32.mrf.mxu0
    %6230 = vmatprep.mubr.f32.mxu0 0.0
    %6231 = vmatmul.mubr.f32.gmra.mxu0 %v6159
    %v6232 = vpop.f32.mrf.mxu0
    %v6233 = vadd.f32 0.0, %v6232
    %v6234 = vpop.f32.mrf.mxu0
    %6235 = vdwg.mxu0
    %v6236 = vadd.f32 %v6149, %v6228
    %v6237 = vadd.f32 %v6150, %v6233
    %v6238 = vld [vmem:[%s2646] ss:$4 sm:$0xff]
    %v6239 = vld [vmem:[%s2648] ss:$4 sm:$0x3f]
    %v6240 = vld [vmem:[%s2650] sm:$0xff]
    %v6241 = vld [vmem:[%s2650 + $0x8] sm:$0xff]
    %v6243 = vsel %vm2361, %v6238, 0
    %v6246 = vsel %vm2361, %v6239, 0
    %6248 = vmatprep.subr.mxu0 0.0
    %6249 = vmatpush1.msra.mxu0 0.0
    %6250 = vmatprep.subr.mxu0 0.0
    %6251 = vmatpush1.msra.mxu0 0.0
    %6252 = vmatprep.subr.mxu0 0.0
    %6253 = vmatpush1.msra.mxu0 0.0
    %6254 = vmatprep.subr.mxu0 0.0
    %6255 = vmatpush1.msra.mxu0 0.0
    %6256 = vmatprep.subr.mxu0 0.0
    %6257 = vmatpush1.msra.mxu0 0.0
    %6258 = vmatprep.subr.mxu0 0.0
    %6259 = vmatpush1.msra.mxu0 0.0
    %6260 = vmatprep.subr.mxu0 0.0
    %6261 = vmatpush1.msra.mxu0 0.0
    %6262 = vmatprep.subr.mxu0 0.0
    %6263 = vmatpush1.msra.mxu0 0.0
    %6264 = vmatprep.subr.mxu0 0.0
    %6265 = vmatpush1.msra.mxu0 0.0
    %6266 = vmatprep.subr.mxu0 0.0
    %6267 = vmatpush1.msra.mxu0 0.0
    %6268 = vmatprep.subr.mxu0 0.0
    %6269 = vmatpush1.msra.mxu0 0.0
    %6270 = vmatprep.subr.mxu0 0.0
    %6271 = vmatpush1.msra.mxu0 0.0
    %6272 = vmatprep.subr.mxu0 0.0
    %6273 = vmatpush1.msra.mxu0 0.0
    %6274 = vmatprep.subr.mxu0 0.0
    %6275 = vmatpush1.msra.mxu0 0.0
    %6276 = vmatprep.subr.mxu0 0.0
    %6277 = vmatpush1.msra.mxu0 %v6241
    %6278 = vmatprep.subr.mxu0 0.0
    %6279 = vmatpush1.msra.mxu0 %v6240
    %6280 = vmatprep.subr.mxu0 0.0
    %6281 = vmatpush2.msra.mxu0 0.0
    %6282 = vmatprep.subr.mxu0 0.0
    %6283 = vmatpush2.msra.mxu0 0.0
    %6284 = vmatprep.subr.mxu0 0.0
    %6285 = vmatpush2.msra.mxu0 0.0
    %6286 = vmatprep.subr.mxu0 0.0
    %6287 = vmatpush2.msra.mxu0 0.0
    %6288 = vmatprep.subr.mxu0 0.0
    %6289 = vmatpush2.msra.mxu0 0.0
    %6290 = vmatprep.subr.mxu0 0.0
    %6291 = vmatpush2.msra.mxu0 0.0
    %6292 = vmatprep.subr.mxu0 0.0
    %6293 = vmatpush2.msra.mxu0 0.0
    %6294 = vmatprep.subr.mxu0 0.0
    %6295 = vmatpush2.msra.mxu0 0.0
    %6296 = vmatprep.subr.mxu0 0.0
    %6297 = vmatpush2.msra.mxu0 0.0
    %6298 = vmatprep.subr.mxu0 0.0
    %6299 = vmatpush2.msra.mxu0 0.0
    %6300 = vmatprep.subr.mxu0 0.0
    %6301 = vmatpush2.msra.mxu0 0.0
    %6302 = vmatprep.subr.mxu0 0.0
    %6303 = vmatpush2.msra.mxu0 0.0
    %6304 = vmatprep.subr.mxu0 0.0
    %6305 = vmatpush2.msra.mxu0 0.0
    %6306 = vmatprep.subr.mxu0 0.0
    %6307 = vmatpush2.msra.mxu0 0.0
    %6308 = vmatprep.subr.mxu0 0.0
    %6309 = vmatpush2.msra.mxu0 0.0
    %6310 = vmatprep.subr.mxu0 0.0
    %6311 = vmatpush2.msra.mxu0 0.0
    %6312 = vmatprep.mubr.f32.mxu0 0.0
    %6313 = vmatmul.mubr.f32.gmra.mxu0 %v6243
    %v6314 = vpop.f32.mrf.mxu0
    %v6315 = vadd.f32 0.0, %v6314
    %v6316 = vpop.f32.mrf.mxu0
    %6317 = vmatprep.mubr.f32.mxu0 0.0
    %6318 = vmatmul.mubr.f32.gmra.mxu0 %v6246
    %v6319 = vpop.f32.mrf.mxu0
    %v6320 = vadd.f32 0.0, %v6319
    %v6321 = vpop.f32.mrf.mxu0
    %6322 = vdwg.mxu0
    %v6323 = vadd.f32 %v6236, %v6315
    %v6324 = vadd.f32 %v6237, %v6320
    %v6325 = vld [vmem:[%s2736] ss:$4 sm:$0xff]
    %v6326 = vld [vmem:[%s2738] ss:$4 sm:$0x3f]
    %v6327 = vld [vmem:[%s2740] sm:$0xff]
    %v6328 = vld [vmem:[%s2740 + $0x8] sm:$0xff]
    %v6330 = vsel %vm2361, %v6325, 0
    %v6333 = vsel %vm2361, %v6326, 0
    %6335 = vmatprep.subr.mxu0 0.0
    %6336 = vmatpush1.msra.mxu0 0.0
    %6337 = vmatprep.subr.mxu0 0.0
    %6338 = vmatpush1.msra.mxu0 0.0
    %6339 = vmatprep.subr.mxu0 0.0
    %6340 = vmatpush1.msra.mxu0 0.0
    %6341 = vmatprep.subr.mxu0 0.0
    %6342 = vmatpush1.msra.mxu0 0.0
    %6343 = vmatprep.subr.mxu0 0.0
    %6344 = vmatpush1.msra.mxu0 0.0
    %6345 = vmatprep.subr.mxu0 0.0
    %6346 = vmatpush1.msra.mxu0 0.0
    %6347 = vmatprep.subr.mxu0 0.0
    %6348 = vmatpush1.msra.mxu0 0.0
    %6349 = vmatprep.subr.mxu0 0.0
    %6350 = vmatpush1.msra.mxu0 0.0
    %6351 = vmatprep.subr.mxu0 0.0
    %6352 = vmatpush1.msra.mxu0 0.0
    %6353 = vmatprep.subr.mxu0 0.0
    %6354 = vmatpush1.msra.mxu0 0.0
    %6355 = vmatprep.subr.mxu0 0.0
    %6356 = vmatpush1.msra.mxu0 0.0
    %6357 = vmatprep.subr.mxu0 0.0
    %6358 = vmatpush1.msra.mxu0 0.0
    %6359 = vmatprep.subr.mxu0 0.0
    %6360 = vmatpush1.msra.mxu0 0.0
    %6361 = vmatprep.subr.mxu0 0.0
    %6362 = vmatpush1.msra.mxu0 0.0
    %6363 = vmatprep.subr.mxu0 0.0
    %6364 = vmatpush1.msra.mxu0 %v6328
    %6365 = vmatprep.subr.mxu0 0.0
    %6366 = vmatpush1.msra.mxu0 %v6327
    %6367 = vmatprep.subr.mxu0 0.0
    %6368 = vmatpush2.msra.mxu0 0.0
    %6369 = vmatprep.subr.mxu0 0.0
    %6370 = vmatpush2.msra.mxu0 0.0
    %6371 = vmatprep.subr.mxu0 0.0
    %6372 = vmatpush2.msra.mxu0 0.0
    %6373 = vmatprep.subr.mxu0 0.0
    %6374 = vmatpush2.msra.mxu0 0.0
    %6375 = vmatprep.subr.mxu0 0.0
    %6376 = vmatpush2.msra.mxu0 0.0
    %6377 = vmatprep.subr.mxu0 0.0
    %6378 = vmatpush2.msra.mxu0 0.0
    %6379 = vmatprep.subr.mxu0 0.0
    %6380 = vmatpush2.msra.mxu0 0.0
    %6381 = vmatprep.subr.mxu0 0.0
    %6382 = vmatpush2.msra.mxu0 0.0
    %6383 = vmatprep.subr.mxu0 0.0
    %6384 = vmatpush2.msra.mxu0 0.0
    %6385 = vmatprep.subr.mxu0 0.0
    %6386 = vmatpush2.msra.mxu0 0.0
    %6387 = vmatprep.subr.mxu0 0.0
    %6388 = vmatpush2.msra.mxu0 0.0
    %6389 = vmatprep.subr.mxu0 0.0
    %6390 = vmatpush2.msra.mxu0 0.0
    %6391 = vmatprep.subr.mxu0 0.0
    %6392 = vmatpush2.msra.mxu0 0.0
    %6393 = vmatprep.subr.mxu0 0.0
    %6394 = vmatpush2.msra.mxu0 0.0
    %6395 = vmatprep.subr.mxu0 0.0
    %6396 = vmatpush2.msra.mxu0 0.0
    %6397 = vmatprep.subr.mxu0 0.0
    %6398 = vmatpush2.msra.mxu0 0.0
    %6399 = vmatprep.mubr.f32.mxu0 0.0
    %6400 = vmatmul.mubr.f32.gmra.mxu0 %v6330
    %v6401 = vpop.f32.mrf.mxu0
    %v6402 = vadd.f32 0.0, %v6401
    %v6403 = vpop.f32.mrf.mxu0
    %6404 = vmatprep.mubr.f32.mxu0 0.0
    %6405 = vmatmul.mubr.f32.gmra.mxu0 %v6333
    %v6406 = vpop.f32.mrf.mxu0
    %v6407 = vadd.f32 0.0, %v6406
    %v6408 = vpop.f32.mrf.mxu0
    %6409 = vdwg.mxu0
    %v6410 = vadd.f32 %v6323, %v6402
    %v6411 = vadd.f32 %v6324, %v6407
    %v6412 = vld [vmem:[%s2826] ss:$4 sm:$0xff]
    %v6413 = vld [vmem:[%s2828] ss:$4 sm:$0x3f]
    %v6414 = vld [vmem:[%s2830] sm:$0xff]
    %v6415 = vld [vmem:[%s2830 + $0x8] sm:$0xff]
    %v6417 = vsel %vm2361, %v6412, 0
    %v6420 = vsel %vm2361, %v6413, 0
    %6422 = vmatprep.subr.mxu0 0.0
    %6423 = vmatpush1.msra.mxu0 0.0
    %6424 = vmatprep.subr.mxu0 0.0
    %6425 = vmatpush1.msra.mxu0 0.0
    %6426 = vmatprep.subr.mxu0 0.0
    %6427 = vmatpush1.msra.mxu0 0.0
    %6428 = vmatprep.subr.mxu0 0.0
    %6429 = vmatpush1.msra.mxu0 0.0
    %6430 = vmatprep.subr.mxu0 0.0
    %6431 = vmatpush1.msra.mxu0 0.0
    %6432 = vmatprep.subr.mxu0 0.0
    %6433 = vmatpush1.msra.mxu0 0.0
    %6434 = vmatprep.subr.mxu0 0.0
    %6435 = vmatpush1.msra.mxu0 0.0
    %6436 = vmatprep.subr.mxu0 0.0
    %6437 = vmatpush1.msra.mxu0 0.0
    %6438 = vmatprep.subr.mxu0 0.0
    %6439 = vmatpush1.msra.mxu0 0.0
    %6440 = vmatprep.subr.mxu0 0.0
    %6441 = vmatpush1.msra.mxu0 0.0
    %6442 = vmatprep.subr.mxu0 0.0
    %6443 = vmatpush1.msra.mxu0 0.0
    %6444 = vmatprep.subr.mxu0 0.0
    %6445 = vmatpush1.msra.mxu0 0.0
    %6446 = vmatprep.subr.mxu0 0.0
    %6447 = vmatpush1.msra.mxu0 0.0
    %6448 = vmatprep.subr.mxu0 0.0
    %6449 = vmatpush1.msra.mxu0 0.0
    %6450 = vmatprep.subr.mxu0 0.0
    %6451 = vmatpush1.msra.mxu0 %v6415
    %6452 = vmatprep.subr.mxu0 0.0
    %6453 = vmatpush1.msra.mxu0 %v6414
    %6454 = vmatprep.subr.mxu0 0.0
    %6455 = vmatpush2.msra.mxu0 0.0
    %6456 = vmatprep.subr.mxu0 0.0
    %6457 = vmatpush2.msra.mxu0 0.0
    %6458 = vmatprep.subr.mxu0 0.0
    %6459 = vmatpush2.msra.mxu0 0.0
    %6460 = vmatprep.subr.mxu0 0.0
    %6461 = vmatpush2.msra.mxu0 0.0
    %6462 = vmatprep.subr.mxu0 0.0
    %6463 = vmatpush2.msra.mxu0 0.0
    %6464 = vmatprep.subr.mxu0 0.0
    %6465 = vmatpush2.msra.mxu0 0.0
    %6466 = vmatprep.subr.mxu0 0.0
    %6467 = vmatpush2.msra.mxu0 0.0
    %6468 = vmatprep.subr.mxu0 0.0
    %6469 = vmatpush2.msra.mxu0 0.0
    %6470 = vmatprep.subr.mxu0 0.0
    %6471 = vmatpush2.msra.mxu0 0.0
    %6472 = vmatprep.subr.mxu0 0.0
    %6473 = vmatpush2.msra.mxu0 0.0
    %6474 = vmatprep.subr.mxu0 0.0
    %6475 = vmatpush2.msra.mxu0 0.0
    %6476 = vmatprep.subr.mxu0 0.0
    %6477 = vmatpush2.msra.mxu0 0.0
    %6478 = vmatprep.subr.mxu0 0.0
    %6479 = vmatpush2.msra.mxu0 0.0
    %6480 = vmatprep.subr.mxu0 0.0
    %6481 = vmatpush2.msra.mxu0 0.0
    %6482 = vmatprep.subr.mxu0 0.0
    %6483 = vmatpush2.msra.mxu0 0.0
    %6484 = vmatprep.subr.mxu0 0.0
    %6485 = vmatpush2.msra.mxu0 0.0
    %6486 = vmatprep.mubr.f32.mxu0 0.0
    %6487 = vmatmul.mubr.f32.gmra.mxu0 %v6417
    %v6488 = vpop.f32.mrf.mxu0
    %v6489 = vadd.f32 0.0, %v6488
    %v6490 = vpop.f32.mrf.mxu0
    %6491 = vmatprep.mubr.f32.mxu0 0.0
    %6492 = vmatmul.mubr.f32.gmra.mxu0 %v6420
    %v6493 = vpop.f32.mrf.mxu0
    %v6494 = vadd.f32 0.0, %v6493
    %v6495 = vpop.f32.mrf.mxu0
    %6496 = vdwg.mxu0
    %v6497 = vadd.f32 %v6410, %v6489
    %v6498 = vadd.f32 %v6411, %v6494
    %v6499 = vld [vmem:[%s2916] ss:$4 sm:$0xff]
    %v6500 = vld [vmem:[%s2918] ss:$4 sm:$0x3f]
    %v6501 = vld [vmem:[%s2920] sm:$0xff]
    %v6502 = vld [vmem:[%s2920 + $0x8] sm:$0xff]
    %v6504 = vsel %vm2361, %v6499, 0
    %v6507 = vsel %vm2361, %v6500, 0
    %6509 = vmatprep.subr.mxu0 0.0
    %6510 = vmatpush1.msra.mxu0 0.0
    %6511 = vmatprep.subr.mxu0 0.0
    %6512 = vmatpush1.msra.mxu0 0.0
    %6513 = vmatprep.subr.mxu0 0.0
    %6514 = vmatpush1.msra.mxu0 0.0
    %6515 = vmatprep.subr.mxu0 0.0
    %6516 = vmatpush1.msra.mxu0 0.0
    %6517 = vmatprep.subr.mxu0 0.0
    %6518 = vmatpush1.msra.mxu0 0.0
    %6519 = vmatprep.subr.mxu0 0.0
    %6520 = vmatpush1.msra.mxu0 0.0
    %6521 = vmatprep.subr.mxu0 0.0
    %6522 = vmatpush1.msra.mxu0 0.0
    %6523 = vmatprep.subr.mxu0 0.0
    %6524 = vmatpush1.msra.mxu0 0.0
    %6525 = vmatprep.subr.mxu0 0.0
    %6526 = vmatpush1.msra.mxu0 0.0
    %6527 = vmatprep.subr.mxu0 0.0
    %6528 = vmatpush1.msra.mxu0 0.0
    %6529 = vmatprep.subr.mxu0 0.0
    %6530 = vmatpush1.msra.mxu0 0.0
    %6531 = vmatprep.subr.mxu0 0.0
    %6532 = vmatpush1.msra.mxu0 0.0
    %6533 = vmatprep.subr.mxu0 0.0
    %6534 = vmatpush1.msra.mxu0 0.0
    %6535 = vmatprep.subr.mxu0 0.0
    %6536 = vmatpush1.msra.mxu0 0.0
    %6537 = vmatprep.subr.mxu0 0.0
    %6538 = vmatpush1.msra.mxu0 %v6502
    %6539 = vmatprep.subr.mxu0 0.0
    %6540 = vmatpush1.msra.mxu0 %v6501
    %6541 = vmatprep.subr.mxu0 0.0
    %6542 = vmatpush2.msra.mxu0 0.0
    %6543 = vmatprep.subr.mxu0 0.0
    %6544 = vmatpush2.msra.mxu0 0.0
    %6545 = vmatprep.subr.mxu0 0.0
    %6546 = vmatpush2.msra.mxu0 0.0
    %6547 = vmatprep.subr.mxu0 0.0
    %6548 = vmatpush2.msra.mxu0 0.0
    %6549 = vmatprep.subr.mxu0 0.0
    %6550 = vmatpush2.msra.mxu0 0.0
    %6551 = vmatprep.subr.mxu0 0.0
    %6552 = vmatpush2.msra.mxu0 0.0
    %6553 = vmatprep.subr.mxu0 0.0
    %6554 = vmatpush2.msra.mxu0 0.0
    %6555 = vmatprep.subr.mxu0 0.0
    %6556 = vmatpush2.msra.mxu0 0.0
    %6557 = vmatprep.subr.mxu0 0.0
    %6558 = vmatpush2.msra.mxu0 0.0
    %6559 = vmatprep.subr.mxu0 0.0
    %6560 = vmatpush2.msra.mxu0 0.0
    %6561 = vmatprep.subr.mxu0 0.0
    %6562 = vmatpush2.msra.mxu0 0.0
    %6563 = vmatprep.subr.mxu0 0.0
    %6564 = vmatpush2.msra.mxu0 0.0
    %6565 = vmatprep.subr.mxu0 0.0
    %6566 = vmatpush2.msra.mxu0 0.0
    %6567 = vmatprep.subr.mxu0 0.0
    %6568 = vmatpush2.msra.mxu0 0.0
    %6569 = vmatprep.subr.mxu0 0.0
    %6570 = vmatpush2.msra.mxu0 0.0
    %6571 = vmatprep.subr.mxu0 0.0
    %6572 = vmatpush2.msra.mxu0 0.0
    %6573 = vmatprep.mubr.f32.mxu0 0.0
    %6574 = vmatmul.mubr.f32.gmra.mxu0 %v6504
    %v6575 = vpop.f32.mrf.mxu0
    %v6576 = vadd.f32 0.0, %v6575
    %v6577 = vpop.f32.mrf.mxu0
    %6578 = vmatprep.mubr.f32.mxu0 0.0
    %6579 = vmatmul.mubr.f32.gmra.mxu0 %v6507
    %v6580 = vpop.f32.mrf.mxu0
    %v6581 = vadd.f32 0.0, %v6580
    %v6582 = vpop.f32.mrf.mxu0
    %6583 = vdwg.mxu0
    %v6584 = vadd.f32 %v6497, %v6576
    %v6585 = vadd.f32 %v6498, %v6581
    %v6586 = vld [vmem:[%s3006] ss:$4 sm:$0xff]
    %v6587 = vld [vmem:[%s3008] ss:$4 sm:$0x3f]
    %v6588 = vld [vmem:[%s3010] sm:$0xff]
    %v6589 = vld [vmem:[%s3010 + $0x8] sm:$0xff]
    %v6591 = vsel %vm2361, %v6586, 0
    %v6594 = vsel %vm2361, %v6587, 0
    %6596 = vmatprep.subr.mxu0 0.0
    %6597 = vmatpush1.msra.mxu0 0.0
    %6598 = vmatprep.subr.mxu0 0.0
    %6599 = vmatpush1.msra.mxu0 0.0
    %6600 = vmatprep.subr.mxu0 0.0
    %6601 = vmatpush1.msra.mxu0 0.0
    %6602 = vmatprep.subr.mxu0 0.0
    %6603 = vmatpush1.msra.mxu0 0.0
    %6604 = vmatprep.subr.mxu0 0.0
    %6605 = vmatpush1.msra.mxu0 0.0
    %6606 = vmatprep.subr.mxu0 0.0
    %6607 = vmatpush1.msra.mxu0 0.0
    %6608 = vmatprep.subr.mxu0 0.0
    %6609 = vmatpush1.msra.mxu0 0.0
    %6610 = vmatprep.subr.mxu0 0.0
    %6611 = vmatpush1.msra.mxu0 0.0
    %6612 = vmatprep.subr.mxu0 0.0
    %6613 = vmatpush1.msra.mxu0 0.0
    %6614 = vmatprep.subr.mxu0 0.0
    %6615 = vmatpush1.msra.mxu0 0.0
    %6616 = vmatprep.subr.mxu0 0.0
    %6617 = vmatpush1.msra.mxu0 0.0
    %6618 = vmatprep.subr.mxu0 0.0
    %6619 = vmatpush1.msra.mxu0 0.0
    %6620 = vmatprep.subr.mxu0 0.0
    %6621 = vmatpush1.msra.mxu0 0.0
    %6622 = vmatprep.subr.mxu0 0.0
    %6623 = vmatpush1.msra.mxu0 0.0
    %6624 = vmatprep.subr.mxu0 0.0
    %6625 = vmatpush1.msra.mxu0 %v6589
    %6626 = vmatprep.subr.mxu0 0.0
    %6627 = vmatpush1.msra.mxu0 %v6588
    %6628 = vmatprep.subr.mxu0 0.0
    %6629 = vmatpush2.msra.mxu0 0.0
    %6630 = vmatprep.subr.mxu0 0.0
    %6631 = vmatpush2.msra.mxu0 0.0
    %6632 = vmatprep.subr.mxu0 0.0
    %6633 = vmatpush2.msra.mxu0 0.0
    %6634 = vmatprep.subr.mxu0 0.0
    %6635 = vmatpush2.msra.mxu0 0.0
    %6636 = vmatprep.subr.mxu0 0.0
    %6637 = vmatpush2.msra.mxu0 0.0
    %6638 = vmatprep.subr.mxu0 0.0
    %6639 = vmatpush2.msra.mxu0 0.0
    %6640 = vmatprep.subr.mxu0 0.0
    %6641 = vmatpush2.msra.mxu0 0.0
    %6642 = vmatprep.subr.mxu0 0.0
    %6643 = vmatpush2.msra.mxu0 0.0
    %6644 = vmatprep.subr.mxu0 0.0
    %6645 = vmatpush2.msra.mxu0 0.0
    %6646 = vmatprep.subr.mxu0 0.0
    %6647 = vmatpush2.msra.mxu0 0.0
    %6648 = vmatprep.subr.mxu0 0.0
    %6649 = vmatpush2.msra.mxu0 0.0
    %6650 = vmatprep.subr.mxu0 0.0
    %6651 = vmatpush2.msra.mxu0 0.0
    %6652 = vmatprep.subr.mxu0 0.0
    %6653 = vmatpush2.msra.mxu0 0.0
    %6654 = vmatprep.subr.mxu0 0.0
    %6655 = vmatpush2.msra.mxu0 0.0
    %6656 = vmatprep.subr.mxu0 0.0
    %6657 = vmatpush2.msra.mxu0 0.0
    %6658 = vmatprep.subr.mxu0 0.0
    %6659 = vmatpush2.msra.mxu0 0.0
    %6660 = vmatprep.mubr.f32.mxu0 0.0
    %6661 = vmatmul.mubr.f32.gmra.mxu0 %v6591
    %v6662 = vpop.f32.mrf.mxu0
    %v6663 = vadd.f32 0.0, %v6662
    %v6664 = vpop.f32.mrf.mxu0
    %6665 = vmatprep.mubr.f32.mxu0 0.0
    %6666 = vmatmul.mubr.f32.gmra.mxu0 %v6594
    %v6667 = vpop.f32.mrf.mxu0
    %v6668 = vadd.f32 0.0, %v6667
    %v6669 = vpop.f32.mrf.mxu0
    %6670 = vdwg.mxu0
    %v6671 = vadd.f32 %v6584, %v6663
    %v6672 = vadd.f32 %v6585, %v6668
    %v6673 = vmax.f32 %v6671, 0.0
    %v6674 = vmax.f32 %v6672, 0.0
    %6675 = vst.msk [vmem:[#allocation4] sm:$0xff] %vm2361, %v6673
    %6676 = vst.msk [vmem:[#allocation4 + $0x8] sm:$0x3f] %vm3099, %v6674
    %v6677 = vld [vmem:[%s12] sm:$0x1]
    %v6678 = vld [vmem:[#allocation4] ss:$2 sm:$0x3f]
    %v6679 = vld [vmem:[%s11] sm:$0xff]
    %v6680 = vld [vmem:[%s11 + $0x8] sm:$0xff]
    %v6682 = vsel %vm2361, %v6678, 0
    %6684 = vmatprep.subr.mxu0 0.0
    %6685 = vmatpush1.msra.mxu0 0.0
    %6686 = vmatprep.subr.mxu0 0.0
    %6687 = vmatpush1.msra.mxu0 0.0
    %6688 = vmatprep.subr.mxu0 0.0
    %6689 = vmatpush1.msra.mxu0 0.0
    %6690 = vmatprep.subr.mxu0 0.0
    %6691 = vmatpush1.msra.mxu0 0.0
    %6692 = vmatprep.subr.mxu0 0.0
    %6693 = vmatpush1.msra.mxu0 0.0
    %6694 = vmatprep.subr.mxu0 0.0
    %6695 = vmatpush1.msra.mxu0 0.0
    %6696 = vmatprep.subr.mxu0 0.0
    %6697 = vmatpush1.msra.mxu0 0.0
    %6698 = vmatprep.subr.mxu0 0.0
    %6699 = vmatpush1.msra.mxu0 0.0
    %6700 = vmatprep.subr.mxu0 0.0
    %6701 = vmatpush1.msra.mxu0 0.0
    %6702 = vmatprep.subr.mxu0 0.0
    %6703 = vmatpush1.msra.mxu0 0.0
    %6704 = vmatprep.subr.mxu0 0.0
    %6705 = vmatpush1.msra.mxu0 0.0
    %6706 = vmatprep.subr.mxu0 0.0
    %6707 = vmatpush1.msra.mxu0 0.0
    %6708 = vmatprep.subr.mxu0 0.0
    %6709 = vmatpush1.msra.mxu0 0.0
    %6710 = vmatprep.subr.mxu0 0.0
    %6711 = vmatpush1.msra.mxu0 0.0
    %6712 = vmatprep.subr.mxu0 0.0
    %6713 = vmatpush1.msra.mxu0 %v6680
    %6714 = vmatprep.subr.mxu0 0.0
    %6715 = vmatpush1.msra.mxu0 %v6679
    %6716 = vmatprep.subr.mxu0 0.0
    %6717 = vmatpush2.msra.mxu0 0.0
    %6718 = vmatprep.subr.mxu0 0.0
    %6719 = vmatpush2.msra.mxu0 0.0
    %6720 = vmatprep.subr.mxu0 0.0
    %6721 = vmatpush2.msra.mxu0 0.0
    %6722 = vmatprep.subr.mxu0 0.0
    %6723 = vmatpush2.msra.mxu0 0.0
    %6724 = vmatprep.subr.mxu0 0.0
    %6725 = vmatpush2.msra.mxu0 0.0
    %6726 = vmatprep.subr.mxu0 0.0
    %6727 = vmatpush2.msra.mxu0 0.0
    %6728 = vmatprep.subr.mxu0 0.0
    %6729 = vmatpush2.msra.mxu0 0.0
    %6730 = vmatprep.subr.mxu0 0.0
    %6731 = vmatpush2.msra.mxu0 0.0
    %6732 = vmatprep.subr.mxu0 0.0
    %6733 = vmatpush2.msra.mxu0 0.0
    %6734 = vmatprep.subr.mxu0 0.0
    %6735 = vmatpush2.msra.mxu0 0.0
    %6736 = vmatprep.subr.mxu0 0.0
    %6737 = vmatpush2.msra.mxu0 0.0
    %6738 = vmatprep.subr.mxu0 0.0
    %6739 = vmatpush2.msra.mxu0 0.0
    %6740 = vmatprep.subr.mxu0 0.0
    %6741 = vmatpush2.msra.mxu0 0.0
    %6742 = vmatprep.subr.mxu0 0.0
    %6743 = vmatpush2.msra.mxu0 0.0
    %6744 = vmatprep.subr.mxu0 0.0
    %6745 = vmatpush2.msra.mxu0 0.0
    %6746 = vmatprep.subr.mxu0 0.0
    %6747 = vmatpush2.msra.mxu0 0.0
    %6748 = vmatprep.mubr.f32.mxu0 0.0
    %6749 = vmatmul.mubr.f32.gmra.mxu0 %v6682
    %v6750 = vpop.f32.mrf.mxu0
    %v6751 = vadd.f32 0.0, %v6750
    %v6752 = vpop.f32.mrf.mxu0
    %6753 = vdwg.mxu0
    %v6755 = vlaneseq
    %v6756 = vshrl.u32 %v6755, 7
    %v6757 = vsub.s32 0, %v6756
    %v6758 = vrot.slane %v6677, %v6757
    %v6760 = vadd.f32 %v6758, %v6751
    %v6761 = vld [vmem:[%s3185] ss:$2 sm:$0x3f]
    %v6762 = vld [vmem:[%s3187] sm:$0xff]
    %v6763 = vld [vmem:[%s3187 + $0x8] sm:$0xff]
    %v6765 = vsel %vm2361, %v6761, 0
    %6767 = vmatprep.subr.mxu0 0.0
    %6768 = vmatpush1.msra.mxu0 0.0
    %6769 = vmatprep.subr.mxu0 0.0
    %6770 = vmatpush1.msra.mxu0 0.0
    %6771 = vmatprep.subr.mxu0 0.0
    %6772 = vmatpush1.msra.mxu0 0.0
    %6773 = vmatprep.subr.mxu0 0.0
    %6774 = vmatpush1.msra.mxu0 0.0
    %6775 = vmatprep.subr.mxu0 0.0
    %6776 = vmatpush1.msra.mxu0 0.0
    %6777 = vmatprep.subr.mxu0 0.0
    %6778 = vmatpush1.msra.mxu0 0.0
    %6779 = vmatprep.subr.mxu0 0.0
    %6780 = vmatpush1.msra.mxu0 0.0
    %6781 = vmatprep.subr.mxu0 0.0
    %6782 = vmatpush1.msra.mxu0 0.0
    %6783 = vmatprep.subr.mxu0 0.0
    %6784 = vmatpush1.msra.mxu0 0.0
    %6785 = vmatprep.subr.mxu0 0.0
    %6786 = vmatpush1.msra.mxu0 0.0
    %6787 = vmatprep.subr.mxu0 0.0
    %6788 = vmatpush1.msra.mxu0 0.0
    %6789 = vmatprep.subr.mxu0 0.0
    %6790 = vmatpush1.msra.mxu0 0.0
    %6791 = vmatprep.subr.mxu0 0.0
    %6792 = vmatpush1.msra.mxu0 0.0
    %6793 = vmatprep.subr.mxu0 0.0
    %6794 = vmatpush1.msra.mxu0 0.0
    %6795 = vmatprep.subr.mxu0 0.0
    %6796 = vmatpush1.msra.mxu0 %v6763
    %6797 = vmatprep.subr.mxu0 0.0
    %6798 = vmatpush1.msra.mxu0 %v6762
    %6799 = vmatprep.subr.mxu0 0.0
    %6800 = vmatpush2.msra.mxu0 0.0
    %6801 = vmatprep.subr.mxu0 0.0
    %6802 = vmatpush2.msra.mxu0 0.0
    %6803 = vmatprep.subr.mxu0 0.0
    %6804 = vmatpush2.msra.mxu0 0.0
    %6805 = vmatprep.subr.mxu0 0.0
    %6806 = vmatpush2.msra.mxu0 0.0
    %6807 = vmatprep.subr.mxu0 0.0
    %6808 = vmatpush2.msra.mxu0 0.0
    %6809 = vmatprep.subr.mxu0 0.0
    %6810 = vmatpush2.msra.mxu0 0.0
    %6811 = vmatprep.subr.mxu0 0.0
    %6812 = vmatpush2.msra.mxu0 0.0
    %6813 = vmatprep.subr.mxu0 0.0
    %6814 = vmatpush2.msra.mxu0 0.0
    %6815 = vmatprep.subr.mxu0 0.0
    %6816 = vmatpush2.msra.mxu0 0.0
    %6817 = vmatprep.subr.mxu0 0.0
    %6818 = vmatpush2.msra.mxu0 0.0
    %6819 = vmatprep.subr.mxu0 0.0
    %6820 = vmatpush2.msra.mxu0 0.0
    %6821 = vmatprep.subr.mxu0 0.0
    %6822 = vmatpush2.msra.mxu0 0.0
    %6823 = vmatprep.subr.mxu0 0.0
    %6824 = vmatpush2.msra.mxu0 0.0
    %6825 = vmatprep.subr.mxu0 0.0
    %6826 = vmatpush2.msra.mxu0 0.0
    %6827 = vmatprep.subr.mxu0 0.0
    %6828 = vmatpush2.msra.mxu0 0.0
    %6829 = vmatprep.subr.mxu0 0.0
    %6830 = vmatpush2.msra.mxu0 0.0
    %6831 = vmatprep.mubr.f32.mxu0 0.0
    %6832 = vmatmul.mubr.f32.gmra.mxu0 %v6765
    %v6833 = vpop.f32.mrf.mxu0
    %v6834 = vadd.f32 0.0, %v6833
    %v6835 = vpop.f32.mrf.mxu0
    %6836 = vdwg.mxu0
    %v6837 = vadd.f32 %v6760, %v6834
    %v6838 = vld [vmem:[%s3264] ss:$2 sm:$0x3f]
    %v6839 = vld [vmem:[%s3266] sm:$0xff]
    %v6840 = vld [vmem:[%s3266 + $0x8] sm:$0xff]
    %v6842 = vsel %vm2361, %v6838, 0
    %6844 = vmatprep.subr.mxu0 0.0
    %6845 = vmatpush1.msra.mxu0 0.0
    %6846 = vmatprep.subr.mxu0 0.0
    %6847 = vmatpush1.msra.mxu0 0.0
    %6848 = vmatprep.subr.mxu0 0.0
    %6849 = vmatpush1.msra.mxu0 0.0
    %6850 = vmatprep.subr.mxu0 0.0
    %6851 = vmatpush1.msra.mxu0 0.0
    %6852 = vmatprep.subr.mxu0 0.0
    %6853 = vmatpush1.msra.mxu0 0.0
    %6854 = vmatprep.subr.mxu0 0.0
    %6855 = vmatpush1.msra.mxu0 0.0
    %6856 = vmatprep.subr.mxu0 0.0
    %6857 = vmatpush1.msra.mxu0 0.0
    %6858 = vmatprep.subr.mxu0 0.0
    %6859 = vmatpush1.msra.mxu0 0.0
    %6860 = vmatprep.subr.mxu0 0.0
    %6861 = vmatpush1.msra.mxu0 0.0
    %6862 = vmatprep.subr.mxu0 0.0
    %6863 = vmatpush1.msra.mxu0 0.0
    %6864 = vmatprep.subr.mxu0 0.0
    %6865 = vmatpush1.msra.mxu0 0.0
    %6866 = vmatprep.subr.mxu0 0.0
    %6867 = vmatpush1.msra.mxu0 0.0
    %6868 = vmatprep.subr.mxu0 0.0
    %6869 = vmatpush1.msra.mxu0 0.0
    %6870 = vmatprep.subr.mxu0 0.0
    %6871 = vmatpush1.msra.mxu0 0.0
    %6872 = vmatprep.subr.mxu0 0.0
    %6873 = vmatpush1.msra.mxu0 %v6840
    %6874 = vmatprep.subr.mxu0 0.0
    %6875 = vmatpush1.msra.mxu0 %v6839
    %6876 = vmatprep.subr.mxu0 0.0
    %6877 = vmatpush2.msra.mxu0 0.0
    %6878 = vmatprep.subr.mxu0 0.0
    %6879 = vmatpush2.msra.mxu0 0.0
    %6880 = vmatprep.subr.mxu0 0.0
    %6881 = vmatpush2.msra.mxu0 0.0
    %6882 = vmatprep.subr.mxu0 0.0
    %6883 = vmatpush2.msra.mxu0 0.0
    %6884 = vmatprep.subr.mxu0 0.0
    %6885 = vmatpush2.msra.mxu0 0.0
    %6886 = vmatprep.subr.mxu0 0.0
    %6887 = vmatpush2.msra.mxu0 0.0
    %6888 = vmatprep.subr.mxu0 0.0
    %6889 = vmatpush2.msra.mxu0 0.0
    %6890 = vmatprep.subr.mxu0 0.0
    %6891 = vmatpush2.msra.mxu0 0.0
    %6892 = vmatprep.subr.mxu0 0.0
    %6893 = vmatpush2.msra.mxu0 0.0
    %6894 = vmatprep.subr.mxu0 0.0
    %6895 = vmatpush2.msra.mxu0 0.0
    %6896 = vmatprep.subr.mxu0 0.0
    %6897 = vmatpush2.msra.mxu0 0.0
    %6898 = vmatprep.subr.mxu0 0.0
    %6899 = vmatpush2.msra.mxu0 0.0
    %6900 = vmatprep.subr.mxu0 0.0
    %6901 = vmatpush2.msra.mxu0 0.0
    %6902 = vmatprep.subr.mxu0 0.0
    %6903 = vmatpush2.msra.mxu0 0.0
    %6904 = vmatprep.subr.mxu0 0.0
    %6905 = vmatpush2.msra.mxu0 0.0
    %6906 = vmatprep.subr.mxu0 0.0
    %6907 = vmatpush2.msra.mxu0 0.0
    %6908 = vmatprep.mubr.f32.mxu0 0.0
    %6909 = vmatmul.mubr.f32.gmra.mxu0 %v6842
    %v6910 = vpop.f32.mrf.mxu0
    %v6911 = vadd.f32 0.0, %v6910
    %v6912 = vpop.f32.mrf.mxu0
    %6913 = vdwg.mxu0
    %v6914 = vadd.f32 %v6837, %v6911
    %v6915 = vld [vmem:[%s3343] ss:$2 sm:$0x3f]
    %v6916 = vld [vmem:[%s3345] sm:$0xff]
    %v6917 = vld [vmem:[%s3345 + $0x8] sm:$0xff]
    %v6919 = vsel %vm2361, %v6915, 0
    %6921 = vmatprep.subr.mxu0 0.0
    %6922 = vmatpush1.msra.mxu0 0.0
    %6923 = vmatprep.subr.mxu0 0.0
    %6924 = vmatpush1.msra.mxu0 0.0
    %6925 = vmatprep.subr.mxu0 0.0
    %6926 = vmatpush1.msra.mxu0 0.0
    %6927 = vmatprep.subr.mxu0 0.0
    %6928 = vmatpush1.msra.mxu0 0.0
    %6929 = vmatprep.subr.mxu0 0.0
    %6930 = vmatpush1.msra.mxu0 0.0
    %6931 = vmatprep.subr.mxu0 0.0
    %6932 = vmatpush1.msra.mxu0 0.0
    %6933 = vmatprep.subr.mxu0 0.0
    %6934 = vmatpush1.msra.mxu0 0.0
    %6935 = vmatprep.subr.mxu0 0.0
    %6936 = vmatpush1.msra.mxu0 0.0
    %6937 = vmatprep.subr.mxu0 0.0
    %6938 = vmatpush1.msra.mxu0 0.0
    %6939 = vmatprep.subr.mxu0 0.0
    %6940 = vmatpush1.msra.mxu0 0.0
    %6941 = vmatprep.subr.mxu0 0.0
    %6942 = vmatpush1.msra.mxu0 0.0
    %6943 = vmatprep.subr.mxu0 0.0
    %6944 = vmatpush1.msra.mxu0 0.0
    %6945 = vmatprep.subr.mxu0 0.0
    %6946 = vmatpush1.msra.mxu0 0.0
    %6947 = vmatprep.subr.mxu0 0.0
    %6948 = vmatpush1.msra.mxu0 0.0
    %6949 = vmatprep.subr.mxu0 0.0
    %6950 = vmatpush1.msra.mxu0 %v6917
    %6951 = vmatprep.subr.mxu0 0.0
    %6952 = vmatpush1.msra.mxu0 %v6916
    %6953 = vmatprep.subr.mxu0 0.0
    %6954 = vmatpush2.msra.mxu0 0.0
    %6955 = vmatprep.subr.mxu0 0.0
    %6956 = vmatpush2.msra.mxu0 0.0
    %6957 = vmatprep.subr.mxu0 0.0
    %6958 = vmatpush2.msra.mxu0 0.0
    %6959 = vmatprep.subr.mxu0 0.0
    %6960 = vmatpush2.msra.mxu0 0.0
    %6961 = vmatprep.subr.mxu0 0.0
    %6962 = vmatpush2.msra.mxu0 0.0
    %6963 = vmatprep.subr.mxu0 0.0
    %6964 = vmatpush2.msra.mxu0 0.0
    %6965 = vmatprep.subr.mxu0 0.0
    %6966 = vmatpush2.msra.mxu0 0.0
    %6967 = vmatprep.subr.mxu0 0.0
    %6968 = vmatpush2.msra.mxu0 0.0
    %6969 = vmatprep.subr.mxu0 0.0
    %6970 = vmatpush2.msra.mxu0 0.0
    %6971 = vmatprep.subr.mxu0 0.0
    %6972 = vmatpush2.msra.mxu0 0.0
    %6973 = vmatprep.subr.mxu0 0.0
    %6974 = vmatpush2.msra.mxu0 0.0
    %6975 = vmatprep.subr.mxu0 0.0
    %6976 = vmatpush2.msra.mxu0 0.0
    %6977 = vmatprep.subr.mxu0 0.0
    %6978 = vmatpush2.msra.mxu0 0.0
    %6979 = vmatprep.subr.mxu0 0.0
    %6980 = vmatpush2.msra.mxu0 0.0
    %6981 = vmatprep.subr.mxu0 0.0
    %6982 = vmatpush2.msra.mxu0 0.0
    %6983 = vmatprep.subr.mxu0 0.0
    %6984 = vmatpush2.msra.mxu0 0.0
    %6985 = vmatprep.mubr.f32.mxu0 0.0
    %6986 = vmatmul.mubr.f32.gmra.mxu0 %v6919
    %v6987 = vpop.f32.mrf.mxu0
    %v6988 = vadd.f32 0.0, %v6987
    %v6989 = vpop.f32.mrf.mxu0
    %6990 = vdwg.mxu0
    %v6991 = vadd.f32 %v6914, %v6988
    %v6992 = vmax.f32 %v6991, 0.0
    %6993 = vst.msk [vmem:[#allocation5] sm:$0x3f] %vm3099, %v6992
    %v6994 = vld [vmem:[%s14] sm:$0x1]
    %v6995 = vld [vmem:[#allocation5] ss:$2 sm:$0x3]
    %v6996 = vld [vmem:[%s13] sm:$0xff]
    %v6997 = vld [vmem:[%s13 + $0x8] sm:$0xff]
    %v6999 = vsel %vm2361, %v6995, 0
    %7001 = vmatprep.subr.mxu0 0.0
    %7002 = vmatpush1.msra.mxu0 0.0
    %7003 = vmatprep.subr.mxu0 0.0
    %7004 = vmatpush1.msra.mxu0 0.0
    %7005 = vmatprep.subr.mxu0 0.0
    %7006 = vmatpush1.msra.mxu0 0.0
    %7007 = vmatprep.subr.mxu0 0.0
    %7008 = vmatpush1.msra.mxu0 0.0
    %7009 = vmatprep.subr.mxu0 0.0
    %7010 = vmatpush1.msra.mxu0 0.0
    %7011 = vmatprep.subr.mxu0 0.0
    %7012 = vmatpush1.msra.mxu0 0.0
    %7013 = vmatprep.subr.mxu0 0.0
    %7014 = vmatpush1.msra.mxu0 0.0
    %7015 = vmatprep.subr.mxu0 0.0
    %7016 = vmatpush1.msra.mxu0 0.0
    %7017 = vmatprep.subr.mxu0 0.0
    %7018 = vmatpush1.msra.mxu0 0.0
    %7019 = vmatprep.subr.mxu0 0.0
    %7020 = vmatpush1.msra.mxu0 0.0
    %7021 = vmatprep.subr.mxu0 0.0
    %7022 = vmatpush1.msra.mxu0 0.0
    %7023 = vmatprep.subr.mxu0 0.0
    %7024 = vmatpush1.msra.mxu0 0.0
    %7025 = vmatprep.subr.mxu0 0.0
    %7026 = vmatpush1.msra.mxu0 0.0
    %7027 = vmatprep.subr.mxu0 0.0
    %7028 = vmatpush1.msra.mxu0 0.0
    %7029 = vmatprep.subr.mxu0 0.0
    %7030 = vmatpush1.msra.mxu0 %v6997
    %7031 = vmatprep.subr.mxu0 0.0
    %7032 = vmatpush1.msra.mxu0 %v6996
    %7033 = vmatprep.subr.mxu0 0.0
    %7034 = vmatpush2.msra.mxu0 0.0
    %7035 = vmatprep.subr.mxu0 0.0
    %7036 = vmatpush2.msra.mxu0 0.0
    %7037 = vmatprep.subr.mxu0 0.0
    %7038 = vmatpush2.msra.mxu0 0.0
    %7039 = vmatprep.subr.mxu0 0.0
    %7040 = vmatpush2.msra.mxu0 0.0
    %7041 = vmatprep.subr.mxu0 0.0
    %7042 = vmatpush2.msra.mxu0 0.0
    %7043 = vmatprep.subr.mxu0 0.0
    %7044 = vmatpush2.msra.mxu0 0.0
    %7045 = vmatprep.subr.mxu0 0.0
    %7046 = vmatpush2.msra.mxu0 0.0
    %7047 = vmatprep.subr.mxu0 0.0
    %7048 = vmatpush2.msra.mxu0 0.0
    %7049 = vmatprep.subr.mxu0 0.0
    %7050 = vmatpush2.msra.mxu0 0.0
    %7051 = vmatprep.subr.mxu0 0.0
    %7052 = vmatpush2.msra.mxu0 0.0
    %7053 = vmatprep.subr.mxu0 0.0
    %7054 = vmatpush2.msra.mxu0 0.0
    %7055 = vmatprep.subr.mxu0 0.0
    %7056 = vmatpush2.msra.mxu0 0.0
    %7057 = vmatprep.subr.mxu0 0.0
    %7058 = vmatpush2.msra.mxu0 0.0
    %7059 = vmatprep.subr.mxu0 0.0
    %7060 = vmatpush2.msra.mxu0 0.0
    %7061 = vmatprep.subr.mxu0 0.0
    %7062 = vmatpush2.msra.mxu0 0.0
    %7063 = vmatprep.subr.mxu0 0.0
    %7064 = vmatpush2.msra.mxu0 0.0
    %7065 = vmatprep.mubr.f32.mxu0 0.0
    %7066 = vmatmul.mubr.f32.gmra.mxu0 %v6999
    %v7067 = vpop.f32.mrf.mxu0
    %v7068 = vadd.f32 0.0, %v7067
    %v7069 = vpop.f32.mrf.mxu0
    %7070 = vdwg.mxu0
    %v7072 = vlaneseq
    %v7073 = vshrl.u32 %v7072, 7
    %v7074 = vsub.s32 0, %v7073
    %v7075 = vrot.slane %v6994, %v7074
    %v7077 = vadd.f32 %v7075, %v7068
    %v7078 = vld [vmem:[%s3508] ss:$2 sm:$0x3]
    %v7079 = vld [vmem:[%s3510] sm:$0xff]
    %v7080 = vld [vmem:[%s3510 + $0x8] sm:$0xff]
    %v7082 = vsel %vm2361, %v7078, 0
    %7084 = vmatprep.subr.mxu0 0.0
    %7085 = vmatpush1.msra.mxu0 0.0
    %7086 = vmatprep.subr.mxu0 0.0
    %7087 = vmatpush1.msra.mxu0 0.0
    %7088 = vmatprep.subr.mxu0 0.0
    %7089 = vmatpush1.msra.mxu0 0.0
    %7090 = vmatprep.subr.mxu0 0.0
    %7091 = vmatpush1.msra.mxu0 0.0
    %7092 = vmatprep.subr.mxu0 0.0
    %7093 = vmatpush1.msra.mxu0 0.0
    %7094 = vmatprep.subr.mxu0 0.0
    %7095 = vmatpush1.msra.mxu0 0.0
    %7096 = vmatprep.subr.mxu0 0.0
    %7097 = vmatpush1.msra.mxu0 0.0
    %7098 = vmatprep.subr.mxu0 0.0
    %7099 = vmatpush1.msra.mxu0 0.0
    %7100 = vmatprep.subr.mxu0 0.0
    %7101 = vmatpush1.msra.mxu0 0.0
    %7102 = vmatprep.subr.mxu0 0.0
    %7103 = vmatpush1.msra.mxu0 0.0
    %7104 = vmatprep.subr.mxu0 0.0
    %7105 = vmatpush1.msra.mxu0 0.0
    %7106 = vmatprep.subr.mxu0 0.0
    %7107 = vmatpush1.msra.mxu0 0.0
    %7108 = vmatprep.subr.mxu0 0.0
    %7109 = vmatpush1.msra.mxu0 0.0
    %7110 = vmatprep.subr.mxu0 0.0
    %7111 = vmatpush1.msra.mxu0 0.0
    %7112 = vmatprep.subr.mxu0 0.0
    %7113 = vmatpush1.msra.mxu0 %v7080
    %7114 = vmatprep.subr.mxu0 0.0
    %7115 = vmatpush1.msra.mxu0 %v7079
    %7116 = vmatprep.subr.mxu0 0.0
    %7117 = vmatpush2.msra.mxu0 0.0
    %7118 = vmatprep.subr.mxu0 0.0
    %7119 = vmatpush2.msra.mxu0 0.0
    %7120 = vmatprep.subr.mxu0 0.0
    %7121 = vmatpush2.msra.mxu0 0.0
    %7122 = vmatprep.subr.mxu0 0.0
    %7123 = vmatpush2.msra.mxu0 0.0
    %7124 = vmatprep.subr.mxu0 0.0
    %7125 = vmatpush2.msra.mxu0 0.0
    %7126 = vmatprep.subr.mxu0 0.0
    %7127 = vmatpush2.msra.mxu0 0.0
    %7128 = vmatprep.subr.mxu0 0.0
    %7129 = vmatpush2.msra.mxu0 0.0
    %7130 = vmatprep.subr.mxu0 0.0
    %7131 = vmatpush2.msra.mxu0 0.0
    %7132 = vmatprep.subr.mxu0 0.0
    %7133 = vmatpush2.msra.mxu0 0.0
    %7134 = vmatprep.subr.mxu0 0.0
    %7135 = vmatpush2.msra.mxu0 0.0
    %7136 = vmatprep.subr.mxu0 0.0
    %7137 = vmatpush2.msra.mxu0 0.0
    %7138 = vmatprep.subr.mxu0 0.0
    %7139 = vmatpush2.msra.mxu0 0.0
    %7140 = vmatprep.subr.mxu0 0.0
    %7141 = vmatpush2.msra.mxu0 0.0
    %7142 = vmatprep.subr.mxu0 0.0
    %7143 = vmatpush2.msra.mxu0 0.0
    %7144 = vmatprep.subr.mxu0 0.0
    %7145 = vmatpush2.msra.mxu0 0.0
    %7146 = vmatprep.subr.mxu0 0.0
    %7147 = vmatpush2.msra.mxu0 0.0
    %7148 = vmatprep.mubr.f32.mxu0 0.0
    %7149 = vmatmul.mubr.f32.gmra.mxu0 %v7082
    %v7150 = vpop.f32.mrf.mxu0
    %v7151 = vadd.f32 0.0, %v7150
    %v7152 = vpop.f32.mrf.mxu0
    %7153 = vdwg.mxu0
    %v7154 = vadd.f32 %v7077, %v7151
    %v7155 = vld [vmem:[%s3587] ss:$2 sm:$0x3]
    %v7156 = vld [vmem:[%s3589] sm:$0xff]
    %v7157 = vld [vmem:[%s3589 + $0x8] sm:$0xff]
    %v7159 = vsel %vm2361, %v7155, 0
    %7161 = vmatprep.subr.mxu0 0.0
    %7162 = vmatpush1.msra.mxu0 0.0
    %7163 = vmatprep.subr.mxu0 0.0
    %7164 = vmatpush1.msra.mxu0 0.0
    %7165 = vmatprep.subr.mxu0 0.0
    %7166 = vmatpush1.msra.mxu0 0.0
    %7167 = vmatprep.subr.mxu0 0.0
    %7168 = vmatpush1.msra.mxu0 0.0
    %7169 = vmatprep.subr.mxu0 0.0
    %7170 = vmatpush1.msra.mxu0 0.0
    %7171 = vmatprep.subr.mxu0 0.0
    %7172 = vmatpush1.msra.mxu0 0.0
    %7173 = vmatprep.subr.mxu0 0.0
    %7174 = vmatpush1.msra.mxu0 0.0
    %7175 = vmatprep.subr.mxu0 0.0
    %7176 = vmatpush1.msra.mxu0 0.0
    %7177 = vmatprep.subr.mxu0 0.0
    %7178 = vmatpush1.msra.mxu0 0.0
    %7179 = vmatprep.subr.mxu0 0.0
    %7180 = vmatpush1.msra.mxu0 0.0
    %7181 = vmatprep.subr.mxu0 0.0
    %7182 = vmatpush1.msra.mxu0 0.0
    %7183 = vmatprep.subr.mxu0 0.0
    %7184 = vmatpush1.msra.mxu0 0.0
    %7185 = vmatprep.subr.mxu0 0.0
    %7186 = vmatpush1.msra.mxu0 0.0
    %7187 = vmatprep.subr.mxu0 0.0
    %7188 = vmatpush1.msra.mxu0 0.0
    %7189 = vmatprep.subr.mxu0 0.0
    %7190 = vmatpush1.msra.mxu0 %v7157
    %7191 = vmatprep.subr.mxu0 0.0
    %7192 = vmatpush1.msra.mxu0 %v7156
    %7193 = vmatprep.subr.mxu0 0.0
    %7194 = vmatpush2.msra.mxu0 0.0
    %7195 = vmatprep.subr.mxu0 0.0
    %7196 = vmatpush2.msra.mxu0 0.0
    %7197 = vmatprep.subr.mxu0 0.0
    %7198 = vmatpush2.msra.mxu0 0.0
    %7199 = vmatprep.subr.mxu0 0.0
    %7200 = vmatpush2.msra.mxu0 0.0
    %7201 = vmatprep.subr.mxu0 0.0
    %7202 = vmatpush2.msra.mxu0 0.0
    %7203 = vmatprep.subr.mxu0 0.0
    %7204 = vmatpush2.msra.mxu0 0.0
    %7205 = vmatprep.subr.mxu0 0.0
    %7206 = vmatpush2.msra.mxu0 0.0
    %7207 = vmatprep.subr.mxu0 0.0
    %7208 = vmatpush2.msra.mxu0 0.0
    %7209 = vmatprep.subr.mxu0 0.0
    %7210 = vmatpush2.msra.mxu0 0.0
    %7211 = vmatprep.subr.mxu0 0.0
    %7212 = vmatpush2.msra.mxu0 0.0
    %7213 = vmatprep.subr.mxu0 0.0
    %7214 = vmatpush2.msra.mxu0 0.0
    %7215 = vmatprep.subr.mxu0 0.0
    %7216 = vmatpush2.msra.mxu0 0.0
    %7217 = vmatprep.subr.mxu0 0.0
    %7218 = vmatpush2.msra.mxu0 0.0
    %7219 = vmatprep.subr.mxu0 0.0
    %7220 = vmatpush2.msra.mxu0 0.0
    %7221 = vmatprep.subr.mxu0 0.0
    %7222 = vmatpush2.msra.mxu0 0.0
    %7223 = vmatprep.subr.mxu0 0.0
    %7224 = vmatpush2.msra.mxu0 0.0
    %7225 = vmatprep.mubr.f32.mxu0 0.0
    %7226 = vmatmul.mubr.f32.gmra.mxu0 %v7159
    %v7227 = vpop.f32.mrf.mxu0
    %v7228 = vadd.f32 0.0, %v7227
    %v7229 = vpop.f32.mrf.mxu0
    %7230 = vdwg.mxu0
    %v7231 = vadd.f32 %v7154, %v7228
    %v7232 = vld [vmem:[%s3666] ss:$2 sm:$0x3]
    %v7233 = vld [vmem:[%s3668] sm:$0xff]
    %v7234 = vld [vmem:[%s3668 + $0x8] sm:$0xff]
    %v7236 = vsel %vm2361, %v7232, 0
    %7238 = vmatprep.subr.mxu0 0.0
    %7239 = vmatpush1.msra.mxu0 0.0
    %7240 = vmatprep.subr.mxu0 0.0
    %7241 = vmatpush1.msra.mxu0 0.0
    %7242 = vmatprep.subr.mxu0 0.0
    %7243 = vmatpush1.msra.mxu0 0.0
    %7244 = vmatprep.subr.mxu0 0.0
    %7245 = vmatpush1.msra.mxu0 0.0
    %7246 = vmatprep.subr.mxu0 0.0
    %7247 = vmatpush1.msra.mxu0 0.0
    %7248 = vmatprep.subr.mxu0 0.0
    %7249 = vmatpush1.msra.mxu0 0.0
    %7250 = vmatprep.subr.mxu0 0.0
    %7251 = vmatpush1.msra.mxu0 0.0
    %7252 = vmatprep.subr.mxu0 0.0
    %7253 = vmatpush1.msra.mxu0 0.0
    %7254 = vmatprep.subr.mxu0 0.0
    %7255 = vmatpush1.msra.mxu0 0.0
    %7256 = vmatprep.subr.mxu0 0.0
    %7257 = vmatpush1.msra.mxu0 0.0
    %7258 = vmatprep.subr.mxu0 0.0
    %7259 = vmatpush1.msra.mxu0 0.0
    %7260 = vmatprep.subr.mxu0 0.0
    %7261 = vmatpush1.msra.mxu0 0.0
    %7262 = vmatprep.subr.mxu0 0.0
    %7263 = vmatpush1.msra.mxu0 0.0
    %7264 = vmatprep.subr.mxu0 0.0
    %7265 = vmatpush1.msra.mxu0 0.0
    %7266 = vmatprep.subr.mxu0 0.0
    %7267 = vmatpush1.msra.mxu0 %v7234
    %7268 = vmatprep.subr.mxu0 0.0
    %7269 = vmatpush1.msra.mxu0 %v7233
    %7270 = vmatprep.subr.mxu0 0.0
    %7271 = vmatpush2.msra.mxu0 0.0
    %7272 = vmatprep.subr.mxu0 0.0
    %7273 = vmatpush2.msra.mxu0 0.0
    %7274 = vmatprep.subr.mxu0 0.0
    %7275 = vmatpush2.msra.mxu0 0.0
    %7276 = vmatprep.subr.mxu0 0.0
    %7277 = vmatpush2.msra.mxu0 0.0
    %7278 = vmatprep.subr.mxu0 0.0
    %7279 = vmatpush2.msra.mxu0 0.0
    %7280 = vmatprep.subr.mxu0 0.0
    %7281 = vmatpush2.msra.mxu0 0.0
    %7282 = vmatprep.subr.mxu0 0.0
    %7283 = vmatpush2.msra.mxu0 0.0
    %7284 = vmatprep.subr.mxu0 0.0
    %7285 = vmatpush2.msra.mxu0 0.0
    %7286 = vmatprep.subr.mxu0 0.0
    %7287 = vmatpush2.msra.mxu0 0.0
    %7288 = vmatprep.subr.mxu0 0.0
    %7289 = vmatpush2.msra.mxu0 0.0
    %7290 = vmatprep.subr.mxu0 0.0
    %7291 = vmatpush2.msra.mxu0 0.0
    %7292 = vmatprep.subr.mxu0 0.0
    %7293 = vmatpush2.msra.mxu0 0.0
    %7294 = vmatprep.subr.mxu0 0.0
    %7295 = vmatpush2.msra.mxu0 0.0
    %7296 = vmatprep.subr.mxu0 0.0
    %7297 = vmatpush2.msra.mxu0 0.0
    %7298 = vmatprep.subr.mxu0 0.0
    %7299 = vmatpush2.msra.mxu0 0.0
    %7300 = vmatprep.subr.mxu0 0.0
    %7301 = vmatpush2.msra.mxu0 0.0
    %7302 = vmatprep.mubr.f32.mxu0 0.0
    %7303 = vmatmul.mubr.f32.gmra.mxu0 %v7236
    %v7304 = vpop.f32.mrf.mxu0
    %v7305 = vadd.f32 0.0, %v7304
    %v7306 = vpop.f32.mrf.mxu0
    %7307 = vdwg.mxu0
    %v7308 = vadd.f32 %v7231, %v7305
    %v7309 = vmax.f32 %v7308, 0.0
    %v7310 = vld [vmem:[%s15] sm:$0x1]
    %v7312 = vlaneseq
    %v7313 = vshrl.u32 %v7312, 7
    %v7314 = vsub.s32 0, %v7313
    %v7315 = vrot.slane %v7310, %v7314
    %v7317 = vmul.f32 %v7309, %v7315
    %v7318 = vld [vmem:[%s16] sm:$0x1]
    %v7320 = vlaneseq
    %v7321 = vshrl.u32 %v7320, 7
    %v7322 = vsub.s32 0, %v7321
    %v7323 = vrot.slane %v7318, %v7322
    %v7325 = vadd.f32 %v7317, %v7323
    %s7326 = scalar_lea.vmem [#allocation8], 2
    %7327 = vst.msk [vmem:[%s7326] sm:$0x3] %vm3762, %v7325
    // Predicated region
    $region66: #{cnn_classifier_forward.1} parent=1 // pred_check
      _
    $region67: #{cnn_classifier_forward.1} parent=1 // pred_check_branch
      %7329 = sbr.rel (0) target = $region69
    $region68: #{cnn_classifier_forward.1} parent=1 // pred_region
      %s7331 = ssub.s32 64, 64
      %7332 = vsyncadd [#allocation9], %s7331
      %s7333 = sshll.u32 [#allocation8], 4
      %s7334 = int_to_ptr.vmem [resolvable:$true] %s7333
      %7339 = dma.vmem_to_hbm [thread:$0]  %s7334, 64, %s17, [#allocation9], 32, 32, 2
    $region69: #{cnn_classifier_forward.1} parent=1 // pred_fallthru
      _
    // Predicated region
    $region70: #{cnn_classifier_forward.1} parent=1 // pred_check
      _
    $region71: #{cnn_classifier_forward.1} parent=1 // pred_check_branch
      %7341 = sbr.rel (0) target = $region73
    $region72: #{cnn_classifier_forward.1} parent=1 // pred_region
      %7342 = dma.done [#allocation9], 64
    $region73: #{cnn_classifier_forward.1} parent=1 // pred_fallthru
      _
    %7343 = vsyncpa [#allocation9], 1

</llo_original>
